<compile_context>
chip_gen: v6e
topology: v6e:2x2x1
jax: 0.10.0
libtpu: 0.0.40
codegen_flags: <defaults>
</compile_context>

<pallas_src>
import functools

import numpy as np
import jax
import jax.numpy as jnp
from jax.experimental import pallas as pl
from jax.experimental.pallas import tpu as pltpu

NUM_AA = 20
OUT_SIZE = NUM_AA + 1          # len(AMINO_ACIDS) + 1
MAX_LEN = 35                   # model max_len; fixes all kernel shapes (no data-dependent shapes)


# ------------------------------------------------------------------ fused kernel
def fused_kernel(x_ref, wx_ref, wh_ref, bg_ref,
                 w1x_ref, w1h_ref, b1_ref, w2_ref, b2_ref,
                 toh_ref, tgt_ref, valid_ref,
                 loss_ref, acc_ref,
                 xp_scr, h_all_scr, *, Bp, H):
    """x_ref: (N, E) time-major flattened inputs, N = (max_len+1) * Bp, row = t*Bp + b.
    Computes the LSTM over all timesteps, then the hidden2out head, masked CE-sum and
    masked correct-argmax count (scalars to SMEM)."""
    N = x_ref.shape[0]
    T1 = N // Bp

    # ---- prologue: input projection for ALL timesteps in one MXU matmul (bias folded in) ----
    xp_scr[...] = (jnp.dot(x_ref[...], wx_ref[...], preferred_element_type=jnp.float32)
                   + bg_ref[...])

    wh = wh_ref[...]                         # hoist recurrent weights out of the loop

    # ---- recurrence: only the (Bp, H) @ (H, 4H) matmul + gates per step ----
    def step(t, carry):
        h, c = carry
        row = pl.multiple_of(t * Bp, 8)      # Bp is a multiple of 8 -> aligned dynamic slices
        h_all_scr[pl.ds(row, Bp), :] = h     # hidden state ENTERING step t (matches torch)
        gates = xp_scr[pl.ds(row, Bp), :] + jnp.dot(h, wh, preferred_element_type=jnp.float32)
        i_g = jax.nn.sigmoid(gates[:, 0 * H:1 * H])
        o_g = jax.nn.sigmoid(gates[:, 1 * H:2 * H])
        f_g = jax.nn.sigmoid(gates[:, 2 * H:3 * H])
        g_g = jnp.tanh(gates[:, 3 * H:4 * H])
        c_new = f_g * c + i_g * g_g
        h_new = o_g * jnp.tanh(c_new)
        return h_new, c_new

    h0 = jnp.zeros((Bp, H), jnp.float32)
    jax.lax.fori_loop(0, T1, step, (h0, h0), unroll=True)

    # ---- head: hidden2out = ReLU(x @ W1x + h @ W1h + b1) @ W2 + b2 ----
    hid = jnp.maximum(
        jnp.dot(x_ref[...], w1x_ref[...], preferred_element_type=jnp.float32)
        + jnp.dot(h_all_scr[...], w1h_ref[...], preferred_element_type=jnp.float32)
        + b1_ref[...], 0.0)
    scores = jnp.dot(hid, w2_ref[...], preferred_element_type=jnp.float32) + b2_ref[...]  # (N, 21)

    valid = valid_ref[...]                                    # (N, 1) 1.0 for real (t, seq) rows

    # cross-entropy, sum reduction over valid rows (== nn.CrossEntropyLoss(size_average=False))
    m = jnp.max(scores, axis=1, keepdims=True)
    lse = jnp.log(jnp.sum(jnp.exp(scores - m), axis=1, keepdims=True)) + m
    tgt_logit = jnp.sum(scores * toh_ref[...], axis=1, keepdims=True)
    loss_ref[0, 0] = jnp.sum(valid * (lse - tgt_logit))

    # accuracy count: first-argmax == target (torch.max tie-break = first index)
    col = jax.lax.broadcasted_iota(jnp.int32, scores.shape, 1)
    pred = jnp.min(jnp.where(scores == m, col, jnp.int32(2 ** 30)), axis=1, keepdims=True)
    correct = (pred == tgt_ref[...]).astype(jnp.float32)
    acc_ref[0, 0] = jnp.sum(valid * correct)


def run_fused(x_flat, Wx, Wh, bgate, W1x, W1h, b1, W2, b2, tgt_oh, tgt, valid, *, Bp, H):
    N, E = x_flat.shape
    G = 4 * H

    def full(shape):
        nd = len(shape)
        return pl.BlockSpec(shape, lambda i, nd=nd: (0,) * nd)

    smem_scalar = pl.BlockSpec(memory_space=pltpu.MemorySpace.SMEM)

    loss, acc = pl.pallas_call(
        functools.partial(fused_kernel, Bp=Bp, H=H),
        grid=(1,),
        out_shape=(jax.ShapeDtypeStruct((1, 1), jnp.float32),
                   jax.ShapeDtypeStruct((1, 1), jnp.float32)),
        in_specs=[full((N, E)),            # x (time-major, flattened)
                  full((E, G)),            # Wx  (fused i|o|f|g)
                  full((H, G)),            # Wh
                  full((1, G)),            # fused gate bias
                  full((E, H)),            # W1x
                  full((H, H)),            # W1h
                  full((1, H)),            # b1
                  full((H, OUT_SIZE)),     # W2
                  full((1, OUT_SIZE)),     # b2
                  full((N, OUT_SIZE)),     # target one-hot
                  full((N, 1)),            # target indices (int32)
                  full((N, 1))],           # validity mask
        out_specs=(smem_scalar, smem_scalar),
        scratch_shapes=[pltpu.VMEM((N, G), jnp.float32),      # XP = X @ Wx + b
                        pltpu.VMEM((N, H), jnp.float32)],     # hidden-state history
        compiler_params=pltpu.CompilerParams(dimension_semantics=("arbitrary",)),
    )(x_flat, Wx, Wh, bgate, W1x, W1h, b1, W2, b2, tgt_oh, tgt, valid)
    return loss[0, 0], acc[0, 0]


# ------------------------------------------------------------------ params / wrapper
def init_params(key, E, H):
    ks = jax.random.split(key, 8)

    def lin(k, fan_in, fan_out):
        bound = 1.0 / np.sqrt(fan_in)
        kw, kb = jax.random.split(k)
        W = jax.random.uniform(kw, (fan_in, fan_out), jnp.float32, -bound, bound)
        b = jax.random.uniform(kb, (1, fan_out), jnp.float32, -bound, bound)
        return W, b

    emb = jax.random.normal(ks[0], (OUT_SIZE, E), jnp.float32)
    emb = emb.at[0].set(0.0)  # padding_idx=0
    Wi, bi = lin(ks[1], E + H, H)
    Wo, bo = lin(ks[2], E + H, H)
    Wf, bf = lin(ks[3], E + H, H)
    Wg, bg = lin(ks[4], E + H, H)
    W1, b1 = lin(ks[5], E + H, H)
    W2, b2 = lin(ks[6], H, OUT_SIZE)
    return dict(embedding=emb, Wi=Wi, bi=bi, Wo=Wo, bo=bo, Wf=Wf, bf=bf,
                Wg=Wg, bg=bg, W1=W1, b1=b1, W2=W2, b2=b2)


@jax.jit
def tcr_lstm_forward(tokens, lengths, params):
    """tokens: (B, MAX_LEN) int32, values 1..20, 0 = pad; lengths: (B,) int32."""
    B, L = tokens.shape
    emb = params["embedding"]
    E = emb.shape[1]
    H = params["Wi"].shape[1]
    T1 = L + 1
    Bp = ((B + 7) // 8) * 8            # pad batch to a sublane multiple
    N = T1 * Bp

    # time-major inputs: X[0] = 0 (init_x_vecs), X[t] = embedding(tokens[:, t-1])
    x_emb = jnp.take(emb, tokens, axis=0)                                  # (B, L, E)
    X = jnp.concatenate([jnp.zeros((1, B, E), jnp.float32),
                         jnp.transpose(x_emb, (1, 0, 2))], axis=0)         # (T1, B, E)
    X = jnp.pad(X, ((0, 0), (0, Bp - B), (0, 0)))                          # (T1, Bp, E)
    x_flat = X.reshape(N, E)

    # targets / validity in the same time-major flattened order (row = t*Bp + b)
    tok_ext = jnp.pad(tokens, ((0, Bp - B), (0, 1)))                       # (Bp, T1)
    tgt = jnp.transpose(tok_ext).reshape(N).astype(jnp.int32)              # tgt[t,b] (0 at stop)
    tgt_oh = jax.nn.one_hot(tgt, OUT_SIZE, dtype=jnp.float32)              # (N, 21)
    len_pad = jnp.concatenate([lengths.astype(jnp.int32),
                               jnp.full((Bp - B,), -1, jnp.int32)])
    valid = (jnp.arange(T1)[:, None] <= len_pad[None, :]).astype(jnp.float32).reshape(N, 1)

    # fused gate weights (order i|o|f|g), with the x / h blocks split out of the concat
    Wx = jnp.concatenate([params[k][:E] for k in ("Wi", "Wo", "Wf", "Wg")], axis=1)   # (E, 4H)
    Wh = jnp.concatenate([params[k][E:] for k in ("Wi", "Wo", "Wf", "Wg")], axis=1)   # (H, 4H)
    bgate = jnp.concatenate([params[k] for k in ("bi", "bo", "bf", "bg")], axis=1)    # (1, 4H)
    W1x, W1h = params["W1"][:E], params["W1"][E:]

    loss_sum, acc_count = run_fused(x_flat, Wx, Wh, bgate, W1x, W1h,
                                    params["b1"], params["W2"], params["b2"],
                                    tgt_oh, tgt.reshape(N, 1), valid, Bp=Bp, H=H)

    n_valid = jnp.sum(lengths) + B                 # true number of target rows
    loss = loss_sum / B                            # CrossEntropyLoss(sum) / len(sequences)
    acc = acc_count / n_valid                      # mean over all target positions
    return loss, acc


# ------------------------------------------------------------------ pure numpy reference
def reference_forward(tokens, lengths, params):
    p = {k: np.asarray(v, np.float64) for k, v in params.items()}
    tokens = np.asarray(tokens)
    lengths = np.asarray(lengths)
    B = tokens.shape[0]
    T = int(lengths.max())
    E = p["embedding"].shape[1]
    H = p["Wi"].shape[1]
    sig = lambda z: 1.0 / (1.0 + np.exp(-z))

    h = np.zeros((B, H))
    c = np.zeros((B, H))
    ah_list, tgt = [], []
    for t in range(T + 1):
        x = np.zeros((B, E)) if t == 0 else p["embedding"][tokens[:, t - 1]]
        for i in range(B):
            if t <= lengths[i]:
                ah_list.append(np.concatenate([x[i], h[i]]))
                tgt.append(int(tokens[i, t]) if t < lengths[i] else 0)
        xh = np.concatenate([x, h], axis=1)
        ig = sig(xh @ p["Wi"] + p["bi"]); og = sig(xh @ p["Wo"] + p["bo"])
        fg = sig(xh @ p["Wf"] + p["bf"]); gg = np.tanh(xh @ p["Wg"] + p["bg"])
        c = fg * c + ig * gg
        h = og * np.tanh(c)

    AHV = np.stack(ah_list)
    tgt = np.asarray(tgt)
    hid = np.maximum(AHV @ p["W1"] + p["b1"], 0.0)
    scores = hid @ p["W2"] + p["b2"]
    m = scores.max(1, keepdims=True)
    lse = np.log(np.exp(scores - m).sum(1)) + m[:, 0]
    loss = (lse - scores[np.arange(len(tgt)), tgt]).sum() / B
    acc = float((scores.argmax(1) == tgt).mean())
    return loss, acc


if __name__ == "__main__":
    key = jax.random.PRNGKey(0)
    B, E, H = 4, 16, 32                              # embed_size=16, hidden_size=32
    lengths = jnp.array([8, 10, 12, 9], jnp.int32)   # min_len=8 <= len <= max_len=35

    kt, kp = jax.random.split(key)
    tokens = jax.random.randint(kt, (B, MAX_LEN), 1, NUM_AA + 1, dtype=jnp.int32)
    pos = jnp.arange(MAX_LEN)[None, :]
    tokens = jnp.where(pos < lengths[:, None], tokens, 0).astype(jnp.int32)  # pad/stop = 0

    params = init_params(kp, E, H)

    loss, acc = tcr_lstm_forward(tokens, lengths, params)
    loss, acc = jax.block_until_ready((loss, acc))

    rloss, racc = reference_forward(np.asarray(tokens), np.asarray(lengths), params)
    assert np.allclose(float(loss), float(rloss), rtol=1e-2, atol=1e-2), (float(loss), float(rloss))
    assert abs(float(acc) - racc) < 1e-5, (float(acc), racc)

    print("KERNEL_OK")
</pallas_src>

<mosaic_0001>
module attributes {stable_mosaic.version = 11 : i64} {
  func.func @fused_kernel(%arg0: i32, %arg1: memref<288x16xf32, #tpu.memory_space<vmem>>, %arg2: memref<16x128xf32, #tpu.memory_space<vmem>>, %arg3: memref<32x128xf32, #tpu.memory_space<vmem>>, %arg4: memref<1x128xf32, #tpu.memory_space<vmem>>, %arg5: memref<16x32xf32, #tpu.memory_space<vmem>>, %arg6: memref<32x32xf32, #tpu.memory_space<vmem>>, %arg7: memref<1x32xf32, #tpu.memory_space<vmem>>, %arg8: memref<32x21xf32, #tpu.memory_space<vmem>>, %arg9: memref<1x21xf32, #tpu.memory_space<vmem>>, %arg10: memref<288x21xf32, #tpu.memory_space<vmem>>, %arg11: memref<288x1xi32, #tpu.memory_space<vmem>>, %arg12: memref<288x1xf32, #tpu.memory_space<vmem>>, %arg13: memref<1x1xf32, #tpu.memory_space<smem>>, %arg14: memref<1x1xf32, #tpu.memory_space<smem>>, %arg15: memref<288x128xf32, #tpu.memory_space<vmem>>, %arg16: memref<288x32xf32, #tpu.memory_space<vmem>>) attributes {dimension_semantics = [#tpu.dimension_semantics<arbitrary>], iteration_bounds = array<i64: 1>, scalar_prefetch = 0 : i64, scratch_operands = 2 : i64, tpu.core_type = #tpu.core_type<tc>, window_params = [{pipeline_mode = #tpu.pipeline_mode<synchronous>, transform_indices = @transform_0, window_bounds = array<i64: 288, 16>}, {pipeline_mode = #tpu.pipeline_mode<synchronous>, transform_indices = @transform_1, window_bounds = array<i64: 16, 128>}, {pipeline_mode = #tpu.pipeline_mode<synchronous>, transform_indices = @transform_2, window_bounds = array<i64: 32, 128>}, {pipeline_mode = #tpu.pipeline_mode<synchronous>, transform_indices = @transform_3, window_bounds = array<i64: 1, 128>}, {pipeline_mode = #tpu.pipeline_mode<synchronous>, transform_indices = @transform_4, window_bounds = array<i64: 16, 32>}, {pipeline_mode = #tpu.pipeline_mode<synchronous>, transform_indices = @transform_5, window_bounds = array<i64: 32, 32>}, {pipeline_mode = #tpu.pipeline_mode<synchronous>, transform_indices = @transform_6, window_bounds = array<i64: 1, 32>}, {pipeline_mode = #tpu.pipeline_mode<synchronous>, transform_indices = @transform_7, window_bounds = array<i64: 32, 21>}, {pipeline_mode = #tpu.pipeline_mode<synchronous>, transform_indices = @transform_8, window_bounds = array<i64: 1, 21>}, {pipeline_mode = #tpu.pipeline_mode<synchronous>, transform_indices = @transform_9, window_bounds = array<i64: 288, 21>}, {pipeline_mode = #tpu.pipeline_mode<synchronous>, transform_indices = @transform_10, window_bounds = array<i64: 288, 1>}, {pipeline_mode = #tpu.pipeline_mode<synchronous>, transform_indices = @transform_11, window_bounds = array<i64: 288, 1>}, {transform_indices = @transform_12, window_bounds = array<i64: 1, 1>}, {transform_indices = @transform_13, window_bounds = array<i64: 1, 1>}]} {
    %c0 = arith.constant 0 : index
    %c0_0 = arith.constant 0 : index
    %0 = vector.load %arg1[%c0, %c0_0] : memref<288x16xf32, #tpu.memory_space<vmem>>, vector<288x16xf32>
    %c0_1 = arith.constant 0 : index
    %c0_2 = arith.constant 0 : index
    %1 = vector.load %arg2[%c0_1, %c0_2] : memref<16x128xf32, #tpu.memory_space<vmem>>, vector<16x128xf32>
    %cst = arith.constant dense<0.000000e+00> : vector<288x128xf32>
    %2 = tpu.matmul %0, %1, %cst {dimension_numbers = #tpu.dot_dimension_numbers<[1], [0], [0], [1], [0, 0, 1, 1], [], []>} : vector<288x16xf32>, vector<16x128xf32>, vector<288x128xf32> -> vector<288x128xf32>
    %c0_3 = arith.constant 0 : index
    %c0_4 = arith.constant 0 : index
    %3 = vector.load %arg4[%c0_3, %c0_4] : memref<1x128xf32, #tpu.memory_space<vmem>>, vector<1x128xf32>
    %4 = vector.broadcast %3 : vector<1x128xf32> to vector<288x128xf32>
    %5 = arith.addf %2, %4 : vector<288x128xf32>
    %c0_5 = arith.constant 0 : index
    %c0_6 = arith.constant 0 : index
    %6 = vector.load %arg15[%c0_5, %c0_6] : memref<288x128xf32, #tpu.memory_space<vmem>>, vector<288x128xf32>
    tpu.vector_store %arg15[%c0_5, %c0_6], %5 {strides = array<i32>} : memref<288x128xf32, #tpu.memory_space<vmem>>, vector<288x128xf32>,
    %c0_7 = arith.constant 0 : index
    %c0_8 = arith.constant 0 : index
    %7 = vector.load %arg3[%c0_7, %c0_8] : memref<32x128xf32, #tpu.memory_space<vmem>>, vector<32x128xf32>
    %cst_9 = arith.constant 0.000000e+00 : f32
    %8 = vector.broadcast %cst_9 : f32 to vector<8x32xf32>
    %c0_i32 = arith.constant 0 : i32
    %c8_i32 = arith.constant 8 : i32
    %9 = arith.muli %c0_i32, %c8_i32 : i32
    %10 = tpu.assume_multiple %9, 8 : i32
    %11 = arith.index_cast %10 : i32 to index
    %c0_10 = arith.constant 0 : index
    %12 = vector.load %arg16[%11, %c0_10] : memref<288x32xf32, #tpu.memory_space<vmem>>, vector<8x32xf32>
    tpu.vector_store %arg16[%11, %c0_10], %8 {strides = array<i32>} : memref<288x32xf32, #tpu.memory_space<vmem>>, vector<8x32xf32>,
    %13 = arith.index_cast %10 : i32 to index
    %c0_11 = arith.constant 0 : index
    %14 = vector.load %arg15[%13, %c0_11] : memref<288x128xf32, #tpu.memory_space<vmem>>, vector<8x128xf32>
    %cst_12 = arith.constant dense<0.000000e+00> : vector<8x128xf32>
    %15 = tpu.matmul %8, %7, %cst_12 {dimension_numbers = #tpu.dot_dimension_numbers<[1], [0], [0], [1], [0, 0, 1, 1], [], []>} : vector<8x32xf32>, vector<32x128xf32>, vector<8x128xf32> -> vector<8x128xf32>
    %16 = arith.addf %14, %15 : vector<8x128xf32>
    %17 = vector.extract_strided_slice %16 {offsets = [0, 0], sizes = [8, 32], strides = [1, 1]} : vector<8x128xf32> to vector<8x32xf32>
    %18 = arith.negf %17 : vector<8x32xf32>
    %19 = math.exp %18 : vector<8x32xf32>
    %cst_13 = arith.constant 1.000000e+00 : f32
    %20 = vector.broadcast %cst_13 : f32 to vector<8x32xf32>
    %21 = arith.addf %20, %19 : vector<8x32xf32>
    %22 = arith.divf %20, %21 : vector<8x32xf32>
    %23 = vector.extract_strided_slice %16 {offsets = [0, 32], sizes = [8, 32], strides = [1, 1]} : vector<8x128xf32> to vector<8x32xf32>
    %24 = arith.negf %23 : vector<8x32xf32>
    %25 = math.exp %24 : vector<8x32xf32>
    %cst_14 = arith.constant 1.000000e+00 : f32
    %26 = vector.broadcast %cst_14 : f32 to vector<8x32xf32>
    %27 = arith.addf %26, %25 : vector<8x32xf32>
    %28 = arith.divf %26, %27 : vector<8x32xf32>
    %29 = vector.extract_strided_slice %16 {offsets = [0, 64], sizes = [8, 32], strides = [1, 1]} : vector<8x128xf32> to vector<8x32xf32>
    %30 = arith.negf %29 : vector<8x32xf32>
    %31 = math.exp %30 : vector<8x32xf32>
    %cst_15 = arith.constant 1.000000e+00 : f32
    %32 = vector.broadcast %cst_15 : f32 to vector<8x32xf32>
    %33 = arith.addf %32, %31 : vector<8x32xf32>
    %34 = arith.divf %32, %33 : vector<8x32xf32>
    %35 = vector.extract_strided_slice %16 {offsets = [0, 96], sizes = [8, 32], strides = [1, 1]} : vector<8x128xf32> to vector<8x32xf32>
    %36 = math.tanh %35 : vector<8x32xf32>
    %37 = arith.mulf %34, %8 : vector<8x32xf32>
    %38 = arith.mulf %22, %36 : vector<8x32xf32>
    %39 = arith.addf %37, %38 : vector<8x32xf32>
    %40 = math.tanh %39 : vector<8x32xf32>
    %41 = arith.mulf %28, %40 : vector<8x32xf32>
    %c1_i32 = arith.constant 1 : i32
    %c8_i32_16 = arith.constant 8 : i32
    %42 = arith.muli %c1_i32, %c8_i32_16 : i32
    %43 = tpu.assume_multiple %42, 8 : i32
    %44 = arith.index_cast %43 : i32 to index
    %c0_17 = arith.constant 0 : index
    %45 = vector.load %arg16[%44, %c0_17] : memref<288x32xf32, #tpu.memory_space<vmem>>, vector<8x32xf32>
    tpu.vector_store %arg16[%44, %c0_17], %41 {strides = array<i32>} : memref<288x32xf32, #tpu.memory_space<vmem>>, vector<8x32xf32>,
    %46 = arith.index_cast %43 : i32 to index
    %c0_18 = arith.constant 0 : index
    %47 = vector.load %arg15[%46, %c0_18] : memref<288x128xf32, #tpu.memory_space<vmem>>, vector<8x128xf32>
    %cst_19 = arith.constant dense<0.000000e+00> : vector<8x128xf32>
    %48 = tpu.matmul %41, %7, %cst_19 {dimension_numbers = #tpu.dot_dimension_numbers<[1], [0], [0], [1], [0, 0, 1, 1], [], []>} : vector<8x32xf32>, vector<32x128xf32>, vector<8x128xf32> -> vector<8x128xf32>
    %49 = arith.addf %47, %48 : vector<8x128xf32>
    %50 = vector.extract_strided_slice %49 {offsets = [0, 0], sizes = [8, 32], strides = [1, 1]} : vector<8x128xf32> to vector<8x32xf32>
    %51 = arith.negf %50 : vector<8x32xf32>
    %52 = math.exp %51 : vector<8x32xf32>
    %cst_20 = arith.constant 1.000000e+00 : f32
    %53 = vector.broadcast %cst_20 : f32 to vector<8x32xf32>
    %54 = arith.addf %53, %52 : vector<8x32xf32>
    %55 = arith.divf %53, %54 : vector<8x32xf32>
    %56 = vector.extract_strided_slice %49 {offsets = [0, 32], sizes = [8, 32], strides = [1, 1]} : vector<8x128xf32> to vector<8x32xf32>
    %57 = arith.negf %56 : vector<8x32xf32>
    %58 = math.exp %57 : vector<8x32xf32>
    %cst_21 = arith.constant 1.000000e+00 : f32
    %59 = vector.broadcast %cst_21 : f32 to vector<8x32xf32>
    %60 = arith.addf %59, %58 : vector<8x32xf32>
    %61 = arith.divf %59, %60 : vector<8x32xf32>
    %62 = vector.extract_strided_slice %49 {offsets = [0, 64], sizes = [8, 32], strides = [1, 1]} : vector<8x128xf32> to vector<8x32xf32>
    %63 = arith.negf %62 : vector<8x32xf32>
    %64 = math.exp %63 : vector<8x32xf32>
    %cst_22 = arith.constant 1.000000e+00 : f32
    %65 = vector.broadcast %cst_22 : f32 to vector<8x32xf32>
    %66 = arith.addf %65, %64 : vector<8x32xf32>
    %67 = arith.divf %65, %66 : vector<8x32xf32>
    %68 = vector.extract_strided_slice %49 {offsets = [0, 96], sizes = [8, 32], strides = [1, 1]} : vector<8x128xf32> to vector<8x32xf32>
    %69 = math.tanh %68 : vector<8x32xf32>
    %70 = arith.mulf %67, %39 : vector<8x32xf32>
    %71 = arith.mulf %55, %69 : vector<8x32xf32>
    %72 = arith.addf %70, %71 : vector<8x32xf32>
    %73 = math.tanh %72 : vector<8x32xf32>
    %74 = arith.mulf %61, %73 : vector<8x32xf32>
    %c2_i32 = arith.constant 2 : i32
    %c8_i32_23 = arith.constant 8 : i32
    %75 = arith.muli %c2_i32, %c8_i32_23 : i32
    %76 = tpu.assume_multiple %75, 8 : i32
    %77 = arith.index_cast %76 : i32 to index
    %c0_24 = arith.constant 0 : index
    %78 = vector.load %arg16[%77, %c0_24] : memref<288x32xf32, #tpu.memory_space<vmem>>, vector<8x32xf32>
    tpu.vector_store %arg16[%77, %c0_24], %74 {strides = array<i32>} : memref<288x32xf32, #tpu.memory_space<vmem>>, vector<8x32xf32>,
    %79 = arith.index_cast %76 : i32 to index
    %c0_25 = arith.constant 0 : index
    %80 = vector.load %arg15[%79, %c0_25] : memref<288x128xf32, #tpu.memory_space<vmem>>, vector<8x128xf32>
    %cst_26 = arith.constant dense<0.000000e+00> : vector<8x128xf32>
    %81 = tpu.matmul %74, %7, %cst_26 {dimension_numbers = #tpu.dot_dimension_numbers<[1], [0], [0], [1], [0, 0, 1, 1], [], []>} : vector<8x32xf32>, vector<32x128xf32>, vector<8x128xf32> -> vector<8x128xf32>
    %82 = arith.addf %80, %81 : vector<8x128xf32>
    %83 = vector.extract_strided_slice %82 {offsets = [0, 0], sizes = [8, 32], strides = [1, 1]} : vector<8x128xf32> to vector<8x32xf32>
    %84 = arith.negf %83 : vector<8x32xf32>
    %85 = math.exp %84 : vector<8x32xf32>
    %cst_27 = arith.constant 1.000000e+00 : f32
    %86 = vector.broadcast %cst_27 : f32 to vector<8x32xf32>
    %87 = arith.addf %86, %85 : vector<8x32xf32>
    %88 = arith.divf %86, %87 : vector<8x32xf32>
    %89 = vector.extract_strided_slice %82 {offsets = [0, 32], sizes = [8, 32], strides = [1, 1]} : vector<8x128xf32> to vector<8x32xf32>
    %90 = arith.negf %89 : vector<8x32xf32>
    %91 = math.exp %90 : vector<8x32xf32>
    %cst_28 = arith.constant 1.000000e+00 : f32
    %92 = vector.broadcast %cst_28 : f32 to vector<8x32xf32>
    %93 = arith.addf %92, %91 : vector<8x32xf32>
    %94 = arith.divf %92, %93 : vector<8x32xf32>
    %95 = vector.extract_strided_slice %82 {offsets = [0, 64], sizes = [8, 32], strides = [1, 1]} : vector<8x128xf32> to vector<8x32xf32>
    %96 = arith.negf %95 : vector<8x32xf32>
    %97 = math.exp %96 : vector<8x32xf32>
    %cst_29 = arith.constant 1.000000e+00 : f32
    %98 = vector.broadcast %cst_29 : f32 to vector<8x32xf32>
    %99 = arith.addf %98, %97 : vector<8x32xf32>
    %100 = arith.divf %98, %99 : vector<8x32xf32>
    %101 = vector.extract_strided_slice %82 {offsets = [0, 96], sizes = [8, 32], strides = [1, 1]} : vector<8x128xf32> to vector<8x32xf32>
    %102 = math.tanh %101 : vector<8x32xf32>
    %103 = arith.mulf %100, %72 : vector<8x32xf32>
    %104 = arith.mulf %88, %102 : vector<8x32xf32>
    %105 = arith.addf %103, %104 : vector<8x32xf32>
    %106 = math.tanh %105 : vector<8x32xf32>
    %107 = arith.mulf %94, %106 : vector<8x32xf32>
    %c3_i32 = arith.constant 3 : i32
    %c8_i32_30 = arith.constant 8 : i32
    %108 = arith.muli %c3_i32, %c8_i32_30 : i32
    %109 = tpu.assume_multiple %108, 8 : i32
    %110 = arith.index_cast %109 : i32 to index
    %c0_31 = arith.constant 0 : index
    %111 = vector.load %arg16[%110, %c0_31] : memref<288x32xf32, #tpu.memory_space<vmem>>, vector<8x32xf32>
    tpu.vector_store %arg16[%110, %c0_31], %107 {strides = array<i32>} : memref<288x32xf32, #tpu.memory_space<vmem>>, vector<8x32xf32>,
    %112 = arith.index_cast %109 : i32 to index
    %c0_32 = arith.constant 0 : index
    %113 = vector.load %arg15[%112, %c0_32] : memref<288x128xf32, #tpu.memory_space<vmem>>, vector<8x128xf32>
    %cst_33 = arith.constant dense<0.000000e+00> : vector<8x128xf32>
    %114 = tpu.matmul %107, %7, %cst_33 {dimension_numbers = #tpu.dot_dimension_numbers<[1], [0], [0], [1], [0, 0, 1, 1], [], []>} : vector<8x32xf32>, vector<32x128xf32>, vector<8x128xf32> -> vector<8x128xf32>
    %115 = arith.addf %113, %114 : vector<8x128xf32>
    %116 = vector.extract_strided_slice %115 {offsets = [0, 0], sizes = [8, 32], strides = [1, 1]} : vector<8x128xf32> to vector<8x32xf32>
    %117 = arith.negf %116 : vector<8x32xf32>
    %118 = math.exp %117 : vector<8x32xf32>
    %cst_34 = arith.constant 1.000000e+00 : f32
    %119 = vector.broadcast %cst_34 : f32 to vector<8x32xf32>
    %120 = arith.addf %119, %118 : vector<8x32xf32>
    %121 = arith.divf %119, %120 : vector<8x32xf32>
    %122 = vector.extract_strided_slice %115 {offsets = [0, 32], sizes = [8, 32], strides = [1, 1]} : vector<8x128xf32> to vector<8x32xf32>
    %123 = arith.negf %122 : vector<8x32xf32>
    %124 = math.exp %123 : vector<8x32xf32>
    %cst_35 = arith.constant 1.000000e+00 : f32
    %125 = vector.broadcast %cst_35 : f32 to vector<8x32xf32>
    %126 = arith.addf %125, %124 : vector<8x32xf32>
    %127 = arith.divf %125, %126 : vector<8x32xf32>
    %128 = vector.extract_strided_slice %115 {offsets = [0, 64], sizes = [8, 32], strides = [1, 1]} : vector<8x128xf32> to vector<8x32xf32>
    %129 = arith.negf %128 : vector<8x32xf32>
    %130 = math.exp %129 : vector<8x32xf32>
    %cst_36 = arith.constant 1.000000e+00 : f32
    %131 = vector.broadcast %cst_36 : f32 to vector<8x32xf32>
    %132 = arith.addf %131, %130 : vector<8x32xf32>
    %133 = arith.divf %131, %132 : vector<8x32xf32>
    %134 = vector.extract_strided_slice %115 {offsets = [0, 96], sizes = [8, 32], strides = [1, 1]} : vector<8x128xf32> to vector<8x32xf32>
    %135 = math.tanh %134 : vector<8x32xf32>
    %136 = arith.mulf %133, %105 : vector<8x32xf32>
    %137 = arith.mulf %121, %135 : vector<8x32xf32>
    %138 = arith.addf %136, %137 : vector<8x32xf32>
    %139 = math.tanh %138 : vector<8x32xf32>
    %140 = arith.mulf %127, %139 : vector<8x32xf32>
    %c4_i32 = arith.constant 4 : i32
    %c8_i32_37 = arith.constant 8 : i32
    %141 = arith.muli %c4_i32, %c8_i32_37 : i32
    %142 = tpu.assume_multiple %141, 8 : i32
    %143 = arith.index_cast %142 : i32 to index
    %c0_38 = arith.constant 0 : index
    %144 = vector.load %arg16[%143, %c0_38] : memref<288x32xf32, #tpu.memory_space<vmem>>, vector<8x32xf32>
    tpu.vector_store %arg16[%143, %c0_38], %140 {strides = array<i32>} : memref<288x32xf32, #tpu.memory_space<vmem>>, vector<8x32xf32>,
    %145 = arith.index_cast %142 : i32 to index
    %c0_39 = arith.constant 0 : index
    %146 = vector.load %arg15[%145, %c0_39] : memref<288x128xf32, #tpu.memory_space<vmem>>, vector<8x128xf32>
    %cst_40 = arith.constant dense<0.000000e+00> : vector<8x128xf32>
    %147 = tpu.matmul %140, %7, %cst_40 {dimension_numbers = #tpu.dot_dimension_numbers<[1], [0], [0], [1], [0, 0, 1, 1], [], []>} : vector<8x32xf32>, vector<32x128xf32>, vector<8x128xf32> -> vector<8x128xf32>
    %148 = arith.addf %146, %147 : vector<8x128xf32>
    %149 = vector.extract_strided_slice %148 {offsets = [0, 0], sizes = [8, 32], strides = [1, 1]} : vector<8x128xf32> to vector<8x32xf32>
    %150 = arith.negf %149 : vector<8x32xf32>
    %151 = math.exp %150 : vector<8x32xf32>
    %cst_41 = arith.constant 1.000000e+00 : f32
    %152 = vector.broadcast %cst_41 : f32 to vector<8x32xf32>
    %153 = arith.addf %152, %151 : vector<8x32xf32>
    %154 = arith.divf %152, %153 : vector<8x32xf32>
    %155 = vector.extract_strided_slice %148 {offsets = [0, 32], sizes = [8, 32], strides = [1, 1]} : vector<8x128xf32> to vector<8x32xf32>
    %156 = arith.negf %155 : vector<8x32xf32>
    %157 = math.exp %156 : vector<8x32xf32>
    %cst_42 = arith.constant 1.000000e+00 : f32
    %158 = vector.broadcast %cst_42 : f32 to vector<8x32xf32>
    %159 = arith.addf %158, %157 : vector<8x32xf32>
    %160 = arith.divf %158, %159 : vector<8x32xf32>
    %161 = vector.extract_strided_slice %148 {offsets = [0, 64], sizes = [8, 32], strides = [1, 1]} : vector<8x128xf32> to vector<8x32xf32>
    %162 = arith.negf %161 : vector<8x32xf32>
    %163 = math.exp %162 : vector<8x32xf32>
    %cst_43 = arith.constant 1.000000e+00 : f32
    %164 = vector.broadcast %cst_43 : f32 to vector<8x32xf32>
    %165 = arith.addf %164, %163 : vector<8x32xf32>
    %166 = arith.divf %164, %165 : vector<8x32xf32>
    %167 = vector.extract_strided_slice %148 {offsets = [0, 96], sizes = [8, 32], strides = [1, 1]} : vector<8x128xf32> to vector<8x32xf32>
    %168 = math.tanh %167 : vector<8x32xf32>
    %169 = arith.mulf %166, %138 : vector<8x32xf32>
    %170 = arith.mulf %154, %168 : vector<8x32xf32>
    %171 = arith.addf %169, %170 : vector<8x32xf32>
    %172 = math.tanh %171 : vector<8x32xf32>
    %173 = arith.mulf %160, %172 : vector<8x32xf32>
    %c5_i32 = arith.constant 5 : i32
    %c8_i32_44 = arith.constant 8 : i32
    %174 = arith.muli %c5_i32, %c8_i32_44 : i32
    %175 = tpu.assume_multiple %174, 8 : i32
    %176 = arith.index_cast %175 : i32 to index
    %c0_45 = arith.constant 0 : index
    %177 = vector.load %arg16[%176, %c0_45] : memref<288x32xf32, #tpu.memory_space<vmem>>, vector<8x32xf32>
    tpu.vector_store %arg16[%176, %c0_45], %173 {strides = array<i32>} : memref<288x32xf32, #tpu.memory_space<vmem>>, vector<8x32xf32>,
    %178 = arith.index_cast %175 : i32 to index
    %c0_46 = arith.constant 0 : index
    %179 = vector.load %arg15[%178, %c0_46] : memref<288x128xf32, #tpu.memory_space<vmem>>, vector<8x128xf32>
    %cst_47 = arith.constant dense<0.000000e+00> : vector<8x128xf32>
    %180 = tpu.matmul %173, %7, %cst_47 {dimension_numbers = #tpu.dot_dimension_numbers<[1], [0], [0], [1], [0, 0, 1, 1], [], []>} : vector<8x32xf32>, vector<32x128xf32>, vector<8x128xf32> -> vector<8x128xf32>
    %181 = arith.addf %179, %180 : vector<8x128xf32>
    %182 = vector.extract_strided_slice %181 {offsets = [0, 0], sizes = [8, 32], strides = [1, 1]} : vector<8x128xf32> to vector<8x32xf32>
    %183 = arith.negf %182 : vector<8x32xf32>
    %184 = math.exp %183 : vector<8x32xf32>
    %cst_48 = arith.constant 1.000000e+00 : f32
    %185 = vector.broadcast %cst_48 : f32 to vector<8x32xf32>
    %186 = arith.addf %185, %184 : vector<8x32xf32>
    %187 = arith.divf %185, %186 : vector<8x32xf32>
    %188 = vector.extract_strided_slice %181 {offsets = [0, 32], sizes = [8, 32], strides = [1, 1]} : vector<8x128xf32> to vector<8x32xf32>
    %189 = arith.negf %188 : vector<8x32xf32>
    %190 = math.exp %189 : vector<8x32xf32>
    %cst_49 = arith.constant 1.000000e+00 : f32
    %191 = vector.broadcast %cst_49 : f32 to vector<8x32xf32>
    %192 = arith.addf %191, %190 : vector<8x32xf32>
    %193 = arith.divf %191, %192 : vector<8x32xf32>
    %194 = vector.extract_strided_slice %181 {offsets = [0, 64], sizes = [8, 32], strides = [1, 1]} : vector<8x128xf32> to vector<8x32xf32>
    %195 = arith.negf %194 : vector<8x32xf32>
    %196 = math.exp %195 : vector<8x32xf32>
    %cst_50 = arith.constant 1.000000e+00 : f32
    %197 = vector.broadcast %cst_50 : f32 to vector<8x32xf32>
    %198 = arith.addf %197, %196 : vector<8x32xf32>
    %199 = arith.divf %197, %198 : vector<8x32xf32>
    %200 = vector.extract_strided_slice %181 {offsets = [0, 96], sizes = [8, 32], strides = [1, 1]} : vector<8x128xf32> to vector<8x32xf32>
    %201 = math.tanh %200 : vector<8x32xf32>
    %202 = arith.mulf %199, %171 : vector<8x32xf32>
    %203 = arith.mulf %187, %201 : vector<8x32xf32>
    %204 = arith.addf %202, %203 : vector<8x32xf32>
    %205 = math.tanh %204 : vector<8x32xf32>
    %206 = arith.mulf %193, %205 : vector<8x32xf32>
    %c6_i32 = arith.constant 6 : i32
    %c8_i32_51 = arith.constant 8 : i32
    %207 = arith.muli %c6_i32, %c8_i32_51 : i32
    %208 = tpu.assume_multiple %207, 8 : i32
    %209 = arith.index_cast %208 : i32 to index
    %c0_52 = arith.constant 0 : index
    %210 = vector.load %arg16[%209, %c0_52] : memref<288x32xf32, #tpu.memory_space<vmem>>, vector<8x32xf32>
    tpu.vector_store %arg16[%209, %c0_52], %206 {strides = array<i32>} : memref<288x32xf32, #tpu.memory_space<vmem>>, vector<8x32xf32>,
    %211 = arith.index_cast %208 : i32 to index
    %c0_53 = arith.constant 0 : index
    %212 = vector.load %arg15[%211, %c0_53] : memref<288x128xf32, #tpu.memory_space<vmem>>, vector<8x128xf32>
    %cst_54 = arith.constant dense<0.000000e+00> : vector<8x128xf32>
    %213 = tpu.matmul %206, %7, %cst_54 {dimension_numbers = #tpu.dot_dimension_numbers<[1], [0], [0], [1], [0, 0, 1, 1], [], []>} : vector<8x32xf32>, vector<32x128xf32>, vector<8x128xf32> -> vector<8x128xf32>
    %214 = arith.addf %212, %213 : vector<8x128xf32>
    %215 = vector.extract_strided_slice %214 {offsets = [0, 0], sizes = [8, 32], strides = [1, 1]} : vector<8x128xf32> to vector<8x32xf32>
    %216 = arith.negf %215 : vector<8x32xf32>
    %217 = math.exp %216 : vector<8x32xf32>
    %cst_55 = arith.constant 1.000000e+00 : f32
    %218 = vector.broadcast %cst_55 : f32 to vector<8x32xf32>
    %219 = arith.addf %218, %217 : vector<8x32xf32>
    %220 = arith.divf %218, %219 : vector<8x32xf32>
    %221 = vector.extract_strided_slice %214 {offsets = [0, 32], sizes = [8, 32], strides = [1, 1]} : vector<8x128xf32> to vector<8x32xf32>
    %222 = arith.negf %221 : vector<8x32xf32>
    %223 = math.exp %222 : vector<8x32xf32>
    %cst_56 = arith.constant 1.000000e+00 : f32
    %224 = vector.broadcast %cst_56 : f32 to vector<8x32xf32>
    %225 = arith.addf %224, %223 : vector<8x32xf32>
    %226 = arith.divf %224, %225 : vector<8x32xf32>
    %227 = vector.extract_strided_slice %214 {offsets = [0, 64], sizes = [8, 32], strides = [1, 1]} : vector<8x128xf32> to vector<8x32xf32>
    %228 = arith.negf %227 : vector<8x32xf32>
    %229 = math.exp %228 : vector<8x32xf32>
    %cst_57 = arith.constant 1.000000e+00 : f32
    %230 = vector.broadcast %cst_57 : f32 to vector<8x32xf32>
    %231 = arith.addf %230, %229 : vector<8x32xf32>
    %232 = arith.divf %230, %231 : vector<8x32xf32>
    %233 = vector.extract_strided_slice %214 {offsets = [0, 96], sizes = [8, 32], strides = [1, 1]} : vector<8x128xf32> to vector<8x32xf32>
    %234 = math.tanh %233 : vector<8x32xf32>
    %235 = arith.mulf %232, %204 : vector<8x32xf32>
    %236 = arith.mulf %220, %234 : vector<8x32xf32>
    %237 = arith.addf %235, %236 : vector<8x32xf32>
    %238 = math.tanh %237 : vector<8x32xf32>
    %239 = arith.mulf %226, %238 : vector<8x32xf32>
    %c7_i32 = arith.constant 7 : i32
    %c8_i32_58 = arith.constant 8 : i32
    %240 = arith.muli %c7_i32, %c8_i32_58 : i32
    %241 = tpu.assume_multiple %240, 8 : i32
    %242 = arith.index_cast %241 : i32 to index
    %c0_59 = arith.constant 0 : index
    %243 = vector.load %arg16[%242, %c0_59] : memref<288x32xf32, #tpu.memory_space<vmem>>, vector<8x32xf32>
    tpu.vector_store %arg16[%242, %c0_59], %239 {strides = array<i32>} : memref<288x32xf32, #tpu.memory_space<vmem>>, vector<8x32xf32>,
    %244 = arith.index_cast %241 : i32 to index
    %c0_60 = arith.constant 0 : index
    %245 = vector.load %arg15[%244, %c0_60] : memref<288x128xf32, #tpu.memory_space<vmem>>, vector<8x128xf32>
    %cst_61 = arith.constant dense<0.000000e+00> : vector<8x128xf32>
    %246 = tpu.matmul %239, %7, %cst_61 {dimension_numbers = #tpu.dot_dimension_numbers<[1], [0], [0], [1], [0, 0, 1, 1], [], []>} : vector<8x32xf32>, vector<32x128xf32>, vector<8x128xf32> -> vector<8x128xf32>
    %247 = arith.addf %245, %246 : vector<8x128xf32>
    %248 = vector.extract_strided_slice %247 {offsets = [0, 0], sizes = [8, 32], strides = [1, 1]} : vector<8x128xf32> to vector<8x32xf32>
    %249 = arith.negf %248 : vector<8x32xf32>
    %250 = math.exp %249 : vector<8x32xf32>
    %cst_62 = arith.constant 1.000000e+00 : f32
    %251 = vector.broadcast %cst_62 : f32 to vector<8x32xf32>
    %252 = arith.addf %251, %250 : vector<8x32xf32>
    %253 = arith.divf %251, %252 : vector<8x32xf32>
    %254 = vector.extract_strided_slice %247 {offsets = [0, 32], sizes = [8, 32], strides = [1, 1]} : vector<8x128xf32> to vector<8x32xf32>
    %255 = arith.negf %254 : vector<8x32xf32>
    %256 = math.exp %255 : vector<8x32xf32>
    %cst_63 = arith.constant 1.000000e+00 : f32
    %257 = vector.broadcast %cst_63 : f32 to vector<8x32xf32>
    %258 = arith.addf %257, %256 : vector<8x32xf32>
    %259 = arith.divf %257, %258 : vector<8x32xf32>
    %260 = vector.extract_strided_slice %247 {offsets = [0, 64], sizes = [8, 32], strides = [1, 1]} : vector<8x128xf32> to vector<8x32xf32>
    %261 = arith.negf %260 : vector<8x32xf32>
    %262 = math.exp %261 : vector<8x32xf32>
    %cst_64 = arith.constant 1.000000e+00 : f32
    %263 = vector.broadcast %cst_64 : f32 to vector<8x32xf32>
    %264 = arith.addf %263, %262 : vector<8x32xf32>
    %265 = arith.divf %263, %264 : vector<8x32xf32>
    %266 = vector.extract_strided_slice %247 {offsets = [0, 96], sizes = [8, 32], strides = [1, 1]} : vector<8x128xf32> to vector<8x32xf32>
    %267 = math.tanh %266 : vector<8x32xf32>
    %268 = arith.mulf %265, %237 : vector<8x32xf32>
    %269 = arith.mulf %253, %267 : vector<8x32xf32>
    %270 = arith.addf %268, %269 : vector<8x32xf32>
    %271 = math.tanh %270 : vector<8x32xf32>
    %272 = arith.mulf %259, %271 : vector<8x32xf32>
    %c8_i32_65 = arith.constant 8 : i32
    %c8_i32_66 = arith.constant 8 : i32
    %273 = arith.muli %c8_i32_65, %c8_i32_66 : i32
    %274 = tpu.assume_multiple %273, 8 : i32
    %275 = arith.index_cast %274 : i32 to index
    %c0_67 = arith.constant 0 : index
    %276 = vector.load %arg16[%275, %c0_67] : memref<288x32xf32, #tpu.memory_space<vmem>>, vector<8x32xf32>
    tpu.vector_store %arg16[%275, %c0_67], %272 {strides = array<i32>} : memref<288x32xf32, #tpu.memory_space<vmem>>, vector<8x32xf32>,
    %277 = arith.index_cast %274 : i32 to index
    %c0_68 = arith.constant 0 : index
    %278 = vector.load %arg15[%277, %c0_68] : memref<288x128xf32, #tpu.memory_space<vmem>>, vector<8x128xf32>
    %cst_69 = arith.constant dense<0.000000e+00> : vector<8x128xf32>
    %279 = tpu.matmul %272, %7, %cst_69 {dimension_numbers = #tpu.dot_dimension_numbers<[1], [0], [0], [1], [0, 0, 1, 1], [], []>} : vector<8x32xf32>, vector<32x128xf32>, vector<8x128xf32> -> vector<8x128xf32>
    %280 = arith.addf %278, %279 : vector<8x128xf32>
    %281 = vector.extract_strided_slice %280 {offsets = [0, 0], sizes = [8, 32], strides = [1, 1]} : vector<8x128xf32> to vector<8x32xf32>
    %282 = arith.negf %281 : vector<8x32xf32>
    %283 = math.exp %282 : vector<8x32xf32>
    %cst_70 = arith.constant 1.000000e+00 : f32
    %284 = vector.broadcast %cst_70 : f32 to vector<8x32xf32>
    %285 = arith.addf %284, %283 : vector<8x32xf32>
    %286 = arith.divf %284, %285 : vector<8x32xf32>
    %287 = vector.extract_strided_slice %280 {offsets = [0, 32], sizes = [8, 32], strides = [1, 1]} : vector<8x128xf32> to vector<8x32xf32>
    %288 = arith.negf %287 : vector<8x32xf32>
    %289 = math.exp %288 : vector<8x32xf32>
    %cst_71 = arith.constant 1.000000e+00 : f32
    %290 = vector.broadcast %cst_71 : f32 to vector<8x32xf32>
    %291 = arith.addf %290, %289 : vector<8x32xf32>
    %292 = arith.divf %290, %291 : vector<8x32xf32>
    %293 = vector.extract_strided_slice %280 {offsets = [0, 64], sizes = [8, 32], strides = [1, 1]} : vector<8x128xf32> to vector<8x32xf32>
    %294 = arith.negf %293 : vector<8x32xf32>
    %295 = math.exp %294 : vector<8x32xf32>
    %cst_72 = arith.constant 1.000000e+00 : f32
    %296 = vector.broadcast %cst_72 : f32 to vector<8x32xf32>
    %297 = arith.addf %296, %295 : vector<8x32xf32>
    %298 = arith.divf %296, %297 : vector<8x32xf32>
    %299 = vector.extract_strided_slice %280 {offsets = [0, 96], sizes = [8, 32], strides = [1, 1]} : vector<8x128xf32> to vector<8x32xf32>
    %300 = math.tanh %299 : vector<8x32xf32>
    %301 = arith.mulf %298, %270 : vector<8x32xf32>
    %302 = arith.mulf %286, %300 : vector<8x32xf32>
    %303 = arith.addf %301, %302 : vector<8x32xf32>
    %304 = math.tanh %303 : vector<8x32xf32>
    %305 = arith.mulf %292, %304 : vector<8x32xf32>
    %c9_i32 = arith.constant 9 : i32
    %c8_i32_73 = arith.constant 8 : i32
    %306 = arith.muli %c9_i32, %c8_i32_73 : i32
    %307 = tpu.assume_multiple %306, 8 : i32
    %308 = arith.index_cast %307 : i32 to index
    %c0_74 = arith.constant 0 : index
    %309 = vector.load %arg16[%308, %c0_74] : memref<288x32xf32, #tpu.memory_space<vmem>>, vector<8x32xf32>
    tpu.vector_store %arg16[%308, %c0_74], %305 {strides = array<i32>} : memref<288x32xf32, #tpu.memory_space<vmem>>, vector<8x32xf32>,
    %310 = arith.index_cast %307 : i32 to index
    %c0_75 = arith.constant 0 : index
    %311 = vector.load %arg15[%310, %c0_75] : memref<288x128xf32, #tpu.memory_space<vmem>>, vector<8x128xf32>
    %cst_76 = arith.constant dense<0.000000e+00> : vector<8x128xf32>
    %312 = tpu.matmul %305, %7, %cst_76 {dimension_numbers = #tpu.dot_dimension_numbers<[1], [0], [0], [1], [0, 0, 1, 1], [], []>} : vector<8x32xf32>, vector<32x128xf32>, vector<8x128xf32> -> vector<8x128xf32>
    %313 = arith.addf %311, %312 : vector<8x128xf32>
    %314 = vector.extract_strided_slice %313 {offsets = [0, 0], sizes = [8, 32], strides = [1, 1]} : vector<8x128xf32> to vector<8x32xf32>
    %315 = arith.negf %314 : vector<8x32xf32>
    %316 = math.exp %315 : vector<8x32xf32>
    %cst_77 = arith.constant 1.000000e+00 : f32
    %317 = vector.broadcast %cst_77 : f32 to vector<8x32xf32>
    %318 = arith.addf %317, %316 : vector<8x32xf32>
    %319 = arith.divf %317, %318 : vector<8x32xf32>
    %320 = vector.extract_strided_slice %313 {offsets = [0, 32], sizes = [8, 32], strides = [1, 1]} : vector<8x128xf32> to vector<8x32xf32>
    %321 = arith.negf %320 : vector<8x32xf32>
    %322 = math.exp %321 : vector<8x32xf32>
    %cst_78 = arith.constant 1.000000e+00 : f32
    %323 = vector.broadcast %cst_78 : f32 to vector<8x32xf32>
    %324 = arith.addf %323, %322 : vector<8x32xf32>
    %325 = arith.divf %323, %324 : vector<8x32xf32>
    %326 = vector.extract_strided_slice %313 {offsets = [0, 64], sizes = [8, 32], strides = [1, 1]} : vector<8x128xf32> to vector<8x32xf32>
    %327 = arith.negf %326 : vector<8x32xf32>
    %328 = math.exp %327 : vector<8x32xf32>
    %cst_79 = arith.constant 1.000000e+00 : f32
    %329 = vector.broadcast %cst_79 : f32 to vector<8x32xf32>
    %330 = arith.addf %329, %328 : vector<8x32xf32>
    %331 = arith.divf %329, %330 : vector<8x32xf32>
    %332 = vector.extract_strided_slice %313 {offsets = [0, 96], sizes = [8, 32], strides = [1, 1]} : vector<8x128xf32> to vector<8x32xf32>
    %333 = math.tanh %332 : vector<8x32xf32>
    %334 = arith.mulf %331, %303 : vector<8x32xf32>
    %335 = arith.mulf %319, %333 : vector<8x32xf32>
    %336 = arith.addf %334, %335 : vector<8x32xf32>
    %337 = math.tanh %336 : vector<8x32xf32>
    %338 = arith.mulf %325, %337 : vector<8x32xf32>
    %c10_i32 = arith.constant 10 : i32
    %c8_i32_80 = arith.constant 8 : i32
    %339 = arith.muli %c10_i32, %c8_i32_80 : i32
    %340 = tpu.assume_multiple %339, 8 : i32
    %341 = arith.index_cast %340 : i32 to index
    %c0_81 = arith.constant 0 : index
    %342 = vector.load %arg16[%341, %c0_81] : memref<288x32xf32, #tpu.memory_space<vmem>>, vector<8x32xf32>
    tpu.vector_store %arg16[%341, %c0_81], %338 {strides = array<i32>} : memref<288x32xf32, #tpu.memory_space<vmem>>, vector<8x32xf32>,
    %343 = arith.index_cast %340 : i32 to index
    %c0_82 = arith.constant 0 : index
    %344 = vector.load %arg15[%343, %c0_82] : memref<288x128xf32, #tpu.memory_space<vmem>>, vector<8x128xf32>
    %cst_83 = arith.constant dense<0.000000e+00> : vector<8x128xf32>
    %345 = tpu.matmul %338, %7, %cst_83 {dimension_numbers = #tpu.dot_dimension_numbers<[1], [0], [0], [1], [0, 0, 1, 1], [], []>} : vector<8x32xf32>, vector<32x128xf32>, vector<8x128xf32> -> vector<8x128xf32>
    %346 = arith.addf %344, %345 : vector<8x128xf32>
    %347 = vector.extract_strided_slice %346 {offsets = [0, 0], sizes = [8, 32], strides = [1, 1]} : vector<8x128xf32> to vector<8x32xf32>
    %348 = arith.negf %347 : vector<8x32xf32>
    %349 = math.exp %348 : vector<8x32xf32>
    %cst_84 = arith.constant 1.000000e+00 : f32
    %350 = vector.broadcast %cst_84 : f32 to vector<8x32xf32>
    %351 = arith.addf %350, %349 : vector<8x32xf32>
    %352 = arith.divf %350, %351 : vector<8x32xf32>
    %353 = vector.extract_strided_slice %346 {offsets = [0, 32], sizes = [8, 32], strides = [1, 1]} : vector<8x128xf32> to vector<8x32xf32>
    %354 = arith.negf %353 : vector<8x32xf32>
    %355 = math.exp %354 : vector<8x32xf32>
    %cst_85 = arith.constant 1.000000e+00 : f32
    %356 = vector.broadcast %cst_85 : f32 to vector<8x32xf32>
    %357 = arith.addf %356, %355 : vector<8x32xf32>
    %358 = arith.divf %356, %357 : vector<8x32xf32>
    %359 = vector.extract_strided_slice %346 {offsets = [0, 64], sizes = [8, 32], strides = [1, 1]} : vector<8x128xf32> to vector<8x32xf32>
    %360 = arith.negf %359 : vector<8x32xf32>
    %361 = math.exp %360 : vector<8x32xf32>
    %cst_86 = arith.constant 1.000000e+00 : f32
    %362 = vector.broadcast %cst_86 : f32 to vector<8x32xf32>
    %363 = arith.addf %362, %361 : vector<8x32xf32>
    %364 = arith.divf %362, %363 : vector<8x32xf32>
    %365 = vector.extract_strided_slice %346 {offsets = [0, 96], sizes = [8, 32], strides = [1, 1]} : vector<8x128xf32> to vector<8x32xf32>
    %366 = math.tanh %365 : vector<8x32xf32>
    %367 = arith.mulf %364, %336 : vector<8x32xf32>
    %368 = arith.mulf %352, %366 : vector<8x32xf32>
    %369 = arith.addf %367, %368 : vector<8x32xf32>
    %370 = math.tanh %369 : vector<8x32xf32>
    %371 = arith.mulf %358, %370 : vector<8x32xf32>
    %c11_i32 = arith.constant 11 : i32
    %c8_i32_87 = arith.constant 8 : i32
    %372 = arith.muli %c11_i32, %c8_i32_87 : i32
    %373 = tpu.assume_multiple %372, 8 : i32
    %374 = arith.index_cast %373 : i32 to index
    %c0_88 = arith.constant 0 : index
    %375 = vector.load %arg16[%374, %c0_88] : memref<288x32xf32, #tpu.memory_space<vmem>>, vector<8x32xf32>
    tpu.vector_store %arg16[%374, %c0_88], %371 {strides = array<i32>} : memref<288x32xf32, #tpu.memory_space<vmem>>, vector<8x32xf32>,
    %376 = arith.index_cast %373 : i32 to index
    %c0_89 = arith.constant 0 : index
    %377 = vector.load %arg15[%376, %c0_89] : memref<288x128xf32, #tpu.memory_space<vmem>>, vector<8x128xf32>
    %cst_90 = arith.constant dense<0.000000e+00> : vector<8x128xf32>
    %378 = tpu.matmul %371, %7, %cst_90 {dimension_numbers = #tpu.dot_dimension_numbers<[1], [0], [0], [1], [0, 0, 1, 1], [], []>} : vector<8x32xf32>, vector<32x128xf32>, vector<8x128xf32> -> vector<8x128xf32>
    %379 = arith.addf %377, %378 : vector<8x128xf32>
    %380 = vector.extract_strided_slice %379 {offsets = [0, 0], sizes = [8, 32], strides = [1, 1]} : vector<8x128xf32> to vector<8x32xf32>
    %381 = arith.negf %380 : vector<8x32xf32>
    %382 = math.exp %381 : vector<8x32xf32>
    %cst_91 = arith.constant 1.000000e+00 : f32
    %383 = vector.broadcast %cst_91 : f32 to vector<8x32xf32>
    %384 = arith.addf %383, %382 : vector<8x32xf32>
    %385 = arith.divf %383, %384 : vector<8x32xf32>
    %386 = vector.extract_strided_slice %379 {offsets = [0, 32], sizes = [8, 32], strides = [1, 1]} : vector<8x128xf32> to vector<8x32xf32>
    %387 = arith.negf %386 : vector<8x32xf32>
    %388 = math.exp %387 : vector<8x32xf32>
    %cst_92 = arith.constant 1.000000e+00 : f32
    %389 = vector.broadcast %cst_92 : f32 to vector<8x32xf32>
    %390 = arith.addf %389, %388 : vector<8x32xf32>
    %391 = arith.divf %389, %390 : vector<8x32xf32>
    %392 = vector.extract_strided_slice %379 {offsets = [0, 64], sizes = [8, 32], strides = [1, 1]} : vector<8x128xf32> to vector<8x32xf32>
    %393 = arith.negf %392 : vector<8x32xf32>
    %394 = math.exp %393 : vector<8x32xf32>
    %cst_93 = arith.constant 1.000000e+00 : f32
    %395 = vector.broadcast %cst_93 : f32 to vector<8x32xf32>
    %396 = arith.addf %395, %394 : vector<8x32xf32>
    %397 = arith.divf %395, %396 : vector<8x32xf32>
    %398 = vector.extract_strided_slice %379 {offsets = [0, 96], sizes = [8, 32], strides = [1, 1]} : vector<8x128xf32> to vector<8x32xf32>
    %399 = math.tanh %398 : vector<8x32xf32>
    %400 = arith.mulf %397, %369 : vector<8x32xf32>
    %401 = arith.mulf %385, %399 : vector<8x32xf32>
    %402 = arith.addf %400, %401 : vector<8x32xf32>
    %403 = math.tanh %402 : vector<8x32xf32>
    %404 = arith.mulf %391, %403 : vector<8x32xf32>
    %c12_i32 = arith.constant 12 : i32
    %c8_i32_94 = arith.constant 8 : i32
    %405 = arith.muli %c12_i32, %c8_i32_94 : i32
    %406 = tpu.assume_multiple %405, 8 : i32
    %407 = arith.index_cast %406 : i32 to index
    %c0_95 = arith.constant 0 : index
    %408 = vector.load %arg16[%407, %c0_95] : memref<288x32xf32, #tpu.memory_space<vmem>>, vector<8x32xf32>
    tpu.vector_store %arg16[%407, %c0_95], %404 {strides = array<i32>} : memref<288x32xf32, #tpu.memory_space<vmem>>, vector<8x32xf32>,
    %409 = arith.index_cast %406 : i32 to index
    %c0_96 = arith.constant 0 : index
    %410 = vector.load %arg15[%409, %c0_96] : memref<288x128xf32, #tpu.memory_space<vmem>>, vector<8x128xf32>
    %cst_97 = arith.constant dense<0.000000e+00> : vector<8x128xf32>
    %411 = tpu.matmul %404, %7, %cst_97 {dimension_numbers = #tpu.dot_dimension_numbers<[1], [0], [0], [1], [0, 0, 1, 1], [], []>} : vector<8x32xf32>, vector<32x128xf32>, vector<8x128xf32> -> vector<8x128xf32>
    %412 = arith.addf %410, %411 : vector<8x128xf32>
    %413 = vector.extract_strided_slice %412 {offsets = [0, 0], sizes = [8, 32], strides = [1, 1]} : vector<8x128xf32> to vector<8x32xf32>
    %414 = arith.negf %413 : vector<8x32xf32>
    %415 = math.exp %414 : vector<8x32xf32>
    %cst_98 = arith.constant 1.000000e+00 : f32
    %416 = vector.broadcast %cst_98 : f32 to vector<8x32xf32>
    %417 = arith.addf %416, %415 : vector<8x32xf32>
    %418 = arith.divf %416, %417 : vector<8x32xf32>
    %419 = vector.extract_strided_slice %412 {offsets = [0, 32], sizes = [8, 32], strides = [1, 1]} : vector<8x128xf32> to vector<8x32xf32>
    %420 = arith.negf %419 : vector<8x32xf32>
    %421 = math.exp %420 : vector<8x32xf32>
    %cst_99 = arith.constant 1.000000e+00 : f32
    %422 = vector.broadcast %cst_99 : f32 to vector<8x32xf32>
    %423 = arith.addf %422, %421 : vector<8x32xf32>
    %424 = arith.divf %422, %423 : vector<8x32xf32>
    %425 = vector.extract_strided_slice %412 {offsets = [0, 64], sizes = [8, 32], strides = [1, 1]} : vector<8x128xf32> to vector<8x32xf32>
    %426 = arith.negf %425 : vector<8x32xf32>
    %427 = math.exp %426 : vector<8x32xf32>
    %cst_100 = arith.constant 1.000000e+00 : f32
    %428 = vector.broadcast %cst_100 : f32 to vector<8x32xf32>
    %429 = arith.addf %428, %427 : vector<8x32xf32>
    %430 = arith.divf %428, %429 : vector<8x32xf32>
    %431 = vector.extract_strided_slice %412 {offsets = [0, 96], sizes = [8, 32], strides = [1, 1]} : vector<8x128xf32> to vector<8x32xf32>
    %432 = math.tanh %431 : vector<8x32xf32>
    %433 = arith.mulf %430, %402 : vector<8x32xf32>
    %434 = arith.mulf %418, %432 : vector<8x32xf32>
    %435 = arith.addf %433, %434 : vector<8x32xf32>
    %436 = math.tanh %435 : vector<8x32xf32>
    %437 = arith.mulf %424, %436 : vector<8x32xf32>
    %c13_i32 = arith.constant 13 : i32
    %c8_i32_101 = arith.constant 8 : i32
    %438 = arith.muli %c13_i32, %c8_i32_101 : i32
    %439 = tpu.assume_multiple %438, 8 : i32
    %440 = arith.index_cast %439 : i32 to index
    %c0_102 = arith.constant 0 : index
    %441 = vector.load %arg16[%440, %c0_102] : memref<288x32xf32, #tpu.memory_space<vmem>>, vector<8x32xf32>
    tpu.vector_store %arg16[%440, %c0_102], %437 {strides = array<i32>} : memref<288x32xf32, #tpu.memory_space<vmem>>, vector<8x32xf32>,
    %442 = arith.index_cast %439 : i32 to index
    %c0_103 = arith.constant 0 : index
    %443 = vector.load %arg15[%442, %c0_103] : memref<288x128xf32, #tpu.memory_space<vmem>>, vector<8x128xf32>
    %cst_104 = arith.constant dense<0.000000e+00> : vector<8x128xf32>
    %444 = tpu.matmul %437, %7, %cst_104 {dimension_numbers = #tpu.dot_dimension_numbers<[1], [0], [0], [1], [0, 0, 1, 1], [], []>} : vector<8x32xf32>, vector<32x128xf32>, vector<8x128xf32> -> vector<8x128xf32>
    %445 = arith.addf %443, %444 : vector<8x128xf32>
    %446 = vector.extract_strided_slice %445 {offsets = [0, 0], sizes = [8, 32], strides = [1, 1]} : vector<8x128xf32> to vector<8x32xf32>
    %447 = arith.negf %446 : vector<8x32xf32>
    %448 = math.exp %447 : vector<8x32xf32>
    %cst_105 = arith.constant 1.000000e+00 : f32
    %449 = vector.broadcast %cst_105 : f32 to vector<8x32xf32>
    %450 = arith.addf %449, %448 : vector<8x32xf32>
    %451 = arith.divf %449, %450 : vector<8x32xf32>
    %452 = vector.extract_strided_slice %445 {offsets = [0, 32], sizes = [8, 32], strides = [1, 1]} : vector<8x128xf32> to vector<8x32xf32>
    %453 = arith.negf %452 : vector<8x32xf32>
    %454 = math.exp %453 : vector<8x32xf32>
    %cst_106 = arith.constant 1.000000e+00 : f32
    %455 = vector.broadcast %cst_106 : f32 to vector<8x32xf32>
    %456 = arith.addf %455, %454 : vector<8x32xf32>
    %457 = arith.divf %455, %456 : vector<8x32xf32>
    %458 = vector.extract_strided_slice %445 {offsets = [0, 64], sizes = [8, 32], strides = [1, 1]} : vector<8x128xf32> to vector<8x32xf32>
    %459 = arith.negf %458 : vector<8x32xf32>
    %460 = math.exp %459 : vector<8x32xf32>
    %cst_107 = arith.constant 1.000000e+00 : f32
    %461 = vector.broadcast %cst_107 : f32 to vector<8x32xf32>
    %462 = arith.addf %461, %460 : vector<8x32xf32>
    %463 = arith.divf %461, %462 : vector<8x32xf32>
    %464 = vector.extract_strided_slice %445 {offsets = [0, 96], sizes = [8, 32], strides = [1, 1]} : vector<8x128xf32> to vector<8x32xf32>
    %465 = math.tanh %464 : vector<8x32xf32>
    %466 = arith.mulf %463, %435 : vector<8x32xf32>
    %467 = arith.mulf %451, %465 : vector<8x32xf32>
    %468 = arith.addf %466, %467 : vector<8x32xf32>
    %469 = math.tanh %468 : vector<8x32xf32>
    %470 = arith.mulf %457, %469 : vector<8x32xf32>
    %c14_i32 = arith.constant 14 : i32
    %c8_i32_108 = arith.constant 8 : i32
    %471 = arith.muli %c14_i32, %c8_i32_108 : i32
    %472 = tpu.assume_multiple %471, 8 : i32
    %473 = arith.index_cast %472 : i32 to index
    %c0_109 = arith.constant 0 : index
    %474 = vector.load %arg16[%473, %c0_109] : memref<288x32xf32, #tpu.memory_space<vmem>>, vector<8x32xf32>
    tpu.vector_store %arg16[%473, %c0_109], %470 {strides = array<i32>} : memref<288x32xf32, #tpu.memory_space<vmem>>, vector<8x32xf32>,
    %475 = arith.index_cast %472 : i32 to index
    %c0_110 = arith.constant 0 : index
    %476 = vector.load %arg15[%475, %c0_110] : memref<288x128xf32, #tpu.memory_space<vmem>>, vector<8x128xf32>
    %cst_111 = arith.constant dense<0.000000e+00> : vector<8x128xf32>
    %477 = tpu.matmul %470, %7, %cst_111 {dimension_numbers = #tpu.dot_dimension_numbers<[1], [0], [0], [1], [0, 0, 1, 1], [], []>} : vector<8x32xf32>, vector<32x128xf32>, vector<8x128xf32> -> vector<8x128xf32>
    %478 = arith.addf %476, %477 : vector<8x128xf32>
    %479 = vector.extract_strided_slice %478 {offsets = [0, 0], sizes = [8, 32], strides = [1, 1]} : vector<8x128xf32> to vector<8x32xf32>
    %480 = arith.negf %479 : vector<8x32xf32>
    %481 = math.exp %480 : vector<8x32xf32>
    %cst_112 = arith.constant 1.000000e+00 : f32
    %482 = vector.broadcast %cst_112 : f32 to vector<8x32xf32>
    %483 = arith.addf %482, %481 : vector<8x32xf32>
    %484 = arith.divf %482, %483 : vector<8x32xf32>
    %485 = vector.extract_strided_slice %478 {offsets = [0, 32], sizes = [8, 32], strides = [1, 1]} : vector<8x128xf32> to vector<8x32xf32>
    %486 = arith.negf %485 : vector<8x32xf32>
    %487 = math.exp %486 : vector<8x32xf32>
    %cst_113 = arith.constant 1.000000e+00 : f32
    %488 = vector.broadcast %cst_113 : f32 to vector<8x32xf32>
    %489 = arith.addf %488, %487 : vector<8x32xf32>
    %490 = arith.divf %488, %489 : vector<8x32xf32>
    %491 = vector.extract_strided_slice %478 {offsets = [0, 64], sizes = [8, 32], strides = [1, 1]} : vector<8x128xf32> to vector<8x32xf32>
    %492 = arith.negf %491 : vector<8x32xf32>
    %493 = math.exp %492 : vector<8x32xf32>
    %cst_114 = arith.constant 1.000000e+00 : f32
    %494 = vector.broadcast %cst_114 : f32 to vector<8x32xf32>
    %495 = arith.addf %494, %493 : vector<8x32xf32>
    %496 = arith.divf %494, %495 : vector<8x32xf32>
    %497 = vector.extract_strided_slice %478 {offsets = [0, 96], sizes = [8, 32], strides = [1, 1]} : vector<8x128xf32> to vector<8x32xf32>
    %498 = math.tanh %497 : vector<8x32xf32>
    %499 = arith.mulf %496, %468 : vector<8x32xf32>
    %500 = arith.mulf %484, %498 : vector<8x32xf32>
    %501 = arith.addf %499, %500 : vector<8x32xf32>
    %502 = math.tanh %501 : vector<8x32xf32>
    %503 = arith.mulf %490, %502 : vector<8x32xf32>
    %c15_i32 = arith.constant 15 : i32
    %c8_i32_115 = arith.constant 8 : i32
    %504 = arith.muli %c15_i32, %c8_i32_115 : i32
    %505 = tpu.assume_multiple %504, 8 : i32
    %506 = arith.index_cast %505 : i32 to index
    %c0_116 = arith.constant 0 : index
    %507 = vector.load %arg16[%506, %c0_116] : memref<288x32xf32, #tpu.memory_space<vmem>>, vector<8x32xf32>
    tpu.vector_store %arg16[%506, %c0_116], %503 {strides = array<i32>} : memref<288x32xf32, #tpu.memory_space<vmem>>, vector<8x32xf32>,
    %508 = arith.index_cast %505 : i32 to index
    %c0_117 = arith.constant 0 : index
    %509 = vector.load %arg15[%508, %c0_117] : memref<288x128xf32, #tpu.memory_space<vmem>>, vector<8x128xf32>
    %cst_118 = arith.constant dense<0.000000e+00> : vector<8x128xf32>
    %510 = tpu.matmul %503, %7, %cst_118 {dimension_numbers = #tpu.dot_dimension_numbers<[1], [0], [0], [1], [0, 0, 1, 1], [], []>} : vector<8x32xf32>, vector<32x128xf32>, vector<8x128xf32> -> vector<8x128xf32>
    %511 = arith.addf %509, %510 : vector<8x128xf32>
    %512 = vector.extract_strided_slice %511 {offsets = [0, 0], sizes = [8, 32], strides = [1, 1]} : vector<8x128xf32> to vector<8x32xf32>
    %513 = arith.negf %512 : vector<8x32xf32>
    %514 = math.exp %513 : vector<8x32xf32>
    %cst_119 = arith.constant 1.000000e+00 : f32
    %515 = vector.broadcast %cst_119 : f32 to vector<8x32xf32>
    %516 = arith.addf %515, %514 : vector<8x32xf32>
    %517 = arith.divf %515, %516 : vector<8x32xf32>
    %518 = vector.extract_strided_slice %511 {offsets = [0, 32], sizes = [8, 32], strides = [1, 1]} : vector<8x128xf32> to vector<8x32xf32>
    %519 = arith.negf %518 : vector<8x32xf32>
    %520 = math.exp %519 : vector<8x32xf32>
    %cst_120 = arith.constant 1.000000e+00 : f32
    %521 = vector.broadcast %cst_120 : f32 to vector<8x32xf32>
    %522 = arith.addf %521, %520 : vector<8x32xf32>
    %523 = arith.divf %521, %522 : vector<8x32xf32>
    %524 = vector.extract_strided_slice %511 {offsets = [0, 64], sizes = [8, 32], strides = [1, 1]} : vector<8x128xf32> to vector<8x32xf32>
    %525 = arith.negf %524 : vector<8x32xf32>
    %526 = math.exp %525 : vector<8x32xf32>
    %cst_121 = arith.constant 1.000000e+00 : f32
    %527 = vector.broadcast %cst_121 : f32 to vector<8x32xf32>
    %528 = arith.addf %527, %526 : vector<8x32xf32>
    %529 = arith.divf %527, %528 : vector<8x32xf32>
    %530 = vector.extract_strided_slice %511 {offsets = [0, 96], sizes = [8, 32], strides = [1, 1]} : vector<8x128xf32> to vector<8x32xf32>
    %531 = math.tanh %530 : vector<8x32xf32>
    %532 = arith.mulf %529, %501 : vector<8x32xf32>
    %533 = arith.mulf %517, %531 : vector<8x32xf32>
    %534 = arith.addf %532, %533 : vector<8x32xf32>
    %535 = math.tanh %534 : vector<8x32xf32>
    %536 = arith.mulf %523, %535 : vector<8x32xf32>
    %c16_i32 = arith.constant 16 : i32
    %c8_i32_122 = arith.constant 8 : i32
    %537 = arith.muli %c16_i32, %c8_i32_122 : i32
    %538 = tpu.assume_multiple %537, 8 : i32
    %539 = arith.index_cast %538 : i32 to index
    %c0_123 = arith.constant 0 : index
    %540 = vector.load %arg16[%539, %c0_123] : memref<288x32xf32, #tpu.memory_space<vmem>>, vector<8x32xf32>
    tpu.vector_store %arg16[%539, %c0_123], %536 {strides = array<i32>} : memref<288x32xf32, #tpu.memory_space<vmem>>, vector<8x32xf32>,
    %541 = arith.index_cast %538 : i32 to index
    %c0_124 = arith.constant 0 : index
    %542 = vector.load %arg15[%541, %c0_124] : memref<288x128xf32, #tpu.memory_space<vmem>>, vector<8x128xf32>
    %cst_125 = arith.constant dense<0.000000e+00> : vector<8x128xf32>
    %543 = tpu.matmul %536, %7, %cst_125 {dimension_numbers = #tpu.dot_dimension_numbers<[1], [0], [0], [1], [0, 0, 1, 1], [], []>} : vector<8x32xf32>, vector<32x128xf32>, vector<8x128xf32> -> vector<8x128xf32>
    %544 = arith.addf %542, %543 : vector<8x128xf32>
    %545 = vector.extract_strided_slice %544 {offsets = [0, 0], sizes = [8, 32], strides = [1, 1]} : vector<8x128xf32> to vector<8x32xf32>
    %546 = arith.negf %545 : vector<8x32xf32>
    %547 = math.exp %546 : vector<8x32xf32>
    %cst_126 = arith.constant 1.000000e+00 : f32
    %548 = vector.broadcast %cst_126 : f32 to vector<8x32xf32>
    %549 = arith.addf %548, %547 : vector<8x32xf32>
    %550 = arith.divf %548, %549 : vector<8x32xf32>
    %551 = vector.extract_strided_slice %544 {offsets = [0, 32], sizes = [8, 32], strides = [1, 1]} : vector<8x128xf32> to vector<8x32xf32>
    %552 = arith.negf %551 : vector<8x32xf32>
    %553 = math.exp %552 : vector<8x32xf32>
    %cst_127 = arith.constant 1.000000e+00 : f32
    %554 = vector.broadcast %cst_127 : f32 to vector<8x32xf32>
    %555 = arith.addf %554, %553 : vector<8x32xf32>
    %556 = arith.divf %554, %555 : vector<8x32xf32>
    %557 = vector.extract_strided_slice %544 {offsets = [0, 64], sizes = [8, 32], strides = [1, 1]} : vector<8x128xf32> to vector<8x32xf32>
    %558 = arith.negf %557 : vector<8x32xf32>
    %559 = math.exp %558 : vector<8x32xf32>
    %cst_128 = arith.constant 1.000000e+00 : f32
    %560 = vector.broadcast %cst_128 : f32 to vector<8x32xf32>
    %561 = arith.addf %560, %559 : vector<8x32xf32>
    %562 = arith.divf %560, %561 : vector<8x32xf32>
    %563 = vector.extract_strided_slice %544 {offsets = [0, 96], sizes = [8, 32], strides = [1, 1]} : vector<8x128xf32> to vector<8x32xf32>
    %564 = math.tanh %563 : vector<8x32xf32>
    %565 = arith.mulf %562, %534 : vector<8x32xf32>
    %566 = arith.mulf %550, %564 : vector<8x32xf32>
    %567 = arith.addf %565, %566 : vector<8x32xf32>
    %568 = math.tanh %567 : vector<8x32xf32>
    %569 = arith.mulf %556, %568 : vector<8x32xf32>
    %c17_i32 = arith.constant 17 : i32
    %c8_i32_129 = arith.constant 8 : i32
    %570 = arith.muli %c17_i32, %c8_i32_129 : i32
    %571 = tpu.assume_multiple %570, 8 : i32
    %572 = arith.index_cast %571 : i32 to index
    %c0_130 = arith.constant 0 : index
    %573 = vector.load %arg16[%572, %c0_130] : memref<288x32xf32, #tpu.memory_space<vmem>>, vector<8x32xf32>
    tpu.vector_store %arg16[%572, %c0_130], %569 {strides = array<i32>} : memref<288x32xf32, #tpu.memory_space<vmem>>, vector<8x32xf32>,
    %574 = arith.index_cast %571 : i32 to index
    %c0_131 = arith.constant 0 : index
    %575 = vector.load %arg15[%574, %c0_131] : memref<288x128xf32, #tpu.memory_space<vmem>>, vector<8x128xf32>
    %cst_132 = arith.constant dense<0.000000e+00> : vector<8x128xf32>
    %576 = tpu.matmul %569, %7, %cst_132 {dimension_numbers = #tpu.dot_dimension_numbers<[1], [0], [0], [1], [0, 0, 1, 1], [], []>} : vector<8x32xf32>, vector<32x128xf32>, vector<8x128xf32> -> vector<8x128xf32>
    %577 = arith.addf %575, %576 : vector<8x128xf32>
    %578 = vector.extract_strided_slice %577 {offsets = [0, 0], sizes = [8, 32], strides = [1, 1]} : vector<8x128xf32> to vector<8x32xf32>
    %579 = arith.negf %578 : vector<8x32xf32>
    %580 = math.exp %579 : vector<8x32xf32>
    %cst_133 = arith.constant 1.000000e+00 : f32
    %581 = vector.broadcast %cst_133 : f32 to vector<8x32xf32>
    %582 = arith.addf %581, %580 : vector<8x32xf32>
    %583 = arith.divf %581, %582 : vector<8x32xf32>
    %584 = vector.extract_strided_slice %577 {offsets = [0, 32], sizes = [8, 32], strides = [1, 1]} : vector<8x128xf32> to vector<8x32xf32>
    %585 = arith.negf %584 : vector<8x32xf32>
    %586 = math.exp %585 : vector<8x32xf32>
    %cst_134 = arith.constant 1.000000e+00 : f32
    %587 = vector.broadcast %cst_134 : f32 to vector<8x32xf32>
    %588 = arith.addf %587, %586 : vector<8x32xf32>
    %589 = arith.divf %587, %588 : vector<8x32xf32>
    %590 = vector.extract_strided_slice %577 {offsets = [0, 64], sizes = [8, 32], strides = [1, 1]} : vector<8x128xf32> to vector<8x32xf32>
    %591 = arith.negf %590 : vector<8x32xf32>
    %592 = math.exp %591 : vector<8x32xf32>
    %cst_135 = arith.constant 1.000000e+00 : f32
    %593 = vector.broadcast %cst_135 : f32 to vector<8x32xf32>
    %594 = arith.addf %593, %592 : vector<8x32xf32>
    %595 = arith.divf %593, %594 : vector<8x32xf32>
    %596 = vector.extract_strided_slice %577 {offsets = [0, 96], sizes = [8, 32], strides = [1, 1]} : vector<8x128xf32> to vector<8x32xf32>
    %597 = math.tanh %596 : vector<8x32xf32>
    %598 = arith.mulf %595, %567 : vector<8x32xf32>
    %599 = arith.mulf %583, %597 : vector<8x32xf32>
    %600 = arith.addf %598, %599 : vector<8x32xf32>
    %601 = math.tanh %600 : vector<8x32xf32>
    %602 = arith.mulf %589, %601 : vector<8x32xf32>
    %c18_i32 = arith.constant 18 : i32
    %c8_i32_136 = arith.constant 8 : i32
    %603 = arith.muli %c18_i32, %c8_i32_136 : i32
    %604 = tpu.assume_multiple %603, 8 : i32
    %605 = arith.index_cast %604 : i32 to index
    %c0_137 = arith.constant 0 : index
    %606 = vector.load %arg16[%605, %c0_137] : memref<288x32xf32, #tpu.memory_space<vmem>>, vector<8x32xf32>
    tpu.vector_store %arg16[%605, %c0_137], %602 {strides = array<i32>} : memref<288x32xf32, #tpu.memory_space<vmem>>, vector<8x32xf32>,
    %607 = arith.index_cast %604 : i32 to index
    %c0_138 = arith.constant 0 : index
    %608 = vector.load %arg15[%607, %c0_138] : memref<288x128xf32, #tpu.memory_space<vmem>>, vector<8x128xf32>
    %cst_139 = arith.constant dense<0.000000e+00> : vector<8x128xf32>
    %609 = tpu.matmul %602, %7, %cst_139 {dimension_numbers = #tpu.dot_dimension_numbers<[1], [0], [0], [1], [0, 0, 1, 1], [], []>} : vector<8x32xf32>, vector<32x128xf32>, vector<8x128xf32> -> vector<8x128xf32>
    %610 = arith.addf %608, %609 : vector<8x128xf32>
    %611 = vector.extract_strided_slice %610 {offsets = [0, 0], sizes = [8, 32], strides = [1, 1]} : vector<8x128xf32> to vector<8x32xf32>
    %612 = arith.negf %611 : vector<8x32xf32>
    %613 = math.exp %612 : vector<8x32xf32>
    %cst_140 = arith.constant 1.000000e+00 : f32
    %614 = vector.broadcast %cst_140 : f32 to vector<8x32xf32>
    %615 = arith.addf %614, %613 : vector<8x32xf32>
    %616 = arith.divf %614, %615 : vector<8x32xf32>
    %617 = vector.extract_strided_slice %610 {offsets = [0, 32], sizes = [8, 32], strides = [1, 1]} : vector<8x128xf32> to vector<8x32xf32>
    %618 = arith.negf %617 : vector<8x32xf32>
    %619 = math.exp %618 : vector<8x32xf32>
    %cst_141 = arith.constant 1.000000e+00 : f32
    %620 = vector.broadcast %cst_141 : f32 to vector<8x32xf32>
    %621 = arith.addf %620, %619 : vector<8x32xf32>
    %622 = arith.divf %620, %621 : vector<8x32xf32>
    %623 = vector.extract_strided_slice %610 {offsets = [0, 64], sizes = [8, 32], strides = [1, 1]} : vector<8x128xf32> to vector<8x32xf32>
    %624 = arith.negf %623 : vector<8x32xf32>
    %625 = math.exp %624 : vector<8x32xf32>
    %cst_142 = arith.constant 1.000000e+00 : f32
    %626 = vector.broadcast %cst_142 : f32 to vector<8x32xf32>
    %627 = arith.addf %626, %625 : vector<8x32xf32>
    %628 = arith.divf %626, %627 : vector<8x32xf32>
    %629 = vector.extract_strided_slice %610 {offsets = [0, 96], sizes = [8, 32], strides = [1, 1]} : vector<8x128xf32> to vector<8x32xf32>
    %630 = math.tanh %629 : vector<8x32xf32>
    %631 = arith.mulf %628, %600 : vector<8x32xf32>
    %632 = arith.mulf %616, %630 : vector<8x32xf32>
    %633 = arith.addf %631, %632 : vector<8x32xf32>
    %634 = math.tanh %633 : vector<8x32xf32>
    %635 = arith.mulf %622, %634 : vector<8x32xf32>
    %c19_i32 = arith.constant 19 : i32
    %c8_i32_143 = arith.constant 8 : i32
    %636 = arith.muli %c19_i32, %c8_i32_143 : i32
    %637 = tpu.assume_multiple %636, 8 : i32
    %638 = arith.index_cast %637 : i32 to index
    %c0_144 = arith.constant 0 : index
    %639 = vector.load %arg16[%638, %c0_144] : memref<288x32xf32, #tpu.memory_space<vmem>>, vector<8x32xf32>
    tpu.vector_store %arg16[%638, %c0_144], %635 {strides = array<i32>} : memref<288x32xf32, #tpu.memory_space<vmem>>, vector<8x32xf32>,
    %640 = arith.index_cast %637 : i32 to index
    %c0_145 = arith.constant 0 : index
    %641 = vector.load %arg15[%640, %c0_145] : memref<288x128xf32, #tpu.memory_space<vmem>>, vector<8x128xf32>
    %cst_146 = arith.constant dense<0.000000e+00> : vector<8x128xf32>
    %642 = tpu.matmul %635, %7, %cst_146 {dimension_numbers = #tpu.dot_dimension_numbers<[1], [0], [0], [1], [0, 0, 1, 1], [], []>} : vector<8x32xf32>, vector<32x128xf32>, vector<8x128xf32> -> vector<8x128xf32>
    %643 = arith.addf %641, %642 : vector<8x128xf32>
    %644 = vector.extract_strided_slice %643 {offsets = [0, 0], sizes = [8, 32], strides = [1, 1]} : vector<8x128xf32> to vector<8x32xf32>
    %645 = arith.negf %644 : vector<8x32xf32>
    %646 = math.exp %645 : vector<8x32xf32>
    %cst_147 = arith.constant 1.000000e+00 : f32
    %647 = vector.broadcast %cst_147 : f32 to vector<8x32xf32>
    %648 = arith.addf %647, %646 : vector<8x32xf32>
    %649 = arith.divf %647, %648 : vector<8x32xf32>
    %650 = vector.extract_strided_slice %643 {offsets = [0, 32], sizes = [8, 32], strides = [1, 1]} : vector<8x128xf32> to vector<8x32xf32>
    %651 = arith.negf %650 : vector<8x32xf32>
    %652 = math.exp %651 : vector<8x32xf32>
    %cst_148 = arith.constant 1.000000e+00 : f32
    %653 = vector.broadcast %cst_148 : f32 to vector<8x32xf32>
    %654 = arith.addf %653, %652 : vector<8x32xf32>
    %655 = arith.divf %653, %654 : vector<8x32xf32>
    %656 = vector.extract_strided_slice %643 {offsets = [0, 64], sizes = [8, 32], strides = [1, 1]} : vector<8x128xf32> to vector<8x32xf32>
    %657 = arith.negf %656 : vector<8x32xf32>
    %658 = math.exp %657 : vector<8x32xf32>
    %cst_149 = arith.constant 1.000000e+00 : f32
    %659 = vector.broadcast %cst_149 : f32 to vector<8x32xf32>
    %660 = arith.addf %659, %658 : vector<8x32xf32>
    %661 = arith.divf %659, %660 : vector<8x32xf32>
    %662 = vector.extract_strided_slice %643 {offsets = [0, 96], sizes = [8, 32], strides = [1, 1]} : vector<8x128xf32> to vector<8x32xf32>
    %663 = math.tanh %662 : vector<8x32xf32>
    %664 = arith.mulf %661, %633 : vector<8x32xf32>
    %665 = arith.mulf %649, %663 : vector<8x32xf32>
    %666 = arith.addf %664, %665 : vector<8x32xf32>
    %667 = math.tanh %666 : vector<8x32xf32>
    %668 = arith.mulf %655, %667 : vector<8x32xf32>
    %c20_i32 = arith.constant 20 : i32
    %c8_i32_150 = arith.constant 8 : i32
    %669 = arith.muli %c20_i32, %c8_i32_150 : i32
    %670 = tpu.assume_multiple %669, 8 : i32
    %671 = arith.index_cast %670 : i32 to index
    %c0_151 = arith.constant 0 : index
    %672 = vector.load %arg16[%671, %c0_151] : memref<288x32xf32, #tpu.memory_space<vmem>>, vector<8x32xf32>
    tpu.vector_store %arg16[%671, %c0_151], %668 {strides = array<i32>} : memref<288x32xf32, #tpu.memory_space<vmem>>, vector<8x32xf32>,
    %673 = arith.index_cast %670 : i32 to index
    %c0_152 = arith.constant 0 : index
    %674 = vector.load %arg15[%673, %c0_152] : memref<288x128xf32, #tpu.memory_space<vmem>>, vector<8x128xf32>
    %cst_153 = arith.constant dense<0.000000e+00> : vector<8x128xf32>
    %675 = tpu.matmul %668, %7, %cst_153 {dimension_numbers = #tpu.dot_dimension_numbers<[1], [0], [0], [1], [0, 0, 1, 1], [], []>} : vector<8x32xf32>, vector<32x128xf32>, vector<8x128xf32> -> vector<8x128xf32>
    %676 = arith.addf %674, %675 : vector<8x128xf32>
    %677 = vector.extract_strided_slice %676 {offsets = [0, 0], sizes = [8, 32], strides = [1, 1]} : vector<8x128xf32> to vector<8x32xf32>
    %678 = arith.negf %677 : vector<8x32xf32>
    %679 = math.exp %678 : vector<8x32xf32>
    %cst_154 = arith.constant 1.000000e+00 : f32
    %680 = vector.broadcast %cst_154 : f32 to vector<8x32xf32>
    %681 = arith.addf %680, %679 : vector<8x32xf32>
    %682 = arith.divf %680, %681 : vector<8x32xf32>
    %683 = vector.extract_strided_slice %676 {offsets = [0, 32], sizes = [8, 32], strides = [1, 1]} : vector<8x128xf32> to vector<8x32xf32>
    %684 = arith.negf %683 : vector<8x32xf32>
    %685 = math.exp %684 : vector<8x32xf32>
    %cst_155 = arith.constant 1.000000e+00 : f32
    %686 = vector.broadcast %cst_155 : f32 to vector<8x32xf32>
    %687 = arith.addf %686, %685 : vector<8x32xf32>
    %688 = arith.divf %686, %687 : vector<8x32xf32>
    %689 = vector.extract_strided_slice %676 {offsets = [0, 64], sizes = [8, 32], strides = [1, 1]} : vector<8x128xf32> to vector<8x32xf32>
    %690 = arith.negf %689 : vector<8x32xf32>
    %691 = math.exp %690 : vector<8x32xf32>
    %cst_156 = arith.constant 1.000000e+00 : f32
    %692 = vector.broadcast %cst_156 : f32 to vector<8x32xf32>
    %693 = arith.addf %692, %691 : vector<8x32xf32>
    %694 = arith.divf %692, %693 : vector<8x32xf32>
    %695 = vector.extract_strided_slice %676 {offsets = [0, 96], sizes = [8, 32], strides = [1, 1]} : vector<8x128xf32> to vector<8x32xf32>
    %696 = math.tanh %695 : vector<8x32xf32>
    %697 = arith.mulf %694, %666 : vector<8x32xf32>
    %698 = arith.mulf %682, %696 : vector<8x32xf32>
    %699 = arith.addf %697, %698 : vector<8x32xf32>
    %700 = math.tanh %699 : vector<8x32xf32>
    %701 = arith.mulf %688, %700 : vector<8x32xf32>
    %c21_i32 = arith.constant 21 : i32
    %c8_i32_157 = arith.constant 8 : i32
    %702 = arith.muli %c21_i32, %c8_i32_157 : i32
    %703 = tpu.assume_multiple %702, 8 : i32
    %704 = arith.index_cast %703 : i32 to index
    %c0_158 = arith.constant 0 : index
    %705 = vector.load %arg16[%704, %c0_158] : memref<288x32xf32, #tpu.memory_space<vmem>>, vector<8x32xf32>
    tpu.vector_store %arg16[%704, %c0_158], %701 {strides = array<i32>} : memref<288x32xf32, #tpu.memory_space<vmem>>, vector<8x32xf32>,
    %706 = arith.index_cast %703 : i32 to index
    %c0_159 = arith.constant 0 : index
    %707 = vector.load %arg15[%706, %c0_159] : memref<288x128xf32, #tpu.memory_space<vmem>>, vector<8x128xf32>
    %cst_160 = arith.constant dense<0.000000e+00> : vector<8x128xf32>
    %708 = tpu.matmul %701, %7, %cst_160 {dimension_numbers = #tpu.dot_dimension_numbers<[1], [0], [0], [1], [0, 0, 1, 1], [], []>} : vector<8x32xf32>, vector<32x128xf32>, vector<8x128xf32> -> vector<8x128xf32>
    %709 = arith.addf %707, %708 : vector<8x128xf32>
    %710 = vector.extract_strided_slice %709 {offsets = [0, 0], sizes = [8, 32], strides = [1, 1]} : vector<8x128xf32> to vector<8x32xf32>
    %711 = arith.negf %710 : vector<8x32xf32>
    %712 = math.exp %711 : vector<8x32xf32>
    %cst_161 = arith.constant 1.000000e+00 : f32
    %713 = vector.broadcast %cst_161 : f32 to vector<8x32xf32>
    %714 = arith.addf %713, %712 : vector<8x32xf32>
    %715 = arith.divf %713, %714 : vector<8x32xf32>
    %716 = vector.extract_strided_slice %709 {offsets = [0, 32], sizes = [8, 32], strides = [1, 1]} : vector<8x128xf32> to vector<8x32xf32>
    %717 = arith.negf %716 : vector<8x32xf32>
    %718 = math.exp %717 : vector<8x32xf32>
    %cst_162 = arith.constant 1.000000e+00 : f32
    %719 = vector.broadcast %cst_162 : f32 to vector<8x32xf32>
    %720 = arith.addf %719, %718 : vector<8x32xf32>
    %721 = arith.divf %719, %720 : vector<8x32xf32>
    %722 = vector.extract_strided_slice %709 {offsets = [0, 64], sizes = [8, 32], strides = [1, 1]} : vector<8x128xf32> to vector<8x32xf32>
    %723 = arith.negf %722 : vector<8x32xf32>
    %724 = math.exp %723 : vector<8x32xf32>
    %cst_163 = arith.constant 1.000000e+00 : f32
    %725 = vector.broadcast %cst_163 : f32 to vector<8x32xf32>
    %726 = arith.addf %725, %724 : vector<8x32xf32>
    %727 = arith.divf %725, %726 : vector<8x32xf32>
    %728 = vector.extract_strided_slice %709 {offsets = [0, 96], sizes = [8, 32], strides = [1, 1]} : vector<8x128xf32> to vector<8x32xf32>
    %729 = math.tanh %728 : vector<8x32xf32>
    %730 = arith.mulf %727, %699 : vector<8x32xf32>
    %731 = arith.mulf %715, %729 : vector<8x32xf32>
    %732 = arith.addf %730, %731 : vector<8x32xf32>
    %733 = math.tanh %732 : vector<8x32xf32>
    %734 = arith.mulf %721, %733 : vector<8x32xf32>
    %c22_i32 = arith.constant 22 : i32
    %c8_i32_164 = arith.constant 8 : i32
    %735 = arith.muli %c22_i32, %c8_i32_164 : i32
    %736 = tpu.assume_multiple %735, 8 : i32
    %737 = arith.index_cast %736 : i32 to index
    %c0_165 = arith.constant 0 : index
    %738 = vector.load %arg16[%737, %c0_165] : memref<288x32xf32, #tpu.memory_space<vmem>>, vector<8x32xf32>
    tpu.vector_store %arg16[%737, %c0_165], %734 {strides = array<i32>} : memref<288x32xf32, #tpu.memory_space<vmem>>, vector<8x32xf32>,
    %739 = arith.index_cast %736 : i32 to index
    %c0_166 = arith.constant 0 : index
    %740 = vector.load %arg15[%739, %c0_166] : memref<288x128xf32, #tpu.memory_space<vmem>>, vector<8x128xf32>
    %cst_167 = arith.constant dense<0.000000e+00> : vector<8x128xf32>
    %741 = tpu.matmul %734, %7, %cst_167 {dimension_numbers = #tpu.dot_dimension_numbers<[1], [0], [0], [1], [0, 0, 1, 1], [], []>} : vector<8x32xf32>, vector<32x128xf32>, vector<8x128xf32> -> vector<8x128xf32>
    %742 = arith.addf %740, %741 : vector<8x128xf32>
    %743 = vector.extract_strided_slice %742 {offsets = [0, 0], sizes = [8, 32], strides = [1, 1]} : vector<8x128xf32> to vector<8x32xf32>
    %744 = arith.negf %743 : vector<8x32xf32>
    %745 = math.exp %744 : vector<8x32xf32>
    %cst_168 = arith.constant 1.000000e+00 : f32
    %746 = vector.broadcast %cst_168 : f32 to vector<8x32xf32>
    %747 = arith.addf %746, %745 : vector<8x32xf32>
    %748 = arith.divf %746, %747 : vector<8x32xf32>
    %749 = vector.extract_strided_slice %742 {offsets = [0, 32], sizes = [8, 32], strides = [1, 1]} : vector<8x128xf32> to vector<8x32xf32>
    %750 = arith.negf %749 : vector<8x32xf32>
    %751 = math.exp %750 : vector<8x32xf32>
    %cst_169 = arith.constant 1.000000e+00 : f32
    %752 = vector.broadcast %cst_169 : f32 to vector<8x32xf32>
    %753 = arith.addf %752, %751 : vector<8x32xf32>
    %754 = arith.divf %752, %753 : vector<8x32xf32>
    %755 = vector.extract_strided_slice %742 {offsets = [0, 64], sizes = [8, 32], strides = [1, 1]} : vector<8x128xf32> to vector<8x32xf32>
    %756 = arith.negf %755 : vector<8x32xf32>
    %757 = math.exp %756 : vector<8x32xf32>
    %cst_170 = arith.constant 1.000000e+00 : f32
    %758 = vector.broadcast %cst_170 : f32 to vector<8x32xf32>
    %759 = arith.addf %758, %757 : vector<8x32xf32>
    %760 = arith.divf %758, %759 : vector<8x32xf32>
    %761 = vector.extract_strided_slice %742 {offsets = [0, 96], sizes = [8, 32], strides = [1, 1]} : vector<8x128xf32> to vector<8x32xf32>
    %762 = math.tanh %761 : vector<8x32xf32>
    %763 = arith.mulf %760, %732 : vector<8x32xf32>
    %764 = arith.mulf %748, %762 : vector<8x32xf32>
    %765 = arith.addf %763, %764 : vector<8x32xf32>
    %766 = math.tanh %765 : vector<8x32xf32>
    %767 = arith.mulf %754, %766 : vector<8x32xf32>
    %c23_i32 = arith.constant 23 : i32
    %c8_i32_171 = arith.constant 8 : i32
    %768 = arith.muli %c23_i32, %c8_i32_171 : i32
    %769 = tpu.assume_multiple %768, 8 : i32
    %770 = arith.index_cast %769 : i32 to index
    %c0_172 = arith.constant 0 : index
    %771 = vector.load %arg16[%770, %c0_172] : memref<288x32xf32, #tpu.memory_space<vmem>>, vector<8x32xf32>
    tpu.vector_store %arg16[%770, %c0_172], %767 {strides = array<i32>} : memref<288x32xf32, #tpu.memory_space<vmem>>, vector<8x32xf32>,
    %772 = arith.index_cast %769 : i32 to index
    %c0_173 = arith.constant 0 : index
    %773 = vector.load %arg15[%772, %c0_173] : memref<288x128xf32, #tpu.memory_space<vmem>>, vector<8x128xf32>
    %cst_174 = arith.constant dense<0.000000e+00> : vector<8x128xf32>
    %774 = tpu.matmul %767, %7, %cst_174 {dimension_numbers = #tpu.dot_dimension_numbers<[1], [0], [0], [1], [0, 0, 1, 1], [], []>} : vector<8x32xf32>, vector<32x128xf32>, vector<8x128xf32> -> vector<8x128xf32>
    %775 = arith.addf %773, %774 : vector<8x128xf32>
    %776 = vector.extract_strided_slice %775 {offsets = [0, 0], sizes = [8, 32], strides = [1, 1]} : vector<8x128xf32> to vector<8x32xf32>
    %777 = arith.negf %776 : vector<8x32xf32>
    %778 = math.exp %777 : vector<8x32xf32>
    %cst_175 = arith.constant 1.000000e+00 : f32
    %779 = vector.broadcast %cst_175 : f32 to vector<8x32xf32>
    %780 = arith.addf %779, %778 : vector<8x32xf32>
    %781 = arith.divf %779, %780 : vector<8x32xf32>
    %782 = vector.extract_strided_slice %775 {offsets = [0, 32], sizes = [8, 32], strides = [1, 1]} : vector<8x128xf32> to vector<8x32xf32>
    %783 = arith.negf %782 : vector<8x32xf32>
    %784 = math.exp %783 : vector<8x32xf32>
    %cst_176 = arith.constant 1.000000e+00 : f32
    %785 = vector.broadcast %cst_176 : f32 to vector<8x32xf32>
    %786 = arith.addf %785, %784 : vector<8x32xf32>
    %787 = arith.divf %785, %786 : vector<8x32xf32>
    %788 = vector.extract_strided_slice %775 {offsets = [0, 64], sizes = [8, 32], strides = [1, 1]} : vector<8x128xf32> to vector<8x32xf32>
    %789 = arith.negf %788 : vector<8x32xf32>
    %790 = math.exp %789 : vector<8x32xf32>
    %cst_177 = arith.constant 1.000000e+00 : f32
    %791 = vector.broadcast %cst_177 : f32 to vector<8x32xf32>
    %792 = arith.addf %791, %790 : vector<8x32xf32>
    %793 = arith.divf %791, %792 : vector<8x32xf32>
    %794 = vector.extract_strided_slice %775 {offsets = [0, 96], sizes = [8, 32], strides = [1, 1]} : vector<8x128xf32> to vector<8x32xf32>
    %795 = math.tanh %794 : vector<8x32xf32>
    %796 = arith.mulf %793, %765 : vector<8x32xf32>
    %797 = arith.mulf %781, %795 : vector<8x32xf32>
    %798 = arith.addf %796, %797 : vector<8x32xf32>
    %799 = math.tanh %798 : vector<8x32xf32>
    %800 = arith.mulf %787, %799 : vector<8x32xf32>
    %c24_i32 = arith.constant 24 : i32
    %c8_i32_178 = arith.constant 8 : i32
    %801 = arith.muli %c24_i32, %c8_i32_178 : i32
    %802 = tpu.assume_multiple %801, 8 : i32
    %803 = arith.index_cast %802 : i32 to index
    %c0_179 = arith.constant 0 : index
    %804 = vector.load %arg16[%803, %c0_179] : memref<288x32xf32, #tpu.memory_space<vmem>>, vector<8x32xf32>
    tpu.vector_store %arg16[%803, %c0_179], %800 {strides = array<i32>} : memref<288x32xf32, #tpu.memory_space<vmem>>, vector<8x32xf32>,
    %805 = arith.index_cast %802 : i32 to index
    %c0_180 = arith.constant 0 : index
    %806 = vector.load %arg15[%805, %c0_180] : memref<288x128xf32, #tpu.memory_space<vmem>>, vector<8x128xf32>
    %cst_181 = arith.constant dense<0.000000e+00> : vector<8x128xf32>
    %807 = tpu.matmul %800, %7, %cst_181 {dimension_numbers = #tpu.dot_dimension_numbers<[1], [0], [0], [1], [0, 0, 1, 1], [], []>} : vector<8x32xf32>, vector<32x128xf32>, vector<8x128xf32> -> vector<8x128xf32>
    %808 = arith.addf %806, %807 : vector<8x128xf32>
    %809 = vector.extract_strided_slice %808 {offsets = [0, 0], sizes = [8, 32], strides = [1, 1]} : vector<8x128xf32> to vector<8x32xf32>
    %810 = arith.negf %809 : vector<8x32xf32>
    %811 = math.exp %810 : vector<8x32xf32>
    %cst_182 = arith.constant 1.000000e+00 : f32
    %812 = vector.broadcast %cst_182 : f32 to vector<8x32xf32>
    %813 = arith.addf %812, %811 : vector<8x32xf32>
    %814 = arith.divf %812, %813 : vector<8x32xf32>
    %815 = vector.extract_strided_slice %808 {offsets = [0, 32], sizes = [8, 32], strides = [1, 1]} : vector<8x128xf32> to vector<8x32xf32>
    %816 = arith.negf %815 : vector<8x32xf32>
    %817 = math.exp %816 : vector<8x32xf32>
    %cst_183 = arith.constant 1.000000e+00 : f32
    %818 = vector.broadcast %cst_183 : f32 to vector<8x32xf32>
    %819 = arith.addf %818, %817 : vector<8x32xf32>
    %820 = arith.divf %818, %819 : vector<8x32xf32>
    %821 = vector.extract_strided_slice %808 {offsets = [0, 64], sizes = [8, 32], strides = [1, 1]} : vector<8x128xf32> to vector<8x32xf32>
    %822 = arith.negf %821 : vector<8x32xf32>
    %823 = math.exp %822 : vector<8x32xf32>
    %cst_184 = arith.constant 1.000000e+00 : f32
    %824 = vector.broadcast %cst_184 : f32 to vector<8x32xf32>
    %825 = arith.addf %824, %823 : vector<8x32xf32>
    %826 = arith.divf %824, %825 : vector<8x32xf32>
    %827 = vector.extract_strided_slice %808 {offsets = [0, 96], sizes = [8, 32], strides = [1, 1]} : vector<8x128xf32> to vector<8x32xf32>
    %828 = math.tanh %827 : vector<8x32xf32>
    %829 = arith.mulf %826, %798 : vector<8x32xf32>
    %830 = arith.mulf %814, %828 : vector<8x32xf32>
    %831 = arith.addf %829, %830 : vector<8x32xf32>
    %832 = math.tanh %831 : vector<8x32xf32>
    %833 = arith.mulf %820, %832 : vector<8x32xf32>
    %c25_i32 = arith.constant 25 : i32
    %c8_i32_185 = arith.constant 8 : i32
    %834 = arith.muli %c25_i32, %c8_i32_185 : i32
    %835 = tpu.assume_multiple %834, 8 : i32
    %836 = arith.index_cast %835 : i32 to index
    %c0_186 = arith.constant 0 : index
    %837 = vector.load %arg16[%836, %c0_186] : memref<288x32xf32, #tpu.memory_space<vmem>>, vector<8x32xf32>
    tpu.vector_store %arg16[%836, %c0_186], %833 {strides = array<i32>} : memref<288x32xf32, #tpu.memory_space<vmem>>, vector<8x32xf32>,
    %838 = arith.index_cast %835 : i32 to index
    %c0_187 = arith.constant 0 : index
    %839 = vector.load %arg15[%838, %c0_187] : memref<288x128xf32, #tpu.memory_space<vmem>>, vector<8x128xf32>
    %cst_188 = arith.constant dense<0.000000e+00> : vector<8x128xf32>
    %840 = tpu.matmul %833, %7, %cst_188 {dimension_numbers = #tpu.dot_dimension_numbers<[1], [0], [0], [1], [0, 0, 1, 1], [], []>} : vector<8x32xf32>, vector<32x128xf32>, vector<8x128xf32> -> vector<8x128xf32>
    %841 = arith.addf %839, %840 : vector<8x128xf32>
    %842 = vector.extract_strided_slice %841 {offsets = [0, 0], sizes = [8, 32], strides = [1, 1]} : vector<8x128xf32> to vector<8x32xf32>
    %843 = arith.negf %842 : vector<8x32xf32>
    %844 = math.exp %843 : vector<8x32xf32>
    %cst_189 = arith.constant 1.000000e+00 : f32
    %845 = vector.broadcast %cst_189 : f32 to vector<8x32xf32>
    %846 = arith.addf %845, %844 : vector<8x32xf32>
    %847 = arith.divf %845, %846 : vector<8x32xf32>
    %848 = vector.extract_strided_slice %841 {offsets = [0, 32], sizes = [8, 32], strides = [1, 1]} : vector<8x128xf32> to vector<8x32xf32>
    %849 = arith.negf %848 : vector<8x32xf32>
    %850 = math.exp %849 : vector<8x32xf32>
    %cst_190 = arith.constant 1.000000e+00 : f32
    %851 = vector.broadcast %cst_190 : f32 to vector<8x32xf32>
    %852 = arith.addf %851, %850 : vector<8x32xf32>
    %853 = arith.divf %851, %852 : vector<8x32xf32>
    %854 = vector.extract_strided_slice %841 {offsets = [0, 64], sizes = [8, 32], strides = [1, 1]} : vector<8x128xf32> to vector<8x32xf32>
    %855 = arith.negf %854 : vector<8x32xf32>
    %856 = math.exp %855 : vector<8x32xf32>
    %cst_191 = arith.constant 1.000000e+00 : f32
    %857 = vector.broadcast %cst_191 : f32 to vector<8x32xf32>
    %858 = arith.addf %857, %856 : vector<8x32xf32>
    %859 = arith.divf %857, %858 : vector<8x32xf32>
    %860 = vector.extract_strided_slice %841 {offsets = [0, 96], sizes = [8, 32], strides = [1, 1]} : vector<8x128xf32> to vector<8x32xf32>
    %861 = math.tanh %860 : vector<8x32xf32>
    %862 = arith.mulf %859, %831 : vector<8x32xf32>
    %863 = arith.mulf %847, %861 : vector<8x32xf32>
    %864 = arith.addf %862, %863 : vector<8x32xf32>
    %865 = math.tanh %864 : vector<8x32xf32>
    %866 = arith.mulf %853, %865 : vector<8x32xf32>
    %c26_i32 = arith.constant 26 : i32
    %c8_i32_192 = arith.constant 8 : i32
    %867 = arith.muli %c26_i32, %c8_i32_192 : i32
    %868 = tpu.assume_multiple %867, 8 : i32
    %869 = arith.index_cast %868 : i32 to index
    %c0_193 = arith.constant 0 : index
    %870 = vector.load %arg16[%869, %c0_193] : memref<288x32xf32, #tpu.memory_space<vmem>>, vector<8x32xf32>
    tpu.vector_store %arg16[%869, %c0_193], %866 {strides = array<i32>} : memref<288x32xf32, #tpu.memory_space<vmem>>, vector<8x32xf32>,
    %871 = arith.index_cast %868 : i32 to index
    %c0_194 = arith.constant 0 : index
    %872 = vector.load %arg15[%871, %c0_194] : memref<288x128xf32, #tpu.memory_space<vmem>>, vector<8x128xf32>
    %cst_195 = arith.constant dense<0.000000e+00> : vector<8x128xf32>
    %873 = tpu.matmul %866, %7, %cst_195 {dimension_numbers = #tpu.dot_dimension_numbers<[1], [0], [0], [1], [0, 0, 1, 1], [], []>} : vector<8x32xf32>, vector<32x128xf32>, vector<8x128xf32> -> vector<8x128xf32>
    %874 = arith.addf %872, %873 : vector<8x128xf32>
    %875 = vector.extract_strided_slice %874 {offsets = [0, 0], sizes = [8, 32], strides = [1, 1]} : vector<8x128xf32> to vector<8x32xf32>
    %876 = arith.negf %875 : vector<8x32xf32>
    %877 = math.exp %876 : vector<8x32xf32>
    %cst_196 = arith.constant 1.000000e+00 : f32
    %878 = vector.broadcast %cst_196 : f32 to vector<8x32xf32>
    %879 = arith.addf %878, %877 : vector<8x32xf32>
    %880 = arith.divf %878, %879 : vector<8x32xf32>
    %881 = vector.extract_strided_slice %874 {offsets = [0, 32], sizes = [8, 32], strides = [1, 1]} : vector<8x128xf32> to vector<8x32xf32>
    %882 = arith.negf %881 : vector<8x32xf32>
    %883 = math.exp %882 : vector<8x32xf32>
    %cst_197 = arith.constant 1.000000e+00 : f32
    %884 = vector.broadcast %cst_197 : f32 to vector<8x32xf32>
    %885 = arith.addf %884, %883 : vector<8x32xf32>
    %886 = arith.divf %884, %885 : vector<8x32xf32>
    %887 = vector.extract_strided_slice %874 {offsets = [0, 64], sizes = [8, 32], strides = [1, 1]} : vector<8x128xf32> to vector<8x32xf32>
    %888 = arith.negf %887 : vector<8x32xf32>
    %889 = math.exp %888 : vector<8x32xf32>
    %cst_198 = arith.constant 1.000000e+00 : f32
    %890 = vector.broadcast %cst_198 : f32 to vector<8x32xf32>
    %891 = arith.addf %890, %889 : vector<8x32xf32>
    %892 = arith.divf %890, %891 : vector<8x32xf32>
    %893 = vector.extract_strided_slice %874 {offsets = [0, 96], sizes = [8, 32], strides = [1, 1]} : vector<8x128xf32> to vector<8x32xf32>
    %894 = math.tanh %893 : vector<8x32xf32>
    %895 = arith.mulf %892, %864 : vector<8x32xf32>
    %896 = arith.mulf %880, %894 : vector<8x32xf32>
    %897 = arith.addf %895, %896 : vector<8x32xf32>
    %898 = math.tanh %897 : vector<8x32xf32>
    %899 = arith.mulf %886, %898 : vector<8x32xf32>
    %c27_i32 = arith.constant 27 : i32
    %c8_i32_199 = arith.constant 8 : i32
    %900 = arith.muli %c27_i32, %c8_i32_199 : i32
    %901 = tpu.assume_multiple %900, 8 : i32
    %902 = arith.index_cast %901 : i32 to index
    %c0_200 = arith.constant 0 : index
    %903 = vector.load %arg16[%902, %c0_200] : memref<288x32xf32, #tpu.memory_space<vmem>>, vector<8x32xf32>
    tpu.vector_store %arg16[%902, %c0_200], %899 {strides = array<i32>} : memref<288x32xf32, #tpu.memory_space<vmem>>, vector<8x32xf32>,
    %904 = arith.index_cast %901 : i32 to index
    %c0_201 = arith.constant 0 : index
    %905 = vector.load %arg15[%904, %c0_201] : memref<288x128xf32, #tpu.memory_space<vmem>>, vector<8x128xf32>
    %cst_202 = arith.constant dense<0.000000e+00> : vector<8x128xf32>
    %906 = tpu.matmul %899, %7, %cst_202 {dimension_numbers = #tpu.dot_dimension_numbers<[1], [0], [0], [1], [0, 0, 1, 1], [], []>} : vector<8x32xf32>, vector<32x128xf32>, vector<8x128xf32> -> vector<8x128xf32>
    %907 = arith.addf %905, %906 : vector<8x128xf32>
    %908 = vector.extract_strided_slice %907 {offsets = [0, 0], sizes = [8, 32], strides = [1, 1]} : vector<8x128xf32> to vector<8x32xf32>
    %909 = arith.negf %908 : vector<8x32xf32>
    %910 = math.exp %909 : vector<8x32xf32>
    %cst_203 = arith.constant 1.000000e+00 : f32
    %911 = vector.broadcast %cst_203 : f32 to vector<8x32xf32>
    %912 = arith.addf %911, %910 : vector<8x32xf32>
    %913 = arith.divf %911, %912 : vector<8x32xf32>
    %914 = vector.extract_strided_slice %907 {offsets = [0, 32], sizes = [8, 32], strides = [1, 1]} : vector<8x128xf32> to vector<8x32xf32>
    %915 = arith.negf %914 : vector<8x32xf32>
    %916 = math.exp %915 : vector<8x32xf32>
    %cst_204 = arith.constant 1.000000e+00 : f32
    %917 = vector.broadcast %cst_204 : f32 to vector<8x32xf32>
    %918 = arith.addf %917, %916 : vector<8x32xf32>
    %919 = arith.divf %917, %918 : vector<8x32xf32>
    %920 = vector.extract_strided_slice %907 {offsets = [0, 64], sizes = [8, 32], strides = [1, 1]} : vector<8x128xf32> to vector<8x32xf32>
    %921 = arith.negf %920 : vector<8x32xf32>
    %922 = math.exp %921 : vector<8x32xf32>
    %cst_205 = arith.constant 1.000000e+00 : f32
    %923 = vector.broadcast %cst_205 : f32 to vector<8x32xf32>
    %924 = arith.addf %923, %922 : vector<8x32xf32>
    %925 = arith.divf %923, %924 : vector<8x32xf32>
    %926 = vector.extract_strided_slice %907 {offsets = [0, 96], sizes = [8, 32], strides = [1, 1]} : vector<8x128xf32> to vector<8x32xf32>
    %927 = math.tanh %926 : vector<8x32xf32>
    %928 = arith.mulf %925, %897 : vector<8x32xf32>
    %929 = arith.mulf %913, %927 : vector<8x32xf32>
    %930 = arith.addf %928, %929 : vector<8x32xf32>
    %931 = math.tanh %930 : vector<8x32xf32>
    %932 = arith.mulf %919, %931 : vector<8x32xf32>
    %c28_i32 = arith.constant 28 : i32
    %c8_i32_206 = arith.constant 8 : i32
    %933 = arith.muli %c28_i32, %c8_i32_206 : i32
    %934 = tpu.assume_multiple %933, 8 : i32
    %935 = arith.index_cast %934 : i32 to index
    %c0_207 = arith.constant 0 : index
    %936 = vector.load %arg16[%935, %c0_207] : memref<288x32xf32, #tpu.memory_space<vmem>>, vector<8x32xf32>
    tpu.vector_store %arg16[%935, %c0_207], %932 {strides = array<i32>} : memref<288x32xf32, #tpu.memory_space<vmem>>, vector<8x32xf32>,
    %937 = arith.index_cast %934 : i32 to index
    %c0_208 = arith.constant 0 : index
    %938 = vector.load %arg15[%937, %c0_208] : memref<288x128xf32, #tpu.memory_space<vmem>>, vector<8x128xf32>
    %cst_209 = arith.constant dense<0.000000e+00> : vector<8x128xf32>
    %939 = tpu.matmul %932, %7, %cst_209 {dimension_numbers = #tpu.dot_dimension_numbers<[1], [0], [0], [1], [0, 0, 1, 1], [], []>} : vector<8x32xf32>, vector<32x128xf32>, vector<8x128xf32> -> vector<8x128xf32>
    %940 = arith.addf %938, %939 : vector<8x128xf32>
    %941 = vector.extract_strided_slice %940 {offsets = [0, 0], sizes = [8, 32], strides = [1, 1]} : vector<8x128xf32> to vector<8x32xf32>
    %942 = arith.negf %941 : vector<8x32xf32>
    %943 = math.exp %942 : vector<8x32xf32>
    %cst_210 = arith.constant 1.000000e+00 : f32
    %944 = vector.broadcast %cst_210 : f32 to vector<8x32xf32>
    %945 = arith.addf %944, %943 : vector<8x32xf32>
    %946 = arith.divf %944, %945 : vector<8x32xf32>
    %947 = vector.extract_strided_slice %940 {offsets = [0, 32], sizes = [8, 32], strides = [1, 1]} : vector<8x128xf32> to vector<8x32xf32>
    %948 = arith.negf %947 : vector<8x32xf32>
    %949 = math.exp %948 : vector<8x32xf32>
    %cst_211 = arith.constant 1.000000e+00 : f32
    %950 = vector.broadcast %cst_211 : f32 to vector<8x32xf32>
    %951 = arith.addf %950, %949 : vector<8x32xf32>
    %952 = arith.divf %950, %951 : vector<8x32xf32>
    %953 = vector.extract_strided_slice %940 {offsets = [0, 64], sizes = [8, 32], strides = [1, 1]} : vector<8x128xf32> to vector<8x32xf32>
    %954 = arith.negf %953 : vector<8x32xf32>
    %955 = math.exp %954 : vector<8x32xf32>
    %cst_212 = arith.constant 1.000000e+00 : f32
    %956 = vector.broadcast %cst_212 : f32 to vector<8x32xf32>
    %957 = arith.addf %956, %955 : vector<8x32xf32>
    %958 = arith.divf %956, %957 : vector<8x32xf32>
    %959 = vector.extract_strided_slice %940 {offsets = [0, 96], sizes = [8, 32], strides = [1, 1]} : vector<8x128xf32> to vector<8x32xf32>
    %960 = math.tanh %959 : vector<8x32xf32>
    %961 = arith.mulf %958, %930 : vector<8x32xf32>
    %962 = arith.mulf %946, %960 : vector<8x32xf32>
    %963 = arith.addf %961, %962 : vector<8x32xf32>
    %964 = math.tanh %963 : vector<8x32xf32>
    %965 = arith.mulf %952, %964 : vector<8x32xf32>
    %c29_i32 = arith.constant 29 : i32
    %c8_i32_213 = arith.constant 8 : i32
    %966 = arith.muli %c29_i32, %c8_i32_213 : i32
    %967 = tpu.assume_multiple %966, 8 : i32
    %968 = arith.index_cast %967 : i32 to index
    %c0_214 = arith.constant 0 : index
    %969 = vector.load %arg16[%968, %c0_214] : memref<288x32xf32, #tpu.memory_space<vmem>>, vector<8x32xf32>
    tpu.vector_store %arg16[%968, %c0_214], %965 {strides = array<i32>} : memref<288x32xf32, #tpu.memory_space<vmem>>, vector<8x32xf32>,
    %970 = arith.index_cast %967 : i32 to index
    %c0_215 = arith.constant 0 : index
    %971 = vector.load %arg15[%970, %c0_215] : memref<288x128xf32, #tpu.memory_space<vmem>>, vector<8x128xf32>
    %cst_216 = arith.constant dense<0.000000e+00> : vector<8x128xf32>
    %972 = tpu.matmul %965, %7, %cst_216 {dimension_numbers = #tpu.dot_dimension_numbers<[1], [0], [0], [1], [0, 0, 1, 1], [], []>} : vector<8x32xf32>, vector<32x128xf32>, vector<8x128xf32> -> vector<8x128xf32>
    %973 = arith.addf %971, %972 : vector<8x128xf32>
    %974 = vector.extract_strided_slice %973 {offsets = [0, 0], sizes = [8, 32], strides = [1, 1]} : vector<8x128xf32> to vector<8x32xf32>
    %975 = arith.negf %974 : vector<8x32xf32>
    %976 = math.exp %975 : vector<8x32xf32>
    %cst_217 = arith.constant 1.000000e+00 : f32
    %977 = vector.broadcast %cst_217 : f32 to vector<8x32xf32>
    %978 = arith.addf %977, %976 : vector<8x32xf32>
    %979 = arith.divf %977, %978 : vector<8x32xf32>
    %980 = vector.extract_strided_slice %973 {offsets = [0, 32], sizes = [8, 32], strides = [1, 1]} : vector<8x128xf32> to vector<8x32xf32>
    %981 = arith.negf %980 : vector<8x32xf32>
    %982 = math.exp %981 : vector<8x32xf32>
    %cst_218 = arith.constant 1.000000e+00 : f32
    %983 = vector.broadcast %cst_218 : f32 to vector<8x32xf32>
    %984 = arith.addf %983, %982 : vector<8x32xf32>
    %985 = arith.divf %983, %984 : vector<8x32xf32>
    %986 = vector.extract_strided_slice %973 {offsets = [0, 64], sizes = [8, 32], strides = [1, 1]} : vector<8x128xf32> to vector<8x32xf32>
    %987 = arith.negf %986 : vector<8x32xf32>
    %988 = math.exp %987 : vector<8x32xf32>
    %cst_219 = arith.constant 1.000000e+00 : f32
    %989 = vector.broadcast %cst_219 : f32 to vector<8x32xf32>
    %990 = arith.addf %989, %988 : vector<8x32xf32>
    %991 = arith.divf %989, %990 : vector<8x32xf32>
    %992 = vector.extract_strided_slice %973 {offsets = [0, 96], sizes = [8, 32], strides = [1, 1]} : vector<8x128xf32> to vector<8x32xf32>
    %993 = math.tanh %992 : vector<8x32xf32>
    %994 = arith.mulf %991, %963 : vector<8x32xf32>
    %995 = arith.mulf %979, %993 : vector<8x32xf32>
    %996 = arith.addf %994, %995 : vector<8x32xf32>
    %997 = math.tanh %996 : vector<8x32xf32>
    %998 = arith.mulf %985, %997 : vector<8x32xf32>
    %c30_i32 = arith.constant 30 : i32
    %c8_i32_220 = arith.constant 8 : i32
    %999 = arith.muli %c30_i32, %c8_i32_220 : i32
    %1000 = tpu.assume_multiple %999, 8 : i32
    %1001 = arith.index_cast %1000 : i32 to index
    %c0_221 = arith.constant 0 : index
    %1002 = vector.load %arg16[%1001, %c0_221] : memref<288x32xf32, #tpu.memory_space<vmem>>, vector<8x32xf32>
    tpu.vector_store %arg16[%1001, %c0_221], %998 {strides = array<i32>} : memref<288x32xf32, #tpu.memory_space<vmem>>, vector<8x32xf32>,
    %1003 = arith.index_cast %1000 : i32 to index
    %c0_222 = arith.constant 0 : index
    %1004 = vector.load %arg15[%1003, %c0_222] : memref<288x128xf32, #tpu.memory_space<vmem>>, vector<8x128xf32>
    %cst_223 = arith.constant dense<0.000000e+00> : vector<8x128xf32>
    %1005 = tpu.matmul %998, %7, %cst_223 {dimension_numbers = #tpu.dot_dimension_numbers<[1], [0], [0], [1], [0, 0, 1, 1], [], []>} : vector<8x32xf32>, vector<32x128xf32>, vector<8x128xf32> -> vector<8x128xf32>
    %1006 = arith.addf %1004, %1005 : vector<8x128xf32>
    %1007 = vector.extract_strided_slice %1006 {offsets = [0, 0], sizes = [8, 32], strides = [1, 1]} : vector<8x128xf32> to vector<8x32xf32>
    %1008 = arith.negf %1007 : vector<8x32xf32>
    %1009 = math.exp %1008 : vector<8x32xf32>
    %cst_224 = arith.constant 1.000000e+00 : f32
    %1010 = vector.broadcast %cst_224 : f32 to vector<8x32xf32>
    %1011 = arith.addf %1010, %1009 : vector<8x32xf32>
    %1012 = arith.divf %1010, %1011 : vector<8x32xf32>
    %1013 = vector.extract_strided_slice %1006 {offsets = [0, 32], sizes = [8, 32], strides = [1, 1]} : vector<8x128xf32> to vector<8x32xf32>
    %1014 = arith.negf %1013 : vector<8x32xf32>
    %1015 = math.exp %1014 : vector<8x32xf32>
    %cst_225 = arith.constant 1.000000e+00 : f32
    %1016 = vector.broadcast %cst_225 : f32 to vector<8x32xf32>
    %1017 = arith.addf %1016, %1015 : vector<8x32xf32>
    %1018 = arith.divf %1016, %1017 : vector<8x32xf32>
    %1019 = vector.extract_strided_slice %1006 {offsets = [0, 64], sizes = [8, 32], strides = [1, 1]} : vector<8x128xf32> to vector<8x32xf32>
    %1020 = arith.negf %1019 : vector<8x32xf32>
    %1021 = math.exp %1020 : vector<8x32xf32>
    %cst_226 = arith.constant 1.000000e+00 : f32
    %1022 = vector.broadcast %cst_226 : f32 to vector<8x32xf32>
    %1023 = arith.addf %1022, %1021 : vector<8x32xf32>
    %1024 = arith.divf %1022, %1023 : vector<8x32xf32>
    %1025 = vector.extract_strided_slice %1006 {offsets = [0, 96], sizes = [8, 32], strides = [1, 1]} : vector<8x128xf32> to vector<8x32xf32>
    %1026 = math.tanh %1025 : vector<8x32xf32>
    %1027 = arith.mulf %1024, %996 : vector<8x32xf32>
    %1028 = arith.mulf %1012, %1026 : vector<8x32xf32>
    %1029 = arith.addf %1027, %1028 : vector<8x32xf32>
    %1030 = math.tanh %1029 : vector<8x32xf32>
    %1031 = arith.mulf %1018, %1030 : vector<8x32xf32>
    %c31_i32 = arith.constant 31 : i32
    %c8_i32_227 = arith.constant 8 : i32
    %1032 = arith.muli %c31_i32, %c8_i32_227 : i32
    %1033 = tpu.assume_multiple %1032, 8 : i32
    %1034 = arith.index_cast %1033 : i32 to index
    %c0_228 = arith.constant 0 : index
    %1035 = vector.load %arg16[%1034, %c0_228] : memref<288x32xf32, #tpu.memory_space<vmem>>, vector<8x32xf32>
    tpu.vector_store %arg16[%1034, %c0_228], %1031 {strides = array<i32>} : memref<288x32xf32, #tpu.memory_space<vmem>>, vector<8x32xf32>,
    %1036 = arith.index_cast %1033 : i32 to index
    %c0_229 = arith.constant 0 : index
    %1037 = vector.load %arg15[%1036, %c0_229] : memref<288x128xf32, #tpu.memory_space<vmem>>, vector<8x128xf32>
    %cst_230 = arith.constant dense<0.000000e+00> : vector<8x128xf32>
    %1038 = tpu.matmul %1031, %7, %cst_230 {dimension_numbers = #tpu.dot_dimension_numbers<[1], [0], [0], [1], [0, 0, 1, 1], [], []>} : vector<8x32xf32>, vector<32x128xf32>, vector<8x128xf32> -> vector<8x128xf32>
    %1039 = arith.addf %1037, %1038 : vector<8x128xf32>
    %1040 = vector.extract_strided_slice %1039 {offsets = [0, 0], sizes = [8, 32], strides = [1, 1]} : vector<8x128xf32> to vector<8x32xf32>
    %1041 = arith.negf %1040 : vector<8x32xf32>
    %1042 = math.exp %1041 : vector<8x32xf32>
    %cst_231 = arith.constant 1.000000e+00 : f32
    %1043 = vector.broadcast %cst_231 : f32 to vector<8x32xf32>
    %1044 = arith.addf %1043, %1042 : vector<8x32xf32>
    %1045 = arith.divf %1043, %1044 : vector<8x32xf32>
    %1046 = vector.extract_strided_slice %1039 {offsets = [0, 32], sizes = [8, 32], strides = [1, 1]} : vector<8x128xf32> to vector<8x32xf32>
    %1047 = arith.negf %1046 : vector<8x32xf32>
    %1048 = math.exp %1047 : vector<8x32xf32>
    %cst_232 = arith.constant 1.000000e+00 : f32
    %1049 = vector.broadcast %cst_232 : f32 to vector<8x32xf32>
    %1050 = arith.addf %1049, %1048 : vector<8x32xf32>
    %1051 = arith.divf %1049, %1050 : vector<8x32xf32>
    %1052 = vector.extract_strided_slice %1039 {offsets = [0, 64], sizes = [8, 32], strides = [1, 1]} : vector<8x128xf32> to vector<8x32xf32>
    %1053 = arith.negf %1052 : vector<8x32xf32>
    %1054 = math.exp %1053 : vector<8x32xf32>
    %cst_233 = arith.constant 1.000000e+00 : f32
    %1055 = vector.broadcast %cst_233 : f32 to vector<8x32xf32>
    %1056 = arith.addf %1055, %1054 : vector<8x32xf32>
    %1057 = arith.divf %1055, %1056 : vector<8x32xf32>
    %1058 = vector.extract_strided_slice %1039 {offsets = [0, 96], sizes = [8, 32], strides = [1, 1]} : vector<8x128xf32> to vector<8x32xf32>
    %1059 = math.tanh %1058 : vector<8x32xf32>
    %1060 = arith.mulf %1057, %1029 : vector<8x32xf32>
    %1061 = arith.mulf %1045, %1059 : vector<8x32xf32>
    %1062 = arith.addf %1060, %1061 : vector<8x32xf32>
    %1063 = math.tanh %1062 : vector<8x32xf32>
    %1064 = arith.mulf %1051, %1063 : vector<8x32xf32>
    %c32_i32 = arith.constant 32 : i32
    %c8_i32_234 = arith.constant 8 : i32
    %1065 = arith.muli %c32_i32, %c8_i32_234 : i32
    %1066 = tpu.assume_multiple %1065, 8 : i32
    %1067 = arith.index_cast %1066 : i32 to index
    %c0_235 = arith.constant 0 : index
    %1068 = vector.load %arg16[%1067, %c0_235] : memref<288x32xf32, #tpu.memory_space<vmem>>, vector<8x32xf32>
    tpu.vector_store %arg16[%1067, %c0_235], %1064 {strides = array<i32>} : memref<288x32xf32, #tpu.memory_space<vmem>>, vector<8x32xf32>,
    %1069 = arith.index_cast %1066 : i32 to index
    %c0_236 = arith.constant 0 : index
    %1070 = vector.load %arg15[%1069, %c0_236] : memref<288x128xf32, #tpu.memory_space<vmem>>, vector<8x128xf32>
    %cst_237 = arith.constant dense<0.000000e+00> : vector<8x128xf32>
    %1071 = tpu.matmul %1064, %7, %cst_237 {dimension_numbers = #tpu.dot_dimension_numbers<[1], [0], [0], [1], [0, 0, 1, 1], [], []>} : vector<8x32xf32>, vector<32x128xf32>, vector<8x128xf32> -> vector<8x128xf32>
    %1072 = arith.addf %1070, %1071 : vector<8x128xf32>
    %1073 = vector.extract_strided_slice %1072 {offsets = [0, 0], sizes = [8, 32], strides = [1, 1]} : vector<8x128xf32> to vector<8x32xf32>
    %1074 = arith.negf %1073 : vector<8x32xf32>
    %1075 = math.exp %1074 : vector<8x32xf32>
    %cst_238 = arith.constant 1.000000e+00 : f32
    %1076 = vector.broadcast %cst_238 : f32 to vector<8x32xf32>
    %1077 = arith.addf %1076, %1075 : vector<8x32xf32>
    %1078 = arith.divf %1076, %1077 : vector<8x32xf32>
    %1079 = vector.extract_strided_slice %1072 {offsets = [0, 32], sizes = [8, 32], strides = [1, 1]} : vector<8x128xf32> to vector<8x32xf32>
    %1080 = arith.negf %1079 : vector<8x32xf32>
    %1081 = math.exp %1080 : vector<8x32xf32>
    %cst_239 = arith.constant 1.000000e+00 : f32
    %1082 = vector.broadcast %cst_239 : f32 to vector<8x32xf32>
    %1083 = arith.addf %1082, %1081 : vector<8x32xf32>
    %1084 = arith.divf %1082, %1083 : vector<8x32xf32>
    %1085 = vector.extract_strided_slice %1072 {offsets = [0, 64], sizes = [8, 32], strides = [1, 1]} : vector<8x128xf32> to vector<8x32xf32>
    %1086 = arith.negf %1085 : vector<8x32xf32>
    %1087 = math.exp %1086 : vector<8x32xf32>
    %cst_240 = arith.constant 1.000000e+00 : f32
    %1088 = vector.broadcast %cst_240 : f32 to vector<8x32xf32>
    %1089 = arith.addf %1088, %1087 : vector<8x32xf32>
    %1090 = arith.divf %1088, %1089 : vector<8x32xf32>
    %1091 = vector.extract_strided_slice %1072 {offsets = [0, 96], sizes = [8, 32], strides = [1, 1]} : vector<8x128xf32> to vector<8x32xf32>
    %1092 = math.tanh %1091 : vector<8x32xf32>
    %1093 = arith.mulf %1090, %1062 : vector<8x32xf32>
    %1094 = arith.mulf %1078, %1092 : vector<8x32xf32>
    %1095 = arith.addf %1093, %1094 : vector<8x32xf32>
    %1096 = math.tanh %1095 : vector<8x32xf32>
    %1097 = arith.mulf %1084, %1096 : vector<8x32xf32>
    %c33_i32 = arith.constant 33 : i32
    %c8_i32_241 = arith.constant 8 : i32
    %1098 = arith.muli %c33_i32, %c8_i32_241 : i32
    %1099 = tpu.assume_multiple %1098, 8 : i32
    %1100 = arith.index_cast %1099 : i32 to index
    %c0_242 = arith.constant 0 : index
    %1101 = vector.load %arg16[%1100, %c0_242] : memref<288x32xf32, #tpu.memory_space<vmem>>, vector<8x32xf32>
    tpu.vector_store %arg16[%1100, %c0_242], %1097 {strides = array<i32>} : memref<288x32xf32, #tpu.memory_space<vmem>>, vector<8x32xf32>,
    %1102 = arith.index_cast %1099 : i32 to index
    %c0_243 = arith.constant 0 : index
    %1103 = vector.load %arg15[%1102, %c0_243] : memref<288x128xf32, #tpu.memory_space<vmem>>, vector<8x128xf32>
    %cst_244 = arith.constant dense<0.000000e+00> : vector<8x128xf32>
    %1104 = tpu.matmul %1097, %7, %cst_244 {dimension_numbers = #tpu.dot_dimension_numbers<[1], [0], [0], [1], [0, 0, 1, 1], [], []>} : vector<8x32xf32>, vector<32x128xf32>, vector<8x128xf32> -> vector<8x128xf32>
    %1105 = arith.addf %1103, %1104 : vector<8x128xf32>
    %1106 = vector.extract_strided_slice %1105 {offsets = [0, 0], sizes = [8, 32], strides = [1, 1]} : vector<8x128xf32> to vector<8x32xf32>
    %1107 = arith.negf %1106 : vector<8x32xf32>
    %1108 = math.exp %1107 : vector<8x32xf32>
    %cst_245 = arith.constant 1.000000e+00 : f32
    %1109 = vector.broadcast %cst_245 : f32 to vector<8x32xf32>
    %1110 = arith.addf %1109, %1108 : vector<8x32xf32>
    %1111 = arith.divf %1109, %1110 : vector<8x32xf32>
    %1112 = vector.extract_strided_slice %1105 {offsets = [0, 32], sizes = [8, 32], strides = [1, 1]} : vector<8x128xf32> to vector<8x32xf32>
    %1113 = arith.negf %1112 : vector<8x32xf32>
    %1114 = math.exp %1113 : vector<8x32xf32>
    %cst_246 = arith.constant 1.000000e+00 : f32
    %1115 = vector.broadcast %cst_246 : f32 to vector<8x32xf32>
    %1116 = arith.addf %1115, %1114 : vector<8x32xf32>
    %1117 = arith.divf %1115, %1116 : vector<8x32xf32>
    %1118 = vector.extract_strided_slice %1105 {offsets = [0, 64], sizes = [8, 32], strides = [1, 1]} : vector<8x128xf32> to vector<8x32xf32>
    %1119 = arith.negf %1118 : vector<8x32xf32>
    %1120 = math.exp %1119 : vector<8x32xf32>
    %cst_247 = arith.constant 1.000000e+00 : f32
    %1121 = vector.broadcast %cst_247 : f32 to vector<8x32xf32>
    %1122 = arith.addf %1121, %1120 : vector<8x32xf32>
    %1123 = arith.divf %1121, %1122 : vector<8x32xf32>
    %1124 = vector.extract_strided_slice %1105 {offsets = [0, 96], sizes = [8, 32], strides = [1, 1]} : vector<8x128xf32> to vector<8x32xf32>
    %1125 = math.tanh %1124 : vector<8x32xf32>
    %1126 = arith.mulf %1123, %1095 : vector<8x32xf32>
    %1127 = arith.mulf %1111, %1125 : vector<8x32xf32>
    %1128 = arith.addf %1126, %1127 : vector<8x32xf32>
    %1129 = math.tanh %1128 : vector<8x32xf32>
    %1130 = arith.mulf %1117, %1129 : vector<8x32xf32>
    %c34_i32 = arith.constant 34 : i32
    %c8_i32_248 = arith.constant 8 : i32
    %1131 = arith.muli %c34_i32, %c8_i32_248 : i32
    %1132 = tpu.assume_multiple %1131, 8 : i32
    %1133 = arith.index_cast %1132 : i32 to index
    %c0_249 = arith.constant 0 : index
    %1134 = vector.load %arg16[%1133, %c0_249] : memref<288x32xf32, #tpu.memory_space<vmem>>, vector<8x32xf32>
    tpu.vector_store %arg16[%1133, %c0_249], %1130 {strides = array<i32>} : memref<288x32xf32, #tpu.memory_space<vmem>>, vector<8x32xf32>,
    %1135 = arith.index_cast %1132 : i32 to index
    %c0_250 = arith.constant 0 : index
    %1136 = vector.load %arg15[%1135, %c0_250] : memref<288x128xf32, #tpu.memory_space<vmem>>, vector<8x128xf32>
    %cst_251 = arith.constant dense<0.000000e+00> : vector<8x128xf32>
    %1137 = tpu.matmul %1130, %7, %cst_251 {dimension_numbers = #tpu.dot_dimension_numbers<[1], [0], [0], [1], [0, 0, 1, 1], [], []>} : vector<8x32xf32>, vector<32x128xf32>, vector<8x128xf32> -> vector<8x128xf32>
    %1138 = arith.addf %1136, %1137 : vector<8x128xf32>
    %1139 = vector.extract_strided_slice %1138 {offsets = [0, 0], sizes = [8, 32], strides = [1, 1]} : vector<8x128xf32> to vector<8x32xf32>
    %1140 = arith.negf %1139 : vector<8x32xf32>
    %1141 = math.exp %1140 : vector<8x32xf32>
    %cst_252 = arith.constant 1.000000e+00 : f32
    %1142 = vector.broadcast %cst_252 : f32 to vector<8x32xf32>
    %1143 = arith.addf %1142, %1141 : vector<8x32xf32>
    %1144 = arith.divf %1142, %1143 : vector<8x32xf32>
    %1145 = vector.extract_strided_slice %1138 {offsets = [0, 32], sizes = [8, 32], strides = [1, 1]} : vector<8x128xf32> to vector<8x32xf32>
    %1146 = arith.negf %1145 : vector<8x32xf32>
    %1147 = math.exp %1146 : vector<8x32xf32>
    %cst_253 = arith.constant 1.000000e+00 : f32
    %1148 = vector.broadcast %cst_253 : f32 to vector<8x32xf32>
    %1149 = arith.addf %1148, %1147 : vector<8x32xf32>
    %1150 = arith.divf %1148, %1149 : vector<8x32xf32>
    %1151 = vector.extract_strided_slice %1138 {offsets = [0, 64], sizes = [8, 32], strides = [1, 1]} : vector<8x128xf32> to vector<8x32xf32>
    %1152 = arith.negf %1151 : vector<8x32xf32>
    %1153 = math.exp %1152 : vector<8x32xf32>
    %cst_254 = arith.constant 1.000000e+00 : f32
    %1154 = vector.broadcast %cst_254 : f32 to vector<8x32xf32>
    %1155 = arith.addf %1154, %1153 : vector<8x32xf32>
    %1156 = arith.divf %1154, %1155 : vector<8x32xf32>
    %1157 = vector.extract_strided_slice %1138 {offsets = [0, 96], sizes = [8, 32], strides = [1, 1]} : vector<8x128xf32> to vector<8x32xf32>
    %1158 = math.tanh %1157 : vector<8x32xf32>
    %1159 = arith.mulf %1156, %1128 : vector<8x32xf32>
    %1160 = arith.mulf %1144, %1158 : vector<8x32xf32>
    %1161 = arith.addf %1159, %1160 : vector<8x32xf32>
    %1162 = math.tanh %1161 : vector<8x32xf32>
    %1163 = arith.mulf %1150, %1162 : vector<8x32xf32>
    %c35_i32 = arith.constant 35 : i32
    %c8_i32_255 = arith.constant 8 : i32
    %1164 = arith.muli %c35_i32, %c8_i32_255 : i32
    %1165 = tpu.assume_multiple %1164, 8 : i32
    %1166 = arith.index_cast %1165 : i32 to index
    %c0_256 = arith.constant 0 : index
    %1167 = vector.load %arg16[%1166, %c0_256] : memref<288x32xf32, #tpu.memory_space<vmem>>, vector<8x32xf32>
    tpu.vector_store %arg16[%1166, %c0_256], %1163 {strides = array<i32>} : memref<288x32xf32, #tpu.memory_space<vmem>>, vector<8x32xf32>,
    %1168 = arith.index_cast %1165 : i32 to index
    %c0_257 = arith.constant 0 : index
    %1169 = vector.load %arg15[%1168, %c0_257] : memref<288x128xf32, #tpu.memory_space<vmem>>, vector<8x128xf32>
    %cst_258 = arith.constant dense<0.000000e+00> : vector<8x128xf32>
    %1170 = tpu.matmul %1163, %7, %cst_258 {dimension_numbers = #tpu.dot_dimension_numbers<[1], [0], [0], [1], [0, 0, 1, 1], [], []>} : vector<8x32xf32>, vector<32x128xf32>, vector<8x128xf32> -> vector<8x128xf32>
    %1171 = arith.addf %1169, %1170 : vector<8x128xf32>
    %1172 = vector.extract_strided_slice %1171 {offsets = [0, 0], sizes = [8, 32], strides = [1, 1]} : vector<8x128xf32> to vector<8x32xf32>
    %1173 = arith.negf %1172 : vector<8x32xf32>
    %1174 = math.exp %1173 : vector<8x32xf32>
    %cst_259 = arith.constant 1.000000e+00 : f32
    %1175 = vector.broadcast %cst_259 : f32 to vector<8x32xf32>
    %1176 = arith.addf %1175, %1174 : vector<8x32xf32>
    %1177 = arith.divf %1175, %1176 : vector<8x32xf32>
    %1178 = vector.extract_strided_slice %1171 {offsets = [0, 32], sizes = [8, 32], strides = [1, 1]} : vector<8x128xf32> to vector<8x32xf32>
    %1179 = arith.negf %1178 : vector<8x32xf32>
    %1180 = math.exp %1179 : vector<8x32xf32>
    %cst_260 = arith.constant 1.000000e+00 : f32
    %1181 = vector.broadcast %cst_260 : f32 to vector<8x32xf32>
    %1182 = arith.addf %1181, %1180 : vector<8x32xf32>
    %1183 = arith.divf %1181, %1182 : vector<8x32xf32>
    %1184 = vector.extract_strided_slice %1171 {offsets = [0, 64], sizes = [8, 32], strides = [1, 1]} : vector<8x128xf32> to vector<8x32xf32>
    %1185 = arith.negf %1184 : vector<8x32xf32>
    %1186 = math.exp %1185 : vector<8x32xf32>
    %cst_261 = arith.constant 1.000000e+00 : f32
    %1187 = vector.broadcast %cst_261 : f32 to vector<8x32xf32>
    %1188 = arith.addf %1187, %1186 : vector<8x32xf32>
    %1189 = arith.divf %1187, %1188 : vector<8x32xf32>
    %1190 = vector.extract_strided_slice %1171 {offsets = [0, 96], sizes = [8, 32], strides = [1, 1]} : vector<8x128xf32> to vector<8x32xf32>
    %1191 = math.tanh %1190 : vector<8x32xf32>
    %1192 = arith.mulf %1189, %1161 : vector<8x32xf32>
    %1193 = arith.mulf %1177, %1191 : vector<8x32xf32>
    %1194 = arith.addf %1192, %1193 : vector<8x32xf32>
    %1195 = math.tanh %1194 : vector<8x32xf32>
    %1196 = arith.mulf %1183, %1195 : vector<8x32xf32>
    %c36_i32 = arith.constant 36 : i32
    %c0_262 = arith.constant 0 : index
    %c0_263 = arith.constant 0 : index
    %1197 = vector.load %arg1[%c0_262, %c0_263] : memref<288x16xf32, #tpu.memory_space<vmem>>, vector<288x16xf32>
    %c0_264 = arith.constant 0 : index
    %c0_265 = arith.constant 0 : index
    %1198 = vector.load %arg5[%c0_264, %c0_265] : memref<16x32xf32, #tpu.memory_space<vmem>>, vector<16x32xf32>
    %cst_266 = arith.constant dense<0.000000e+00> : vector<288x32xf32>
    %1199 = tpu.matmul %1197, %1198, %cst_266 {dimension_numbers = #tpu.dot_dimension_numbers<[1], [0], [0], [1], [0, 0, 1, 1], [], []>} : vector<288x16xf32>, vector<16x32xf32>, vector<288x32xf32> -> vector<288x32xf32>
    %c0_267 = arith.constant 0 : index
    %c0_268 = arith.constant 0 : index
    %1200 = vector.load %arg16[%c0_267, %c0_268] : memref<288x32xf32, #tpu.memory_space<vmem>>, vector<288x32xf32>
    %c0_269 = arith.constant 0 : index
    %c0_270 = arith.constant 0 : index
    %1201 = vector.load %arg6[%c0_269, %c0_270] : memref<32x32xf32, #tpu.memory_space<vmem>>, vector<32x32xf32>
    %cst_271 = arith.constant dense<0.000000e+00> : vector<288x32xf32>
    %1202 = tpu.matmul %1200, %1201, %cst_271 {dimension_numbers = #tpu.dot_dimension_numbers<[1], [0], [0], [1], [0, 0, 1, 1], [], []>} : vector<288x32xf32>, vector<32x32xf32>, vector<288x32xf32> -> vector<288x32xf32>
    %1203 = arith.addf %1199, %1202 : vector<288x32xf32>
    %c0_272 = arith.constant 0 : index
    %c0_273 = arith.constant 0 : index
    %1204 = vector.load %arg7[%c0_272, %c0_273] : memref<1x32xf32, #tpu.memory_space<vmem>>, vector<1x32xf32>
    %1205 = vector.broadcast %1204 : vector<1x32xf32> to vector<288x32xf32>
    %1206 = arith.addf %1203, %1205 : vector<288x32xf32>
    %cst_274 = arith.constant 0.000000e+00 : f32
    %1207 = vector.broadcast %cst_274 : f32 to vector<288x32xf32>
    %1208 = arith.maximumf %1206, %1207 : vector<288x32xf32>
    %c0_275 = arith.constant 0 : index
    %c0_276 = arith.constant 0 : index
    %1209 = vector.load %arg8[%c0_275, %c0_276] : memref<32x21xf32, #tpu.memory_space<vmem>>, vector<32x21xf32>
    %cst_277 = arith.constant dense<0.000000e+00> : vector<288x21xf32>
    %1210 = tpu.matmul %1208, %1209, %cst_277 {dimension_numbers = #tpu.dot_dimension_numbers<[1], [0], [0], [1], [0, 0, 1, 1], [], []>} : vector<288x32xf32>, vector<32x21xf32>, vector<288x21xf32> -> vector<288x21xf32>
    %c0_278 = arith.constant 0 : index
    %c0_279 = arith.constant 0 : index
    %1211 = vector.load %arg9[%c0_278, %c0_279] : memref<1x21xf32, #tpu.memory_space<vmem>>, vector<1x21xf32>
    %1212 = vector.broadcast %1211 : vector<1x21xf32> to vector<288x21xf32>
    %1213 = arith.addf %1210, %1212 : vector<288x21xf32>
    %c0_280 = arith.constant 0 : index
    %c0_281 = arith.constant 0 : index
    %1214 = vector.load %arg12[%c0_280, %c0_281] : memref<288x1xf32, #tpu.memory_space<vmem>>, vector<288x1xf32>
    %cst_282 = arith.constant dense<0xFF800000> : vector<288xf32>
    %1215 = vector.multi_reduction <maximumf>, %1213, %cst_282 [1] : vector<288x21xf32> to vector<288xf32>
    %1216 = vector.shape_cast %1215 : vector<288xf32> to vector<288x1xf32>
    %1217 = vector.broadcast %1216 : vector<288x1xf32> to vector<288x21xf32>
    %1218 = arith.subf %1213, %1217 : vector<288x21xf32>
    %1219 = math.exp %1218 : vector<288x21xf32>
    %cst_283 = arith.constant dense<0.000000e+00> : vector<288xf32>
    %1220 = vector.multi_reduction <add>, %1219, %cst_283 [1] : vector<288x21xf32> to vector<288xf32>
    %1221 = vector.shape_cast %1220 : vector<288xf32> to vector<288x1xf32>
    %1222 = math.log %1221 : vector<288x1xf32>
    %1223 = arith.addf %1222, %1216 : vector<288x1xf32>
    %c0_284 = arith.constant 0 : index
    %c0_285 = arith.constant 0 : index
    %1224 = vector.load %arg10[%c0_284, %c0_285] : memref<288x21xf32, #tpu.memory_space<vmem>>, vector<288x21xf32>
    %1225 = arith.mulf %1213, %1224 : vector<288x21xf32>
    %cst_286 = arith.constant dense<0.000000e+00> : vector<288xf32>
    %1226 = vector.multi_reduction <add>, %1225, %cst_286 [1] : vector<288x21xf32> to vector<288xf32>
    %1227 = vector.shape_cast %1226 : vector<288xf32> to vector<288x1xf32>
    %1228 = arith.subf %1223, %1227 : vector<288x1xf32>
    %1229 = arith.mulf %1214, %1228 : vector<288x1xf32>
    %1230 = vector.shape_cast %1229 : vector<288x1xf32> to vector<1x288x1xf32>
    %cst_287 = arith.constant dense<0.000000e+00> : vector<1xf32>
    %1231 = vector.multi_reduction <add>, %1230, %cst_287 [1, 2] : vector<1x288x1xf32> to vector<1xf32>
    %1232 = vector.shape_cast %1231 : vector<1xf32> to vector<1x1x1xf32>
    %1233 = vector.extract %1232[0, 0, 0] : f32 from vector<1x1x1xf32>
    %c0_288 = arith.constant 0 : index
    %c0_289 = arith.constant 0 : index
    %1234 = memref.load %arg13[%c0_288, %c0_289] : memref<1x1xf32, #tpu.memory_space<smem>>
    memref.store %1233, %arg13[%c0_288, %c0_289] : memref<1x1xf32, #tpu.memory_space<smem>>
    %1235 = tpu.iota {dimensions = array<i32: 1>} : vector<288x21xi32>
    %1236 = vector.broadcast %1216 : vector<288x1xf32> to vector<288x21xf32>
    %1237 = arith.cmpf oeq, %1213, %1236 : vector<288x21xf32>
    %c1073741824_i32 = arith.constant 1073741824 : i32
    %1238 = vector.broadcast %c1073741824_i32 : i32 to vector<288x21xi32>
    %1239 = arith.select %1237, %1235, %1238 : vector<288x21xi1>, vector<288x21xi32>
    %cst_290 = arith.constant dense<2147483647> : vector<288xi32>
    %1240 = vector.multi_reduction <minsi>, %1239, %cst_290 [1] : vector<288x21xi32> to vector<288xi32>
    %1241 = vector.shape_cast %1240 : vector<288xi32> to vector<288x1xi32>
    %c0_291 = arith.constant 0 : index
    %c0_292 = arith.constant 0 : index
    %1242 = vector.load %arg11[%c0_291, %c0_292] : memref<288x1xi32, #tpu.memory_space<vmem>>, vector<288x1xi32>
    %1243 = arith.cmpi eq, %1241, %1242 : vector<288x1xi32>
    %1244 = arith.extui %1243 : vector<288x1xi1> to vector<288x1xi32>
    %1245 = arith.sitofp %1244 : vector<288x1xi32> to vector<288x1xf32>
    %1246 = arith.mulf %1214, %1245 : vector<288x1xf32>
    %1247 = vector.shape_cast %1246 : vector<288x1xf32> to vector<1x288x1xf32>
    %cst_293 = arith.constant dense<0.000000e+00> : vector<1xf32>
    %1248 = vector.multi_reduction <add>, %1247, %cst_293 [1, 2] : vector<1x288x1xf32> to vector<1xf32>
    %1249 = vector.shape_cast %1248 : vector<1xf32> to vector<1x1x1xf32>
    %1250 = vector.extract %1249[0, 0, 0] : f32 from vector<1x1x1xf32>
    %c0_294 = arith.constant 0 : index
    %c0_295 = arith.constant 0 : index
    %1251 = memref.load %arg14[%c0_294, %c0_295] : memref<1x1xf32, #tpu.memory_space<smem>>
    memref.store %1250, %arg14[%c0_294, %c0_295] : memref<1x1xf32, #tpu.memory_space<smem>>
    return
  }
  func.func @transform_0(%arg0: i32) -> (i32, i32) {
    %c0_i32 = arith.constant 0 : i32
    %c0_i32_0 = arith.constant 0 : i32
    %c0_i32_1 = arith.constant 0 : i32
    return %c0_i32, %c0_i32_0 : i32, i32
  }
  func.func @transform_1(%arg0: i32) -> (i32, i32) {
    %c0_i32 = arith.constant 0 : i32
    %c0_i32_0 = arith.constant 0 : i32
    %c0_i32_1 = arith.constant 0 : i32
    return %c0_i32, %c0_i32_0 : i32, i32
  }
  func.func @transform_2(%arg0: i32) -> (i32, i32) {
    %c0_i32 = arith.constant 0 : i32
    %c0_i32_0 = arith.constant 0 : i32
    %c0_i32_1 = arith.constant 0 : i32
    return %c0_i32, %c0_i32_0 : i32, i32
  }
  func.func @transform_3(%arg0: i32) -> (i32, i32) {
    %c0_i32 = arith.constant 0 : i32
    %c0_i32_0 = arith.constant 0 : i32
    %c0_i32_1 = arith.constant 0 : i32
    return %c0_i32, %c0_i32_0 : i32, i32
  }
  func.func @transform_4(%arg0: i32) -> (i32, i32) {
    %c0_i32 = arith.constant 0 : i32
    %c0_i32_0 = arith.constant 0 : i32
    %c0_i32_1 = arith.constant 0 : i32
    return %c0_i32, %c0_i32_0 : i32, i32
  }
  func.func @transform_5(%arg0: i32) -> (i32, i32) {
    %c0_i32 = arith.constant 0 : i32
    %c0_i32_0 = arith.constant 0 : i32
    %c0_i32_1 = arith.constant 0 : i32
    return %c0_i32, %c0_i32_0 : i32, i32
  }
  func.func @transform_6(%arg0: i32) -> (i32, i32) {
    %c0_i32 = arith.constant 0 : i32
    %c0_i32_0 = arith.constant 0 : i32
    %c0_i32_1 = arith.constant 0 : i32
    return %c0_i32, %c0_i32_0 : i32, i32
  }
  func.func @transform_7(%arg0: i32) -> (i32, i32) {
    %c0_i32 = arith.constant 0 : i32
    %c0_i32_0 = arith.constant 0 : i32
    %c0_i32_1 = arith.constant 0 : i32
    return %c0_i32, %c0_i32_0 : i32, i32
  }
  func.func @transform_8(%arg0: i32) -> (i32, i32) {
    %c0_i32 = arith.constant 0 : i32
    %c0_i32_0 = arith.constant 0 : i32
    %c0_i32_1 = arith.constant 0 : i32
    return %c0_i32, %c0_i32_0 : i32, i32
  }
  func.func @transform_9(%arg0: i32) -> (i32, i32) {
    %c0_i32 = arith.constant 0 : i32
    %c0_i32_0 = arith.constant 0 : i32
    %c0_i32_1 = arith.constant 0 : i32
    return %c0_i32, %c0_i32_0 : i32, i32
  }
  func.func @transform_10(%arg0: i32) -> (i32, i32) {
    %c0_i32 = arith.constant 0 : i32
    %c0_i32_0 = arith.constant 0 : i32
    %c0_i32_1 = arith.constant 0 : i32
    return %c0_i32, %c0_i32_0 : i32, i32
  }
  func.func @transform_11(%arg0: i32) -> (i32, i32) {
    %c0_i32 = arith.constant 0 : i32
    %c0_i32_0 = arith.constant 0 : i32
    %c0_i32_1 = arith.constant 0 : i32
    return %c0_i32, %c0_i32_0 : i32, i32
  }
  func.func @transform_12(%arg0: i32) -> (i32, i32) {
    %c0_i32 = arith.constant 0 : i32
    %c0_i32_0 = arith.constant 0 : i32
    %c0_i32_1 = arith.constant 0 : i32
    return %c0_i32, %c0_i32_0 : i32, i32
  }
  func.func @transform_13(%arg0: i32) -> (i32, i32) {
    %c0_i32 = arith.constant 0 : i32
    %c0_i32_0 = arith.constant 0 : i32
    %c0_i32_1 = arith.constant 0 : i32
    return %c0_i32, %c0_i32_0 : i32, i32
  }
}

</mosaic_0001>

<llo_original>
// kernel: eq.1
$region0: #{eq.1}
  %s0 = inlined_call_operand.vmem [shape: s32[36,8], index: 0, kind: input, shape index: {}]
  %s1 = inlined_call_operand.vmem [shape: s32[288], index: 1, kind: output, shape index: {}]
  $region1: #{eq.1} parent=0
    #allocation0 [shape = 'u8[4096]{0}', space=vmem, size = 0x1000, scoped, tag = 'scoped mem for output reshape']
    %s2 = smov 3
    %v3 = vld [vmem:[%s0] ss:$16 sm:%s2]
    %s4 = scalar_lea.vmem %s0, 30
    %v5 = vld [vmem:[%s4] sm:$0x4]
    %vm6 = vcmask 1042434
    %v7 = vsel %vm6, %v5, %v3
    %vm8 = vcmask 64512
    %9 = vst.msk [vmem:[#allocation0] sm:$0x7] %vm8, %v7
    %s10 = scalar_lea.vmem %s0, 15
    %s11 = smov 3
    %v12 = vld [vmem:[%s10] ss:$16 sm:%s11]
    %13 = vrot.lane.b32.xlu0 %v12, 120
    %v14 = vpop.permute.xlu0 %13
    %vm15 = vcmask 1048512
    %16 = vst.msk [vmem:[#allocation0] sm:$0x3] %vm15, %v14
    %s17 = scalar_lea.vmem %s0, 14
    %s18 = smov 3
    %v19 = vld [vmem:[%s17] ss:$16 sm:%s18]
    %20 = vrot.lane.b32.xlu0 %v19, 112
    %v21 = vpop.permute.xlu0 %20
    %vm22 = vcmask 982912
    %23 = vst.msk [vmem:[#allocation0] sm:$0x3] %vm22, %v21
    %s24 = scalar_lea.vmem %s0, 13
    %s25 = smov 3
    %v26 = vld [vmem:[%s24] ss:$16 sm:%s25]
    %27 = vrot.lane.b32.xlu0 %v26, 104
    %v28 = vpop.permute.xlu0 %27
    %vm29 = vcmask 917312
    %30 = vst.msk [vmem:[#allocation0] sm:$0x3] %vm29, %v28
    %s31 = scalar_lea.vmem %s0, 12
    %s32 = smov 3
    %v33 = vld [vmem:[%s31] ss:$16 sm:%s32]
    %34 = vrot.lane.b32.xlu0 %v33, 96
    %v35 = vpop.permute.xlu0 %34
    %vm36 = vcmask 851712
    %37 = vst.msk [vmem:[#allocation0] sm:$0x3] %vm36, %v35
    %s38 = scalar_lea.vmem %s0, 11
    %s39 = smov 3
    %v40 = vld [vmem:[%s38] ss:$16 sm:%s39]
    %41 = vrot.lane.b32.xlu0 %v40, 88
    %v42 = vpop.permute.xlu0 %41
    %vm43 = vcmask 786112
    %44 = vst.msk [vmem:[#allocation0] sm:$0x3] %vm43, %v42
    %s45 = scalar_lea.vmem %s0, 10
    %s46 = smov 3
    %v47 = vld [vmem:[%s45] ss:$16 sm:%s46]
    %48 = vrot.lane.b32.xlu0 %v47, 80
    %v49 = vpop.permute.xlu0 %48
    %vm50 = vcmask 720512
    %51 = vst.msk [vmem:[#allocation0] sm:$0x3] %vm50, %v49
    %s52 = scalar_lea.vmem %s0, 9
    %s53 = smov 3
    %v54 = vld [vmem:[%s52] ss:$16 sm:%s53]
    %55 = vrot.lane.b32.xlu0 %v54, 72
    %v56 = vpop.permute.xlu0 %55
    %vm57 = vcmask 654912
    %58 = vst.msk [vmem:[#allocation0] sm:$0x3] %vm57, %v56
    %s59 = scalar_lea.vmem %s0, 8
    %s60 = smov 3
    %v61 = vld [vmem:[%s59] ss:$16 sm:%s60]
    %62 = vrot.lane.b32.xlu0 %v61, 64
    %v63 = vpop.permute.xlu0 %62
    %vm64 = vcmask 589312
    %65 = vst.msk [vmem:[#allocation0] sm:$0x3] %vm64, %v63
    %s66 = scalar_lea.vmem %s0, 7
    %s67 = smov 3
    %v68 = vld [vmem:[%s66] ss:$16 sm:%s67]
    %69 = vrot.lane.b32.xlu0 %v68, 56
    %v70 = vpop.permute.xlu0 %69
    %vm71 = vcmask 523712
    %72 = vst.msk [vmem:[#allocation0] sm:$0x3] %vm71, %v70
    %s73 = scalar_lea.vmem %s0, 6
    %s74 = smov 3
    %v75 = vld [vmem:[%s73] ss:$16 sm:%s74]
    %76 = vrot.lane.b32.xlu0 %v75, 48
    %v77 = vpop.permute.xlu0 %76
    %vm78 = vcmask 458112
    %79 = vst.msk [vmem:[#allocation0] sm:$0x3] %vm78, %v77
    %s80 = scalar_lea.vmem %s0, 5
    %s81 = smov 3
    %v82 = vld [vmem:[%s80] ss:$16 sm:%s81]
    %83 = vrot.lane.b32.xlu0 %v82, 40
    %v84 = vpop.permute.xlu0 %83
    %vm85 = vcmask 392512
    %86 = vst.msk [vmem:[#allocation0] sm:$0x3] %vm85, %v84
    %s87 = scalar_lea.vmem %s0, 4
    %s88 = smov 3
    %v89 = vld [vmem:[%s87] ss:$16 sm:%s88]
    %90 = vrot.lane.b32.xlu0 %v89, 32
    %v91 = vpop.permute.xlu0 %90
    %vm92 = vcmask 326912
    %93 = vst.msk [vmem:[#allocation0] sm:$0x3] %vm92, %v91
    %s94 = scalar_lea.vmem %s0, 3
    %s95 = smov 3
    %v96 = vld [vmem:[%s94] ss:$16 sm:%s95]
    %s97 = scalar_lea.vmem %s0, 33
    %v98 = vld [vmem:[%s97] sm:$0x4]
    %vm99 = vcmask 1042434
    %v100 = vsel %vm99, %v98, %v96
    %101 = vrot.lane.b32.xlu0 %v100, 24
    %v102 = vpop.permute.xlu0 %101
    %vm103 = vcmask 261312
    %104 = vst.msk [vmem:[#allocation0] sm:$0x7] %vm103, %v102
    %s105 = scalar_lea.vmem %s0, 2
    %s106 = smov 3
    %v107 = vld [vmem:[%s105] ss:$16 sm:%s106]
    %s108 = scalar_lea.vmem %s0, 32
    %v109 = vld [vmem:[%s108] sm:$0x4]
    %vm110 = vcmask 1042434
    %v111 = vsel %vm110, %v109, %v107
    %112 = vrot.lane.b32.xlu0 %v111, 16
    %v113 = vpop.permute.xlu0 %112
    %vm114 = vcmask 195712
    %115 = vst.msk [vmem:[#allocation0] sm:$0x7] %vm114, %v113
    %s116 = scalar_lea.vmem %s0, 1
    %s117 = smov 3
    %v118 = vld [vmem:[%s116] ss:$16 sm:%s117]
    %s119 = scalar_lea.vmem %s0, 31
    %v120 = vld [vmem:[%s119] sm:$0x4]
    %vm121 = vcmask 1042434
    %v122 = vsel %vm121, %v120, %v118
    %123 = vrot.lane.b32.xlu0 %v122, 8
    %v124 = vpop.permute.xlu0 %123
    %vm125 = vcmask 130112
    %126 = vst.msk [vmem:[#allocation0] sm:$0x7] %vm125, %v124
    %s128 = sshll.u32 1, 4
    %s129 = ssub.s32 %s128, 1
    %v131 = vld [vmem:[#allocation0] sm:%s129]
    %s132 = sshll.u32 1, 4
    %s133 = ssub.s32 %s132, 1
    %134 = vst [vmem:[%s1] sm:%s133] %v131

// kernel: tcr_lstm_forward.1
$region0: #{tcr_lstm_forward.1}
  #allocation0 [shape = 'u32[]', space=smem, size = 0x4, offset = 0x4, fixed_abs, tag = 'smem constant byte address 0x4 - core index']
  #allocation1 [shape = 'u32[144,128]{1,0:T(1,128)}', space=vmem, size = 0x12000, scoped, tag = 'internal scratch']
  #allocation2 [shape = 'f32[288,128]{1,0:T(8,128)}', space=vmem, size = 0x24000, scoped, tag = 'scratch operand']
  #allocation3 [shape = 'f32[288,32]{1,0:T(8,128)}', space=vmem, size = 0x24000, scoped, tag = 'scratch operand']
  %s0 = inlined_call_operand.vmem [shape: f32[288,16], index: 0, kind: input, shape index: {}]
  %s1 = inlined_call_operand.vmem [shape: f32[16,128], index: 1, kind: input, shape index: {}]
  %s2 = inlined_call_operand.vmem [shape: f32[32,128], index: 2, kind: input, shape index: {}]
  %s3 = inlined_call_operand.vmem [shape: f32[1,128], index: 3, kind: input, shape index: {}]
  %s4 = inlined_call_operand.vmem [shape: f32[16,32], index: 4, kind: input, shape index: {}]
  %s5 = inlined_call_operand.vmem [shape: f32[32,32], index: 5, kind: input, shape index: {}]
  %s6 = inlined_call_operand.vmem [shape: f32[1,32], index: 6, kind: input, shape index: {}]
  %s7 = inlined_call_operand.vmem [shape: f32[32,21], index: 7, kind: input, shape index: {}]
  %s8 = inlined_call_operand.vmem [shape: f32[1,21], index: 8, kind: input, shape index: {}]
  %s9 = inlined_call_operand.vmem [shape: f32[288,21], index: 9, kind: input, shape index: {}]
  %s10 = inlined_call_operand.vmem [shape: s32[288,1], index: 10, kind: input, shape index: {}]
  %s11 = inlined_call_operand.vmem [shape: f32[288,1], index: 11, kind: input, shape index: {}]
  %s12 = inlined_call_operand.hbm [shape: f32[1,1], index: 12, kind: output, shape index: {0}]
  %s13 = inlined_call_operand.hbm [shape: f32[1,1], index: 13, kind: output, shape index: {1}]
  %14 = xla_tuple %s12, %s13
  %s15 = sld [smem:[#allocation0]]
  $region66: #{tcr_lstm_forward.1} parent=0
    _
  %s17 = ssub.s32 1, %s15
  %s18 = scalar_select 0, %s17, %s15
  $region1: #{tcr_lstm_forward.1} parent=0
    #allocation4 [shape = 'u8[512]{0}', space=smem, size = 0x200, scoped, tag = 'output window, operand 0, single buffered']
    #allocation5 [shape = 's32[1]{0}', space=sflag, size = 0x4, scoped, tag = 'scoped memory for tcr_lstm_forward.1']
    #allocation6 [shape = 'u8[512]{0}', space=smem, size = 0x200, scoped, tag = 'output window, operand 1, single buffered']
    #allocation7 [shape = 's32[1]{0}', space=sflag, size = 0x4, scoped, tag = 'scoped memory for tcr_lstm_forward.1']
    %19 = vsyncpa [#allocation5], 0
    %20 = vsyncpa [#allocation7], 0
    // Predicated region
    $region2: #{tcr_lstm_forward.1} parent=1 // pred_check
      _
    $region3: #{tcr_lstm_forward.1} parent=1 // pred_check_branch
      %22 = sbr.rel (0) target = $region5
    $region4: #{tcr_lstm_forward.1} parent=1 // pred_region
      _
    $region5: #{tcr_lstm_forward.1} parent=1 // pred_fallthru
      _
    // Predicated region
    $region6: #{tcr_lstm_forward.1} parent=1 // pred_check
      _
    $region7: #{tcr_lstm_forward.1} parent=1 // pred_check_branch
      %24 = sbr.rel (0) target = $region9
    $region8: #{tcr_lstm_forward.1} parent=1 // pred_region
      _
    $region9: #{tcr_lstm_forward.1} parent=1 // pred_fallthru
      _
    // Predicated region
    $region10: #{tcr_lstm_forward.1} parent=1 // pred_check
      _
    $region11: #{tcr_lstm_forward.1} parent=1 // pred_check_branch
      %26 = sbr.rel (0) target = $region13
    $region12: #{tcr_lstm_forward.1} parent=1 // pred_region
      _
    $region13: #{tcr_lstm_forward.1} parent=1 // pred_fallthru
      _
    // Predicated region
    $region14: #{tcr_lstm_forward.1} parent=1 // pred_check
      _
    $region15: #{tcr_lstm_forward.1} parent=1 // pred_check_branch
      %28 = sbr.rel (0) target = $region17
    $region16: #{tcr_lstm_forward.1} parent=1 // pred_region
      _
    $region17: #{tcr_lstm_forward.1} parent=1 // pred_fallthru
      _
    // Predicated region
    $region18: #{tcr_lstm_forward.1} parent=1 // pred_check
      _
    $region19: #{tcr_lstm_forward.1} parent=1 // pred_check_branch
      %30 = sbr.rel (0) target = $region21
    $region20: #{tcr_lstm_forward.1} parent=1 // pred_region
      _
    $region21: #{tcr_lstm_forward.1} parent=1 // pred_fallthru
      _
    // Predicated region
    $region22: #{tcr_lstm_forward.1} parent=1 // pred_check
      _
    $region23: #{tcr_lstm_forward.1} parent=1 // pred_check_branch
      %32 = sbr.rel (0) target = $region25
    $region24: #{tcr_lstm_forward.1} parent=1 // pred_region
      _
    $region25: #{tcr_lstm_forward.1} parent=1 // pred_fallthru
      _
    // Predicated region
    $region26: #{tcr_lstm_forward.1} parent=1 // pred_check
      _
    $region27: #{tcr_lstm_forward.1} parent=1 // pred_check_branch
      %34 = sbr.rel (0) target = $region29
    $region28: #{tcr_lstm_forward.1} parent=1 // pred_region
      _
    $region29: #{tcr_lstm_forward.1} parent=1 // pred_fallthru
      _
    // Predicated region
    $region30: #{tcr_lstm_forward.1} parent=1 // pred_check
      _
    $region31: #{tcr_lstm_forward.1} parent=1 // pred_check_branch
      %36 = sbr.rel (0) target = $region33
    $region32: #{tcr_lstm_forward.1} parent=1 // pred_region
      _
    $region33: #{tcr_lstm_forward.1} parent=1 // pred_fallthru
      _
    // Predicated region
    $region34: #{tcr_lstm_forward.1} parent=1 // pred_check
      _
    $region35: #{tcr_lstm_forward.1} parent=1 // pred_check_branch
      %38 = sbr.rel (0) target = $region37
    $region36: #{tcr_lstm_forward.1} parent=1 // pred_region
      _
    $region37: #{tcr_lstm_forward.1} parent=1 // pred_fallthru
      _
    // Predicated region
    $region38: #{tcr_lstm_forward.1} parent=1 // pred_check
      _
    $region39: #{tcr_lstm_forward.1} parent=1 // pred_check_branch
      %40 = sbr.rel (0) target = $region41
    $region40: #{tcr_lstm_forward.1} parent=1 // pred_region
      _
    $region41: #{tcr_lstm_forward.1} parent=1 // pred_fallthru
      _
    // Predicated region
    $region42: #{tcr_lstm_forward.1} parent=1 // pred_check
      _
    $region43: #{tcr_lstm_forward.1} parent=1 // pred_check_branch
      %42 = sbr.rel (0) target = $region45
    $region44: #{tcr_lstm_forward.1} parent=1 // pred_region
      _
    $region45: #{tcr_lstm_forward.1} parent=1 // pred_fallthru
      _
    // Predicated region
    $region46: #{tcr_lstm_forward.1} parent=1 // pred_check
      _
    $region47: #{tcr_lstm_forward.1} parent=1 // pred_check_branch
      %44 = sbr.rel (0) target = $region49
    $region48: #{tcr_lstm_forward.1} parent=1 // pred_region
      _
    $region49: #{tcr_lstm_forward.1} parent=1 // pred_fallthru
      _
    %v45 = vld [vmem:[%s0] sm:$0xff]
    %v46 = vld [vmem:[%s0 + $0x8] sm:$0xff]
    %v47 = vld [vmem:[%s0 + $0x10] sm:$0xff]
    %v48 = vld [vmem:[%s0 + $0x18] sm:$0xff]
    %v49 = vld [vmem:[%s0 + $0x20] sm:$0xff]
    %v50 = vld [vmem:[%s0 + $0x28] sm:$0xff]
    %v51 = vld [vmem:[%s0 + $0x30] sm:$0xff]
    %v52 = vld [vmem:[%s0 + $0x38] sm:$0xff]
    %v53 = vld [vmem:[%s0 + $0x40] sm:$0xff]
    %v54 = vld [vmem:[%s0 + $0x48] sm:$0xff]
    %v55 = vld [vmem:[%s0 + $0x50] sm:$0xff]
    %v56 = vld [vmem:[%s0 + $0x58] sm:$0xff]
    %v57 = vld [vmem:[%s0 + $0x60] sm:$0xff]
    %v58 = vld [vmem:[%s0 + $0x68] sm:$0xff]
    %v59 = vld [vmem:[%s0 + $0x70] sm:$0xff]
    %v60 = vld [vmem:[%s0 + $0x78] sm:$0xff]
    %v61 = vld [vmem:[%s0 + $0x80] sm:$0xff]
    %v62 = vld [vmem:[%s0 + $0x88] sm:$0xff]
    %v63 = vld [vmem:[%s0 + $0x90] sm:$0xff]
    %v64 = vld [vmem:[%s0 + $0x98] sm:$0xff]
    %v65 = vld [vmem:[%s0 + $0xa0] sm:$0xff]
    %v66 = vld [vmem:[%s0 + $0xa8] sm:$0xff]
    %v67 = vld [vmem:[%s0 + $0xb0] sm:$0xff]
    %v68 = vld [vmem:[%s0 + $0xb8] sm:$0xff]
    %v69 = vld [vmem:[%s0 + $0xc0] sm:$0xff]
    %v70 = vld [vmem:[%s0 + $0xc8] sm:$0xff]
    %v71 = vld [vmem:[%s0 + $0xd0] sm:$0xff]
    %v72 = vld [vmem:[%s0 + $0xd8] sm:$0xff]
    %v73 = vld [vmem:[%s0 + $0xe0] sm:$0xff]
    %v74 = vld [vmem:[%s0 + $0xe8] sm:$0xff]
    %v75 = vld [vmem:[%s0 + $0xf0] sm:$0xff]
    %v76 = vld [vmem:[%s0 + $0xf8] sm:$0xff]
    %v77 = vld [vmem:[%s0 + $0x100] sm:$0xff]
    %v78 = vld [vmem:[%s0 + $0x108] sm:$0xff]
    %v79 = vld [vmem:[%s0 + $0x110] sm:$0xff]
    %v80 = vld [vmem:[%s0 + $0x118] sm:$0xff]
    %v81 = vld [vmem:[%s1] sm:$0xff]
    %v82 = vld [vmem:[%s1 + $0x8] sm:$0xff]
    %v83 = vld [vmem:[%s3] sm:$0x1]
    %v85 = vlaneseq
    %v86 = vshrl.u32 %v85, 7
    %v87 = vsub.s32 0, %v86
    %v88 = vrot.slane %v83, %v87
    %vm90 = vcmask 130048
    %v92 = vsel %vm90, %v45, 0
    %v95 = vsel %vm90, %v46, 0
    %v98 = vsel %vm90, %v47, 0
    %v101 = vsel %vm90, %v48, 0
    %v104 = vsel %vm90, %v49, 0
    %v107 = vsel %vm90, %v50, 0
    %v110 = vsel %vm90, %v51, 0
    %v113 = vsel %vm90, %v52, 0
    %v116 = vsel %vm90, %v53, 0
    %v119 = vsel %vm90, %v54, 0
    %v122 = vsel %vm90, %v55, 0
    %v125 = vsel %vm90, %v56, 0
    %v128 = vsel %vm90, %v57, 0
    %v131 = vsel %vm90, %v58, 0
    %v134 = vsel %vm90, %v59, 0
    %v137 = vsel %vm90, %v60, 0
    %v140 = vsel %vm90, %v61, 0
    %v143 = vsel %vm90, %v62, 0
    %v146 = vsel %vm90, %v63, 0
    %v149 = vsel %vm90, %v64, 0
    %v152 = vsel %vm90, %v65, 0
    %v155 = vsel %vm90, %v66, 0
    %v158 = vsel %vm90, %v67, 0
    %v161 = vsel %vm90, %v68, 0
    %v164 = vsel %vm90, %v69, 0
    %v167 = vsel %vm90, %v70, 0
    %v170 = vsel %vm90, %v71, 0
    %v173 = vsel %vm90, %v72, 0
    %v176 = vsel %vm90, %v73, 0
    %v179 = vsel %vm90, %v74, 0
    %v182 = vsel %vm90, %v75, 0
    %v185 = vsel %vm90, %v76, 0
    %v188 = vsel %vm90, %v77, 0
    %v191 = vsel %vm90, %v78, 0
    %v194 = vsel %vm90, %v79, 0
    %v197 = vsel %vm90, %v80, 0
    %199 = vmatprep.subr.mxu0 0.0
    %200 = vmatpush1.msra.mxu0 0.0
    %201 = vmatprep.subr.mxu0 0.0
    %202 = vmatpush1.msra.mxu0 0.0
    %203 = vmatprep.subr.mxu0 0.0
    %204 = vmatpush1.msra.mxu0 0.0
    %205 = vmatprep.subr.mxu0 0.0
    %206 = vmatpush1.msra.mxu0 0.0
    %207 = vmatprep.subr.mxu0 0.0
    %208 = vmatpush1.msra.mxu0 0.0
    %209 = vmatprep.subr.mxu0 0.0
    %210 = vmatpush1.msra.mxu0 0.0
    %211 = vmatprep.subr.mxu0 0.0
    %212 = vmatpush1.msra.mxu0 0.0
    %213 = vmatprep.subr.mxu0 0.0
    %214 = vmatpush1.msra.mxu0 0.0
    %215 = vmatprep.subr.mxu0 0.0
    %216 = vmatpush1.msra.mxu0 0.0
    %217 = vmatprep.subr.mxu0 0.0
    %218 = vmatpush1.msra.mxu0 0.0
    %219 = vmatprep.subr.mxu0 0.0
    %220 = vmatpush1.msra.mxu0 0.0
    %221 = vmatprep.subr.mxu0 0.0
    %222 = vmatpush1.msra.mxu0 0.0
    %223 = vmatprep.subr.mxu0 0.0
    %224 = vmatpush1.msra.mxu0 0.0
    %225 = vmatprep.subr.mxu0 0.0
    %226 = vmatpush1.msra.mxu0 0.0
    %227 = vmatprep.subr.mxu0 0.0
    %228 = vmatpush1.msra.mxu0 %v82
    %229 = vmatprep.subr.mxu0 0.0
    %230 = vmatpush1.msra.mxu0 %v81
    %231 = vmatprep.subr.mxu0 0.0
    %232 = vmatpush2.msra.mxu0 0.0
    %233 = vmatprep.subr.mxu0 0.0
    %234 = vmatpush2.msra.mxu0 0.0
    %235 = vmatprep.subr.mxu0 0.0
    %236 = vmatpush2.msra.mxu0 0.0
    %237 = vmatprep.subr.mxu0 0.0
    %238 = vmatpush2.msra.mxu0 0.0
    %239 = vmatprep.subr.mxu0 0.0
    %240 = vmatpush2.msra.mxu0 0.0
    %241 = vmatprep.subr.mxu0 0.0
    %242 = vmatpush2.msra.mxu0 0.0
    %243 = vmatprep.subr.mxu0 0.0
    %244 = vmatpush2.msra.mxu0 0.0
    %245 = vmatprep.subr.mxu0 0.0
    %246 = vmatpush2.msra.mxu0 0.0
    %247 = vmatprep.subr.mxu0 0.0
    %248 = vmatpush2.msra.mxu0 0.0
    %249 = vmatprep.subr.mxu0 0.0
    %250 = vmatpush2.msra.mxu0 0.0
    %251 = vmatprep.subr.mxu0 0.0
    %252 = vmatpush2.msra.mxu0 0.0
    %253 = vmatprep.subr.mxu0 0.0
    %254 = vmatpush2.msra.mxu0 0.0
    %255 = vmatprep.subr.mxu0 0.0
    %256 = vmatpush2.msra.mxu0 0.0
    %257 = vmatprep.subr.mxu0 0.0
    %258 = vmatpush2.msra.mxu0 0.0
    %259 = vmatprep.subr.mxu0 0.0
    %260 = vmatpush2.msra.mxu0 0.0
    %261 = vmatprep.subr.mxu0 0.0
    %262 = vmatpush2.msra.mxu0 0.0
    %263 = vmatprep.mubr.f32.mxu0 0.0
    %264 = vmatmul.mubr.f32.gmra.mxu0 %v92
    %v265 = vpop.f32.mrf.mxu0
    %v266 = vadd.f32 %v88, %v265
    %v267 = vpop.f32.mrf.mxu0
    %268 = vmatprep.mubr.f32.mxu0 0.0
    %269 = vmatmul.mubr.f32.gmra.mxu0 %v95
    %v270 = vpop.f32.mrf.mxu0
    %v271 = vadd.f32 %v88, %v270
    %v272 = vpop.f32.mrf.mxu0
    %273 = vmatprep.mubr.f32.mxu0 0.0
    %274 = vmatmul.mubr.f32.gmra.mxu0 %v98
    %v275 = vpop.f32.mrf.mxu0
    %v276 = vadd.f32 %v88, %v275
    %v277 = vpop.f32.mrf.mxu0
    %278 = vmatprep.mubr.f32.mxu0 0.0
    %279 = vmatmul.mubr.f32.gmra.mxu0 %v101
    %v280 = vpop.f32.mrf.mxu0
    %v281 = vadd.f32 %v88, %v280
    %v282 = vpop.f32.mrf.mxu0
    %283 = vmatprep.mubr.f32.mxu0 0.0
    %284 = vmatmul.mubr.f32.gmra.mxu0 %v104
    %v285 = vpop.f32.mrf.mxu0
    %v286 = vadd.f32 %v88, %v285
    %v287 = vpop.f32.mrf.mxu0
    %288 = vmatprep.mubr.f32.mxu0 0.0
    %289 = vmatmul.mubr.f32.gmra.mxu0 %v107
    %v290 = vpop.f32.mrf.mxu0
    %v291 = vadd.f32 %v88, %v290
    %v292 = vpop.f32.mrf.mxu0
    %293 = vmatprep.mubr.f32.mxu0 0.0
    %294 = vmatmul.mubr.f32.gmra.mxu0 %v110
    %v295 = vpop.f32.mrf.mxu0
    %v296 = vadd.f32 %v88, %v295
    %v297 = vpop.f32.mrf.mxu0
    %298 = vmatprep.mubr.f32.mxu0 0.0
    %299 = vmatmul.mubr.f32.gmra.mxu0 %v113
    %v300 = vpop.f32.mrf.mxu0
    %v301 = vadd.f32 %v88, %v300
    %v302 = vpop.f32.mrf.mxu0
    %303 = vmatprep.mubr.f32.mxu0 0.0
    %304 = vmatmul.mubr.f32.gmra.mxu0 %v116
    %v305 = vpop.f32.mrf.mxu0
    %v306 = vadd.f32 %v88, %v305
    %v307 = vpop.f32.mrf.mxu0
    %308 = vmatprep.mubr.f32.mxu0 0.0
    %309 = vmatmul.mubr.f32.gmra.mxu0 %v119
    %v310 = vpop.f32.mrf.mxu0
    %v311 = vadd.f32 %v88, %v310
    %v312 = vpop.f32.mrf.mxu0
    %313 = vmatprep.mubr.f32.mxu0 0.0
    %314 = vmatmul.mubr.f32.gmra.mxu0 %v122
    %v315 = vpop.f32.mrf.mxu0
    %v316 = vadd.f32 %v88, %v315
    %v317 = vpop.f32.mrf.mxu0
    %318 = vmatprep.mubr.f32.mxu0 0.0
    %319 = vmatmul.mubr.f32.gmra.mxu0 %v125
    %v320 = vpop.f32.mrf.mxu0
    %v321 = vadd.f32 %v88, %v320
    %v322 = vpop.f32.mrf.mxu0
    %323 = vmatprep.mubr.f32.mxu0 0.0
    %324 = vmatmul.mubr.f32.gmra.mxu0 %v128
    %v325 = vpop.f32.mrf.mxu0
    %v326 = vadd.f32 %v88, %v325
    %v327 = vpop.f32.mrf.mxu0
    %328 = vmatprep.mubr.f32.mxu0 0.0
    %329 = vmatmul.mubr.f32.gmra.mxu0 %v131
    %v330 = vpop.f32.mrf.mxu0
    %v331 = vadd.f32 %v88, %v330
    %v332 = vpop.f32.mrf.mxu0
    %333 = vmatprep.mubr.f32.mxu0 0.0
    %334 = vmatmul.mubr.f32.gmra.mxu0 %v134
    %v335 = vpop.f32.mrf.mxu0
    %v336 = vadd.f32 %v88, %v335
    %v337 = vpop.f32.mrf.mxu0
    %338 = vmatprep.mubr.f32.mxu0 0.0
    %339 = vmatmul.mubr.f32.gmra.mxu0 %v137
    %v340 = vpop.f32.mrf.mxu0
    %v341 = vadd.f32 %v88, %v340
    %v342 = vpop.f32.mrf.mxu0
    %343 = vmatprep.mubr.f32.mxu0 0.0
    %344 = vmatmul.mubr.f32.gmra.mxu0 %v140
    %v345 = vpop.f32.mrf.mxu0
    %v346 = vadd.f32 %v88, %v345
    %v347 = vpop.f32.mrf.mxu0
    %348 = vmatprep.mubr.f32.mxu0 0.0
    %349 = vmatmul.mubr.f32.gmra.mxu0 %v143
    %v350 = vpop.f32.mrf.mxu0
    %v351 = vadd.f32 %v88, %v350
    %v352 = vpop.f32.mrf.mxu0
    %353 = vmatprep.mubr.f32.mxu0 0.0
    %354 = vmatmul.mubr.f32.gmra.mxu0 %v146
    %v355 = vpop.f32.mrf.mxu0
    %v356 = vadd.f32 %v88, %v355
    %v357 = vpop.f32.mrf.mxu0
    %358 = vmatprep.mubr.f32.mxu0 0.0
    %359 = vmatmul.mubr.f32.gmra.mxu0 %v149
    %v360 = vpop.f32.mrf.mxu0
    %v361 = vadd.f32 %v88, %v360
    %v362 = vpop.f32.mrf.mxu0
    %363 = vmatprep.mubr.f32.mxu0 0.0
    %364 = vmatmul.mubr.f32.gmra.mxu0 %v152
    %v365 = vpop.f32.mrf.mxu0
    %v366 = vadd.f32 %v88, %v365
    %v367 = vpop.f32.mrf.mxu0
    %368 = vmatprep.mubr.f32.mxu0 0.0
    %369 = vmatmul.mubr.f32.gmra.mxu0 %v155
    %v370 = vpop.f32.mrf.mxu0
    %v371 = vadd.f32 %v88, %v370
    %v372 = vpop.f32.mrf.mxu0
    %373 = vmatprep.mubr.f32.mxu0 0.0
    %374 = vmatmul.mubr.f32.gmra.mxu0 %v158
    %v375 = vpop.f32.mrf.mxu0
    %v376 = vadd.f32 %v88, %v375
    %v377 = vpop.f32.mrf.mxu0
    %378 = vmatprep.mubr.f32.mxu0 0.0
    %379 = vmatmul.mubr.f32.gmra.mxu0 %v161
    %v380 = vpop.f32.mrf.mxu0
    %v381 = vadd.f32 %v88, %v380
    %v382 = vpop.f32.mrf.mxu0
    %383 = vmatprep.mubr.f32.mxu0 0.0
    %384 = vmatmul.mubr.f32.gmra.mxu0 %v164
    %v385 = vpop.f32.mrf.mxu0
    %v386 = vadd.f32 %v88, %v385
    %v387 = vpop.f32.mrf.mxu0
    %388 = vmatprep.mubr.f32.mxu0 0.0
    %389 = vmatmul.mubr.f32.gmra.mxu0 %v167
    %v390 = vpop.f32.mrf.mxu0
    %v391 = vadd.f32 %v88, %v390
    %v392 = vpop.f32.mrf.mxu0
    %393 = vmatprep.mubr.f32.mxu0 0.0
    %394 = vmatmul.mubr.f32.gmra.mxu0 %v170
    %v395 = vpop.f32.mrf.mxu0
    %v396 = vadd.f32 %v88, %v395
    %v397 = vpop.f32.mrf.mxu0
    %398 = vmatprep.mubr.f32.mxu0 0.0
    %399 = vmatmul.mubr.f32.gmra.mxu0 %v173
    %v400 = vpop.f32.mrf.mxu0
    %v401 = vadd.f32 %v88, %v400
    %v402 = vpop.f32.mrf.mxu0
    %403 = vmatprep.mubr.f32.mxu0 0.0
    %404 = vmatmul.mubr.f32.gmra.mxu0 %v176
    %v405 = vpop.f32.mrf.mxu0
    %v406 = vadd.f32 %v88, %v405
    %v407 = vpop.f32.mrf.mxu0
    %408 = vmatprep.mubr.f32.mxu0 0.0
    %409 = vmatmul.mubr.f32.gmra.mxu0 %v179
    %v410 = vpop.f32.mrf.mxu0
    %v411 = vadd.f32 %v88, %v410
    %v412 = vpop.f32.mrf.mxu0
    %413 = vmatprep.mubr.f32.mxu0 0.0
    %414 = vmatmul.mubr.f32.gmra.mxu0 %v182
    %v415 = vpop.f32.mrf.mxu0
    %v416 = vadd.f32 %v88, %v415
    %v417 = vpop.f32.mrf.mxu0
    %418 = vmatprep.mubr.f32.mxu0 0.0
    %419 = vmatmul.mubr.f32.gmra.mxu0 %v185
    %v420 = vpop.f32.mrf.mxu0
    %v421 = vadd.f32 %v88, %v420
    %v422 = vpop.f32.mrf.mxu0
    %423 = vmatprep.mubr.f32.mxu0 0.0
    %424 = vmatmul.mubr.f32.gmra.mxu0 %v188
    %v425 = vpop.f32.mrf.mxu0
    %v426 = vadd.f32 %v88, %v425
    %v427 = vpop.f32.mrf.mxu0
    %428 = vmatprep.mubr.f32.mxu0 0.0
    %429 = vmatmul.mubr.f32.gmra.mxu0 %v191
    %v430 = vpop.f32.mrf.mxu0
    %v431 = vadd.f32 %v88, %v430
    %v432 = vpop.f32.mrf.mxu0
    %433 = vmatprep.mubr.f32.mxu0 0.0
    %434 = vmatmul.mubr.f32.gmra.mxu0 %v194
    %v435 = vpop.f32.mrf.mxu0
    %v436 = vadd.f32 %v88, %v435
    %v437 = vpop.f32.mrf.mxu0
    %438 = vmatprep.mubr.f32.mxu0 0.0
    %439 = vmatmul.mubr.f32.gmra.mxu0 %v197
    %v440 = vpop.f32.mrf.mxu0
    %v441 = vadd.f32 %v88, %v440
    %v442 = vpop.f32.mrf.mxu0
    %443 = vdwg.mxu0
    %444 = vst [vmem:[#allocation2] sm:$0xff] %v266
    %445 = vst [vmem:[#allocation2 + $0x8] sm:$0xff] %v271
    %446 = vst [vmem:[#allocation2 + $0x10] sm:$0xff] %v276
    %447 = vst [vmem:[#allocation2 + $0x18] sm:$0xff] %v281
    %448 = vst [vmem:[#allocation2 + $0x20] sm:$0xff] %v286
    %449 = vst [vmem:[#allocation2 + $0x28] sm:$0xff] %v291
    %450 = vst [vmem:[#allocation2 + $0x30] sm:$0xff] %v296
    %451 = vst [vmem:[#allocation2 + $0x38] sm:$0xff] %v301
    %452 = vst [vmem:[#allocation2 + $0x40] sm:$0xff] %v306
    %453 = vst [vmem:[#allocation2 + $0x48] sm:$0xff] %v311
    %454 = vst [vmem:[#allocation2 + $0x50] sm:$0xff] %v316
    %455 = vst [vmem:[#allocation2 + $0x58] sm:$0xff] %v321
    %456 = vst [vmem:[#allocation2 + $0x60] sm:$0xff] %v326
    %457 = vst [vmem:[#allocation2 + $0x68] sm:$0xff] %v331
    %458 = vst [vmem:[#allocation2 + $0x70] sm:$0xff] %v336
    %459 = vst [vmem:[#allocation2 + $0x78] sm:$0xff] %v341
    %460 = vst [vmem:[#allocation2 + $0x80] sm:$0xff] %v346
    %461 = vst [vmem:[#allocation2 + $0x88] sm:$0xff] %v351
    %462 = vst [vmem:[#allocation2 + $0x90] sm:$0xff] %v356
    %463 = vst [vmem:[#allocation2 + $0x98] sm:$0xff] %v361
    %464 = vst [vmem:[#allocation2 + $0xa0] sm:$0xff] %v366
    %465 = vst [vmem:[#allocation2 + $0xa8] sm:$0xff] %v371
    %466 = vst [vmem:[#allocation2 + $0xb0] sm:$0xff] %v376
    %467 = vst [vmem:[#allocation2 + $0xb8] sm:$0xff] %v381
    %468 = vst [vmem:[#allocation2 + $0xc0] sm:$0xff] %v386
    %469 = vst [vmem:[#allocation2 + $0xc8] sm:$0xff] %v391
    %470 = vst [vmem:[#allocation2 + $0xd0] sm:$0xff] %v396
    %471 = vst [vmem:[#allocation2 + $0xd8] sm:$0xff] %v401
    %472 = vst [vmem:[#allocation2 + $0xe0] sm:$0xff] %v406
    %473 = vst [vmem:[#allocation2 + $0xe8] sm:$0xff] %v411
    %474 = vst [vmem:[#allocation2 + $0xf0] sm:$0xff] %v416
    %475 = vst [vmem:[#allocation2 + $0xf8] sm:$0xff] %v421
    %476 = vst [vmem:[#allocation2 + $0x100] sm:$0xff] %v426
    %477 = vst [vmem:[#allocation2 + $0x108] sm:$0xff] %v431
    %478 = vst [vmem:[#allocation2 + $0x110] sm:$0xff] %v436
    %479 = vst [vmem:[#allocation2 + $0x118] sm:$0xff] %v441
    %v480 = vld [vmem:[%s2] sm:$0xff]
    %v481 = vld [vmem:[%s2 + $0x8] sm:$0xff]
    %v482 = vld [vmem:[%s2 + $0x10] sm:$0xff]
    %v483 = vld [vmem:[%s2 + $0x18] sm:$0xff]
    %vm484 = vcmask 261120
    %485 = vst.msk [vmem:[#allocation3] sm:$0xff] %vm484, 0.0
    %v486 = vld [vmem:[#allocation2] sm:$0xff]
    %v488 = vsel %vm484, 0.0, 0
    %490 = vmatprep.subr.mxu0 0.0
    %491 = vmatpush1.msra.mxu0 0.0
    %492 = vmatprep.subr.mxu0 0.0
    %493 = vmatpush1.msra.mxu0 0.0
    %494 = vmatprep.subr.mxu0 0.0
    %495 = vmatpush1.msra.mxu0 0.0
    %496 = vmatprep.subr.mxu0 0.0
    %497 = vmatpush1.msra.mxu0 0.0
    %498 = vmatprep.subr.mxu0 0.0
    %499 = vmatpush1.msra.mxu0 0.0
    %500 = vmatprep.subr.mxu0 0.0
    %501 = vmatpush1.msra.mxu0 0.0
    %502 = vmatprep.subr.mxu0 0.0
    %503 = vmatpush1.msra.mxu0 0.0
    %504 = vmatprep.subr.mxu0 0.0
    %505 = vmatpush1.msra.mxu0 0.0
    %506 = vmatprep.subr.mxu0 0.0
    %507 = vmatpush1.msra.mxu0 0.0
    %508 = vmatprep.subr.mxu0 0.0
    %509 = vmatpush1.msra.mxu0 0.0
    %510 = vmatprep.subr.mxu0 0.0
    %511 = vmatpush1.msra.mxu0 0.0
    %512 = vmatprep.subr.mxu0 0.0
    %513 = vmatpush1.msra.mxu0 0.0
    %514 = vmatprep.subr.mxu0 0.0
    %515 = vmatpush1.msra.mxu0 %v483
    %516 = vmatprep.subr.mxu0 0.0
    %517 = vmatpush1.msra.mxu0 %v482
    %518 = vmatprep.subr.mxu0 0.0
    %519 = vmatpush1.msra.mxu0 %v481
    %520 = vmatprep.subr.mxu0 0.0
    %521 = vmatpush1.msra.mxu0 %v480
    %522 = vmatprep.subr.mxu0 0.0
    %523 = vmatpush2.msra.mxu0 0.0
    %524 = vmatprep.subr.mxu0 0.0
    %525 = vmatpush2.msra.mxu0 0.0
    %526 = vmatprep.subr.mxu0 0.0
    %527 = vmatpush2.msra.mxu0 0.0
    %528 = vmatprep.subr.mxu0 0.0
    %529 = vmatpush2.msra.mxu0 0.0
    %530 = vmatprep.subr.mxu0 0.0
    %531 = vmatpush2.msra.mxu0 0.0
    %532 = vmatprep.subr.mxu0 0.0
    %533 = vmatpush2.msra.mxu0 0.0
    %534 = vmatprep.subr.mxu0 0.0
    %535 = vmatpush2.msra.mxu0 0.0
    %536 = vmatprep.subr.mxu0 0.0
    %537 = vmatpush2.msra.mxu0 0.0
    %538 = vmatprep.subr.mxu0 0.0
    %539 = vmatpush2.msra.mxu0 0.0
    %540 = vmatprep.subr.mxu0 0.0
    %541 = vmatpush2.msra.mxu0 0.0
    %542 = vmatprep.subr.mxu0 0.0
    %543 = vmatpush2.msra.mxu0 0.0
    %544 = vmatprep.subr.mxu0 0.0
    %545 = vmatpush2.msra.mxu0 0.0
    %546 = vmatprep.subr.mxu0 0.0
    %547 = vmatpush2.msra.mxu0 0.0
    %548 = vmatprep.subr.mxu0 0.0
    %549 = vmatpush2.msra.mxu0 0.0
    %550 = vmatprep.subr.mxu0 0.0
    %551 = vmatpush2.msra.mxu0 0.0
    %552 = vmatprep.subr.mxu0 0.0
    %553 = vmatpush2.msra.mxu0 0.0
    %554 = vmatprep.mubr.f32.mxu0 0.0
    %555 = vmatmul.mubr.f32.gmra.mxu0 %v488
    %v556 = vpop.f32.mrf.mxu0
    %v557 = vadd.f32 0.0, %v556
    %v558 = vpop.f32.mrf.mxu0
    %559 = vdwg.mxu0
    %v560 = vadd.f32 %v486, %v557
    %v561 = vxor.u32 %v560, 2147483648
    %v562 = vmul.f32 %v561, 1.442695
    %v563 = vpow.pop %v562
    %v564 = vadd.f32 %v563, 1.0
    %v565 = vrcp.pop %v564
    %v566 = vmul.f32 1.0, %v565
    %v567 = vtanh.pop %v560
    %v568 = vmul.f32 %v566, 0.0
    %570 = vrot.lane.b32.xlu0 %v567, 32
    %v571 = vpop.permute.xlu0 %570
    %v573 = vmul.f32 %v566, %v571
    %575 = vrot.lane.b32.xlu0 %v573, 64
    %v576 = vpop.permute.xlu0 %575
    %v578 = vadd.f32 %v568, %v576
    %v579 = vtanh.pop %v578
    %581 = vrot.lane.b32.xlu0 %v579, 96
    %v582 = vpop.permute.xlu0 %581
    %v584 = vmul.f32 %v566, %v582
    %586 = vrot.lane.b32.xlu0 %v584, 96
    %v587 = vpop.permute.xlu0 %586
    %s589 = scalar_lea.vmem [#allocation3], 8
    %590 = vst.msk [vmem:[%s589] sm:$0xff] %vm484, %v587
    %s591 = scalar_lea.vmem [#allocation2], 8
    %v592 = vld [vmem:[%s591] sm:$0xff]
    %v593 = vsel %vm484, %v587, 0
    %595 = vmatprep.subr.mxu0 0.0
    %596 = vmatpush1.msra.mxu0 0.0
    %597 = vmatprep.subr.mxu0 0.0
    %598 = vmatpush1.msra.mxu0 0.0
    %599 = vmatprep.subr.mxu0 0.0
    %600 = vmatpush1.msra.mxu0 0.0
    %601 = vmatprep.subr.mxu0 0.0
    %602 = vmatpush1.msra.mxu0 0.0
    %603 = vmatprep.subr.mxu0 0.0
    %604 = vmatpush1.msra.mxu0 0.0
    %605 = vmatprep.subr.mxu0 0.0
    %606 = vmatpush1.msra.mxu0 0.0
    %607 = vmatprep.subr.mxu0 0.0
    %608 = vmatpush1.msra.mxu0 0.0
    %609 = vmatprep.subr.mxu0 0.0
    %610 = vmatpush1.msra.mxu0 0.0
    %611 = vmatprep.subr.mxu0 0.0
    %612 = vmatpush1.msra.mxu0 0.0
    %613 = vmatprep.subr.mxu0 0.0
    %614 = vmatpush1.msra.mxu0 0.0
    %615 = vmatprep.subr.mxu0 0.0
    %616 = vmatpush1.msra.mxu0 0.0
    %617 = vmatprep.subr.mxu0 0.0
    %618 = vmatpush1.msra.mxu0 0.0
    %619 = vmatprep.subr.mxu0 0.0
    %620 = vmatpush1.msra.mxu0 %v483
    %621 = vmatprep.subr.mxu0 0.0
    %622 = vmatpush1.msra.mxu0 %v482
    %623 = vmatprep.subr.mxu0 0.0
    %624 = vmatpush1.msra.mxu0 %v481
    %625 = vmatprep.subr.mxu0 0.0
    %626 = vmatpush1.msra.mxu0 %v480
    %627 = vmatprep.subr.mxu0 0.0
    %628 = vmatpush2.msra.mxu0 0.0
    %629 = vmatprep.subr.mxu0 0.0
    %630 = vmatpush2.msra.mxu0 0.0
    %631 = vmatprep.subr.mxu0 0.0
    %632 = vmatpush2.msra.mxu0 0.0
    %633 = vmatprep.subr.mxu0 0.0
    %634 = vmatpush2.msra.mxu0 0.0
    %635 = vmatprep.subr.mxu0 0.0
    %636 = vmatpush2.msra.mxu0 0.0
    %637 = vmatprep.subr.mxu0 0.0
    %638 = vmatpush2.msra.mxu0 0.0
    %639 = vmatprep.subr.mxu0 0.0
    %640 = vmatpush2.msra.mxu0 0.0
    %641 = vmatprep.subr.mxu0 0.0
    %642 = vmatpush2.msra.mxu0 0.0
    %643 = vmatprep.subr.mxu0 0.0
    %644 = vmatpush2.msra.mxu0 0.0
    %645 = vmatprep.subr.mxu0 0.0
    %646 = vmatpush2.msra.mxu0 0.0
    %647 = vmatprep.subr.mxu0 0.0
    %648 = vmatpush2.msra.mxu0 0.0
    %649 = vmatprep.subr.mxu0 0.0
    %650 = vmatpush2.msra.mxu0 0.0
    %651 = vmatprep.subr.mxu0 0.0
    %652 = vmatpush2.msra.mxu0 0.0
    %653 = vmatprep.subr.mxu0 0.0
    %654 = vmatpush2.msra.mxu0 0.0
    %655 = vmatprep.subr.mxu0 0.0
    %656 = vmatpush2.msra.mxu0 0.0
    %657 = vmatprep.subr.mxu0 0.0
    %658 = vmatpush2.msra.mxu0 0.0
    %659 = vmatprep.mubr.f32.mxu0 0.0
    %660 = vmatmul.mubr.f32.gmra.mxu0 %v593
    %v661 = vpop.f32.mrf.mxu0
    %v662 = vadd.f32 0.0, %v661
    %v663 = vpop.f32.mrf.mxu0
    %664 = vdwg.mxu0
    %v665 = vadd.f32 %v592, %v662
    %v666 = vxor.u32 %v665, 2147483648
    %v667 = vmul.f32 %v666, 1.442695
    %v668 = vpow.pop %v667
    %v669 = vadd.f32 %v668, 1.0
    %v670 = vrcp.pop %v669
    %v671 = vmul.f32 1.0, %v670
    %v672 = vtanh.pop %v665
    %v673 = vmul.f32 %v671, %v578
    %675 = vrot.lane.b32.xlu0 %v672, 32
    %v676 = vpop.permute.xlu0 %675
    %v678 = vmul.f32 %v671, %v676
    %680 = vrot.lane.b32.xlu0 %v678, 64
    %v681 = vpop.permute.xlu0 %680
    %v683 = vadd.f32 %v673, %v681
    %v684 = vtanh.pop %v683
    %686 = vrot.lane.b32.xlu0 %v684, 96
    %v687 = vpop.permute.xlu0 %686
    %v689 = vmul.f32 %v671, %v687
    %691 = vrot.lane.b32.xlu0 %v689, 96
    %v692 = vpop.permute.xlu0 %691
    %s694 = scalar_lea.vmem [#allocation3], 16
    %695 = vst.msk [vmem:[%s694] sm:$0xff] %vm484, %v692
    %s696 = scalar_lea.vmem [#allocation2], 16
    %v697 = vld [vmem:[%s696] sm:$0xff]
    %v698 = vsel %vm484, %v692, 0
    %700 = vmatprep.subr.mxu0 0.0
    %701 = vmatpush1.msra.mxu0 0.0
    %702 = vmatprep.subr.mxu0 0.0
    %703 = vmatpush1.msra.mxu0 0.0
    %704 = vmatprep.subr.mxu0 0.0
    %705 = vmatpush1.msra.mxu0 0.0
    %706 = vmatprep.subr.mxu0 0.0
    %707 = vmatpush1.msra.mxu0 0.0
    %708 = vmatprep.subr.mxu0 0.0
    %709 = vmatpush1.msra.mxu0 0.0
    %710 = vmatprep.subr.mxu0 0.0
    %711 = vmatpush1.msra.mxu0 0.0
    %712 = vmatprep.subr.mxu0 0.0
    %713 = vmatpush1.msra.mxu0 0.0
    %714 = vmatprep.subr.mxu0 0.0
    %715 = vmatpush1.msra.mxu0 0.0
    %716 = vmatprep.subr.mxu0 0.0
    %717 = vmatpush1.msra.mxu0 0.0
    %718 = vmatprep.subr.mxu0 0.0
    %719 = vmatpush1.msra.mxu0 0.0
    %720 = vmatprep.subr.mxu0 0.0
    %721 = vmatpush1.msra.mxu0 0.0
    %722 = vmatprep.subr.mxu0 0.0
    %723 = vmatpush1.msra.mxu0 0.0
    %724 = vmatprep.subr.mxu0 0.0
    %725 = vmatpush1.msra.mxu0 %v483
    %726 = vmatprep.subr.mxu0 0.0
    %727 = vmatpush1.msra.mxu0 %v482
    %728 = vmatprep.subr.mxu0 0.0
    %729 = vmatpush1.msra.mxu0 %v481
    %730 = vmatprep.subr.mxu0 0.0
    %731 = vmatpush1.msra.mxu0 %v480
    %732 = vmatprep.subr.mxu0 0.0
    %733 = vmatpush2.msra.mxu0 0.0
    %734 = vmatprep.subr.mxu0 0.0
    %735 = vmatpush2.msra.mxu0 0.0
    %736 = vmatprep.subr.mxu0 0.0
    %737 = vmatpush2.msra.mxu0 0.0
    %738 = vmatprep.subr.mxu0 0.0
    %739 = vmatpush2.msra.mxu0 0.0
    %740 = vmatprep.subr.mxu0 0.0
    %741 = vmatpush2.msra.mxu0 0.0
    %742 = vmatprep.subr.mxu0 0.0
    %743 = vmatpush2.msra.mxu0 0.0
    %744 = vmatprep.subr.mxu0 0.0
    %745 = vmatpush2.msra.mxu0 0.0
    %746 = vmatprep.subr.mxu0 0.0
    %747 = vmatpush2.msra.mxu0 0.0
    %748 = vmatprep.subr.mxu0 0.0
    %749 = vmatpush2.msra.mxu0 0.0
    %750 = vmatprep.subr.mxu0 0.0
    %751 = vmatpush2.msra.mxu0 0.0
    %752 = vmatprep.subr.mxu0 0.0
    %753 = vmatpush2.msra.mxu0 0.0
    %754 = vmatprep.subr.mxu0 0.0
    %755 = vmatpush2.msra.mxu0 0.0
    %756 = vmatprep.subr.mxu0 0.0
    %757 = vmatpush2.msra.mxu0 0.0
    %758 = vmatprep.subr.mxu0 0.0
    %759 = vmatpush2.msra.mxu0 0.0
    %760 = vmatprep.subr.mxu0 0.0
    %761 = vmatpush2.msra.mxu0 0.0
    %762 = vmatprep.subr.mxu0 0.0
    %763 = vmatpush2.msra.mxu0 0.0
    %764 = vmatprep.mubr.f32.mxu0 0.0
    %765 = vmatmul.mubr.f32.gmra.mxu0 %v698
    %v766 = vpop.f32.mrf.mxu0
    %v767 = vadd.f32 0.0, %v766
    %v768 = vpop.f32.mrf.mxu0
    %769 = vdwg.mxu0
    %v770 = vadd.f32 %v697, %v767
    %v771 = vxor.u32 %v770, 2147483648
    %v772 = vmul.f32 %v771, 1.442695
    %v773 = vpow.pop %v772
    %v774 = vadd.f32 %v773, 1.0
    %v775 = vrcp.pop %v774
    %v776 = vmul.f32 1.0, %v775
    %v777 = vtanh.pop %v770
    %v778 = vmul.f32 %v776, %v683
    %780 = vrot.lane.b32.xlu0 %v777, 32
    %v781 = vpop.permute.xlu0 %780
    %v783 = vmul.f32 %v776, %v781
    %785 = vrot.lane.b32.xlu0 %v783, 64
    %v786 = vpop.permute.xlu0 %785
    %v788 = vadd.f32 %v778, %v786
    %v789 = vtanh.pop %v788
    %791 = vrot.lane.b32.xlu0 %v789, 96
    %v792 = vpop.permute.xlu0 %791
    %v794 = vmul.f32 %v776, %v792
    %796 = vrot.lane.b32.xlu0 %v794, 96
    %v797 = vpop.permute.xlu0 %796
    %s799 = scalar_lea.vmem [#allocation3], 24
    %800 = vst.msk [vmem:[%s799] sm:$0xff] %vm484, %v797
    %s801 = scalar_lea.vmem [#allocation2], 24
    %v802 = vld [vmem:[%s801] sm:$0xff]
    %v803 = vsel %vm484, %v797, 0
    %805 = vmatprep.subr.mxu0 0.0
    %806 = vmatpush1.msra.mxu0 0.0
    %807 = vmatprep.subr.mxu0 0.0
    %808 = vmatpush1.msra.mxu0 0.0
    %809 = vmatprep.subr.mxu0 0.0
    %810 = vmatpush1.msra.mxu0 0.0
    %811 = vmatprep.subr.mxu0 0.0
    %812 = vmatpush1.msra.mxu0 0.0
    %813 = vmatprep.subr.mxu0 0.0
    %814 = vmatpush1.msra.mxu0 0.0
    %815 = vmatprep.subr.mxu0 0.0
    %816 = vmatpush1.msra.mxu0 0.0
    %817 = vmatprep.subr.mxu0 0.0
    %818 = vmatpush1.msra.mxu0 0.0
    %819 = vmatprep.subr.mxu0 0.0
    %820 = vmatpush1.msra.mxu0 0.0
    %821 = vmatprep.subr.mxu0 0.0
    %822 = vmatpush1.msra.mxu0 0.0
    %823 = vmatprep.subr.mxu0 0.0
    %824 = vmatpush1.msra.mxu0 0.0
    %825 = vmatprep.subr.mxu0 0.0
    %826 = vmatpush1.msra.mxu0 0.0
    %827 = vmatprep.subr.mxu0 0.0
    %828 = vmatpush1.msra.mxu0 0.0
    %829 = vmatprep.subr.mxu0 0.0
    %830 = vmatpush1.msra.mxu0 %v483
    %831 = vmatprep.subr.mxu0 0.0
    %832 = vmatpush1.msra.mxu0 %v482
    %833 = vmatprep.subr.mxu0 0.0
    %834 = vmatpush1.msra.mxu0 %v481
    %835 = vmatprep.subr.mxu0 0.0
    %836 = vmatpush1.msra.mxu0 %v480
    %837 = vmatprep.subr.mxu0 0.0
    %838 = vmatpush2.msra.mxu0 0.0
    %839 = vmatprep.subr.mxu0 0.0
    %840 = vmatpush2.msra.mxu0 0.0
    %841 = vmatprep.subr.mxu0 0.0
    %842 = vmatpush2.msra.mxu0 0.0
    %843 = vmatprep.subr.mxu0 0.0
    %844 = vmatpush2.msra.mxu0 0.0
    %845 = vmatprep.subr.mxu0 0.0
    %846 = vmatpush2.msra.mxu0 0.0
    %847 = vmatprep.subr.mxu0 0.0
    %848 = vmatpush2.msra.mxu0 0.0
    %849 = vmatprep.subr.mxu0 0.0
    %850 = vmatpush2.msra.mxu0 0.0
    %851 = vmatprep.subr.mxu0 0.0
    %852 = vmatpush2.msra.mxu0 0.0
    %853 = vmatprep.subr.mxu0 0.0
    %854 = vmatpush2.msra.mxu0 0.0
    %855 = vmatprep.subr.mxu0 0.0
    %856 = vmatpush2.msra.mxu0 0.0
    %857 = vmatprep.subr.mxu0 0.0
    %858 = vmatpush2.msra.mxu0 0.0
    %859 = vmatprep.subr.mxu0 0.0
    %860 = vmatpush2.msra.mxu0 0.0
    %861 = vmatprep.subr.mxu0 0.0
    %862 = vmatpush2.msra.mxu0 0.0
    %863 = vmatprep.subr.mxu0 0.0
    %864 = vmatpush2.msra.mxu0 0.0
    %865 = vmatprep.subr.mxu0 0.0
    %866 = vmatpush2.msra.mxu0 0.0
    %867 = vmatprep.subr.mxu0 0.0
    %868 = vmatpush2.msra.mxu0 0.0
    %869 = vmatprep.mubr.f32.mxu0 0.0
    %870 = vmatmul.mubr.f32.gmra.mxu0 %v803
    %v871 = vpop.f32.mrf.mxu0
    %v872 = vadd.f32 0.0, %v871
    %v873 = vpop.f32.mrf.mxu0
    %874 = vdwg.mxu0
    %v875 = vadd.f32 %v802, %v872
    %v876 = vxor.u32 %v875, 2147483648
    %v877 = vmul.f32 %v876, 1.442695
    %v878 = vpow.pop %v877
    %v879 = vadd.f32 %v878, 1.0
    %v880 = vrcp.pop %v879
    %v881 = vmul.f32 1.0, %v880
    %v882 = vtanh.pop %v875
    %v883 = vmul.f32 %v881, %v788
    %885 = vrot.lane.b32.xlu0 %v882, 32
    %v886 = vpop.permute.xlu0 %885
    %v888 = vmul.f32 %v881, %v886
    %890 = vrot.lane.b32.xlu0 %v888, 64
    %v891 = vpop.permute.xlu0 %890
    %v893 = vadd.f32 %v883, %v891
    %v894 = vtanh.pop %v893
    %896 = vrot.lane.b32.xlu0 %v894, 96
    %v897 = vpop.permute.xlu0 %896
    %v899 = vmul.f32 %v881, %v897
    %901 = vrot.lane.b32.xlu0 %v899, 96
    %v902 = vpop.permute.xlu0 %901
    %s904 = scalar_lea.vmem [#allocation3], 32
    %905 = vst.msk [vmem:[%s904] sm:$0xff] %vm484, %v902
    %s906 = scalar_lea.vmem [#allocation2], 32
    %v907 = vld [vmem:[%s906] sm:$0xff]
    %v908 = vsel %vm484, %v902, 0
    %910 = vmatprep.subr.mxu0 0.0
    %911 = vmatpush1.msra.mxu0 0.0
    %912 = vmatprep.subr.mxu0 0.0
    %913 = vmatpush1.msra.mxu0 0.0
    %914 = vmatprep.subr.mxu0 0.0
    %915 = vmatpush1.msra.mxu0 0.0
    %916 = vmatprep.subr.mxu0 0.0
    %917 = vmatpush1.msra.mxu0 0.0
    %918 = vmatprep.subr.mxu0 0.0
    %919 = vmatpush1.msra.mxu0 0.0
    %920 = vmatprep.subr.mxu0 0.0
    %921 = vmatpush1.msra.mxu0 0.0
    %922 = vmatprep.subr.mxu0 0.0
    %923 = vmatpush1.msra.mxu0 0.0
    %924 = vmatprep.subr.mxu0 0.0
    %925 = vmatpush1.msra.mxu0 0.0
    %926 = vmatprep.subr.mxu0 0.0
    %927 = vmatpush1.msra.mxu0 0.0
    %928 = vmatprep.subr.mxu0 0.0
    %929 = vmatpush1.msra.mxu0 0.0
    %930 = vmatprep.subr.mxu0 0.0
    %931 = vmatpush1.msra.mxu0 0.0
    %932 = vmatprep.subr.mxu0 0.0
    %933 = vmatpush1.msra.mxu0 0.0
    %934 = vmatprep.subr.mxu0 0.0
    %935 = vmatpush1.msra.mxu0 %v483
    %936 = vmatprep.subr.mxu0 0.0
    %937 = vmatpush1.msra.mxu0 %v482
    %938 = vmatprep.subr.mxu0 0.0
    %939 = vmatpush1.msra.mxu0 %v481
    %940 = vmatprep.subr.mxu0 0.0
    %941 = vmatpush1.msra.mxu0 %v480
    %942 = vmatprep.subr.mxu0 0.0
    %943 = vmatpush2.msra.mxu0 0.0
    %944 = vmatprep.subr.mxu0 0.0
    %945 = vmatpush2.msra.mxu0 0.0
    %946 = vmatprep.subr.mxu0 0.0
    %947 = vmatpush2.msra.mxu0 0.0
    %948 = vmatprep.subr.mxu0 0.0
    %949 = vmatpush2.msra.mxu0 0.0
    %950 = vmatprep.subr.mxu0 0.0
    %951 = vmatpush2.msra.mxu0 0.0
    %952 = vmatprep.subr.mxu0 0.0
    %953 = vmatpush2.msra.mxu0 0.0
    %954 = vmatprep.subr.mxu0 0.0
    %955 = vmatpush2.msra.mxu0 0.0
    %956 = vmatprep.subr.mxu0 0.0
    %957 = vmatpush2.msra.mxu0 0.0
    %958 = vmatprep.subr.mxu0 0.0
    %959 = vmatpush2.msra.mxu0 0.0
    %960 = vmatprep.subr.mxu0 0.0
    %961 = vmatpush2.msra.mxu0 0.0
    %962 = vmatprep.subr.mxu0 0.0
    %963 = vmatpush2.msra.mxu0 0.0
    %964 = vmatprep.subr.mxu0 0.0
    %965 = vmatpush2.msra.mxu0 0.0
    %966 = vmatprep.subr.mxu0 0.0
    %967 = vmatpush2.msra.mxu0 0.0
    %968 = vmatprep.subr.mxu0 0.0
    %969 = vmatpush2.msra.mxu0 0.0
    %970 = vmatprep.subr.mxu0 0.0
    %971 = vmatpush2.msra.mxu0 0.0
    %972 = vmatprep.subr.mxu0 0.0
    %973 = vmatpush2.msra.mxu0 0.0
    %974 = vmatprep.mubr.f32.mxu0 0.0
    %975 = vmatmul.mubr.f32.gmra.mxu0 %v908
    %v976 = vpop.f32.mrf.mxu0
    %v977 = vadd.f32 0.0, %v976
    %v978 = vpop.f32.mrf.mxu0
    %979 = vdwg.mxu0
    %v980 = vadd.f32 %v907, %v977
    %v981 = vxor.u32 %v980, 2147483648
    %v982 = vmul.f32 %v981, 1.442695
    %v983 = vpow.pop %v982
    %v984 = vadd.f32 %v983, 1.0
    %v985 = vrcp.pop %v984
    %v986 = vmul.f32 1.0, %v985
    %v987 = vtanh.pop %v980
    %v988 = vmul.f32 %v986, %v893
    %990 = vrot.lane.b32.xlu0 %v987, 32
    %v991 = vpop.permute.xlu0 %990
    %v993 = vmul.f32 %v986, %v991
    %995 = vrot.lane.b32.xlu0 %v993, 64
    %v996 = vpop.permute.xlu0 %995
    %v998 = vadd.f32 %v988, %v996
    %v999 = vtanh.pop %v998
    %1001 = vrot.lane.b32.xlu0 %v999, 96
    %v1002 = vpop.permute.xlu0 %1001
    %v1004 = vmul.f32 %v986, %v1002
    %1006 = vrot.lane.b32.xlu0 %v1004, 96
    %v1007 = vpop.permute.xlu0 %1006
    %s1009 = scalar_lea.vmem [#allocation3], 40
    %1010 = vst.msk [vmem:[%s1009] sm:$0xff] %vm484, %v1007
    %s1011 = scalar_lea.vmem [#allocation2], 40
    %v1012 = vld [vmem:[%s1011] sm:$0xff]
    %v1013 = vsel %vm484, %v1007, 0
    %1015 = vmatprep.subr.mxu0 0.0
    %1016 = vmatpush1.msra.mxu0 0.0
    %1017 = vmatprep.subr.mxu0 0.0
    %1018 = vmatpush1.msra.mxu0 0.0
    %1019 = vmatprep.subr.mxu0 0.0
    %1020 = vmatpush1.msra.mxu0 0.0
    %1021 = vmatprep.subr.mxu0 0.0
    %1022 = vmatpush1.msra.mxu0 0.0
    %1023 = vmatprep.subr.mxu0 0.0
    %1024 = vmatpush1.msra.mxu0 0.0
    %1025 = vmatprep.subr.mxu0 0.0
    %1026 = vmatpush1.msra.mxu0 0.0
    %1027 = vmatprep.subr.mxu0 0.0
    %1028 = vmatpush1.msra.mxu0 0.0
    %1029 = vmatprep.subr.mxu0 0.0
    %1030 = vmatpush1.msra.mxu0 0.0
    %1031 = vmatprep.subr.mxu0 0.0
    %1032 = vmatpush1.msra.mxu0 0.0
    %1033 = vmatprep.subr.mxu0 0.0
    %1034 = vmatpush1.msra.mxu0 0.0
    %1035 = vmatprep.subr.mxu0 0.0
    %1036 = vmatpush1.msra.mxu0 0.0
    %1037 = vmatprep.subr.mxu0 0.0
    %1038 = vmatpush1.msra.mxu0 0.0
    %1039 = vmatprep.subr.mxu0 0.0
    %1040 = vmatpush1.msra.mxu0 %v483
    %1041 = vmatprep.subr.mxu0 0.0
    %1042 = vmatpush1.msra.mxu0 %v482
    %1043 = vmatprep.subr.mxu0 0.0
    %1044 = vmatpush1.msra.mxu0 %v481
    %1045 = vmatprep.subr.mxu0 0.0
    %1046 = vmatpush1.msra.mxu0 %v480
    %1047 = vmatprep.subr.mxu0 0.0
    %1048 = vmatpush2.msra.mxu0 0.0
    %1049 = vmatprep.subr.mxu0 0.0
    %1050 = vmatpush2.msra.mxu0 0.0
    %1051 = vmatprep.subr.mxu0 0.0
    %1052 = vmatpush2.msra.mxu0 0.0
    %1053 = vmatprep.subr.mxu0 0.0
    %1054 = vmatpush2.msra.mxu0 0.0
    %1055 = vmatprep.subr.mxu0 0.0
    %1056 = vmatpush2.msra.mxu0 0.0
    %1057 = vmatprep.subr.mxu0 0.0
    %1058 = vmatpush2.msra.mxu0 0.0
    %1059 = vmatprep.subr.mxu0 0.0
    %1060 = vmatpush2.msra.mxu0 0.0
    %1061 = vmatprep.subr.mxu0 0.0
    %1062 = vmatpush2.msra.mxu0 0.0
    %1063 = vmatprep.subr.mxu0 0.0
    %1064 = vmatpush2.msra.mxu0 0.0
    %1065 = vmatprep.subr.mxu0 0.0
    %1066 = vmatpush2.msra.mxu0 0.0
    %1067 = vmatprep.subr.mxu0 0.0
    %1068 = vmatpush2.msra.mxu0 0.0
    %1069 = vmatprep.subr.mxu0 0.0
    %1070 = vmatpush2.msra.mxu0 0.0
    %1071 = vmatprep.subr.mxu0 0.0
    %1072 = vmatpush2.msra.mxu0 0.0
    %1073 = vmatprep.subr.mxu0 0.0
    %1074 = vmatpush2.msra.mxu0 0.0
    %1075 = vmatprep.subr.mxu0 0.0
    %1076 = vmatpush2.msra.mxu0 0.0
    %1077 = vmatprep.subr.mxu0 0.0
    %1078 = vmatpush2.msra.mxu0 0.0
    %1079 = vmatprep.mubr.f32.mxu0 0.0
    %1080 = vmatmul.mubr.f32.gmra.mxu0 %v1013
    %v1081 = vpop.f32.mrf.mxu0
    %v1082 = vadd.f32 0.0, %v1081
    %v1083 = vpop.f32.mrf.mxu0
    %1084 = vdwg.mxu0
    %v1085 = vadd.f32 %v1012, %v1082
    %v1086 = vxor.u32 %v1085, 2147483648
    %v1087 = vmul.f32 %v1086, 1.442695
    %v1088 = vpow.pop %v1087
    %v1089 = vadd.f32 %v1088, 1.0
    %v1090 = vrcp.pop %v1089
    %v1091 = vmul.f32 1.0, %v1090
    %v1092 = vtanh.pop %v1085
    %v1093 = vmul.f32 %v1091, %v998
    %1095 = vrot.lane.b32.xlu0 %v1092, 32
    %v1096 = vpop.permute.xlu0 %1095
    %v1098 = vmul.f32 %v1091, %v1096
    %1100 = vrot.lane.b32.xlu0 %v1098, 64
    %v1101 = vpop.permute.xlu0 %1100
    %v1103 = vadd.f32 %v1093, %v1101
    %v1104 = vtanh.pop %v1103
    %1106 = vrot.lane.b32.xlu0 %v1104, 96
    %v1107 = vpop.permute.xlu0 %1106
    %v1109 = vmul.f32 %v1091, %v1107
    %1111 = vrot.lane.b32.xlu0 %v1109, 96
    %v1112 = vpop.permute.xlu0 %1111
    %s1114 = scalar_lea.vmem [#allocation3], 48
    %1115 = vst.msk [vmem:[%s1114] sm:$0xff] %vm484, %v1112
    %s1116 = scalar_lea.vmem [#allocation2], 48
    %v1117 = vld [vmem:[%s1116] sm:$0xff]
    %v1118 = vsel %vm484, %v1112, 0
    %1120 = vmatprep.subr.mxu0 0.0
    %1121 = vmatpush1.msra.mxu0 0.0
    %1122 = vmatprep.subr.mxu0 0.0
    %1123 = vmatpush1.msra.mxu0 0.0
    %1124 = vmatprep.subr.mxu0 0.0
    %1125 = vmatpush1.msra.mxu0 0.0
    %1126 = vmatprep.subr.mxu0 0.0
    %1127 = vmatpush1.msra.mxu0 0.0
    %1128 = vmatprep.subr.mxu0 0.0
    %1129 = vmatpush1.msra.mxu0 0.0
    %1130 = vmatprep.subr.mxu0 0.0
    %1131 = vmatpush1.msra.mxu0 0.0
    %1132 = vmatprep.subr.mxu0 0.0
    %1133 = vmatpush1.msra.mxu0 0.0
    %1134 = vmatprep.subr.mxu0 0.0
    %1135 = vmatpush1.msra.mxu0 0.0
    %1136 = vmatprep.subr.mxu0 0.0
    %1137 = vmatpush1.msra.mxu0 0.0
    %1138 = vmatprep.subr.mxu0 0.0
    %1139 = vmatpush1.msra.mxu0 0.0
    %1140 = vmatprep.subr.mxu0 0.0
    %1141 = vmatpush1.msra.mxu0 0.0
    %1142 = vmatprep.subr.mxu0 0.0
    %1143 = vmatpush1.msra.mxu0 0.0
    %1144 = vmatprep.subr.mxu0 0.0
    %1145 = vmatpush1.msra.mxu0 %v483
    %1146 = vmatprep.subr.mxu0 0.0
    %1147 = vmatpush1.msra.mxu0 %v482
    %1148 = vmatprep.subr.mxu0 0.0
    %1149 = vmatpush1.msra.mxu0 %v481
    %1150 = vmatprep.subr.mxu0 0.0
    %1151 = vmatpush1.msra.mxu0 %v480
    %1152 = vmatprep.subr.mxu0 0.0
    %1153 = vmatpush2.msra.mxu0 0.0
    %1154 = vmatprep.subr.mxu0 0.0
    %1155 = vmatpush2.msra.mxu0 0.0
    %1156 = vmatprep.subr.mxu0 0.0
    %1157 = vmatpush2.msra.mxu0 0.0
    %1158 = vmatprep.subr.mxu0 0.0
    %1159 = vmatpush2.msra.mxu0 0.0
    %1160 = vmatprep.subr.mxu0 0.0
    %1161 = vmatpush2.msra.mxu0 0.0
    %1162 = vmatprep.subr.mxu0 0.0
    %1163 = vmatpush2.msra.mxu0 0.0
    %1164 = vmatprep.subr.mxu0 0.0
    %1165 = vmatpush2.msra.mxu0 0.0
    %1166 = vmatprep.subr.mxu0 0.0
    %1167 = vmatpush2.msra.mxu0 0.0
    %1168 = vmatprep.subr.mxu0 0.0
    %1169 = vmatpush2.msra.mxu0 0.0
    %1170 = vmatprep.subr.mxu0 0.0
    %1171 = vmatpush2.msra.mxu0 0.0
    %1172 = vmatprep.subr.mxu0 0.0
    %1173 = vmatpush2.msra.mxu0 0.0
    %1174 = vmatprep.subr.mxu0 0.0
    %1175 = vmatpush2.msra.mxu0 0.0
    %1176 = vmatprep.subr.mxu0 0.0
    %1177 = vmatpush2.msra.mxu0 0.0
    %1178 = vmatprep.subr.mxu0 0.0
    %1179 = vmatpush2.msra.mxu0 0.0
    %1180 = vmatprep.subr.mxu0 0.0
    %1181 = vmatpush2.msra.mxu0 0.0
    %1182 = vmatprep.subr.mxu0 0.0
    %1183 = vmatpush2.msra.mxu0 0.0
    %1184 = vmatprep.mubr.f32.mxu0 0.0
    %1185 = vmatmul.mubr.f32.gmra.mxu0 %v1118
    %v1186 = vpop.f32.mrf.mxu0
    %v1187 = vadd.f32 0.0, %v1186
    %v1188 = vpop.f32.mrf.mxu0
    %1189 = vdwg.mxu0
    %v1190 = vadd.f32 %v1117, %v1187
    %v1191 = vxor.u32 %v1190, 2147483648
    %v1192 = vmul.f32 %v1191, 1.442695
    %v1193 = vpow.pop %v1192
    %v1194 = vadd.f32 %v1193, 1.0
    %v1195 = vrcp.pop %v1194
    %v1196 = vmul.f32 1.0, %v1195
    %v1197 = vtanh.pop %v1190
    %v1198 = vmul.f32 %v1196, %v1103
    %1200 = vrot.lane.b32.xlu0 %v1197, 32
    %v1201 = vpop.permute.xlu0 %1200
    %v1203 = vmul.f32 %v1196, %v1201
    %1205 = vrot.lane.b32.xlu0 %v1203, 64
    %v1206 = vpop.permute.xlu0 %1205
    %v1208 = vadd.f32 %v1198, %v1206
    %v1209 = vtanh.pop %v1208
    %1211 = vrot.lane.b32.xlu0 %v1209, 96
    %v1212 = vpop.permute.xlu0 %1211
    %v1214 = vmul.f32 %v1196, %v1212
    %1216 = vrot.lane.b32.xlu0 %v1214, 96
    %v1217 = vpop.permute.xlu0 %1216
    %s1219 = scalar_lea.vmem [#allocation3], 56
    %1220 = vst.msk [vmem:[%s1219] sm:$0xff] %vm484, %v1217
    %s1221 = scalar_lea.vmem [#allocation2], 56
    %v1222 = vld [vmem:[%s1221] sm:$0xff]
    %v1223 = vsel %vm484, %v1217, 0
    %1225 = vmatprep.subr.mxu0 0.0
    %1226 = vmatpush1.msra.mxu0 0.0
    %1227 = vmatprep.subr.mxu0 0.0
    %1228 = vmatpush1.msra.mxu0 0.0
    %1229 = vmatprep.subr.mxu0 0.0
    %1230 = vmatpush1.msra.mxu0 0.0
    %1231 = vmatprep.subr.mxu0 0.0
    %1232 = vmatpush1.msra.mxu0 0.0
    %1233 = vmatprep.subr.mxu0 0.0
    %1234 = vmatpush1.msra.mxu0 0.0
    %1235 = vmatprep.subr.mxu0 0.0
    %1236 = vmatpush1.msra.mxu0 0.0
    %1237 = vmatprep.subr.mxu0 0.0
    %1238 = vmatpush1.msra.mxu0 0.0
    %1239 = vmatprep.subr.mxu0 0.0
    %1240 = vmatpush1.msra.mxu0 0.0
    %1241 = vmatprep.subr.mxu0 0.0
    %1242 = vmatpush1.msra.mxu0 0.0
    %1243 = vmatprep.subr.mxu0 0.0
    %1244 = vmatpush1.msra.mxu0 0.0
    %1245 = vmatprep.subr.mxu0 0.0
    %1246 = vmatpush1.msra.mxu0 0.0
    %1247 = vmatprep.subr.mxu0 0.0
    %1248 = vmatpush1.msra.mxu0 0.0
    %1249 = vmatprep.subr.mxu0 0.0
    %1250 = vmatpush1.msra.mxu0 %v483
    %1251 = vmatprep.subr.mxu0 0.0
    %1252 = vmatpush1.msra.mxu0 %v482
    %1253 = vmatprep.subr.mxu0 0.0
    %1254 = vmatpush1.msra.mxu0 %v481
    %1255 = vmatprep.subr.mxu0 0.0
    %1256 = vmatpush1.msra.mxu0 %v480
    %1257 = vmatprep.subr.mxu0 0.0
    %1258 = vmatpush2.msra.mxu0 0.0
    %1259 = vmatprep.subr.mxu0 0.0
    %1260 = vmatpush2.msra.mxu0 0.0
    %1261 = vmatprep.subr.mxu0 0.0
    %1262 = vmatpush2.msra.mxu0 0.0
    %1263 = vmatprep.subr.mxu0 0.0
    %1264 = vmatpush2.msra.mxu0 0.0
    %1265 = vmatprep.subr.mxu0 0.0
    %1266 = vmatpush2.msra.mxu0 0.0
    %1267 = vmatprep.subr.mxu0 0.0
    %1268 = vmatpush2.msra.mxu0 0.0
    %1269 = vmatprep.subr.mxu0 0.0
    %1270 = vmatpush2.msra.mxu0 0.0
    %1271 = vmatprep.subr.mxu0 0.0
    %1272 = vmatpush2.msra.mxu0 0.0
    %1273 = vmatprep.subr.mxu0 0.0
    %1274 = vmatpush2.msra.mxu0 0.0
    %1275 = vmatprep.subr.mxu0 0.0
    %1276 = vmatpush2.msra.mxu0 0.0
    %1277 = vmatprep.subr.mxu0 0.0
    %1278 = vmatpush2.msra.mxu0 0.0
    %1279 = vmatprep.subr.mxu0 0.0
    %1280 = vmatpush2.msra.mxu0 0.0
    %1281 = vmatprep.subr.mxu0 0.0
    %1282 = vmatpush2.msra.mxu0 0.0
    %1283 = vmatprep.subr.mxu0 0.0
    %1284 = vmatpush2.msra.mxu0 0.0
    %1285 = vmatprep.subr.mxu0 0.0
    %1286 = vmatpush2.msra.mxu0 0.0
    %1287 = vmatprep.subr.mxu0 0.0
    %1288 = vmatpush2.msra.mxu0 0.0
    %1289 = vmatprep.mubr.f32.mxu0 0.0
    %1290 = vmatmul.mubr.f32.gmra.mxu0 %v1223
    %v1291 = vpop.f32.mrf.mxu0
    %v1292 = vadd.f32 0.0, %v1291
    %v1293 = vpop.f32.mrf.mxu0
    %1294 = vdwg.mxu0
    %v1295 = vadd.f32 %v1222, %v1292
    %v1296 = vxor.u32 %v1295, 2147483648
    %v1297 = vmul.f32 %v1296, 1.442695
    %v1298 = vpow.pop %v1297
    %v1299 = vadd.f32 %v1298, 1.0
    %v1300 = vrcp.pop %v1299
    %v1301 = vmul.f32 1.0, %v1300
    %v1302 = vtanh.pop %v1295
    %v1303 = vmul.f32 %v1301, %v1208
    %1305 = vrot.lane.b32.xlu0 %v1302, 32
    %v1306 = vpop.permute.xlu0 %1305
    %v1308 = vmul.f32 %v1301, %v1306
    %1310 = vrot.lane.b32.xlu0 %v1308, 64
    %v1311 = vpop.permute.xlu0 %1310
    %v1313 = vadd.f32 %v1303, %v1311
    %v1314 = vtanh.pop %v1313
    %1316 = vrot.lane.b32.xlu0 %v1314, 96
    %v1317 = vpop.permute.xlu0 %1316
    %v1319 = vmul.f32 %v1301, %v1317
    %1321 = vrot.lane.b32.xlu0 %v1319, 96
    %v1322 = vpop.permute.xlu0 %1321
    %s1324 = scalar_lea.vmem [#allocation3], 64
    %1325 = vst.msk [vmem:[%s1324] sm:$0xff] %vm484, %v1322
    %s1326 = scalar_lea.vmem [#allocation2], 64
    %v1327 = vld [vmem:[%s1326] sm:$0xff]
    %v1328 = vsel %vm484, %v1322, 0
    %1330 = vmatprep.subr.mxu0 0.0
    %1331 = vmatpush1.msra.mxu0 0.0
    %1332 = vmatprep.subr.mxu0 0.0
    %1333 = vmatpush1.msra.mxu0 0.0
    %1334 = vmatprep.subr.mxu0 0.0
    %1335 = vmatpush1.msra.mxu0 0.0
    %1336 = vmatprep.subr.mxu0 0.0
    %1337 = vmatpush1.msra.mxu0 0.0
    %1338 = vmatprep.subr.mxu0 0.0
    %1339 = vmatpush1.msra.mxu0 0.0
    %1340 = vmatprep.subr.mxu0 0.0
    %1341 = vmatpush1.msra.mxu0 0.0
    %1342 = vmatprep.subr.mxu0 0.0
    %1343 = vmatpush1.msra.mxu0 0.0
    %1344 = vmatprep.subr.mxu0 0.0
    %1345 = vmatpush1.msra.mxu0 0.0
    %1346 = vmatprep.subr.mxu0 0.0
    %1347 = vmatpush1.msra.mxu0 0.0
    %1348 = vmatprep.subr.mxu0 0.0
    %1349 = vmatpush1.msra.mxu0 0.0
    %1350 = vmatprep.subr.mxu0 0.0
    %1351 = vmatpush1.msra.mxu0 0.0
    %1352 = vmatprep.subr.mxu0 0.0
    %1353 = vmatpush1.msra.mxu0 0.0
    %1354 = vmatprep.subr.mxu0 0.0
    %1355 = vmatpush1.msra.mxu0 %v483
    %1356 = vmatprep.subr.mxu0 0.0
    %1357 = vmatpush1.msra.mxu0 %v482
    %1358 = vmatprep.subr.mxu0 0.0
    %1359 = vmatpush1.msra.mxu0 %v481
    %1360 = vmatprep.subr.mxu0 0.0
    %1361 = vmatpush1.msra.mxu0 %v480
    %1362 = vmatprep.subr.mxu0 0.0
    %1363 = vmatpush2.msra.mxu0 0.0
    %1364 = vmatprep.subr.mxu0 0.0
    %1365 = vmatpush2.msra.mxu0 0.0
    %1366 = vmatprep.subr.mxu0 0.0
    %1367 = vmatpush2.msra.mxu0 0.0
    %1368 = vmatprep.subr.mxu0 0.0
    %1369 = vmatpush2.msra.mxu0 0.0
    %1370 = vmatprep.subr.mxu0 0.0
    %1371 = vmatpush2.msra.mxu0 0.0
    %1372 = vmatprep.subr.mxu0 0.0
    %1373 = vmatpush2.msra.mxu0 0.0
    %1374 = vmatprep.subr.mxu0 0.0
    %1375 = vmatpush2.msra.mxu0 0.0
    %1376 = vmatprep.subr.mxu0 0.0
    %1377 = vmatpush2.msra.mxu0 0.0
    %1378 = vmatprep.subr.mxu0 0.0
    %1379 = vmatpush2.msra.mxu0 0.0
    %1380 = vmatprep.subr.mxu0 0.0
    %1381 = vmatpush2.msra.mxu0 0.0
    %1382 = vmatprep.subr.mxu0 0.0
    %1383 = vmatpush2.msra.mxu0 0.0
    %1384 = vmatprep.subr.mxu0 0.0
    %1385 = vmatpush2.msra.mxu0 0.0
    %1386 = vmatprep.subr.mxu0 0.0
    %1387 = vmatpush2.msra.mxu0 0.0
    %1388 = vmatprep.subr.mxu0 0.0
    %1389 = vmatpush2.msra.mxu0 0.0
    %1390 = vmatprep.subr.mxu0 0.0
    %1391 = vmatpush2.msra.mxu0 0.0
    %1392 = vmatprep.subr.mxu0 0.0
    %1393 = vmatpush2.msra.mxu0 0.0
    %1394 = vmatprep.mubr.f32.mxu0 0.0
    %1395 = vmatmul.mubr.f32.gmra.mxu0 %v1328
    %v1396 = vpop.f32.mrf.mxu0
    %v1397 = vadd.f32 0.0, %v1396
    %v1398 = vpop.f32.mrf.mxu0
    %1399 = vdwg.mxu0
    %v1400 = vadd.f32 %v1327, %v1397
    %v1401 = vxor.u32 %v1400, 2147483648
    %v1402 = vmul.f32 %v1401, 1.442695
    %v1403 = vpow.pop %v1402
    %v1404 = vadd.f32 %v1403, 1.0
    %v1405 = vrcp.pop %v1404
    %v1406 = vmul.f32 1.0, %v1405
    %v1407 = vtanh.pop %v1400
    %v1408 = vmul.f32 %v1406, %v1313
    %1410 = vrot.lane.b32.xlu0 %v1407, 32
    %v1411 = vpop.permute.xlu0 %1410
    %v1413 = vmul.f32 %v1406, %v1411
    %1415 = vrot.lane.b32.xlu0 %v1413, 64
    %v1416 = vpop.permute.xlu0 %1415
    %v1418 = vadd.f32 %v1408, %v1416
    %v1419 = vtanh.pop %v1418
    %1421 = vrot.lane.b32.xlu0 %v1419, 96
    %v1422 = vpop.permute.xlu0 %1421
    %v1424 = vmul.f32 %v1406, %v1422
    %1426 = vrot.lane.b32.xlu0 %v1424, 96
    %v1427 = vpop.permute.xlu0 %1426
    %s1429 = scalar_lea.vmem [#allocation3], 72
    %1430 = vst.msk [vmem:[%s1429] sm:$0xff] %vm484, %v1427
    %s1431 = scalar_lea.vmem [#allocation2], 72
    %v1432 = vld [vmem:[%s1431] sm:$0xff]
    %v1433 = vsel %vm484, %v1427, 0
    %1435 = vmatprep.subr.mxu0 0.0
    %1436 = vmatpush1.msra.mxu0 0.0
    %1437 = vmatprep.subr.mxu0 0.0
    %1438 = vmatpush1.msra.mxu0 0.0
    %1439 = vmatprep.subr.mxu0 0.0
    %1440 = vmatpush1.msra.mxu0 0.0
    %1441 = vmatprep.subr.mxu0 0.0
    %1442 = vmatpush1.msra.mxu0 0.0
    %1443 = vmatprep.subr.mxu0 0.0
    %1444 = vmatpush1.msra.mxu0 0.0
    %1445 = vmatprep.subr.mxu0 0.0
    %1446 = vmatpush1.msra.mxu0 0.0
    %1447 = vmatprep.subr.mxu0 0.0
    %1448 = vmatpush1.msra.mxu0 0.0
    %1449 = vmatprep.subr.mxu0 0.0
    %1450 = vmatpush1.msra.mxu0 0.0
    %1451 = vmatprep.subr.mxu0 0.0
    %1452 = vmatpush1.msra.mxu0 0.0
    %1453 = vmatprep.subr.mxu0 0.0
    %1454 = vmatpush1.msra.mxu0 0.0
    %1455 = vmatprep.subr.mxu0 0.0
    %1456 = vmatpush1.msra.mxu0 0.0
    %1457 = vmatprep.subr.mxu0 0.0
    %1458 = vmatpush1.msra.mxu0 0.0
    %1459 = vmatprep.subr.mxu0 0.0
    %1460 = vmatpush1.msra.mxu0 %v483
    %1461 = vmatprep.subr.mxu0 0.0
    %1462 = vmatpush1.msra.mxu0 %v482
    %1463 = vmatprep.subr.mxu0 0.0
    %1464 = vmatpush1.msra.mxu0 %v481
    %1465 = vmatprep.subr.mxu0 0.0
    %1466 = vmatpush1.msra.mxu0 %v480
    %1467 = vmatprep.subr.mxu0 0.0
    %1468 = vmatpush2.msra.mxu0 0.0
    %1469 = vmatprep.subr.mxu0 0.0
    %1470 = vmatpush2.msra.mxu0 0.0
    %1471 = vmatprep.subr.mxu0 0.0
    %1472 = vmatpush2.msra.mxu0 0.0
    %1473 = vmatprep.subr.mxu0 0.0
    %1474 = vmatpush2.msra.mxu0 0.0
    %1475 = vmatprep.subr.mxu0 0.0
    %1476 = vmatpush2.msra.mxu0 0.0
    %1477 = vmatprep.subr.mxu0 0.0
    %1478 = vmatpush2.msra.mxu0 0.0
    %1479 = vmatprep.subr.mxu0 0.0
    %1480 = vmatpush2.msra.mxu0 0.0
    %1481 = vmatprep.subr.mxu0 0.0
    %1482 = vmatpush2.msra.mxu0 0.0
    %1483 = vmatprep.subr.mxu0 0.0
    %1484 = vmatpush2.msra.mxu0 0.0
    %1485 = vmatprep.subr.mxu0 0.0
    %1486 = vmatpush2.msra.mxu0 0.0
    %1487 = vmatprep.subr.mxu0 0.0
    %1488 = vmatpush2.msra.mxu0 0.0
    %1489 = vmatprep.subr.mxu0 0.0
    %1490 = vmatpush2.msra.mxu0 0.0
    %1491 = vmatprep.subr.mxu0 0.0
    %1492 = vmatpush2.msra.mxu0 0.0
    %1493 = vmatprep.subr.mxu0 0.0
    %1494 = vmatpush2.msra.mxu0 0.0
    %1495 = vmatprep.subr.mxu0 0.0
    %1496 = vmatpush2.msra.mxu0 0.0
    %1497 = vmatprep.subr.mxu0 0.0
    %1498 = vmatpush2.msra.mxu0 0.0
    %1499 = vmatprep.mubr.f32.mxu0 0.0
    %1500 = vmatmul.mubr.f32.gmra.mxu0 %v1433
    %v1501 = vpop.f32.mrf.mxu0
    %v1502 = vadd.f32 0.0, %v1501
    %v1503 = vpop.f32.mrf.mxu0
    %1504 = vdwg.mxu0
    %v1505 = vadd.f32 %v1432, %v1502
    %v1506 = vxor.u32 %v1505, 2147483648
    %v1507 = vmul.f32 %v1506, 1.442695
    %v1508 = vpow.pop %v1507
    %v1509 = vadd.f32 %v1508, 1.0
    %v1510 = vrcp.pop %v1509
    %v1511 = vmul.f32 1.0, %v1510
    %v1512 = vtanh.pop %v1505
    %v1513 = vmul.f32 %v1511, %v1418
    %1515 = vrot.lane.b32.xlu0 %v1512, 32
    %v1516 = vpop.permute.xlu0 %1515
    %v1518 = vmul.f32 %v1511, %v1516
    %1520 = vrot.lane.b32.xlu0 %v1518, 64
    %v1521 = vpop.permute.xlu0 %1520
    %v1523 = vadd.f32 %v1513, %v1521
    %v1524 = vtanh.pop %v1523
    %1526 = vrot.lane.b32.xlu0 %v1524, 96
    %v1527 = vpop.permute.xlu0 %1526
    %v1529 = vmul.f32 %v1511, %v1527
    %1531 = vrot.lane.b32.xlu0 %v1529, 96
    %v1532 = vpop.permute.xlu0 %1531
    %s1534 = scalar_lea.vmem [#allocation3], 80
    %1535 = vst.msk [vmem:[%s1534] sm:$0xff] %vm484, %v1532
    %s1536 = scalar_lea.vmem [#allocation2], 80
    %v1537 = vld [vmem:[%s1536] sm:$0xff]
    %v1538 = vsel %vm484, %v1532, 0
    %1540 = vmatprep.subr.mxu0 0.0
    %1541 = vmatpush1.msra.mxu0 0.0
    %1542 = vmatprep.subr.mxu0 0.0
    %1543 = vmatpush1.msra.mxu0 0.0
    %1544 = vmatprep.subr.mxu0 0.0
    %1545 = vmatpush1.msra.mxu0 0.0
    %1546 = vmatprep.subr.mxu0 0.0
    %1547 = vmatpush1.msra.mxu0 0.0
    %1548 = vmatprep.subr.mxu0 0.0
    %1549 = vmatpush1.msra.mxu0 0.0
    %1550 = vmatprep.subr.mxu0 0.0
    %1551 = vmatpush1.msra.mxu0 0.0
    %1552 = vmatprep.subr.mxu0 0.0
    %1553 = vmatpush1.msra.mxu0 0.0
    %1554 = vmatprep.subr.mxu0 0.0
    %1555 = vmatpush1.msra.mxu0 0.0
    %1556 = vmatprep.subr.mxu0 0.0
    %1557 = vmatpush1.msra.mxu0 0.0
    %1558 = vmatprep.subr.mxu0 0.0
    %1559 = vmatpush1.msra.mxu0 0.0
    %1560 = vmatprep.subr.mxu0 0.0
    %1561 = vmatpush1.msra.mxu0 0.0
    %1562 = vmatprep.subr.mxu0 0.0
    %1563 = vmatpush1.msra.mxu0 0.0
    %1564 = vmatprep.subr.mxu0 0.0
    %1565 = vmatpush1.msra.mxu0 %v483
    %1566 = vmatprep.subr.mxu0 0.0
    %1567 = vmatpush1.msra.mxu0 %v482
    %1568 = vmatprep.subr.mxu0 0.0
    %1569 = vmatpush1.msra.mxu0 %v481
    %1570 = vmatprep.subr.mxu0 0.0
    %1571 = vmatpush1.msra.mxu0 %v480
    %1572 = vmatprep.subr.mxu0 0.0
    %1573 = vmatpush2.msra.mxu0 0.0
    %1574 = vmatprep.subr.mxu0 0.0
    %1575 = vmatpush2.msra.mxu0 0.0
    %1576 = vmatprep.subr.mxu0 0.0
    %1577 = vmatpush2.msra.mxu0 0.0
    %1578 = vmatprep.subr.mxu0 0.0
    %1579 = vmatpush2.msra.mxu0 0.0
    %1580 = vmatprep.subr.mxu0 0.0
    %1581 = vmatpush2.msra.mxu0 0.0
    %1582 = vmatprep.subr.mxu0 0.0
    %1583 = vmatpush2.msra.mxu0 0.0
    %1584 = vmatprep.subr.mxu0 0.0
    %1585 = vmatpush2.msra.mxu0 0.0
    %1586 = vmatprep.subr.mxu0 0.0
    %1587 = vmatpush2.msra.mxu0 0.0
    %1588 = vmatprep.subr.mxu0 0.0
    %1589 = vmatpush2.msra.mxu0 0.0
    %1590 = vmatprep.subr.mxu0 0.0
    %1591 = vmatpush2.msra.mxu0 0.0
    %1592 = vmatprep.subr.mxu0 0.0
    %1593 = vmatpush2.msra.mxu0 0.0
    %1594 = vmatprep.subr.mxu0 0.0
    %1595 = vmatpush2.msra.mxu0 0.0
    %1596 = vmatprep.subr.mxu0 0.0
    %1597 = vmatpush2.msra.mxu0 0.0
    %1598 = vmatprep.subr.mxu0 0.0
    %1599 = vmatpush2.msra.mxu0 0.0
    %1600 = vmatprep.subr.mxu0 0.0
    %1601 = vmatpush2.msra.mxu0 0.0
    %1602 = vmatprep.subr.mxu0 0.0
    %1603 = vmatpush2.msra.mxu0 0.0
    %1604 = vmatprep.mubr.f32.mxu0 0.0
    %1605 = vmatmul.mubr.f32.gmra.mxu0 %v1538
    %v1606 = vpop.f32.mrf.mxu0
    %v1607 = vadd.f32 0.0, %v1606
    %v1608 = vpop.f32.mrf.mxu0
    %1609 = vdwg.mxu0
    %v1610 = vadd.f32 %v1537, %v1607
    %v1611 = vxor.u32 %v1610, 2147483648
    %v1612 = vmul.f32 %v1611, 1.442695
    %v1613 = vpow.pop %v1612
    %v1614 = vadd.f32 %v1613, 1.0
    %v1615 = vrcp.pop %v1614
    %v1616 = vmul.f32 1.0, %v1615
    %v1617 = vtanh.pop %v1610
    %v1618 = vmul.f32 %v1616, %v1523
    %1620 = vrot.lane.b32.xlu0 %v1617, 32
    %v1621 = vpop.permute.xlu0 %1620
    %v1623 = vmul.f32 %v1616, %v1621
    %1625 = vrot.lane.b32.xlu0 %v1623, 64
    %v1626 = vpop.permute.xlu0 %1625
    %v1628 = vadd.f32 %v1618, %v1626
    %v1629 = vtanh.pop %v1628
    %1631 = vrot.lane.b32.xlu0 %v1629, 96
    %v1632 = vpop.permute.xlu0 %1631
    %v1634 = vmul.f32 %v1616, %v1632
    %1636 = vrot.lane.b32.xlu0 %v1634, 96
    %v1637 = vpop.permute.xlu0 %1636
    %s1639 = scalar_lea.vmem [#allocation3], 88
    %1640 = vst.msk [vmem:[%s1639] sm:$0xff] %vm484, %v1637
    %s1641 = scalar_lea.vmem [#allocation2], 88
    %v1642 = vld [vmem:[%s1641] sm:$0xff]
    %v1643 = vsel %vm484, %v1637, 0
    %1645 = vmatprep.subr.mxu0 0.0
    %1646 = vmatpush1.msra.mxu0 0.0
    %1647 = vmatprep.subr.mxu0 0.0
    %1648 = vmatpush1.msra.mxu0 0.0
    %1649 = vmatprep.subr.mxu0 0.0
    %1650 = vmatpush1.msra.mxu0 0.0
    %1651 = vmatprep.subr.mxu0 0.0
    %1652 = vmatpush1.msra.mxu0 0.0
    %1653 = vmatprep.subr.mxu0 0.0
    %1654 = vmatpush1.msra.mxu0 0.0
    %1655 = vmatprep.subr.mxu0 0.0
    %1656 = vmatpush1.msra.mxu0 0.0
    %1657 = vmatprep.subr.mxu0 0.0
    %1658 = vmatpush1.msra.mxu0 0.0
    %1659 = vmatprep.subr.mxu0 0.0
    %1660 = vmatpush1.msra.mxu0 0.0
    %1661 = vmatprep.subr.mxu0 0.0
    %1662 = vmatpush1.msra.mxu0 0.0
    %1663 = vmatprep.subr.mxu0 0.0
    %1664 = vmatpush1.msra.mxu0 0.0
    %1665 = vmatprep.subr.mxu0 0.0
    %1666 = vmatpush1.msra.mxu0 0.0
    %1667 = vmatprep.subr.mxu0 0.0
    %1668 = vmatpush1.msra.mxu0 0.0
    %1669 = vmatprep.subr.mxu0 0.0
    %1670 = vmatpush1.msra.mxu0 %v483
    %1671 = vmatprep.subr.mxu0 0.0
    %1672 = vmatpush1.msra.mxu0 %v482
    %1673 = vmatprep.subr.mxu0 0.0
    %1674 = vmatpush1.msra.mxu0 %v481
    %1675 = vmatprep.subr.mxu0 0.0
    %1676 = vmatpush1.msra.mxu0 %v480
    %1677 = vmatprep.subr.mxu0 0.0
    %1678 = vmatpush2.msra.mxu0 0.0
    %1679 = vmatprep.subr.mxu0 0.0
    %1680 = vmatpush2.msra.mxu0 0.0
    %1681 = vmatprep.subr.mxu0 0.0
    %1682 = vmatpush2.msra.mxu0 0.0
    %1683 = vmatprep.subr.mxu0 0.0
    %1684 = vmatpush2.msra.mxu0 0.0
    %1685 = vmatprep.subr.mxu0 0.0
    %1686 = vmatpush2.msra.mxu0 0.0
    %1687 = vmatprep.subr.mxu0 0.0
    %1688 = vmatpush2.msra.mxu0 0.0
    %1689 = vmatprep.subr.mxu0 0.0
    %1690 = vmatpush2.msra.mxu0 0.0
    %1691 = vmatprep.subr.mxu0 0.0
    %1692 = vmatpush2.msra.mxu0 0.0
    %1693 = vmatprep.subr.mxu0 0.0
    %1694 = vmatpush2.msra.mxu0 0.0
    %1695 = vmatprep.subr.mxu0 0.0
    %1696 = vmatpush2.msra.mxu0 0.0
    %1697 = vmatprep.subr.mxu0 0.0
    %1698 = vmatpush2.msra.mxu0 0.0
    %1699 = vmatprep.subr.mxu0 0.0
    %1700 = vmatpush2.msra.mxu0 0.0
    %1701 = vmatprep.subr.mxu0 0.0
    %1702 = vmatpush2.msra.mxu0 0.0
    %1703 = vmatprep.subr.mxu0 0.0
    %1704 = vmatpush2.msra.mxu0 0.0
    %1705 = vmatprep.subr.mxu0 0.0
    %1706 = vmatpush2.msra.mxu0 0.0
    %1707 = vmatprep.subr.mxu0 0.0
    %1708 = vmatpush2.msra.mxu0 0.0
    %1709 = vmatprep.mubr.f32.mxu0 0.0
    %1710 = vmatmul.mubr.f32.gmra.mxu0 %v1643
    %v1711 = vpop.f32.mrf.mxu0
    %v1712 = vadd.f32 0.0, %v1711
    %v1713 = vpop.f32.mrf.mxu0
    %1714 = vdwg.mxu0
    %v1715 = vadd.f32 %v1642, %v1712
    %v1716 = vxor.u32 %v1715, 2147483648
    %v1717 = vmul.f32 %v1716, 1.442695
    %v1718 = vpow.pop %v1717
    %v1719 = vadd.f32 %v1718, 1.0
    %v1720 = vrcp.pop %v1719
    %v1721 = vmul.f32 1.0, %v1720
    %v1722 = vtanh.pop %v1715
    %v1723 = vmul.f32 %v1721, %v1628
    %1725 = vrot.lane.b32.xlu0 %v1722, 32
    %v1726 = vpop.permute.xlu0 %1725
    %v1728 = vmul.f32 %v1721, %v1726
    %1730 = vrot.lane.b32.xlu0 %v1728, 64
    %v1731 = vpop.permute.xlu0 %1730
    %v1733 = vadd.f32 %v1723, %v1731
    %v1734 = vtanh.pop %v1733
    %1736 = vrot.lane.b32.xlu0 %v1734, 96
    %v1737 = vpop.permute.xlu0 %1736
    %v1739 = vmul.f32 %v1721, %v1737
    %1741 = vrot.lane.b32.xlu0 %v1739, 96
    %v1742 = vpop.permute.xlu0 %1741
    %s1744 = scalar_lea.vmem [#allocation3], 96
    %1745 = vst.msk [vmem:[%s1744] sm:$0xff] %vm484, %v1742
    %s1746 = scalar_lea.vmem [#allocation2], 96
    %v1747 = vld [vmem:[%s1746] sm:$0xff]
    %v1748 = vsel %vm484, %v1742, 0
    %1750 = vmatprep.subr.mxu0 0.0
    %1751 = vmatpush1.msra.mxu0 0.0
    %1752 = vmatprep.subr.mxu0 0.0
    %1753 = vmatpush1.msra.mxu0 0.0
    %1754 = vmatprep.subr.mxu0 0.0
    %1755 = vmatpush1.msra.mxu0 0.0
    %1756 = vmatprep.subr.mxu0 0.0
    %1757 = vmatpush1.msra.mxu0 0.0
    %1758 = vmatprep.subr.mxu0 0.0
    %1759 = vmatpush1.msra.mxu0 0.0
    %1760 = vmatprep.subr.mxu0 0.0
    %1761 = vmatpush1.msra.mxu0 0.0
    %1762 = vmatprep.subr.mxu0 0.0
    %1763 = vmatpush1.msra.mxu0 0.0
    %1764 = vmatprep.subr.mxu0 0.0
    %1765 = vmatpush1.msra.mxu0 0.0
    %1766 = vmatprep.subr.mxu0 0.0
    %1767 = vmatpush1.msra.mxu0 0.0
    %1768 = vmatprep.subr.mxu0 0.0
    %1769 = vmatpush1.msra.mxu0 0.0
    %1770 = vmatprep.subr.mxu0 0.0
    %1771 = vmatpush1.msra.mxu0 0.0
    %1772 = vmatprep.subr.mxu0 0.0
    %1773 = vmatpush1.msra.mxu0 0.0
    %1774 = vmatprep.subr.mxu0 0.0
    %1775 = vmatpush1.msra.mxu0 %v483
    %1776 = vmatprep.subr.mxu0 0.0
    %1777 = vmatpush1.msra.mxu0 %v482
    %1778 = vmatprep.subr.mxu0 0.0
    %1779 = vmatpush1.msra.mxu0 %v481
    %1780 = vmatprep.subr.mxu0 0.0
    %1781 = vmatpush1.msra.mxu0 %v480
    %1782 = vmatprep.subr.mxu0 0.0
    %1783 = vmatpush2.msra.mxu0 0.0
    %1784 = vmatprep.subr.mxu0 0.0
    %1785 = vmatpush2.msra.mxu0 0.0
    %1786 = vmatprep.subr.mxu0 0.0
    %1787 = vmatpush2.msra.mxu0 0.0
    %1788 = vmatprep.subr.mxu0 0.0
    %1789 = vmatpush2.msra.mxu0 0.0
    %1790 = vmatprep.subr.mxu0 0.0
    %1791 = vmatpush2.msra.mxu0 0.0
    %1792 = vmatprep.subr.mxu0 0.0
    %1793 = vmatpush2.msra.mxu0 0.0
    %1794 = vmatprep.subr.mxu0 0.0
    %1795 = vmatpush2.msra.mxu0 0.0
    %1796 = vmatprep.subr.mxu0 0.0
    %1797 = vmatpush2.msra.mxu0 0.0
    %1798 = vmatprep.subr.mxu0 0.0
    %1799 = vmatpush2.msra.mxu0 0.0
    %1800 = vmatprep.subr.mxu0 0.0
    %1801 = vmatpush2.msra.mxu0 0.0
    %1802 = vmatprep.subr.mxu0 0.0
    %1803 = vmatpush2.msra.mxu0 0.0
    %1804 = vmatprep.subr.mxu0 0.0
    %1805 = vmatpush2.msra.mxu0 0.0
    %1806 = vmatprep.subr.mxu0 0.0
    %1807 = vmatpush2.msra.mxu0 0.0
    %1808 = vmatprep.subr.mxu0 0.0
    %1809 = vmatpush2.msra.mxu0 0.0
    %1810 = vmatprep.subr.mxu0 0.0
    %1811 = vmatpush2.msra.mxu0 0.0
    %1812 = vmatprep.subr.mxu0 0.0
    %1813 = vmatpush2.msra.mxu0 0.0
    %1814 = vmatprep.mubr.f32.mxu0 0.0
    %1815 = vmatmul.mubr.f32.gmra.mxu0 %v1748
    %v1816 = vpop.f32.mrf.mxu0
    %v1817 = vadd.f32 0.0, %v1816
    %v1818 = vpop.f32.mrf.mxu0
    %1819 = vdwg.mxu0
    %v1820 = vadd.f32 %v1747, %v1817
    %v1821 = vxor.u32 %v1820, 2147483648
    %v1822 = vmul.f32 %v1821, 1.442695
    %v1823 = vpow.pop %v1822
    %v1824 = vadd.f32 %v1823, 1.0
    %v1825 = vrcp.pop %v1824
    %v1826 = vmul.f32 1.0, %v1825
    %v1827 = vtanh.pop %v1820
    %v1828 = vmul.f32 %v1826, %v1733
    %1830 = vrot.lane.b32.xlu0 %v1827, 32
    %v1831 = vpop.permute.xlu0 %1830
    %v1833 = vmul.f32 %v1826, %v1831
    %1835 = vrot.lane.b32.xlu0 %v1833, 64
    %v1836 = vpop.permute.xlu0 %1835
    %v1838 = vadd.f32 %v1828, %v1836
    %v1839 = vtanh.pop %v1838
    %1841 = vrot.lane.b32.xlu0 %v1839, 96
    %v1842 = vpop.permute.xlu0 %1841
    %v1844 = vmul.f32 %v1826, %v1842
    %1846 = vrot.lane.b32.xlu0 %v1844, 96
    %v1847 = vpop.permute.xlu0 %1846
    %s1849 = scalar_lea.vmem [#allocation3], 104
    %1850 = vst.msk [vmem:[%s1849] sm:$0xff] %vm484, %v1847
    %s1851 = scalar_lea.vmem [#allocation2], 104
    %v1852 = vld [vmem:[%s1851] sm:$0xff]
    %v1853 = vsel %vm484, %v1847, 0
    %1855 = vmatprep.subr.mxu0 0.0
    %1856 = vmatpush1.msra.mxu0 0.0
    %1857 = vmatprep.subr.mxu0 0.0
    %1858 = vmatpush1.msra.mxu0 0.0
    %1859 = vmatprep.subr.mxu0 0.0
    %1860 = vmatpush1.msra.mxu0 0.0
    %1861 = vmatprep.subr.mxu0 0.0
    %1862 = vmatpush1.msra.mxu0 0.0
    %1863 = vmatprep.subr.mxu0 0.0
    %1864 = vmatpush1.msra.mxu0 0.0
    %1865 = vmatprep.subr.mxu0 0.0
    %1866 = vmatpush1.msra.mxu0 0.0
    %1867 = vmatprep.subr.mxu0 0.0
    %1868 = vmatpush1.msra.mxu0 0.0
    %1869 = vmatprep.subr.mxu0 0.0
    %1870 = vmatpush1.msra.mxu0 0.0
    %1871 = vmatprep.subr.mxu0 0.0
    %1872 = vmatpush1.msra.mxu0 0.0
    %1873 = vmatprep.subr.mxu0 0.0
    %1874 = vmatpush1.msra.mxu0 0.0
    %1875 = vmatprep.subr.mxu0 0.0
    %1876 = vmatpush1.msra.mxu0 0.0
    %1877 = vmatprep.subr.mxu0 0.0
    %1878 = vmatpush1.msra.mxu0 0.0
    %1879 = vmatprep.subr.mxu0 0.0
    %1880 = vmatpush1.msra.mxu0 %v483
    %1881 = vmatprep.subr.mxu0 0.0
    %1882 = vmatpush1.msra.mxu0 %v482
    %1883 = vmatprep.subr.mxu0 0.0
    %1884 = vmatpush1.msra.mxu0 %v481
    %1885 = vmatprep.subr.mxu0 0.0
    %1886 = vmatpush1.msra.mxu0 %v480
    %1887 = vmatprep.subr.mxu0 0.0
    %1888 = vmatpush2.msra.mxu0 0.0
    %1889 = vmatprep.subr.mxu0 0.0
    %1890 = vmatpush2.msra.mxu0 0.0
    %1891 = vmatprep.subr.mxu0 0.0
    %1892 = vmatpush2.msra.mxu0 0.0
    %1893 = vmatprep.subr.mxu0 0.0
    %1894 = vmatpush2.msra.mxu0 0.0
    %1895 = vmatprep.subr.mxu0 0.0
    %1896 = vmatpush2.msra.mxu0 0.0
    %1897 = vmatprep.subr.mxu0 0.0
    %1898 = vmatpush2.msra.mxu0 0.0
    %1899 = vmatprep.subr.mxu0 0.0
    %1900 = vmatpush2.msra.mxu0 0.0
    %1901 = vmatprep.subr.mxu0 0.0
    %1902 = vmatpush2.msra.mxu0 0.0
    %1903 = vmatprep.subr.mxu0 0.0
    %1904 = vmatpush2.msra.mxu0 0.0
    %1905 = vmatprep.subr.mxu0 0.0
    %1906 = vmatpush2.msra.mxu0 0.0
    %1907 = vmatprep.subr.mxu0 0.0
    %1908 = vmatpush2.msra.mxu0 0.0
    %1909 = vmatprep.subr.mxu0 0.0
    %1910 = vmatpush2.msra.mxu0 0.0
    %1911 = vmatprep.subr.mxu0 0.0
    %1912 = vmatpush2.msra.mxu0 0.0
    %1913 = vmatprep.subr.mxu0 0.0
    %1914 = vmatpush2.msra.mxu0 0.0
    %1915 = vmatprep.subr.mxu0 0.0
    %1916 = vmatpush2.msra.mxu0 0.0
    %1917 = vmatprep.subr.mxu0 0.0
    %1918 = vmatpush2.msra.mxu0 0.0
    %1919 = vmatprep.mubr.f32.mxu0 0.0
    %1920 = vmatmul.mubr.f32.gmra.mxu0 %v1853
    %v1921 = vpop.f32.mrf.mxu0
    %v1922 = vadd.f32 0.0, %v1921
    %v1923 = vpop.f32.mrf.mxu0
    %1924 = vdwg.mxu0
    %v1925 = vadd.f32 %v1852, %v1922
    %v1926 = vxor.u32 %v1925, 2147483648
    %v1927 = vmul.f32 %v1926, 1.442695
    %v1928 = vpow.pop %v1927
    %v1929 = vadd.f32 %v1928, 1.0
    %v1930 = vrcp.pop %v1929
    %v1931 = vmul.f32 1.0, %v1930
    %v1932 = vtanh.pop %v1925
    %v1933 = vmul.f32 %v1931, %v1838
    %1935 = vrot.lane.b32.xlu0 %v1932, 32
    %v1936 = vpop.permute.xlu0 %1935
    %v1938 = vmul.f32 %v1931, %v1936
    %1940 = vrot.lane.b32.xlu0 %v1938, 64
    %v1941 = vpop.permute.xlu0 %1940
    %v1943 = vadd.f32 %v1933, %v1941
    %v1944 = vtanh.pop %v1943
    %1946 = vrot.lane.b32.xlu0 %v1944, 96
    %v1947 = vpop.permute.xlu0 %1946
    %v1949 = vmul.f32 %v1931, %v1947
    %1951 = vrot.lane.b32.xlu0 %v1949, 96
    %v1952 = vpop.permute.xlu0 %1951
    %s1954 = scalar_lea.vmem [#allocation3], 112
    %1955 = vst.msk [vmem:[%s1954] sm:$0xff] %vm484, %v1952
    %s1956 = scalar_lea.vmem [#allocation2], 112
    %v1957 = vld [vmem:[%s1956] sm:$0xff]
    %v1958 = vsel %vm484, %v1952, 0
    %1960 = vmatprep.subr.mxu0 0.0
    %1961 = vmatpush1.msra.mxu0 0.0
    %1962 = vmatprep.subr.mxu0 0.0
    %1963 = vmatpush1.msra.mxu0 0.0
    %1964 = vmatprep.subr.mxu0 0.0
    %1965 = vmatpush1.msra.mxu0 0.0
    %1966 = vmatprep.subr.mxu0 0.0
    %1967 = vmatpush1.msra.mxu0 0.0
    %1968 = vmatprep.subr.mxu0 0.0
    %1969 = vmatpush1.msra.mxu0 0.0
    %1970 = vmatprep.subr.mxu0 0.0
    %1971 = vmatpush1.msra.mxu0 0.0
    %1972 = vmatprep.subr.mxu0 0.0
    %1973 = vmatpush1.msra.mxu0 0.0
    %1974 = vmatprep.subr.mxu0 0.0
    %1975 = vmatpush1.msra.mxu0 0.0
    %1976 = vmatprep.subr.mxu0 0.0
    %1977 = vmatpush1.msra.mxu0 0.0
    %1978 = vmatprep.subr.mxu0 0.0
    %1979 = vmatpush1.msra.mxu0 0.0
    %1980 = vmatprep.subr.mxu0 0.0
    %1981 = vmatpush1.msra.mxu0 0.0
    %1982 = vmatprep.subr.mxu0 0.0
    %1983 = vmatpush1.msra.mxu0 0.0
    %1984 = vmatprep.subr.mxu0 0.0
    %1985 = vmatpush1.msra.mxu0 %v483
    %1986 = vmatprep.subr.mxu0 0.0
    %1987 = vmatpush1.msra.mxu0 %v482
    %1988 = vmatprep.subr.mxu0 0.0
    %1989 = vmatpush1.msra.mxu0 %v481
    %1990 = vmatprep.subr.mxu0 0.0
    %1991 = vmatpush1.msra.mxu0 %v480
    %1992 = vmatprep.subr.mxu0 0.0
    %1993 = vmatpush2.msra.mxu0 0.0
    %1994 = vmatprep.subr.mxu0 0.0
    %1995 = vmatpush2.msra.mxu0 0.0
    %1996 = vmatprep.subr.mxu0 0.0
    %1997 = vmatpush2.msra.mxu0 0.0
    %1998 = vmatprep.subr.mxu0 0.0
    %1999 = vmatpush2.msra.mxu0 0.0
    %2000 = vmatprep.subr.mxu0 0.0
    %2001 = vmatpush2.msra.mxu0 0.0
    %2002 = vmatprep.subr.mxu0 0.0
    %2003 = vmatpush2.msra.mxu0 0.0
    %2004 = vmatprep.subr.mxu0 0.0
    %2005 = vmatpush2.msra.mxu0 0.0
    %2006 = vmatprep.subr.mxu0 0.0
    %2007 = vmatpush2.msra.mxu0 0.0
    %2008 = vmatprep.subr.mxu0 0.0
    %2009 = vmatpush2.msra.mxu0 0.0
    %2010 = vmatprep.subr.mxu0 0.0
    %2011 = vmatpush2.msra.mxu0 0.0
    %2012 = vmatprep.subr.mxu0 0.0
    %2013 = vmatpush2.msra.mxu0 0.0
    %2014 = vmatprep.subr.mxu0 0.0
    %2015 = vmatpush2.msra.mxu0 0.0
    %2016 = vmatprep.subr.mxu0 0.0
    %2017 = vmatpush2.msra.mxu0 0.0
    %2018 = vmatprep.subr.mxu0 0.0
    %2019 = vmatpush2.msra.mxu0 0.0
    %2020 = vmatprep.subr.mxu0 0.0
    %2021 = vmatpush2.msra.mxu0 0.0
    %2022 = vmatprep.subr.mxu0 0.0
    %2023 = vmatpush2.msra.mxu0 0.0
    %2024 = vmatprep.mubr.f32.mxu0 0.0
    %2025 = vmatmul.mubr.f32.gmra.mxu0 %v1958
    %v2026 = vpop.f32.mrf.mxu0
    %v2027 = vadd.f32 0.0, %v2026
    %v2028 = vpop.f32.mrf.mxu0
    %2029 = vdwg.mxu0
    %v2030 = vadd.f32 %v1957, %v2027
    %v2031 = vxor.u32 %v2030, 2147483648
    %v2032 = vmul.f32 %v2031, 1.442695
    %v2033 = vpow.pop %v2032
    %v2034 = vadd.f32 %v2033, 1.0
    %v2035 = vrcp.pop %v2034
    %v2036 = vmul.f32 1.0, %v2035
    %v2037 = vtanh.pop %v2030
    %v2038 = vmul.f32 %v2036, %v1943
    %2040 = vrot.lane.b32.xlu0 %v2037, 32
    %v2041 = vpop.permute.xlu0 %2040
    %v2043 = vmul.f32 %v2036, %v2041
    %2045 = vrot.lane.b32.xlu0 %v2043, 64
    %v2046 = vpop.permute.xlu0 %2045
    %v2048 = vadd.f32 %v2038, %v2046
    %v2049 = vtanh.pop %v2048
    %2051 = vrot.lane.b32.xlu0 %v2049, 96
    %v2052 = vpop.permute.xlu0 %2051
    %v2054 = vmul.f32 %v2036, %v2052
    %2056 = vrot.lane.b32.xlu0 %v2054, 96
    %v2057 = vpop.permute.xlu0 %2056
    %s2059 = scalar_lea.vmem [#allocation3], 120
    %2060 = vst.msk [vmem:[%s2059] sm:$0xff] %vm484, %v2057
    %s2061 = scalar_lea.vmem [#allocation2], 120
    %v2062 = vld [vmem:[%s2061] sm:$0xff]
    %v2063 = vsel %vm484, %v2057, 0
    %2065 = vmatprep.subr.mxu0 0.0
    %2066 = vmatpush1.msra.mxu0 0.0
    %2067 = vmatprep.subr.mxu0 0.0
    %2068 = vmatpush1.msra.mxu0 0.0
    %2069 = vmatprep.subr.mxu0 0.0
    %2070 = vmatpush1.msra.mxu0 0.0
    %2071 = vmatprep.subr.mxu0 0.0
    %2072 = vmatpush1.msra.mxu0 0.0
    %2073 = vmatprep.subr.mxu0 0.0
    %2074 = vmatpush1.msra.mxu0 0.0
    %2075 = vmatprep.subr.mxu0 0.0
    %2076 = vmatpush1.msra.mxu0 0.0
    %2077 = vmatprep.subr.mxu0 0.0
    %2078 = vmatpush1.msra.mxu0 0.0
    %2079 = vmatprep.subr.mxu0 0.0
    %2080 = vmatpush1.msra.mxu0 0.0
    %2081 = vmatprep.subr.mxu0 0.0
    %2082 = vmatpush1.msra.mxu0 0.0
    %2083 = vmatprep.subr.mxu0 0.0
    %2084 = vmatpush1.msra.mxu0 0.0
    %2085 = vmatprep.subr.mxu0 0.0
    %2086 = vmatpush1.msra.mxu0 0.0
    %2087 = vmatprep.subr.mxu0 0.0
    %2088 = vmatpush1.msra.mxu0 0.0
    %2089 = vmatprep.subr.mxu0 0.0
    %2090 = vmatpush1.msra.mxu0 %v483
    %2091 = vmatprep.subr.mxu0 0.0
    %2092 = vmatpush1.msra.mxu0 %v482
    %2093 = vmatprep.subr.mxu0 0.0
    %2094 = vmatpush1.msra.mxu0 %v481
    %2095 = vmatprep.subr.mxu0 0.0
    %2096 = vmatpush1.msra.mxu0 %v480
    %2097 = vmatprep.subr.mxu0 0.0
    %2098 = vmatpush2.msra.mxu0 0.0
    %2099 = vmatprep.subr.mxu0 0.0
    %2100 = vmatpush2.msra.mxu0 0.0
    %2101 = vmatprep.subr.mxu0 0.0
    %2102 = vmatpush2.msra.mxu0 0.0
    %2103 = vmatprep.subr.mxu0 0.0
    %2104 = vmatpush2.msra.mxu0 0.0
    %2105 = vmatprep.subr.mxu0 0.0
    %2106 = vmatpush2.msra.mxu0 0.0
    %2107 = vmatprep.subr.mxu0 0.0
    %2108 = vmatpush2.msra.mxu0 0.0
    %2109 = vmatprep.subr.mxu0 0.0
    %2110 = vmatpush2.msra.mxu0 0.0
    %2111 = vmatprep.subr.mxu0 0.0
    %2112 = vmatpush2.msra.mxu0 0.0
    %2113 = vmatprep.subr.mxu0 0.0
    %2114 = vmatpush2.msra.mxu0 0.0
    %2115 = vmatprep.subr.mxu0 0.0
    %2116 = vmatpush2.msra.mxu0 0.0
    %2117 = vmatprep.subr.mxu0 0.0
    %2118 = vmatpush2.msra.mxu0 0.0
    %2119 = vmatprep.subr.mxu0 0.0
    %2120 = vmatpush2.msra.mxu0 0.0
    %2121 = vmatprep.subr.mxu0 0.0
    %2122 = vmatpush2.msra.mxu0 0.0
    %2123 = vmatprep.subr.mxu0 0.0
    %2124 = vmatpush2.msra.mxu0 0.0
    %2125 = vmatprep.subr.mxu0 0.0
    %2126 = vmatpush2.msra.mxu0 0.0
    %2127 = vmatprep.subr.mxu0 0.0
    %2128 = vmatpush2.msra.mxu0 0.0
    %2129 = vmatprep.mubr.f32.mxu0 0.0
    %2130 = vmatmul.mubr.f32.gmra.mxu0 %v2063
    %v2131 = vpop.f32.mrf.mxu0
    %v2132 = vadd.f32 0.0, %v2131
    %v2133 = vpop.f32.mrf.mxu0
    %2134 = vdwg.mxu0
    %v2135 = vadd.f32 %v2062, %v2132
    %v2136 = vxor.u32 %v2135, 2147483648
    %v2137 = vmul.f32 %v2136, 1.442695
    %v2138 = vpow.pop %v2137
    %v2139 = vadd.f32 %v2138, 1.0
    %v2140 = vrcp.pop %v2139
    %v2141 = vmul.f32 1.0, %v2140
    %v2142 = vtanh.pop %v2135
    %v2143 = vmul.f32 %v2141, %v2048
    %2145 = vrot.lane.b32.xlu0 %v2142, 32
    %v2146 = vpop.permute.xlu0 %2145
    %v2148 = vmul.f32 %v2141, %v2146
    %2150 = vrot.lane.b32.xlu0 %v2148, 64
    %v2151 = vpop.permute.xlu0 %2150
    %v2153 = vadd.f32 %v2143, %v2151
    %v2154 = vtanh.pop %v2153
    %2156 = vrot.lane.b32.xlu0 %v2154, 96
    %v2157 = vpop.permute.xlu0 %2156
    %v2159 = vmul.f32 %v2141, %v2157
    %2161 = vrot.lane.b32.xlu0 %v2159, 96
    %v2162 = vpop.permute.xlu0 %2161
    %s2164 = scalar_lea.vmem [#allocation3], 128
    %2165 = vst.msk [vmem:[%s2164] sm:$0xff] %vm484, %v2162
    %s2166 = scalar_lea.vmem [#allocation2], 128
    %v2167 = vld [vmem:[%s2166] sm:$0xff]
    %v2168 = vsel %vm484, %v2162, 0
    %2170 = vmatprep.subr.mxu0 0.0
    %2171 = vmatpush1.msra.mxu0 0.0
    %2172 = vmatprep.subr.mxu0 0.0
    %2173 = vmatpush1.msra.mxu0 0.0
    %2174 = vmatprep.subr.mxu0 0.0
    %2175 = vmatpush1.msra.mxu0 0.0
    %2176 = vmatprep.subr.mxu0 0.0
    %2177 = vmatpush1.msra.mxu0 0.0
    %2178 = vmatprep.subr.mxu0 0.0
    %2179 = vmatpush1.msra.mxu0 0.0
    %2180 = vmatprep.subr.mxu0 0.0
    %2181 = vmatpush1.msra.mxu0 0.0
    %2182 = vmatprep.subr.mxu0 0.0
    %2183 = vmatpush1.msra.mxu0 0.0
    %2184 = vmatprep.subr.mxu0 0.0
    %2185 = vmatpush1.msra.mxu0 0.0
    %2186 = vmatprep.subr.mxu0 0.0
    %2187 = vmatpush1.msra.mxu0 0.0
    %2188 = vmatprep.subr.mxu0 0.0
    %2189 = vmatpush1.msra.mxu0 0.0
    %2190 = vmatprep.subr.mxu0 0.0
    %2191 = vmatpush1.msra.mxu0 0.0
    %2192 = vmatprep.subr.mxu0 0.0
    %2193 = vmatpush1.msra.mxu0 0.0
    %2194 = vmatprep.subr.mxu0 0.0
    %2195 = vmatpush1.msra.mxu0 %v483
    %2196 = vmatprep.subr.mxu0 0.0
    %2197 = vmatpush1.msra.mxu0 %v482
    %2198 = vmatprep.subr.mxu0 0.0
    %2199 = vmatpush1.msra.mxu0 %v481
    %2200 = vmatprep.subr.mxu0 0.0
    %2201 = vmatpush1.msra.mxu0 %v480
    %2202 = vmatprep.subr.mxu0 0.0
    %2203 = vmatpush2.msra.mxu0 0.0
    %2204 = vmatprep.subr.mxu0 0.0
    %2205 = vmatpush2.msra.mxu0 0.0
    %2206 = vmatprep.subr.mxu0 0.0
    %2207 = vmatpush2.msra.mxu0 0.0
    %2208 = vmatprep.subr.mxu0 0.0
    %2209 = vmatpush2.msra.mxu0 0.0
    %2210 = vmatprep.subr.mxu0 0.0
    %2211 = vmatpush2.msra.mxu0 0.0
    %2212 = vmatprep.subr.mxu0 0.0
    %2213 = vmatpush2.msra.mxu0 0.0
    %2214 = vmatprep.subr.mxu0 0.0
    %2215 = vmatpush2.msra.mxu0 0.0
    %2216 = vmatprep.subr.mxu0 0.0
    %2217 = vmatpush2.msra.mxu0 0.0
    %2218 = vmatprep.subr.mxu0 0.0
    %2219 = vmatpush2.msra.mxu0 0.0
    %2220 = vmatprep.subr.mxu0 0.0
    %2221 = vmatpush2.msra.mxu0 0.0
    %2222 = vmatprep.subr.mxu0 0.0
    %2223 = vmatpush2.msra.mxu0 0.0
    %2224 = vmatprep.subr.mxu0 0.0
    %2225 = vmatpush2.msra.mxu0 0.0
    %2226 = vmatprep.subr.mxu0 0.0
    %2227 = vmatpush2.msra.mxu0 0.0
    %2228 = vmatprep.subr.mxu0 0.0
    %2229 = vmatpush2.msra.mxu0 0.0
    %2230 = vmatprep.subr.mxu0 0.0
    %2231 = vmatpush2.msra.mxu0 0.0
    %2232 = vmatprep.subr.mxu0 0.0
    %2233 = vmatpush2.msra.mxu0 0.0
    %2234 = vmatprep.mubr.f32.mxu0 0.0
    %2235 = vmatmul.mubr.f32.gmra.mxu0 %v2168
    %v2236 = vpop.f32.mrf.mxu0
    %v2237 = vadd.f32 0.0, %v2236
    %v2238 = vpop.f32.mrf.mxu0
    %2239 = vdwg.mxu0
    %v2240 = vadd.f32 %v2167, %v2237
    %v2241 = vxor.u32 %v2240, 2147483648
    %v2242 = vmul.f32 %v2241, 1.442695
    %v2243 = vpow.pop %v2242
    %v2244 = vadd.f32 %v2243, 1.0
    %v2245 = vrcp.pop %v2244
    %v2246 = vmul.f32 1.0, %v2245
    %v2247 = vtanh.pop %v2240
    %v2248 = vmul.f32 %v2246, %v2153
    %2250 = vrot.lane.b32.xlu0 %v2247, 32
    %v2251 = vpop.permute.xlu0 %2250
    %v2253 = vmul.f32 %v2246, %v2251
    %2255 = vrot.lane.b32.xlu0 %v2253, 64
    %v2256 = vpop.permute.xlu0 %2255
    %v2258 = vadd.f32 %v2248, %v2256
    %v2259 = vtanh.pop %v2258
    %2261 = vrot.lane.b32.xlu0 %v2259, 96
    %v2262 = vpop.permute.xlu0 %2261
    %v2264 = vmul.f32 %v2246, %v2262
    %2266 = vrot.lane.b32.xlu0 %v2264, 96
    %v2267 = vpop.permute.xlu0 %2266
    %s2269 = scalar_lea.vmem [#allocation3], 136
    %2270 = vst.msk [vmem:[%s2269] sm:$0xff] %vm484, %v2267
    %s2271 = scalar_lea.vmem [#allocation2], 136
    %v2272 = vld [vmem:[%s2271] sm:$0xff]
    %v2273 = vsel %vm484, %v2267, 0
    %2275 = vmatprep.subr.mxu0 0.0
    %2276 = vmatpush1.msra.mxu0 0.0
    %2277 = vmatprep.subr.mxu0 0.0
    %2278 = vmatpush1.msra.mxu0 0.0
    %2279 = vmatprep.subr.mxu0 0.0
    %2280 = vmatpush1.msra.mxu0 0.0
    %2281 = vmatprep.subr.mxu0 0.0
    %2282 = vmatpush1.msra.mxu0 0.0
    %2283 = vmatprep.subr.mxu0 0.0
    %2284 = vmatpush1.msra.mxu0 0.0
    %2285 = vmatprep.subr.mxu0 0.0
    %2286 = vmatpush1.msra.mxu0 0.0
    %2287 = vmatprep.subr.mxu0 0.0
    %2288 = vmatpush1.msra.mxu0 0.0
    %2289 = vmatprep.subr.mxu0 0.0
    %2290 = vmatpush1.msra.mxu0 0.0
    %2291 = vmatprep.subr.mxu0 0.0
    %2292 = vmatpush1.msra.mxu0 0.0
    %2293 = vmatprep.subr.mxu0 0.0
    %2294 = vmatpush1.msra.mxu0 0.0
    %2295 = vmatprep.subr.mxu0 0.0
    %2296 = vmatpush1.msra.mxu0 0.0
    %2297 = vmatprep.subr.mxu0 0.0
    %2298 = vmatpush1.msra.mxu0 0.0
    %2299 = vmatprep.subr.mxu0 0.0
    %2300 = vmatpush1.msra.mxu0 %v483
    %2301 = vmatprep.subr.mxu0 0.0
    %2302 = vmatpush1.msra.mxu0 %v482
    %2303 = vmatprep.subr.mxu0 0.0
    %2304 = vmatpush1.msra.mxu0 %v481
    %2305 = vmatprep.subr.mxu0 0.0
    %2306 = vmatpush1.msra.mxu0 %v480
    %2307 = vmatprep.subr.mxu0 0.0
    %2308 = vmatpush2.msra.mxu0 0.0
    %2309 = vmatprep.subr.mxu0 0.0
    %2310 = vmatpush2.msra.mxu0 0.0
    %2311 = vmatprep.subr.mxu0 0.0
    %2312 = vmatpush2.msra.mxu0 0.0
    %2313 = vmatprep.subr.mxu0 0.0
    %2314 = vmatpush2.msra.mxu0 0.0
    %2315 = vmatprep.subr.mxu0 0.0
    %2316 = vmatpush2.msra.mxu0 0.0
    %2317 = vmatprep.subr.mxu0 0.0
    %2318 = vmatpush2.msra.mxu0 0.0
    %2319 = vmatprep.subr.mxu0 0.0
    %2320 = vmatpush2.msra.mxu0 0.0
    %2321 = vmatprep.subr.mxu0 0.0
    %2322 = vmatpush2.msra.mxu0 0.0
    %2323 = vmatprep.subr.mxu0 0.0
    %2324 = vmatpush2.msra.mxu0 0.0
    %2325 = vmatprep.subr.mxu0 0.0
    %2326 = vmatpush2.msra.mxu0 0.0
    %2327 = vmatprep.subr.mxu0 0.0
    %2328 = vmatpush2.msra.mxu0 0.0
    %2329 = vmatprep.subr.mxu0 0.0
    %2330 = vmatpush2.msra.mxu0 0.0
    %2331 = vmatprep.subr.mxu0 0.0
    %2332 = vmatpush2.msra.mxu0 0.0
    %2333 = vmatprep.subr.mxu0 0.0
    %2334 = vmatpush2.msra.mxu0 0.0
    %2335 = vmatprep.subr.mxu0 0.0
    %2336 = vmatpush2.msra.mxu0 0.0
    %2337 = vmatprep.subr.mxu0 0.0
    %2338 = vmatpush2.msra.mxu0 0.0
    %2339 = vmatprep.mubr.f32.mxu0 0.0
    %2340 = vmatmul.mubr.f32.gmra.mxu0 %v2273
    %v2341 = vpop.f32.mrf.mxu0
    %v2342 = vadd.f32 0.0, %v2341
    %v2343 = vpop.f32.mrf.mxu0
    %2344 = vdwg.mxu0
    %v2345 = vadd.f32 %v2272, %v2342
    %v2346 = vxor.u32 %v2345, 2147483648
    %v2347 = vmul.f32 %v2346, 1.442695
    %v2348 = vpow.pop %v2347
    %v2349 = vadd.f32 %v2348, 1.0
    %v2350 = vrcp.pop %v2349
    %v2351 = vmul.f32 1.0, %v2350
    %v2352 = vtanh.pop %v2345
    %v2353 = vmul.f32 %v2351, %v2258
    %2355 = vrot.lane.b32.xlu0 %v2352, 32
    %v2356 = vpop.permute.xlu0 %2355
    %v2358 = vmul.f32 %v2351, %v2356
    %2360 = vrot.lane.b32.xlu0 %v2358, 64
    %v2361 = vpop.permute.xlu0 %2360
    %v2363 = vadd.f32 %v2353, %v2361
    %v2364 = vtanh.pop %v2363
    %2366 = vrot.lane.b32.xlu0 %v2364, 96
    %v2367 = vpop.permute.xlu0 %2366
    %v2369 = vmul.f32 %v2351, %v2367
    %2371 = vrot.lane.b32.xlu0 %v2369, 96
    %v2372 = vpop.permute.xlu0 %2371
    %s2374 = scalar_lea.vmem [#allocation3], 144
    %2375 = vst.msk [vmem:[%s2374] sm:$0xff] %vm484, %v2372
    %s2376 = scalar_lea.vmem [#allocation2], 144
    %v2377 = vld [vmem:[%s2376] sm:$0xff]
    %v2378 = vsel %vm484, %v2372, 0
    %2380 = vmatprep.subr.mxu0 0.0
    %2381 = vmatpush1.msra.mxu0 0.0
    %2382 = vmatprep.subr.mxu0 0.0
    %2383 = vmatpush1.msra.mxu0 0.0
    %2384 = vmatprep.subr.mxu0 0.0
    %2385 = vmatpush1.msra.mxu0 0.0
    %2386 = vmatprep.subr.mxu0 0.0
    %2387 = vmatpush1.msra.mxu0 0.0
    %2388 = vmatprep.subr.mxu0 0.0
    %2389 = vmatpush1.msra.mxu0 0.0
    %2390 = vmatprep.subr.mxu0 0.0
    %2391 = vmatpush1.msra.mxu0 0.0
    %2392 = vmatprep.subr.mxu0 0.0
    %2393 = vmatpush1.msra.mxu0 0.0
    %2394 = vmatprep.subr.mxu0 0.0
    %2395 = vmatpush1.msra.mxu0 0.0
    %2396 = vmatprep.subr.mxu0 0.0
    %2397 = vmatpush1.msra.mxu0 0.0
    %2398 = vmatprep.subr.mxu0 0.0
    %2399 = vmatpush1.msra.mxu0 0.0
    %2400 = vmatprep.subr.mxu0 0.0
    %2401 = vmatpush1.msra.mxu0 0.0
    %2402 = vmatprep.subr.mxu0 0.0
    %2403 = vmatpush1.msra.mxu0 0.0
    %2404 = vmatprep.subr.mxu0 0.0
    %2405 = vmatpush1.msra.mxu0 %v483
    %2406 = vmatprep.subr.mxu0 0.0
    %2407 = vmatpush1.msra.mxu0 %v482
    %2408 = vmatprep.subr.mxu0 0.0
    %2409 = vmatpush1.msra.mxu0 %v481
    %2410 = vmatprep.subr.mxu0 0.0
    %2411 = vmatpush1.msra.mxu0 %v480
    %2412 = vmatprep.subr.mxu0 0.0
    %2413 = vmatpush2.msra.mxu0 0.0
    %2414 = vmatprep.subr.mxu0 0.0
    %2415 = vmatpush2.msra.mxu0 0.0
    %2416 = vmatprep.subr.mxu0 0.0
    %2417 = vmatpush2.msra.mxu0 0.0
    %2418 = vmatprep.subr.mxu0 0.0
    %2419 = vmatpush2.msra.mxu0 0.0
    %2420 = vmatprep.subr.mxu0 0.0
    %2421 = vmatpush2.msra.mxu0 0.0
    %2422 = vmatprep.subr.mxu0 0.0
    %2423 = vmatpush2.msra.mxu0 0.0
    %2424 = vmatprep.subr.mxu0 0.0
    %2425 = vmatpush2.msra.mxu0 0.0
    %2426 = vmatprep.subr.mxu0 0.0
    %2427 = vmatpush2.msra.mxu0 0.0
    %2428 = vmatprep.subr.mxu0 0.0
    %2429 = vmatpush2.msra.mxu0 0.0
    %2430 = vmatprep.subr.mxu0 0.0
    %2431 = vmatpush2.msra.mxu0 0.0
    %2432 = vmatprep.subr.mxu0 0.0
    %2433 = vmatpush2.msra.mxu0 0.0
    %2434 = vmatprep.subr.mxu0 0.0
    %2435 = vmatpush2.msra.mxu0 0.0
    %2436 = vmatprep.subr.mxu0 0.0
    %2437 = vmatpush2.msra.mxu0 0.0
    %2438 = vmatprep.subr.mxu0 0.0
    %2439 = vmatpush2.msra.mxu0 0.0
    %2440 = vmatprep.subr.mxu0 0.0
    %2441 = vmatpush2.msra.mxu0 0.0
    %2442 = vmatprep.subr.mxu0 0.0
    %2443 = vmatpush2.msra.mxu0 0.0
    %2444 = vmatprep.mubr.f32.mxu0 0.0
    %2445 = vmatmul.mubr.f32.gmra.mxu0 %v2378
    %v2446 = vpop.f32.mrf.mxu0
    %v2447 = vadd.f32 0.0, %v2446
    %v2448 = vpop.f32.mrf.mxu0
    %2449 = vdwg.mxu0
    %v2450 = vadd.f32 %v2377, %v2447
    %v2451 = vxor.u32 %v2450, 2147483648
    %v2452 = vmul.f32 %v2451, 1.442695
    %v2453 = vpow.pop %v2452
    %v2454 = vadd.f32 %v2453, 1.0
    %v2455 = vrcp.pop %v2454
    %v2456 = vmul.f32 1.0, %v2455
    %v2457 = vtanh.pop %v2450
    %v2458 = vmul.f32 %v2456, %v2363
    %2460 = vrot.lane.b32.xlu0 %v2457, 32
    %v2461 = vpop.permute.xlu0 %2460
    %v2463 = vmul.f32 %v2456, %v2461
    %2465 = vrot.lane.b32.xlu0 %v2463, 64
    %v2466 = vpop.permute.xlu0 %2465
    %v2468 = vadd.f32 %v2458, %v2466
    %v2469 = vtanh.pop %v2468
    %2471 = vrot.lane.b32.xlu0 %v2469, 96
    %v2472 = vpop.permute.xlu0 %2471
    %v2474 = vmul.f32 %v2456, %v2472
    %2476 = vrot.lane.b32.xlu0 %v2474, 96
    %v2477 = vpop.permute.xlu0 %2476
    %s2479 = scalar_lea.vmem [#allocation3], 152
    %2480 = vst.msk [vmem:[%s2479] sm:$0xff] %vm484, %v2477
    %s2481 = scalar_lea.vmem [#allocation2], 152
    %v2482 = vld [vmem:[%s2481] sm:$0xff]
    %v2483 = vsel %vm484, %v2477, 0
    %2485 = vmatprep.subr.mxu0 0.0
    %2486 = vmatpush1.msra.mxu0 0.0
    %2487 = vmatprep.subr.mxu0 0.0
    %2488 = vmatpush1.msra.mxu0 0.0
    %2489 = vmatprep.subr.mxu0 0.0
    %2490 = vmatpush1.msra.mxu0 0.0
    %2491 = vmatprep.subr.mxu0 0.0
    %2492 = vmatpush1.msra.mxu0 0.0
    %2493 = vmatprep.subr.mxu0 0.0
    %2494 = vmatpush1.msra.mxu0 0.0
    %2495 = vmatprep.subr.mxu0 0.0
    %2496 = vmatpush1.msra.mxu0 0.0
    %2497 = vmatprep.subr.mxu0 0.0
    %2498 = vmatpush1.msra.mxu0 0.0
    %2499 = vmatprep.subr.mxu0 0.0
    %2500 = vmatpush1.msra.mxu0 0.0
    %2501 = vmatprep.subr.mxu0 0.0
    %2502 = vmatpush1.msra.mxu0 0.0
    %2503 = vmatprep.subr.mxu0 0.0
    %2504 = vmatpush1.msra.mxu0 0.0
    %2505 = vmatprep.subr.mxu0 0.0
    %2506 = vmatpush1.msra.mxu0 0.0
    %2507 = vmatprep.subr.mxu0 0.0
    %2508 = vmatpush1.msra.mxu0 0.0
    %2509 = vmatprep.subr.mxu0 0.0
    %2510 = vmatpush1.msra.mxu0 %v483
    %2511 = vmatprep.subr.mxu0 0.0
    %2512 = vmatpush1.msra.mxu0 %v482
    %2513 = vmatprep.subr.mxu0 0.0
    %2514 = vmatpush1.msra.mxu0 %v481
    %2515 = vmatprep.subr.mxu0 0.0
    %2516 = vmatpush1.msra.mxu0 %v480
    %2517 = vmatprep.subr.mxu0 0.0
    %2518 = vmatpush2.msra.mxu0 0.0
    %2519 = vmatprep.subr.mxu0 0.0
    %2520 = vmatpush2.msra.mxu0 0.0
    %2521 = vmatprep.subr.mxu0 0.0
    %2522 = vmatpush2.msra.mxu0 0.0
    %2523 = vmatprep.subr.mxu0 0.0
    %2524 = vmatpush2.msra.mxu0 0.0
    %2525 = vmatprep.subr.mxu0 0.0
    %2526 = vmatpush2.msra.mxu0 0.0
    %2527 = vmatprep.subr.mxu0 0.0
    %2528 = vmatpush2.msra.mxu0 0.0
    %2529 = vmatprep.subr.mxu0 0.0
    %2530 = vmatpush2.msra.mxu0 0.0
    %2531 = vmatprep.subr.mxu0 0.0
    %2532 = vmatpush2.msra.mxu0 0.0
    %2533 = vmatprep.subr.mxu0 0.0
    %2534 = vmatpush2.msra.mxu0 0.0
    %2535 = vmatprep.subr.mxu0 0.0
    %2536 = vmatpush2.msra.mxu0 0.0
    %2537 = vmatprep.subr.mxu0 0.0
    %2538 = vmatpush2.msra.mxu0 0.0
    %2539 = vmatprep.subr.mxu0 0.0
    %2540 = vmatpush2.msra.mxu0 0.0
    %2541 = vmatprep.subr.mxu0 0.0
    %2542 = vmatpush2.msra.mxu0 0.0
    %2543 = vmatprep.subr.mxu0 0.0
    %2544 = vmatpush2.msra.mxu0 0.0
    %2545 = vmatprep.subr.mxu0 0.0
    %2546 = vmatpush2.msra.mxu0 0.0
    %2547 = vmatprep.subr.mxu0 0.0
    %2548 = vmatpush2.msra.mxu0 0.0
    %2549 = vmatprep.mubr.f32.mxu0 0.0
    %2550 = vmatmul.mubr.f32.gmra.mxu0 %v2483
    %v2551 = vpop.f32.mrf.mxu0
    %v2552 = vadd.f32 0.0, %v2551
    %v2553 = vpop.f32.mrf.mxu0
    %2554 = vdwg.mxu0
    %v2555 = vadd.f32 %v2482, %v2552
    %v2556 = vxor.u32 %v2555, 2147483648
    %v2557 = vmul.f32 %v2556, 1.442695
    %v2558 = vpow.pop %v2557
    %v2559 = vadd.f32 %v2558, 1.0
    %v2560 = vrcp.pop %v2559
    %v2561 = vmul.f32 1.0, %v2560
    %v2562 = vtanh.pop %v2555
    %v2563 = vmul.f32 %v2561, %v2468
    %2565 = vrot.lane.b32.xlu0 %v2562, 32
    %v2566 = vpop.permute.xlu0 %2565
    %v2568 = vmul.f32 %v2561, %v2566
    %2570 = vrot.lane.b32.xlu0 %v2568, 64
    %v2571 = vpop.permute.xlu0 %2570
    %v2573 = vadd.f32 %v2563, %v2571
    %v2574 = vtanh.pop %v2573
    %2576 = vrot.lane.b32.xlu0 %v2574, 96
    %v2577 = vpop.permute.xlu0 %2576
    %v2579 = vmul.f32 %v2561, %v2577
    %2581 = vrot.lane.b32.xlu0 %v2579, 96
    %v2582 = vpop.permute.xlu0 %2581
    %s2584 = scalar_lea.vmem [#allocation3], 160
    %2585 = vst.msk [vmem:[%s2584] sm:$0xff] %vm484, %v2582
    %s2586 = scalar_lea.vmem [#allocation2], 160
    %v2587 = vld [vmem:[%s2586] sm:$0xff]
    %v2588 = vsel %vm484, %v2582, 0
    %2590 = vmatprep.subr.mxu0 0.0
    %2591 = vmatpush1.msra.mxu0 0.0
    %2592 = vmatprep.subr.mxu0 0.0
    %2593 = vmatpush1.msra.mxu0 0.0
    %2594 = vmatprep.subr.mxu0 0.0
    %2595 = vmatpush1.msra.mxu0 0.0
    %2596 = vmatprep.subr.mxu0 0.0
    %2597 = vmatpush1.msra.mxu0 0.0
    %2598 = vmatprep.subr.mxu0 0.0
    %2599 = vmatpush1.msra.mxu0 0.0
    %2600 = vmatprep.subr.mxu0 0.0
    %2601 = vmatpush1.msra.mxu0 0.0
    %2602 = vmatprep.subr.mxu0 0.0
    %2603 = vmatpush1.msra.mxu0 0.0
    %2604 = vmatprep.subr.mxu0 0.0
    %2605 = vmatpush1.msra.mxu0 0.0
    %2606 = vmatprep.subr.mxu0 0.0
    %2607 = vmatpush1.msra.mxu0 0.0
    %2608 = vmatprep.subr.mxu0 0.0
    %2609 = vmatpush1.msra.mxu0 0.0
    %2610 = vmatprep.subr.mxu0 0.0
    %2611 = vmatpush1.msra.mxu0 0.0
    %2612 = vmatprep.subr.mxu0 0.0
    %2613 = vmatpush1.msra.mxu0 0.0
    %2614 = vmatprep.subr.mxu0 0.0
    %2615 = vmatpush1.msra.mxu0 %v483
    %2616 = vmatprep.subr.mxu0 0.0
    %2617 = vmatpush1.msra.mxu0 %v482
    %2618 = vmatprep.subr.mxu0 0.0
    %2619 = vmatpush1.msra.mxu0 %v481
    %2620 = vmatprep.subr.mxu0 0.0
    %2621 = vmatpush1.msra.mxu0 %v480
    %2622 = vmatprep.subr.mxu0 0.0
    %2623 = vmatpush2.msra.mxu0 0.0
    %2624 = vmatprep.subr.mxu0 0.0
    %2625 = vmatpush2.msra.mxu0 0.0
    %2626 = vmatprep.subr.mxu0 0.0
    %2627 = vmatpush2.msra.mxu0 0.0
    %2628 = vmatprep.subr.mxu0 0.0
    %2629 = vmatpush2.msra.mxu0 0.0
    %2630 = vmatprep.subr.mxu0 0.0
    %2631 = vmatpush2.msra.mxu0 0.0
    %2632 = vmatprep.subr.mxu0 0.0
    %2633 = vmatpush2.msra.mxu0 0.0
    %2634 = vmatprep.subr.mxu0 0.0
    %2635 = vmatpush2.msra.mxu0 0.0
    %2636 = vmatprep.subr.mxu0 0.0
    %2637 = vmatpush2.msra.mxu0 0.0
    %2638 = vmatprep.subr.mxu0 0.0
    %2639 = vmatpush2.msra.mxu0 0.0
    %2640 = vmatprep.subr.mxu0 0.0
    %2641 = vmatpush2.msra.mxu0 0.0
    %2642 = vmatprep.subr.mxu0 0.0
    %2643 = vmatpush2.msra.mxu0 0.0
    %2644 = vmatprep.subr.mxu0 0.0
    %2645 = vmatpush2.msra.mxu0 0.0
    %2646 = vmatprep.subr.mxu0 0.0
    %2647 = vmatpush2.msra.mxu0 0.0
    %2648 = vmatprep.subr.mxu0 0.0
    %2649 = vmatpush2.msra.mxu0 0.0
    %2650 = vmatprep.subr.mxu0 0.0
    %2651 = vmatpush2.msra.mxu0 0.0
    %2652 = vmatprep.subr.mxu0 0.0
    %2653 = vmatpush2.msra.mxu0 0.0
    %2654 = vmatprep.mubr.f32.mxu0 0.0
    %2655 = vmatmul.mubr.f32.gmra.mxu0 %v2588
    %v2656 = vpop.f32.mrf.mxu0
    %v2657 = vadd.f32 0.0, %v2656
    %v2658 = vpop.f32.mrf.mxu0
    %2659 = vdwg.mxu0
    %v2660 = vadd.f32 %v2587, %v2657
    %v2661 = vxor.u32 %v2660, 2147483648
    %v2662 = vmul.f32 %v2661, 1.442695
    %v2663 = vpow.pop %v2662
    %v2664 = vadd.f32 %v2663, 1.0
    %v2665 = vrcp.pop %v2664
    %v2666 = vmul.f32 1.0, %v2665
    %v2667 = vtanh.pop %v2660
    %v2668 = vmul.f32 %v2666, %v2573
    %2670 = vrot.lane.b32.xlu0 %v2667, 32
    %v2671 = vpop.permute.xlu0 %2670
    %v2673 = vmul.f32 %v2666, %v2671
    %2675 = vrot.lane.b32.xlu0 %v2673, 64
    %v2676 = vpop.permute.xlu0 %2675
    %v2678 = vadd.f32 %v2668, %v2676
    %v2679 = vtanh.pop %v2678
    %2681 = vrot.lane.b32.xlu0 %v2679, 96
    %v2682 = vpop.permute.xlu0 %2681
    %v2684 = vmul.f32 %v2666, %v2682
    %2686 = vrot.lane.b32.xlu0 %v2684, 96
    %v2687 = vpop.permute.xlu0 %2686
    %s2689 = scalar_lea.vmem [#allocation3], 168
    %2690 = vst.msk [vmem:[%s2689] sm:$0xff] %vm484, %v2687
    %s2691 = scalar_lea.vmem [#allocation2], 168
    %v2692 = vld [vmem:[%s2691] sm:$0xff]
    %v2693 = vsel %vm484, %v2687, 0
    %2695 = vmatprep.subr.mxu0 0.0
    %2696 = vmatpush1.msra.mxu0 0.0
    %2697 = vmatprep.subr.mxu0 0.0
    %2698 = vmatpush1.msra.mxu0 0.0
    %2699 = vmatprep.subr.mxu0 0.0
    %2700 = vmatpush1.msra.mxu0 0.0
    %2701 = vmatprep.subr.mxu0 0.0
    %2702 = vmatpush1.msra.mxu0 0.0
    %2703 = vmatprep.subr.mxu0 0.0
    %2704 = vmatpush1.msra.mxu0 0.0
    %2705 = vmatprep.subr.mxu0 0.0
    %2706 = vmatpush1.msra.mxu0 0.0
    %2707 = vmatprep.subr.mxu0 0.0
    %2708 = vmatpush1.msra.mxu0 0.0
    %2709 = vmatprep.subr.mxu0 0.0
    %2710 = vmatpush1.msra.mxu0 0.0
    %2711 = vmatprep.subr.mxu0 0.0
    %2712 = vmatpush1.msra.mxu0 0.0
    %2713 = vmatprep.subr.mxu0 0.0
    %2714 = vmatpush1.msra.mxu0 0.0
    %2715 = vmatprep.subr.mxu0 0.0
    %2716 = vmatpush1.msra.mxu0 0.0
    %2717 = vmatprep.subr.mxu0 0.0
    %2718 = vmatpush1.msra.mxu0 0.0
    %2719 = vmatprep.subr.mxu0 0.0
    %2720 = vmatpush1.msra.mxu0 %v483
    %2721 = vmatprep.subr.mxu0 0.0
    %2722 = vmatpush1.msra.mxu0 %v482
    %2723 = vmatprep.subr.mxu0 0.0
    %2724 = vmatpush1.msra.mxu0 %v481
    %2725 = vmatprep.subr.mxu0 0.0
    %2726 = vmatpush1.msra.mxu0 %v480
    %2727 = vmatprep.subr.mxu0 0.0
    %2728 = vmatpush2.msra.mxu0 0.0
    %2729 = vmatprep.subr.mxu0 0.0
    %2730 = vmatpush2.msra.mxu0 0.0
    %2731 = vmatprep.subr.mxu0 0.0
    %2732 = vmatpush2.msra.mxu0 0.0
    %2733 = vmatprep.subr.mxu0 0.0
    %2734 = vmatpush2.msra.mxu0 0.0
    %2735 = vmatprep.subr.mxu0 0.0
    %2736 = vmatpush2.msra.mxu0 0.0
    %2737 = vmatprep.subr.mxu0 0.0
    %2738 = vmatpush2.msra.mxu0 0.0
    %2739 = vmatprep.subr.mxu0 0.0
    %2740 = vmatpush2.msra.mxu0 0.0
    %2741 = vmatprep.subr.mxu0 0.0
    %2742 = vmatpush2.msra.mxu0 0.0
    %2743 = vmatprep.subr.mxu0 0.0
    %2744 = vmatpush2.msra.mxu0 0.0
    %2745 = vmatprep.subr.mxu0 0.0
    %2746 = vmatpush2.msra.mxu0 0.0
    %2747 = vmatprep.subr.mxu0 0.0
    %2748 = vmatpush2.msra.mxu0 0.0
    %2749 = vmatprep.subr.mxu0 0.0
    %2750 = vmatpush2.msra.mxu0 0.0
    %2751 = vmatprep.subr.mxu0 0.0
    %2752 = vmatpush2.msra.mxu0 0.0
    %2753 = vmatprep.subr.mxu0 0.0
    %2754 = vmatpush2.msra.mxu0 0.0
    %2755 = vmatprep.subr.mxu0 0.0
    %2756 = vmatpush2.msra.mxu0 0.0
    %2757 = vmatprep.subr.mxu0 0.0
    %2758 = vmatpush2.msra.mxu0 0.0
    %2759 = vmatprep.mubr.f32.mxu0 0.0
    %2760 = vmatmul.mubr.f32.gmra.mxu0 %v2693
    %v2761 = vpop.f32.mrf.mxu0
    %v2762 = vadd.f32 0.0, %v2761
    %v2763 = vpop.f32.mrf.mxu0
    %2764 = vdwg.mxu0
    %v2765 = vadd.f32 %v2692, %v2762
    %v2766 = vxor.u32 %v2765, 2147483648
    %v2767 = vmul.f32 %v2766, 1.442695
    %v2768 = vpow.pop %v2767
    %v2769 = vadd.f32 %v2768, 1.0
    %v2770 = vrcp.pop %v2769
    %v2771 = vmul.f32 1.0, %v2770
    %v2772 = vtanh.pop %v2765
    %v2773 = vmul.f32 %v2771, %v2678
    %2775 = vrot.lane.b32.xlu0 %v2772, 32
    %v2776 = vpop.permute.xlu0 %2775
    %v2778 = vmul.f32 %v2771, %v2776
    %2780 = vrot.lane.b32.xlu0 %v2778, 64
    %v2781 = vpop.permute.xlu0 %2780
    %v2783 = vadd.f32 %v2773, %v2781
    %v2784 = vtanh.pop %v2783
    %2786 = vrot.lane.b32.xlu0 %v2784, 96
    %v2787 = vpop.permute.xlu0 %2786
    %v2789 = vmul.f32 %v2771, %v2787
    %2791 = vrot.lane.b32.xlu0 %v2789, 96
    %v2792 = vpop.permute.xlu0 %2791
    %s2794 = scalar_lea.vmem [#allocation3], 176
    %2795 = vst.msk [vmem:[%s2794] sm:$0xff] %vm484, %v2792
    %s2796 = scalar_lea.vmem [#allocation2], 176
    %v2797 = vld [vmem:[%s2796] sm:$0xff]
    %v2798 = vsel %vm484, %v2792, 0
    %2800 = vmatprep.subr.mxu0 0.0
    %2801 = vmatpush1.msra.mxu0 0.0
    %2802 = vmatprep.subr.mxu0 0.0
    %2803 = vmatpush1.msra.mxu0 0.0
    %2804 = vmatprep.subr.mxu0 0.0
    %2805 = vmatpush1.msra.mxu0 0.0
    %2806 = vmatprep.subr.mxu0 0.0
    %2807 = vmatpush1.msra.mxu0 0.0
    %2808 = vmatprep.subr.mxu0 0.0
    %2809 = vmatpush1.msra.mxu0 0.0
    %2810 = vmatprep.subr.mxu0 0.0
    %2811 = vmatpush1.msra.mxu0 0.0
    %2812 = vmatprep.subr.mxu0 0.0
    %2813 = vmatpush1.msra.mxu0 0.0
    %2814 = vmatprep.subr.mxu0 0.0
    %2815 = vmatpush1.msra.mxu0 0.0
    %2816 = vmatprep.subr.mxu0 0.0
    %2817 = vmatpush1.msra.mxu0 0.0
    %2818 = vmatprep.subr.mxu0 0.0
    %2819 = vmatpush1.msra.mxu0 0.0
    %2820 = vmatprep.subr.mxu0 0.0
    %2821 = vmatpush1.msra.mxu0 0.0
    %2822 = vmatprep.subr.mxu0 0.0
    %2823 = vmatpush1.msra.mxu0 0.0
    %2824 = vmatprep.subr.mxu0 0.0
    %2825 = vmatpush1.msra.mxu0 %v483
    %2826 = vmatprep.subr.mxu0 0.0
    %2827 = vmatpush1.msra.mxu0 %v482
    %2828 = vmatprep.subr.mxu0 0.0
    %2829 = vmatpush1.msra.mxu0 %v481
    %2830 = vmatprep.subr.mxu0 0.0
    %2831 = vmatpush1.msra.mxu0 %v480
    %2832 = vmatprep.subr.mxu0 0.0
    %2833 = vmatpush2.msra.mxu0 0.0
    %2834 = vmatprep.subr.mxu0 0.0
    %2835 = vmatpush2.msra.mxu0 0.0
    %2836 = vmatprep.subr.mxu0 0.0
    %2837 = vmatpush2.msra.mxu0 0.0
    %2838 = vmatprep.subr.mxu0 0.0
    %2839 = vmatpush2.msra.mxu0 0.0
    %2840 = vmatprep.subr.mxu0 0.0
    %2841 = vmatpush2.msra.mxu0 0.0
    %2842 = vmatprep.subr.mxu0 0.0
    %2843 = vmatpush2.msra.mxu0 0.0
    %2844 = vmatprep.subr.mxu0 0.0
    %2845 = vmatpush2.msra.mxu0 0.0
    %2846 = vmatprep.subr.mxu0 0.0
    %2847 = vmatpush2.msra.mxu0 0.0
    %2848 = vmatprep.subr.mxu0 0.0
    %2849 = vmatpush2.msra.mxu0 0.0
    %2850 = vmatprep.subr.mxu0 0.0
    %2851 = vmatpush2.msra.mxu0 0.0
    %2852 = vmatprep.subr.mxu0 0.0
    %2853 = vmatpush2.msra.mxu0 0.0
    %2854 = vmatprep.subr.mxu0 0.0
    %2855 = vmatpush2.msra.mxu0 0.0
    %2856 = vmatprep.subr.mxu0 0.0
    %2857 = vmatpush2.msra.mxu0 0.0
    %2858 = vmatprep.subr.mxu0 0.0
    %2859 = vmatpush2.msra.mxu0 0.0
    %2860 = vmatprep.subr.mxu0 0.0
    %2861 = vmatpush2.msra.mxu0 0.0
    %2862 = vmatprep.subr.mxu0 0.0
    %2863 = vmatpush2.msra.mxu0 0.0
    %2864 = vmatprep.mubr.f32.mxu0 0.0
    %2865 = vmatmul.mubr.f32.gmra.mxu0 %v2798
    %v2866 = vpop.f32.mrf.mxu0
    %v2867 = vadd.f32 0.0, %v2866
    %v2868 = vpop.f32.mrf.mxu0
    %2869 = vdwg.mxu0
    %v2870 = vadd.f32 %v2797, %v2867
    %v2871 = vxor.u32 %v2870, 2147483648
    %v2872 = vmul.f32 %v2871, 1.442695
    %v2873 = vpow.pop %v2872
    %v2874 = vadd.f32 %v2873, 1.0
    %v2875 = vrcp.pop %v2874
    %v2876 = vmul.f32 1.0, %v2875
    %v2877 = vtanh.pop %v2870
    %v2878 = vmul.f32 %v2876, %v2783
    %2880 = vrot.lane.b32.xlu0 %v2877, 32
    %v2881 = vpop.permute.xlu0 %2880
    %v2883 = vmul.f32 %v2876, %v2881
    %2885 = vrot.lane.b32.xlu0 %v2883, 64
    %v2886 = vpop.permute.xlu0 %2885
    %v2888 = vadd.f32 %v2878, %v2886
    %v2889 = vtanh.pop %v2888
    %2891 = vrot.lane.b32.xlu0 %v2889, 96
    %v2892 = vpop.permute.xlu0 %2891
    %v2894 = vmul.f32 %v2876, %v2892
    %2896 = vrot.lane.b32.xlu0 %v2894, 96
    %v2897 = vpop.permute.xlu0 %2896
    %s2899 = scalar_lea.vmem [#allocation3], 184
    %2900 = vst.msk [vmem:[%s2899] sm:$0xff] %vm484, %v2897
    %s2901 = scalar_lea.vmem [#allocation2], 184
    %v2902 = vld [vmem:[%s2901] sm:$0xff]
    %v2903 = vsel %vm484, %v2897, 0
    %2905 = vmatprep.subr.mxu0 0.0
    %2906 = vmatpush1.msra.mxu0 0.0
    %2907 = vmatprep.subr.mxu0 0.0
    %2908 = vmatpush1.msra.mxu0 0.0
    %2909 = vmatprep.subr.mxu0 0.0
    %2910 = vmatpush1.msra.mxu0 0.0
    %2911 = vmatprep.subr.mxu0 0.0
    %2912 = vmatpush1.msra.mxu0 0.0
    %2913 = vmatprep.subr.mxu0 0.0
    %2914 = vmatpush1.msra.mxu0 0.0
    %2915 = vmatprep.subr.mxu0 0.0
    %2916 = vmatpush1.msra.mxu0 0.0
    %2917 = vmatprep.subr.mxu0 0.0
    %2918 = vmatpush1.msra.mxu0 0.0
    %2919 = vmatprep.subr.mxu0 0.0
    %2920 = vmatpush1.msra.mxu0 0.0
    %2921 = vmatprep.subr.mxu0 0.0
    %2922 = vmatpush1.msra.mxu0 0.0
    %2923 = vmatprep.subr.mxu0 0.0
    %2924 = vmatpush1.msra.mxu0 0.0
    %2925 = vmatprep.subr.mxu0 0.0
    %2926 = vmatpush1.msra.mxu0 0.0
    %2927 = vmatprep.subr.mxu0 0.0
    %2928 = vmatpush1.msra.mxu0 0.0
    %2929 = vmatprep.subr.mxu0 0.0
    %2930 = vmatpush1.msra.mxu0 %v483
    %2931 = vmatprep.subr.mxu0 0.0
    %2932 = vmatpush1.msra.mxu0 %v482
    %2933 = vmatprep.subr.mxu0 0.0
    %2934 = vmatpush1.msra.mxu0 %v481
    %2935 = vmatprep.subr.mxu0 0.0
    %2936 = vmatpush1.msra.mxu0 %v480
    %2937 = vmatprep.subr.mxu0 0.0
    %2938 = vmatpush2.msra.mxu0 0.0
    %2939 = vmatprep.subr.mxu0 0.0
    %2940 = vmatpush2.msra.mxu0 0.0
    %2941 = vmatprep.subr.mxu0 0.0
    %2942 = vmatpush2.msra.mxu0 0.0
    %2943 = vmatprep.subr.mxu0 0.0
    %2944 = vmatpush2.msra.mxu0 0.0
    %2945 = vmatprep.subr.mxu0 0.0
    %2946 = vmatpush2.msra.mxu0 0.0
    %2947 = vmatprep.subr.mxu0 0.0
    %2948 = vmatpush2.msra.mxu0 0.0
    %2949 = vmatprep.subr.mxu0 0.0
    %2950 = vmatpush2.msra.mxu0 0.0
    %2951 = vmatprep.subr.mxu0 0.0
    %2952 = vmatpush2.msra.mxu0 0.0
    %2953 = vmatprep.subr.mxu0 0.0
    %2954 = vmatpush2.msra.mxu0 0.0
    %2955 = vmatprep.subr.mxu0 0.0
    %2956 = vmatpush2.msra.mxu0 0.0
    %2957 = vmatprep.subr.mxu0 0.0
    %2958 = vmatpush2.msra.mxu0 0.0
    %2959 = vmatprep.subr.mxu0 0.0
    %2960 = vmatpush2.msra.mxu0 0.0
    %2961 = vmatprep.subr.mxu0 0.0
    %2962 = vmatpush2.msra.mxu0 0.0
    %2963 = vmatprep.subr.mxu0 0.0
    %2964 = vmatpush2.msra.mxu0 0.0
    %2965 = vmatprep.subr.mxu0 0.0
    %2966 = vmatpush2.msra.mxu0 0.0
    %2967 = vmatprep.subr.mxu0 0.0
    %2968 = vmatpush2.msra.mxu0 0.0
    %2969 = vmatprep.mubr.f32.mxu0 0.0
    %2970 = vmatmul.mubr.f32.gmra.mxu0 %v2903
    %v2971 = vpop.f32.mrf.mxu0
    %v2972 = vadd.f32 0.0, %v2971
    %v2973 = vpop.f32.mrf.mxu0
    %2974 = vdwg.mxu0
    %v2975 = vadd.f32 %v2902, %v2972
    %v2976 = vxor.u32 %v2975, 2147483648
    %v2977 = vmul.f32 %v2976, 1.442695
    %v2978 = vpow.pop %v2977
    %v2979 = vadd.f32 %v2978, 1.0
    %v2980 = vrcp.pop %v2979
    %v2981 = vmul.f32 1.0, %v2980
    %v2982 = vtanh.pop %v2975
    %v2983 = vmul.f32 %v2981, %v2888
    %2985 = vrot.lane.b32.xlu0 %v2982, 32
    %v2986 = vpop.permute.xlu0 %2985
    %v2988 = vmul.f32 %v2981, %v2986
    %2990 = vrot.lane.b32.xlu0 %v2988, 64
    %v2991 = vpop.permute.xlu0 %2990
    %v2993 = vadd.f32 %v2983, %v2991
    %v2994 = vtanh.pop %v2993
    %2996 = vrot.lane.b32.xlu0 %v2994, 96
    %v2997 = vpop.permute.xlu0 %2996
    %v2999 = vmul.f32 %v2981, %v2997
    %3001 = vrot.lane.b32.xlu0 %v2999, 96
    %v3002 = vpop.permute.xlu0 %3001
    %s3004 = scalar_lea.vmem [#allocation3], 192
    %3005 = vst.msk [vmem:[%s3004] sm:$0xff] %vm484, %v3002
    %s3006 = scalar_lea.vmem [#allocation2], 192
    %v3007 = vld [vmem:[%s3006] sm:$0xff]
    %v3008 = vsel %vm484, %v3002, 0
    %3010 = vmatprep.subr.mxu0 0.0
    %3011 = vmatpush1.msra.mxu0 0.0
    %3012 = vmatprep.subr.mxu0 0.0
    %3013 = vmatpush1.msra.mxu0 0.0
    %3014 = vmatprep.subr.mxu0 0.0
    %3015 = vmatpush1.msra.mxu0 0.0
    %3016 = vmatprep.subr.mxu0 0.0
    %3017 = vmatpush1.msra.mxu0 0.0
    %3018 = vmatprep.subr.mxu0 0.0
    %3019 = vmatpush1.msra.mxu0 0.0
    %3020 = vmatprep.subr.mxu0 0.0
    %3021 = vmatpush1.msra.mxu0 0.0
    %3022 = vmatprep.subr.mxu0 0.0
    %3023 = vmatpush1.msra.mxu0 0.0
    %3024 = vmatprep.subr.mxu0 0.0
    %3025 = vmatpush1.msra.mxu0 0.0
    %3026 = vmatprep.subr.mxu0 0.0
    %3027 = vmatpush1.msra.mxu0 0.0
    %3028 = vmatprep.subr.mxu0 0.0
    %3029 = vmatpush1.msra.mxu0 0.0
    %3030 = vmatprep.subr.mxu0 0.0
    %3031 = vmatpush1.msra.mxu0 0.0
    %3032 = vmatprep.subr.mxu0 0.0
    %3033 = vmatpush1.msra.mxu0 0.0
    %3034 = vmatprep.subr.mxu0 0.0
    %3035 = vmatpush1.msra.mxu0 %v483
    %3036 = vmatprep.subr.mxu0 0.0
    %3037 = vmatpush1.msra.mxu0 %v482
    %3038 = vmatprep.subr.mxu0 0.0
    %3039 = vmatpush1.msra.mxu0 %v481
    %3040 = vmatprep.subr.mxu0 0.0
    %3041 = vmatpush1.msra.mxu0 %v480
    %3042 = vmatprep.subr.mxu0 0.0
    %3043 = vmatpush2.msra.mxu0 0.0
    %3044 = vmatprep.subr.mxu0 0.0
    %3045 = vmatpush2.msra.mxu0 0.0
    %3046 = vmatprep.subr.mxu0 0.0
    %3047 = vmatpush2.msra.mxu0 0.0
    %3048 = vmatprep.subr.mxu0 0.0
    %3049 = vmatpush2.msra.mxu0 0.0
    %3050 = vmatprep.subr.mxu0 0.0
    %3051 = vmatpush2.msra.mxu0 0.0
    %3052 = vmatprep.subr.mxu0 0.0
    %3053 = vmatpush2.msra.mxu0 0.0
    %3054 = vmatprep.subr.mxu0 0.0
    %3055 = vmatpush2.msra.mxu0 0.0
    %3056 = vmatprep.subr.mxu0 0.0
    %3057 = vmatpush2.msra.mxu0 0.0
    %3058 = vmatprep.subr.mxu0 0.0
    %3059 = vmatpush2.msra.mxu0 0.0
    %3060 = vmatprep.subr.mxu0 0.0
    %3061 = vmatpush2.msra.mxu0 0.0
    %3062 = vmatprep.subr.mxu0 0.0
    %3063 = vmatpush2.msra.mxu0 0.0
    %3064 = vmatprep.subr.mxu0 0.0
    %3065 = vmatpush2.msra.mxu0 0.0
    %3066 = vmatprep.subr.mxu0 0.0
    %3067 = vmatpush2.msra.mxu0 0.0
    %3068 = vmatprep.subr.mxu0 0.0
    %3069 = vmatpush2.msra.mxu0 0.0
    %3070 = vmatprep.subr.mxu0 0.0
    %3071 = vmatpush2.msra.mxu0 0.0
    %3072 = vmatprep.subr.mxu0 0.0
    %3073 = vmatpush2.msra.mxu0 0.0
    %3074 = vmatprep.mubr.f32.mxu0 0.0
    %3075 = vmatmul.mubr.f32.gmra.mxu0 %v3008
    %v3076 = vpop.f32.mrf.mxu0
    %v3077 = vadd.f32 0.0, %v3076
    %v3078 = vpop.f32.mrf.mxu0
    %3079 = vdwg.mxu0
    %v3080 = vadd.f32 %v3007, %v3077
    %v3081 = vxor.u32 %v3080, 2147483648
    %v3082 = vmul.f32 %v3081, 1.442695
    %v3083 = vpow.pop %v3082
    %v3084 = vadd.f32 %v3083, 1.0
    %v3085 = vrcp.pop %v3084
    %v3086 = vmul.f32 1.0, %v3085
    %v3087 = vtanh.pop %v3080
    %v3088 = vmul.f32 %v3086, %v2993
    %3090 = vrot.lane.b32.xlu0 %v3087, 32
    %v3091 = vpop.permute.xlu0 %3090
    %v3093 = vmul.f32 %v3086, %v3091
    %3095 = vrot.lane.b32.xlu0 %v3093, 64
    %v3096 = vpop.permute.xlu0 %3095
    %v3098 = vadd.f32 %v3088, %v3096
    %v3099 = vtanh.pop %v3098
    %3101 = vrot.lane.b32.xlu0 %v3099, 96
    %v3102 = vpop.permute.xlu0 %3101
    %v3104 = vmul.f32 %v3086, %v3102
    %3106 = vrot.lane.b32.xlu0 %v3104, 96
    %v3107 = vpop.permute.xlu0 %3106
    %s3109 = scalar_lea.vmem [#allocation3], 200
    %3110 = vst.msk [vmem:[%s3109] sm:$0xff] %vm484, %v3107
    %s3111 = scalar_lea.vmem [#allocation2], 200
    %v3112 = vld [vmem:[%s3111] sm:$0xff]
    %v3113 = vsel %vm484, %v3107, 0
    %3115 = vmatprep.subr.mxu0 0.0
    %3116 = vmatpush1.msra.mxu0 0.0
    %3117 = vmatprep.subr.mxu0 0.0
    %3118 = vmatpush1.msra.mxu0 0.0
    %3119 = vmatprep.subr.mxu0 0.0
    %3120 = vmatpush1.msra.mxu0 0.0
    %3121 = vmatprep.subr.mxu0 0.0
    %3122 = vmatpush1.msra.mxu0 0.0
    %3123 = vmatprep.subr.mxu0 0.0
    %3124 = vmatpush1.msra.mxu0 0.0
    %3125 = vmatprep.subr.mxu0 0.0
    %3126 = vmatpush1.msra.mxu0 0.0
    %3127 = vmatprep.subr.mxu0 0.0
    %3128 = vmatpush1.msra.mxu0 0.0
    %3129 = vmatprep.subr.mxu0 0.0
    %3130 = vmatpush1.msra.mxu0 0.0
    %3131 = vmatprep.subr.mxu0 0.0
    %3132 = vmatpush1.msra.mxu0 0.0
    %3133 = vmatprep.subr.mxu0 0.0
    %3134 = vmatpush1.msra.mxu0 0.0
    %3135 = vmatprep.subr.mxu0 0.0
    %3136 = vmatpush1.msra.mxu0 0.0
    %3137 = vmatprep.subr.mxu0 0.0
    %3138 = vmatpush1.msra.mxu0 0.0
    %3139 = vmatprep.subr.mxu0 0.0
    %3140 = vmatpush1.msra.mxu0 %v483
    %3141 = vmatprep.subr.mxu0 0.0
    %3142 = vmatpush1.msra.mxu0 %v482
    %3143 = vmatprep.subr.mxu0 0.0
    %3144 = vmatpush1.msra.mxu0 %v481
    %3145 = vmatprep.subr.mxu0 0.0
    %3146 = vmatpush1.msra.mxu0 %v480
    %3147 = vmatprep.subr.mxu0 0.0
    %3148 = vmatpush2.msra.mxu0 0.0
    %3149 = vmatprep.subr.mxu0 0.0
    %3150 = vmatpush2.msra.mxu0 0.0
    %3151 = vmatprep.subr.mxu0 0.0
    %3152 = vmatpush2.msra.mxu0 0.0
    %3153 = vmatprep.subr.mxu0 0.0
    %3154 = vmatpush2.msra.mxu0 0.0
    %3155 = vmatprep.subr.mxu0 0.0
    %3156 = vmatpush2.msra.mxu0 0.0
    %3157 = vmatprep.subr.mxu0 0.0
    %3158 = vmatpush2.msra.mxu0 0.0
    %3159 = vmatprep.subr.mxu0 0.0
    %3160 = vmatpush2.msra.mxu0 0.0
    %3161 = vmatprep.subr.mxu0 0.0
    %3162 = vmatpush2.msra.mxu0 0.0
    %3163 = vmatprep.subr.mxu0 0.0
    %3164 = vmatpush2.msra.mxu0 0.0
    %3165 = vmatprep.subr.mxu0 0.0
    %3166 = vmatpush2.msra.mxu0 0.0
    %3167 = vmatprep.subr.mxu0 0.0
    %3168 = vmatpush2.msra.mxu0 0.0
    %3169 = vmatprep.subr.mxu0 0.0
    %3170 = vmatpush2.msra.mxu0 0.0
    %3171 = vmatprep.subr.mxu0 0.0
    %3172 = vmatpush2.msra.mxu0 0.0
    %3173 = vmatprep.subr.mxu0 0.0
    %3174 = vmatpush2.msra.mxu0 0.0
    %3175 = vmatprep.subr.mxu0 0.0
    %3176 = vmatpush2.msra.mxu0 0.0
    %3177 = vmatprep.subr.mxu0 0.0
    %3178 = vmatpush2.msra.mxu0 0.0
    %3179 = vmatprep.mubr.f32.mxu0 0.0
    %3180 = vmatmul.mubr.f32.gmra.mxu0 %v3113
    %v3181 = vpop.f32.mrf.mxu0
    %v3182 = vadd.f32 0.0, %v3181
    %v3183 = vpop.f32.mrf.mxu0
    %3184 = vdwg.mxu0
    %v3185 = vadd.f32 %v3112, %v3182
    %v3186 = vxor.u32 %v3185, 2147483648
    %v3187 = vmul.f32 %v3186, 1.442695
    %v3188 = vpow.pop %v3187
    %v3189 = vadd.f32 %v3188, 1.0
    %v3190 = vrcp.pop %v3189
    %v3191 = vmul.f32 1.0, %v3190
    %v3192 = vtanh.pop %v3185
    %v3193 = vmul.f32 %v3191, %v3098
    %3195 = vrot.lane.b32.xlu0 %v3192, 32
    %v3196 = vpop.permute.xlu0 %3195
    %v3198 = vmul.f32 %v3191, %v3196
    %3200 = vrot.lane.b32.xlu0 %v3198, 64
    %v3201 = vpop.permute.xlu0 %3200
    %v3203 = vadd.f32 %v3193, %v3201
    %v3204 = vtanh.pop %v3203
    %3206 = vrot.lane.b32.xlu0 %v3204, 96
    %v3207 = vpop.permute.xlu0 %3206
    %v3209 = vmul.f32 %v3191, %v3207
    %3211 = vrot.lane.b32.xlu0 %v3209, 96
    %v3212 = vpop.permute.xlu0 %3211
    %s3214 = scalar_lea.vmem [#allocation3], 208
    %3215 = vst.msk [vmem:[%s3214] sm:$0xff] %vm484, %v3212
    %s3216 = scalar_lea.vmem [#allocation2], 208
    %v3217 = vld [vmem:[%s3216] sm:$0xff]
    %v3218 = vsel %vm484, %v3212, 0
    %3220 = vmatprep.subr.mxu0 0.0
    %3221 = vmatpush1.msra.mxu0 0.0
    %3222 = vmatprep.subr.mxu0 0.0
    %3223 = vmatpush1.msra.mxu0 0.0
    %3224 = vmatprep.subr.mxu0 0.0
    %3225 = vmatpush1.msra.mxu0 0.0
    %3226 = vmatprep.subr.mxu0 0.0
    %3227 = vmatpush1.msra.mxu0 0.0
    %3228 = vmatprep.subr.mxu0 0.0
    %3229 = vmatpush1.msra.mxu0 0.0
    %3230 = vmatprep.subr.mxu0 0.0
    %3231 = vmatpush1.msra.mxu0 0.0
    %3232 = vmatprep.subr.mxu0 0.0
    %3233 = vmatpush1.msra.mxu0 0.0
    %3234 = vmatprep.subr.mxu0 0.0
    %3235 = vmatpush1.msra.mxu0 0.0
    %3236 = vmatprep.subr.mxu0 0.0
    %3237 = vmatpush1.msra.mxu0 0.0
    %3238 = vmatprep.subr.mxu0 0.0
    %3239 = vmatpush1.msra.mxu0 0.0
    %3240 = vmatprep.subr.mxu0 0.0
    %3241 = vmatpush1.msra.mxu0 0.0
    %3242 = vmatprep.subr.mxu0 0.0
    %3243 = vmatpush1.msra.mxu0 0.0
    %3244 = vmatprep.subr.mxu0 0.0
    %3245 = vmatpush1.msra.mxu0 %v483
    %3246 = vmatprep.subr.mxu0 0.0
    %3247 = vmatpush1.msra.mxu0 %v482
    %3248 = vmatprep.subr.mxu0 0.0
    %3249 = vmatpush1.msra.mxu0 %v481
    %3250 = vmatprep.subr.mxu0 0.0
    %3251 = vmatpush1.msra.mxu0 %v480
    %3252 = vmatprep.subr.mxu0 0.0
    %3253 = vmatpush2.msra.mxu0 0.0
    %3254 = vmatprep.subr.mxu0 0.0
    %3255 = vmatpush2.msra.mxu0 0.0
    %3256 = vmatprep.subr.mxu0 0.0
    %3257 = vmatpush2.msra.mxu0 0.0
    %3258 = vmatprep.subr.mxu0 0.0
    %3259 = vmatpush2.msra.mxu0 0.0
    %3260 = vmatprep.subr.mxu0 0.0
    %3261 = vmatpush2.msra.mxu0 0.0
    %3262 = vmatprep.subr.mxu0 0.0
    %3263 = vmatpush2.msra.mxu0 0.0
    %3264 = vmatprep.subr.mxu0 0.0
    %3265 = vmatpush2.msra.mxu0 0.0
    %3266 = vmatprep.subr.mxu0 0.0
    %3267 = vmatpush2.msra.mxu0 0.0
    %3268 = vmatprep.subr.mxu0 0.0
    %3269 = vmatpush2.msra.mxu0 0.0
    %3270 = vmatprep.subr.mxu0 0.0
    %3271 = vmatpush2.msra.mxu0 0.0
    %3272 = vmatprep.subr.mxu0 0.0
    %3273 = vmatpush2.msra.mxu0 0.0
    %3274 = vmatprep.subr.mxu0 0.0
    %3275 = vmatpush2.msra.mxu0 0.0
    %3276 = vmatprep.subr.mxu0 0.0
    %3277 = vmatpush2.msra.mxu0 0.0
    %3278 = vmatprep.subr.mxu0 0.0
    %3279 = vmatpush2.msra.mxu0 0.0
    %3280 = vmatprep.subr.mxu0 0.0
    %3281 = vmatpush2.msra.mxu0 0.0
    %3282 = vmatprep.subr.mxu0 0.0
    %3283 = vmatpush2.msra.mxu0 0.0
    %3284 = vmatprep.mubr.f32.mxu0 0.0
    %3285 = vmatmul.mubr.f32.gmra.mxu0 %v3218
    %v3286 = vpop.f32.mrf.mxu0
    %v3287 = vadd.f32 0.0, %v3286
    %v3288 = vpop.f32.mrf.mxu0
    %3289 = vdwg.mxu0
    %v3290 = vadd.f32 %v3217, %v3287
    %v3291 = vxor.u32 %v3290, 2147483648
    %v3292 = vmul.f32 %v3291, 1.442695
    %v3293 = vpow.pop %v3292
    %v3294 = vadd.f32 %v3293, 1.0
    %v3295 = vrcp.pop %v3294
    %v3296 = vmul.f32 1.0, %v3295
    %v3297 = vtanh.pop %v3290
    %v3298 = vmul.f32 %v3296, %v3203
    %3300 = vrot.lane.b32.xlu0 %v3297, 32
    %v3301 = vpop.permute.xlu0 %3300
    %v3303 = vmul.f32 %v3296, %v3301
    %3305 = vrot.lane.b32.xlu0 %v3303, 64
    %v3306 = vpop.permute.xlu0 %3305
    %v3308 = vadd.f32 %v3298, %v3306
    %v3309 = vtanh.pop %v3308
    %3311 = vrot.lane.b32.xlu0 %v3309, 96
    %v3312 = vpop.permute.xlu0 %3311
    %v3314 = vmul.f32 %v3296, %v3312
    %3316 = vrot.lane.b32.xlu0 %v3314, 96
    %v3317 = vpop.permute.xlu0 %3316
    %s3319 = scalar_lea.vmem [#allocation3], 216
    %3320 = vst.msk [vmem:[%s3319] sm:$0xff] %vm484, %v3317
    %s3321 = scalar_lea.vmem [#allocation2], 216
    %v3322 = vld [vmem:[%s3321] sm:$0xff]
    %v3323 = vsel %vm484, %v3317, 0
    %3325 = vmatprep.subr.mxu0 0.0
    %3326 = vmatpush1.msra.mxu0 0.0
    %3327 = vmatprep.subr.mxu0 0.0
    %3328 = vmatpush1.msra.mxu0 0.0
    %3329 = vmatprep.subr.mxu0 0.0
    %3330 = vmatpush1.msra.mxu0 0.0
    %3331 = vmatprep.subr.mxu0 0.0
    %3332 = vmatpush1.msra.mxu0 0.0
    %3333 = vmatprep.subr.mxu0 0.0
    %3334 = vmatpush1.msra.mxu0 0.0
    %3335 = vmatprep.subr.mxu0 0.0
    %3336 = vmatpush1.msra.mxu0 0.0
    %3337 = vmatprep.subr.mxu0 0.0
    %3338 = vmatpush1.msra.mxu0 0.0
    %3339 = vmatprep.subr.mxu0 0.0
    %3340 = vmatpush1.msra.mxu0 0.0
    %3341 = vmatprep.subr.mxu0 0.0
    %3342 = vmatpush1.msra.mxu0 0.0
    %3343 = vmatprep.subr.mxu0 0.0
    %3344 = vmatpush1.msra.mxu0 0.0
    %3345 = vmatprep.subr.mxu0 0.0
    %3346 = vmatpush1.msra.mxu0 0.0
    %3347 = vmatprep.subr.mxu0 0.0
    %3348 = vmatpush1.msra.mxu0 0.0
    %3349 = vmatprep.subr.mxu0 0.0
    %3350 = vmatpush1.msra.mxu0 %v483
    %3351 = vmatprep.subr.mxu0 0.0
    %3352 = vmatpush1.msra.mxu0 %v482
    %3353 = vmatprep.subr.mxu0 0.0
    %3354 = vmatpush1.msra.mxu0 %v481
    %3355 = vmatprep.subr.mxu0 0.0
    %3356 = vmatpush1.msra.mxu0 %v480
    %3357 = vmatprep.subr.mxu0 0.0
    %3358 = vmatpush2.msra.mxu0 0.0
    %3359 = vmatprep.subr.mxu0 0.0
    %3360 = vmatpush2.msra.mxu0 0.0
    %3361 = vmatprep.subr.mxu0 0.0
    %3362 = vmatpush2.msra.mxu0 0.0
    %3363 = vmatprep.subr.mxu0 0.0
    %3364 = vmatpush2.msra.mxu0 0.0
    %3365 = vmatprep.subr.mxu0 0.0
    %3366 = vmatpush2.msra.mxu0 0.0
    %3367 = vmatprep.subr.mxu0 0.0
    %3368 = vmatpush2.msra.mxu0 0.0
    %3369 = vmatprep.subr.mxu0 0.0
    %3370 = vmatpush2.msra.mxu0 0.0
    %3371 = vmatprep.subr.mxu0 0.0
    %3372 = vmatpush2.msra.mxu0 0.0
    %3373 = vmatprep.subr.mxu0 0.0
    %3374 = vmatpush2.msra.mxu0 0.0
    %3375 = vmatprep.subr.mxu0 0.0
    %3376 = vmatpush2.msra.mxu0 0.0
    %3377 = vmatprep.subr.mxu0 0.0
    %3378 = vmatpush2.msra.mxu0 0.0
    %3379 = vmatprep.subr.mxu0 0.0
    %3380 = vmatpush2.msra.mxu0 0.0
    %3381 = vmatprep.subr.mxu0 0.0
    %3382 = vmatpush2.msra.mxu0 0.0
    %3383 = vmatprep.subr.mxu0 0.0
    %3384 = vmatpush2.msra.mxu0 0.0
    %3385 = vmatprep.subr.mxu0 0.0
    %3386 = vmatpush2.msra.mxu0 0.0
    %3387 = vmatprep.subr.mxu0 0.0
    %3388 = vmatpush2.msra.mxu0 0.0
    %3389 = vmatprep.mubr.f32.mxu0 0.0
    %3390 = vmatmul.mubr.f32.gmra.mxu0 %v3323
    %v3391 = vpop.f32.mrf.mxu0
    %v3392 = vadd.f32 0.0, %v3391
    %v3393 = vpop.f32.mrf.mxu0
    %3394 = vdwg.mxu0
    %v3395 = vadd.f32 %v3322, %v3392
    %v3396 = vxor.u32 %v3395, 2147483648
    %v3397 = vmul.f32 %v3396, 1.442695
    %v3398 = vpow.pop %v3397
    %v3399 = vadd.f32 %v3398, 1.0
    %v3400 = vrcp.pop %v3399
    %v3401 = vmul.f32 1.0, %v3400
    %v3402 = vtanh.pop %v3395
    %v3403 = vmul.f32 %v3401, %v3308
    %3405 = vrot.lane.b32.xlu0 %v3402, 32
    %v3406 = vpop.permute.xlu0 %3405
    %v3408 = vmul.f32 %v3401, %v3406
    %3410 = vrot.lane.b32.xlu0 %v3408, 64
    %v3411 = vpop.permute.xlu0 %3410
    %v3413 = vadd.f32 %v3403, %v3411
    %v3414 = vtanh.pop %v3413
    %3416 = vrot.lane.b32.xlu0 %v3414, 96
    %v3417 = vpop.permute.xlu0 %3416
    %v3419 = vmul.f32 %v3401, %v3417
    %3421 = vrot.lane.b32.xlu0 %v3419, 96
    %v3422 = vpop.permute.xlu0 %3421
    %s3424 = scalar_lea.vmem [#allocation3], 224
    %3425 = vst.msk [vmem:[%s3424] sm:$0xff] %vm484, %v3422
    %s3426 = scalar_lea.vmem [#allocation2], 224
    %v3427 = vld [vmem:[%s3426] sm:$0xff]
    %v3428 = vsel %vm484, %v3422, 0
    %3430 = vmatprep.subr.mxu0 0.0
    %3431 = vmatpush1.msra.mxu0 0.0
    %3432 = vmatprep.subr.mxu0 0.0
    %3433 = vmatpush1.msra.mxu0 0.0
    %3434 = vmatprep.subr.mxu0 0.0
    %3435 = vmatpush1.msra.mxu0 0.0
    %3436 = vmatprep.subr.mxu0 0.0
    %3437 = vmatpush1.msra.mxu0 0.0
    %3438 = vmatprep.subr.mxu0 0.0
    %3439 = vmatpush1.msra.mxu0 0.0
    %3440 = vmatprep.subr.mxu0 0.0
    %3441 = vmatpush1.msra.mxu0 0.0
    %3442 = vmatprep.subr.mxu0 0.0
    %3443 = vmatpush1.msra.mxu0 0.0
    %3444 = vmatprep.subr.mxu0 0.0
    %3445 = vmatpush1.msra.mxu0 0.0
    %3446 = vmatprep.subr.mxu0 0.0
    %3447 = vmatpush1.msra.mxu0 0.0
    %3448 = vmatprep.subr.mxu0 0.0
    %3449 = vmatpush1.msra.mxu0 0.0
    %3450 = vmatprep.subr.mxu0 0.0
    %3451 = vmatpush1.msra.mxu0 0.0
    %3452 = vmatprep.subr.mxu0 0.0
    %3453 = vmatpush1.msra.mxu0 0.0
    %3454 = vmatprep.subr.mxu0 0.0
    %3455 = vmatpush1.msra.mxu0 %v483
    %3456 = vmatprep.subr.mxu0 0.0
    %3457 = vmatpush1.msra.mxu0 %v482
    %3458 = vmatprep.subr.mxu0 0.0
    %3459 = vmatpush1.msra.mxu0 %v481
    %3460 = vmatprep.subr.mxu0 0.0
    %3461 = vmatpush1.msra.mxu0 %v480
    %3462 = vmatprep.subr.mxu0 0.0
    %3463 = vmatpush2.msra.mxu0 0.0
    %3464 = vmatprep.subr.mxu0 0.0
    %3465 = vmatpush2.msra.mxu0 0.0
    %3466 = vmatprep.subr.mxu0 0.0
    %3467 = vmatpush2.msra.mxu0 0.0
    %3468 = vmatprep.subr.mxu0 0.0
    %3469 = vmatpush2.msra.mxu0 0.0
    %3470 = vmatprep.subr.mxu0 0.0
    %3471 = vmatpush2.msra.mxu0 0.0
    %3472 = vmatprep.subr.mxu0 0.0
    %3473 = vmatpush2.msra.mxu0 0.0
    %3474 = vmatprep.subr.mxu0 0.0
    %3475 = vmatpush2.msra.mxu0 0.0
    %3476 = vmatprep.subr.mxu0 0.0
    %3477 = vmatpush2.msra.mxu0 0.0
    %3478 = vmatprep.subr.mxu0 0.0
    %3479 = vmatpush2.msra.mxu0 0.0
    %3480 = vmatprep.subr.mxu0 0.0
    %3481 = vmatpush2.msra.mxu0 0.0
    %3482 = vmatprep.subr.mxu0 0.0
    %3483 = vmatpush2.msra.mxu0 0.0
    %3484 = vmatprep.subr.mxu0 0.0
    %3485 = vmatpush2.msra.mxu0 0.0
    %3486 = vmatprep.subr.mxu0 0.0
    %3487 = vmatpush2.msra.mxu0 0.0
    %3488 = vmatprep.subr.mxu0 0.0
    %3489 = vmatpush2.msra.mxu0 0.0
    %3490 = vmatprep.subr.mxu0 0.0
    %3491 = vmatpush2.msra.mxu0 0.0
    %3492 = vmatprep.subr.mxu0 0.0
    %3493 = vmatpush2.msra.mxu0 0.0
    %3494 = vmatprep.mubr.f32.mxu0 0.0
    %3495 = vmatmul.mubr.f32.gmra.mxu0 %v3428
    %v3496 = vpop.f32.mrf.mxu0
    %v3497 = vadd.f32 0.0, %v3496
    %v3498 = vpop.f32.mrf.mxu0
    %3499 = vdwg.mxu0
    %v3500 = vadd.f32 %v3427, %v3497
    %v3501 = vxor.u32 %v3500, 2147483648
    %v3502 = vmul.f32 %v3501, 1.442695
    %v3503 = vpow.pop %v3502
    %v3504 = vadd.f32 %v3503, 1.0
    %v3505 = vrcp.pop %v3504
    %v3506 = vmul.f32 1.0, %v3505
    %v3507 = vtanh.pop %v3500
    %v3508 = vmul.f32 %v3506, %v3413
    %3510 = vrot.lane.b32.xlu0 %v3507, 32
    %v3511 = vpop.permute.xlu0 %3510
    %v3513 = vmul.f32 %v3506, %v3511
    %3515 = vrot.lane.b32.xlu0 %v3513, 64
    %v3516 = vpop.permute.xlu0 %3515
    %v3518 = vadd.f32 %v3508, %v3516
    %v3519 = vtanh.pop %v3518
    %3521 = vrot.lane.b32.xlu0 %v3519, 96
    %v3522 = vpop.permute.xlu0 %3521
    %v3524 = vmul.f32 %v3506, %v3522
    %3526 = vrot.lane.b32.xlu0 %v3524, 96
    %v3527 = vpop.permute.xlu0 %3526
    %s3529 = scalar_lea.vmem [#allocation3], 232
    %3530 = vst.msk [vmem:[%s3529] sm:$0xff] %vm484, %v3527
    %s3531 = scalar_lea.vmem [#allocation2], 232
    %v3532 = vld [vmem:[%s3531] sm:$0xff]
    %v3533 = vsel %vm484, %v3527, 0
    %3535 = vmatprep.subr.mxu0 0.0
    %3536 = vmatpush1.msra.mxu0 0.0
    %3537 = vmatprep.subr.mxu0 0.0
    %3538 = vmatpush1.msra.mxu0 0.0
    %3539 = vmatprep.subr.mxu0 0.0
    %3540 = vmatpush1.msra.mxu0 0.0
    %3541 = vmatprep.subr.mxu0 0.0
    %3542 = vmatpush1.msra.mxu0 0.0
    %3543 = vmatprep.subr.mxu0 0.0
    %3544 = vmatpush1.msra.mxu0 0.0
    %3545 = vmatprep.subr.mxu0 0.0
    %3546 = vmatpush1.msra.mxu0 0.0
    %3547 = vmatprep.subr.mxu0 0.0
    %3548 = vmatpush1.msra.mxu0 0.0
    %3549 = vmatprep.subr.mxu0 0.0
    %3550 = vmatpush1.msra.mxu0 0.0
    %3551 = vmatprep.subr.mxu0 0.0
    %3552 = vmatpush1.msra.mxu0 0.0
    %3553 = vmatprep.subr.mxu0 0.0
    %3554 = vmatpush1.msra.mxu0 0.0
    %3555 = vmatprep.subr.mxu0 0.0
    %3556 = vmatpush1.msra.mxu0 0.0
    %3557 = vmatprep.subr.mxu0 0.0
    %3558 = vmatpush1.msra.mxu0 0.0
    %3559 = vmatprep.subr.mxu0 0.0
    %3560 = vmatpush1.msra.mxu0 %v483
    %3561 = vmatprep.subr.mxu0 0.0
    %3562 = vmatpush1.msra.mxu0 %v482
    %3563 = vmatprep.subr.mxu0 0.0
    %3564 = vmatpush1.msra.mxu0 %v481
    %3565 = vmatprep.subr.mxu0 0.0
    %3566 = vmatpush1.msra.mxu0 %v480
    %3567 = vmatprep.subr.mxu0 0.0
    %3568 = vmatpush2.msra.mxu0 0.0
    %3569 = vmatprep.subr.mxu0 0.0
    %3570 = vmatpush2.msra.mxu0 0.0
    %3571 = vmatprep.subr.mxu0 0.0
    %3572 = vmatpush2.msra.mxu0 0.0
    %3573 = vmatprep.subr.mxu0 0.0
    %3574 = vmatpush2.msra.mxu0 0.0
    %3575 = vmatprep.subr.mxu0 0.0
    %3576 = vmatpush2.msra.mxu0 0.0
    %3577 = vmatprep.subr.mxu0 0.0
    %3578 = vmatpush2.msra.mxu0 0.0
    %3579 = vmatprep.subr.mxu0 0.0
    %3580 = vmatpush2.msra.mxu0 0.0
    %3581 = vmatprep.subr.mxu0 0.0
    %3582 = vmatpush2.msra.mxu0 0.0
    %3583 = vmatprep.subr.mxu0 0.0
    %3584 = vmatpush2.msra.mxu0 0.0
    %3585 = vmatprep.subr.mxu0 0.0
    %3586 = vmatpush2.msra.mxu0 0.0
    %3587 = vmatprep.subr.mxu0 0.0
    %3588 = vmatpush2.msra.mxu0 0.0
    %3589 = vmatprep.subr.mxu0 0.0
    %3590 = vmatpush2.msra.mxu0 0.0
    %3591 = vmatprep.subr.mxu0 0.0
    %3592 = vmatpush2.msra.mxu0 0.0
    %3593 = vmatprep.subr.mxu0 0.0
    %3594 = vmatpush2.msra.mxu0 0.0
    %3595 = vmatprep.subr.mxu0 0.0
    %3596 = vmatpush2.msra.mxu0 0.0
    %3597 = vmatprep.subr.mxu0 0.0
    %3598 = vmatpush2.msra.mxu0 0.0
    %3599 = vmatprep.mubr.f32.mxu0 0.0
    %3600 = vmatmul.mubr.f32.gmra.mxu0 %v3533
    %v3601 = vpop.f32.mrf.mxu0
    %v3602 = vadd.f32 0.0, %v3601
    %v3603 = vpop.f32.mrf.mxu0
    %3604 = vdwg.mxu0
    %v3605 = vadd.f32 %v3532, %v3602
    %v3606 = vxor.u32 %v3605, 2147483648
    %v3607 = vmul.f32 %v3606, 1.442695
    %v3608 = vpow.pop %v3607
    %v3609 = vadd.f32 %v3608, 1.0
    %v3610 = vrcp.pop %v3609
    %v3611 = vmul.f32 1.0, %v3610
    %v3612 = vtanh.pop %v3605
    %v3613 = vmul.f32 %v3611, %v3518
    %3615 = vrot.lane.b32.xlu0 %v3612, 32
    %v3616 = vpop.permute.xlu0 %3615
    %v3618 = vmul.f32 %v3611, %v3616
    %3620 = vrot.lane.b32.xlu0 %v3618, 64
    %v3621 = vpop.permute.xlu0 %3620
    %v3623 = vadd.f32 %v3613, %v3621
    %v3624 = vtanh.pop %v3623
    %3626 = vrot.lane.b32.xlu0 %v3624, 96
    %v3627 = vpop.permute.xlu0 %3626
    %v3629 = vmul.f32 %v3611, %v3627
    %3631 = vrot.lane.b32.xlu0 %v3629, 96
    %v3632 = vpop.permute.xlu0 %3631
    %s3634 = scalar_lea.vmem [#allocation3], 240
    %3635 = vst.msk [vmem:[%s3634] sm:$0xff] %vm484, %v3632
    %s3636 = scalar_lea.vmem [#allocation2], 240
    %v3637 = vld [vmem:[%s3636] sm:$0xff]
    %v3638 = vsel %vm484, %v3632, 0
    %3640 = vmatprep.subr.mxu0 0.0
    %3641 = vmatpush1.msra.mxu0 0.0
    %3642 = vmatprep.subr.mxu0 0.0
    %3643 = vmatpush1.msra.mxu0 0.0
    %3644 = vmatprep.subr.mxu0 0.0
    %3645 = vmatpush1.msra.mxu0 0.0
    %3646 = vmatprep.subr.mxu0 0.0
    %3647 = vmatpush1.msra.mxu0 0.0
    %3648 = vmatprep.subr.mxu0 0.0
    %3649 = vmatpush1.msra.mxu0 0.0
    %3650 = vmatprep.subr.mxu0 0.0
    %3651 = vmatpush1.msra.mxu0 0.0
    %3652 = vmatprep.subr.mxu0 0.0
    %3653 = vmatpush1.msra.mxu0 0.0
    %3654 = vmatprep.subr.mxu0 0.0
    %3655 = vmatpush1.msra.mxu0 0.0
    %3656 = vmatprep.subr.mxu0 0.0
    %3657 = vmatpush1.msra.mxu0 0.0
    %3658 = vmatprep.subr.mxu0 0.0
    %3659 = vmatpush1.msra.mxu0 0.0
    %3660 = vmatprep.subr.mxu0 0.0
    %3661 = vmatpush1.msra.mxu0 0.0
    %3662 = vmatprep.subr.mxu0 0.0
    %3663 = vmatpush1.msra.mxu0 0.0
    %3664 = vmatprep.subr.mxu0 0.0
    %3665 = vmatpush1.msra.mxu0 %v483
    %3666 = vmatprep.subr.mxu0 0.0
    %3667 = vmatpush1.msra.mxu0 %v482
    %3668 = vmatprep.subr.mxu0 0.0
    %3669 = vmatpush1.msra.mxu0 %v481
    %3670 = vmatprep.subr.mxu0 0.0
    %3671 = vmatpush1.msra.mxu0 %v480
    %3672 = vmatprep.subr.mxu0 0.0
    %3673 = vmatpush2.msra.mxu0 0.0
    %3674 = vmatprep.subr.mxu0 0.0
    %3675 = vmatpush2.msra.mxu0 0.0
    %3676 = vmatprep.subr.mxu0 0.0
    %3677 = vmatpush2.msra.mxu0 0.0
    %3678 = vmatprep.subr.mxu0 0.0
    %3679 = vmatpush2.msra.mxu0 0.0
    %3680 = vmatprep.subr.mxu0 0.0
    %3681 = vmatpush2.msra.mxu0 0.0
    %3682 = vmatprep.subr.mxu0 0.0
    %3683 = vmatpush2.msra.mxu0 0.0
    %3684 = vmatprep.subr.mxu0 0.0
    %3685 = vmatpush2.msra.mxu0 0.0
    %3686 = vmatprep.subr.mxu0 0.0
    %3687 = vmatpush2.msra.mxu0 0.0
    %3688 = vmatprep.subr.mxu0 0.0
    %3689 = vmatpush2.msra.mxu0 0.0
    %3690 = vmatprep.subr.mxu0 0.0
    %3691 = vmatpush2.msra.mxu0 0.0
    %3692 = vmatprep.subr.mxu0 0.0
    %3693 = vmatpush2.msra.mxu0 0.0
    %3694 = vmatprep.subr.mxu0 0.0
    %3695 = vmatpush2.msra.mxu0 0.0
    %3696 = vmatprep.subr.mxu0 0.0
    %3697 = vmatpush2.msra.mxu0 0.0
    %3698 = vmatprep.subr.mxu0 0.0
    %3699 = vmatpush2.msra.mxu0 0.0
    %3700 = vmatprep.subr.mxu0 0.0
    %3701 = vmatpush2.msra.mxu0 0.0
    %3702 = vmatprep.subr.mxu0 0.0
    %3703 = vmatpush2.msra.mxu0 0.0
    %3704 = vmatprep.mubr.f32.mxu0 0.0
    %3705 = vmatmul.mubr.f32.gmra.mxu0 %v3638
    %v3706 = vpop.f32.mrf.mxu0
    %v3707 = vadd.f32 0.0, %v3706
    %v3708 = vpop.f32.mrf.mxu0
    %3709 = vdwg.mxu0
    %v3710 = vadd.f32 %v3637, %v3707
    %v3711 = vxor.u32 %v3710, 2147483648
    %v3712 = vmul.f32 %v3711, 1.442695
    %v3713 = vpow.pop %v3712
    %v3714 = vadd.f32 %v3713, 1.0
    %v3715 = vrcp.pop %v3714
    %v3716 = vmul.f32 1.0, %v3715
    %v3717 = vtanh.pop %v3710
    %v3718 = vmul.f32 %v3716, %v3623
    %3720 = vrot.lane.b32.xlu0 %v3717, 32
    %v3721 = vpop.permute.xlu0 %3720
    %v3723 = vmul.f32 %v3716, %v3721
    %3725 = vrot.lane.b32.xlu0 %v3723, 64
    %v3726 = vpop.permute.xlu0 %3725
    %v3728 = vadd.f32 %v3718, %v3726
    %v3729 = vtanh.pop %v3728
    %3731 = vrot.lane.b32.xlu0 %v3729, 96
    %v3732 = vpop.permute.xlu0 %3731
    %v3734 = vmul.f32 %v3716, %v3732
    %3736 = vrot.lane.b32.xlu0 %v3734, 96
    %v3737 = vpop.permute.xlu0 %3736
    %s3739 = scalar_lea.vmem [#allocation3], 248
    %3740 = vst.msk [vmem:[%s3739] sm:$0xff] %vm484, %v3737
    %s3741 = scalar_lea.vmem [#allocation2], 248
    %v3742 = vld [vmem:[%s3741] sm:$0xff]
    %v3743 = vsel %vm484, %v3737, 0
    %3745 = vmatprep.subr.mxu0 0.0
    %3746 = vmatpush1.msra.mxu0 0.0
    %3747 = vmatprep.subr.mxu0 0.0
    %3748 = vmatpush1.msra.mxu0 0.0
    %3749 = vmatprep.subr.mxu0 0.0
    %3750 = vmatpush1.msra.mxu0 0.0
    %3751 = vmatprep.subr.mxu0 0.0
    %3752 = vmatpush1.msra.mxu0 0.0
    %3753 = vmatprep.subr.mxu0 0.0
    %3754 = vmatpush1.msra.mxu0 0.0
    %3755 = vmatprep.subr.mxu0 0.0
    %3756 = vmatpush1.msra.mxu0 0.0
    %3757 = vmatprep.subr.mxu0 0.0
    %3758 = vmatpush1.msra.mxu0 0.0
    %3759 = vmatprep.subr.mxu0 0.0
    %3760 = vmatpush1.msra.mxu0 0.0
    %3761 = vmatprep.subr.mxu0 0.0
    %3762 = vmatpush1.msra.mxu0 0.0
    %3763 = vmatprep.subr.mxu0 0.0
    %3764 = vmatpush1.msra.mxu0 0.0
    %3765 = vmatprep.subr.mxu0 0.0
    %3766 = vmatpush1.msra.mxu0 0.0
    %3767 = vmatprep.subr.mxu0 0.0
    %3768 = vmatpush1.msra.mxu0 0.0
    %3769 = vmatprep.subr.mxu0 0.0
    %3770 = vmatpush1.msra.mxu0 %v483
    %3771 = vmatprep.subr.mxu0 0.0
    %3772 = vmatpush1.msra.mxu0 %v482
    %3773 = vmatprep.subr.mxu0 0.0
    %3774 = vmatpush1.msra.mxu0 %v481
    %3775 = vmatprep.subr.mxu0 0.0
    %3776 = vmatpush1.msra.mxu0 %v480
    %3777 = vmatprep.subr.mxu0 0.0
    %3778 = vmatpush2.msra.mxu0 0.0
    %3779 = vmatprep.subr.mxu0 0.0
    %3780 = vmatpush2.msra.mxu0 0.0
    %3781 = vmatprep.subr.mxu0 0.0
    %3782 = vmatpush2.msra.mxu0 0.0
    %3783 = vmatprep.subr.mxu0 0.0
    %3784 = vmatpush2.msra.mxu0 0.0
    %3785 = vmatprep.subr.mxu0 0.0
    %3786 = vmatpush2.msra.mxu0 0.0
    %3787 = vmatprep.subr.mxu0 0.0
    %3788 = vmatpush2.msra.mxu0 0.0
    %3789 = vmatprep.subr.mxu0 0.0
    %3790 = vmatpush2.msra.mxu0 0.0
    %3791 = vmatprep.subr.mxu0 0.0
    %3792 = vmatpush2.msra.mxu0 0.0
    %3793 = vmatprep.subr.mxu0 0.0
    %3794 = vmatpush2.msra.mxu0 0.0
    %3795 = vmatprep.subr.mxu0 0.0
    %3796 = vmatpush2.msra.mxu0 0.0
    %3797 = vmatprep.subr.mxu0 0.0
    %3798 = vmatpush2.msra.mxu0 0.0
    %3799 = vmatprep.subr.mxu0 0.0
    %3800 = vmatpush2.msra.mxu0 0.0
    %3801 = vmatprep.subr.mxu0 0.0
    %3802 = vmatpush2.msra.mxu0 0.0
    %3803 = vmatprep.subr.mxu0 0.0
    %3804 = vmatpush2.msra.mxu0 0.0
    %3805 = vmatprep.subr.mxu0 0.0
    %3806 = vmatpush2.msra.mxu0 0.0
    %3807 = vmatprep.subr.mxu0 0.0
    %3808 = vmatpush2.msra.mxu0 0.0
    %3809 = vmatprep.mubr.f32.mxu0 0.0
    %3810 = vmatmul.mubr.f32.gmra.mxu0 %v3743
    %v3811 = vpop.f32.mrf.mxu0
    %v3812 = vadd.f32 0.0, %v3811
    %v3813 = vpop.f32.mrf.mxu0
    %3814 = vdwg.mxu0
    %v3815 = vadd.f32 %v3742, %v3812
    %v3816 = vxor.u32 %v3815, 2147483648
    %v3817 = vmul.f32 %v3816, 1.442695
    %v3818 = vpow.pop %v3817
    %v3819 = vadd.f32 %v3818, 1.0
    %v3820 = vrcp.pop %v3819
    %v3821 = vmul.f32 1.0, %v3820
    %v3822 = vtanh.pop %v3815
    %v3823 = vmul.f32 %v3821, %v3728
    %3825 = vrot.lane.b32.xlu0 %v3822, 32
    %v3826 = vpop.permute.xlu0 %3825
    %v3828 = vmul.f32 %v3821, %v3826
    %3830 = vrot.lane.b32.xlu0 %v3828, 64
    %v3831 = vpop.permute.xlu0 %3830
    %v3833 = vadd.f32 %v3823, %v3831
    %v3834 = vtanh.pop %v3833
    %3836 = vrot.lane.b32.xlu0 %v3834, 96
    %v3837 = vpop.permute.xlu0 %3836
    %v3839 = vmul.f32 %v3821, %v3837
    %3841 = vrot.lane.b32.xlu0 %v3839, 96
    %v3842 = vpop.permute.xlu0 %3841
    %s3844 = scalar_lea.vmem [#allocation3], 256
    %3845 = vst.msk [vmem:[%s3844] sm:$0xff] %vm484, %v3842
    %s3846 = scalar_lea.vmem [#allocation2], 256
    %v3847 = vld [vmem:[%s3846] sm:$0xff]
    %v3848 = vsel %vm484, %v3842, 0
    %3850 = vmatprep.subr.mxu0 0.0
    %3851 = vmatpush1.msra.mxu0 0.0
    %3852 = vmatprep.subr.mxu0 0.0
    %3853 = vmatpush1.msra.mxu0 0.0
    %3854 = vmatprep.subr.mxu0 0.0
    %3855 = vmatpush1.msra.mxu0 0.0
    %3856 = vmatprep.subr.mxu0 0.0
    %3857 = vmatpush1.msra.mxu0 0.0
    %3858 = vmatprep.subr.mxu0 0.0
    %3859 = vmatpush1.msra.mxu0 0.0
    %3860 = vmatprep.subr.mxu0 0.0
    %3861 = vmatpush1.msra.mxu0 0.0
    %3862 = vmatprep.subr.mxu0 0.0
    %3863 = vmatpush1.msra.mxu0 0.0
    %3864 = vmatprep.subr.mxu0 0.0
    %3865 = vmatpush1.msra.mxu0 0.0
    %3866 = vmatprep.subr.mxu0 0.0
    %3867 = vmatpush1.msra.mxu0 0.0
    %3868 = vmatprep.subr.mxu0 0.0
    %3869 = vmatpush1.msra.mxu0 0.0
    %3870 = vmatprep.subr.mxu0 0.0
    %3871 = vmatpush1.msra.mxu0 0.0
    %3872 = vmatprep.subr.mxu0 0.0
    %3873 = vmatpush1.msra.mxu0 0.0
    %3874 = vmatprep.subr.mxu0 0.0
    %3875 = vmatpush1.msra.mxu0 %v483
    %3876 = vmatprep.subr.mxu0 0.0
    %3877 = vmatpush1.msra.mxu0 %v482
    %3878 = vmatprep.subr.mxu0 0.0
    %3879 = vmatpush1.msra.mxu0 %v481
    %3880 = vmatprep.subr.mxu0 0.0
    %3881 = vmatpush1.msra.mxu0 %v480
    %3882 = vmatprep.subr.mxu0 0.0
    %3883 = vmatpush2.msra.mxu0 0.0
    %3884 = vmatprep.subr.mxu0 0.0
    %3885 = vmatpush2.msra.mxu0 0.0
    %3886 = vmatprep.subr.mxu0 0.0
    %3887 = vmatpush2.msra.mxu0 0.0
    %3888 = vmatprep.subr.mxu0 0.0
    %3889 = vmatpush2.msra.mxu0 0.0
    %3890 = vmatprep.subr.mxu0 0.0
    %3891 = vmatpush2.msra.mxu0 0.0
    %3892 = vmatprep.subr.mxu0 0.0
    %3893 = vmatpush2.msra.mxu0 0.0
    %3894 = vmatprep.subr.mxu0 0.0
    %3895 = vmatpush2.msra.mxu0 0.0
    %3896 = vmatprep.subr.mxu0 0.0
    %3897 = vmatpush2.msra.mxu0 0.0
    %3898 = vmatprep.subr.mxu0 0.0
    %3899 = vmatpush2.msra.mxu0 0.0
    %3900 = vmatprep.subr.mxu0 0.0
    %3901 = vmatpush2.msra.mxu0 0.0
    %3902 = vmatprep.subr.mxu0 0.0
    %3903 = vmatpush2.msra.mxu0 0.0
    %3904 = vmatprep.subr.mxu0 0.0
    %3905 = vmatpush2.msra.mxu0 0.0
    %3906 = vmatprep.subr.mxu0 0.0
    %3907 = vmatpush2.msra.mxu0 0.0
    %3908 = vmatprep.subr.mxu0 0.0
    %3909 = vmatpush2.msra.mxu0 0.0
    %3910 = vmatprep.subr.mxu0 0.0
    %3911 = vmatpush2.msra.mxu0 0.0
    %3912 = vmatprep.subr.mxu0 0.0
    %3913 = vmatpush2.msra.mxu0 0.0
    %3914 = vmatprep.mubr.f32.mxu0 0.0
    %3915 = vmatmul.mubr.f32.gmra.mxu0 %v3848
    %v3916 = vpop.f32.mrf.mxu0
    %v3917 = vadd.f32 0.0, %v3916
    %v3918 = vpop.f32.mrf.mxu0
    %3919 = vdwg.mxu0
    %v3920 = vadd.f32 %v3847, %v3917
    %v3921 = vxor.u32 %v3920, 2147483648
    %v3922 = vmul.f32 %v3921, 1.442695
    %v3923 = vpow.pop %v3922
    %v3924 = vadd.f32 %v3923, 1.0
    %v3925 = vrcp.pop %v3924
    %v3926 = vmul.f32 1.0, %v3925
    %v3927 = vtanh.pop %v3920
    %v3928 = vmul.f32 %v3926, %v3833
    %3930 = vrot.lane.b32.xlu0 %v3927, 32
    %v3931 = vpop.permute.xlu0 %3930
    %v3933 = vmul.f32 %v3926, %v3931
    %3935 = vrot.lane.b32.xlu0 %v3933, 64
    %v3936 = vpop.permute.xlu0 %3935
    %v3938 = vadd.f32 %v3928, %v3936
    %v3939 = vtanh.pop %v3938
    %3941 = vrot.lane.b32.xlu0 %v3939, 96
    %v3942 = vpop.permute.xlu0 %3941
    %v3944 = vmul.f32 %v3926, %v3942
    %3946 = vrot.lane.b32.xlu0 %v3944, 96
    %v3947 = vpop.permute.xlu0 %3946
    %s3949 = scalar_lea.vmem [#allocation3], 264
    %3950 = vst.msk [vmem:[%s3949] sm:$0xff] %vm484, %v3947
    %s3951 = scalar_lea.vmem [#allocation2], 264
    %v3952 = vld [vmem:[%s3951] sm:$0xff]
    %v3953 = vsel %vm484, %v3947, 0
    %3955 = vmatprep.subr.mxu0 0.0
    %3956 = vmatpush1.msra.mxu0 0.0
    %3957 = vmatprep.subr.mxu0 0.0
    %3958 = vmatpush1.msra.mxu0 0.0
    %3959 = vmatprep.subr.mxu0 0.0
    %3960 = vmatpush1.msra.mxu0 0.0
    %3961 = vmatprep.subr.mxu0 0.0
    %3962 = vmatpush1.msra.mxu0 0.0
    %3963 = vmatprep.subr.mxu0 0.0
    %3964 = vmatpush1.msra.mxu0 0.0
    %3965 = vmatprep.subr.mxu0 0.0
    %3966 = vmatpush1.msra.mxu0 0.0
    %3967 = vmatprep.subr.mxu0 0.0
    %3968 = vmatpush1.msra.mxu0 0.0
    %3969 = vmatprep.subr.mxu0 0.0
    %3970 = vmatpush1.msra.mxu0 0.0
    %3971 = vmatprep.subr.mxu0 0.0
    %3972 = vmatpush1.msra.mxu0 0.0
    %3973 = vmatprep.subr.mxu0 0.0
    %3974 = vmatpush1.msra.mxu0 0.0
    %3975 = vmatprep.subr.mxu0 0.0
    %3976 = vmatpush1.msra.mxu0 0.0
    %3977 = vmatprep.subr.mxu0 0.0
    %3978 = vmatpush1.msra.mxu0 0.0
    %3979 = vmatprep.subr.mxu0 0.0
    %3980 = vmatpush1.msra.mxu0 %v483
    %3981 = vmatprep.subr.mxu0 0.0
    %3982 = vmatpush1.msra.mxu0 %v482
    %3983 = vmatprep.subr.mxu0 0.0
    %3984 = vmatpush1.msra.mxu0 %v481
    %3985 = vmatprep.subr.mxu0 0.0
    %3986 = vmatpush1.msra.mxu0 %v480
    %3987 = vmatprep.subr.mxu0 0.0
    %3988 = vmatpush2.msra.mxu0 0.0
    %3989 = vmatprep.subr.mxu0 0.0
    %3990 = vmatpush2.msra.mxu0 0.0
    %3991 = vmatprep.subr.mxu0 0.0
    %3992 = vmatpush2.msra.mxu0 0.0
    %3993 = vmatprep.subr.mxu0 0.0
    %3994 = vmatpush2.msra.mxu0 0.0
    %3995 = vmatprep.subr.mxu0 0.0
    %3996 = vmatpush2.msra.mxu0 0.0
    %3997 = vmatprep.subr.mxu0 0.0
    %3998 = vmatpush2.msra.mxu0 0.0
    %3999 = vmatprep.subr.mxu0 0.0
    %4000 = vmatpush2.msra.mxu0 0.0
    %4001 = vmatprep.subr.mxu0 0.0
    %4002 = vmatpush2.msra.mxu0 0.0
    %4003 = vmatprep.subr.mxu0 0.0
    %4004 = vmatpush2.msra.mxu0 0.0
    %4005 = vmatprep.subr.mxu0 0.0
    %4006 = vmatpush2.msra.mxu0 0.0
    %4007 = vmatprep.subr.mxu0 0.0
    %4008 = vmatpush2.msra.mxu0 0.0
    %4009 = vmatprep.subr.mxu0 0.0
    %4010 = vmatpush2.msra.mxu0 0.0
    %4011 = vmatprep.subr.mxu0 0.0
    %4012 = vmatpush2.msra.mxu0 0.0
    %4013 = vmatprep.subr.mxu0 0.0
    %4014 = vmatpush2.msra.mxu0 0.0
    %4015 = vmatprep.subr.mxu0 0.0
    %4016 = vmatpush2.msra.mxu0 0.0
    %4017 = vmatprep.subr.mxu0 0.0
    %4018 = vmatpush2.msra.mxu0 0.0
    %4019 = vmatprep.mubr.f32.mxu0 0.0
    %4020 = vmatmul.mubr.f32.gmra.mxu0 %v3953
    %v4021 = vpop.f32.mrf.mxu0
    %v4022 = vadd.f32 0.0, %v4021
    %v4023 = vpop.f32.mrf.mxu0
    %4024 = vdwg.mxu0
    %v4025 = vadd.f32 %v3952, %v4022
    %v4026 = vxor.u32 %v4025, 2147483648
    %v4027 = vmul.f32 %v4026, 1.442695
    %v4028 = vpow.pop %v4027
    %v4029 = vadd.f32 %v4028, 1.0
    %v4030 = vrcp.pop %v4029
    %v4031 = vmul.f32 1.0, %v4030
    %v4032 = vtanh.pop %v4025
    %v4033 = vmul.f32 %v4031, %v3938
    %4035 = vrot.lane.b32.xlu0 %v4032, 32
    %v4036 = vpop.permute.xlu0 %4035
    %v4038 = vmul.f32 %v4031, %v4036
    %4040 = vrot.lane.b32.xlu0 %v4038, 64
    %v4041 = vpop.permute.xlu0 %4040
    %v4043 = vadd.f32 %v4033, %v4041
    %v4044 = vtanh.pop %v4043
    %4046 = vrot.lane.b32.xlu0 %v4044, 96
    %v4047 = vpop.permute.xlu0 %4046
    %v4049 = vmul.f32 %v4031, %v4047
    %4051 = vrot.lane.b32.xlu0 %v4049, 96
    %v4052 = vpop.permute.xlu0 %4051
    %s4054 = scalar_lea.vmem [#allocation3], 272
    %4055 = vst.msk [vmem:[%s4054] sm:$0xff] %vm484, %v4052
    %s4056 = scalar_lea.vmem [#allocation2], 272
    %v4057 = vld [vmem:[%s4056] sm:$0xff]
    %v4058 = vsel %vm484, %v4052, 0
    %4060 = vmatprep.subr.mxu0 0.0
    %4061 = vmatpush1.msra.mxu0 0.0
    %4062 = vmatprep.subr.mxu0 0.0
    %4063 = vmatpush1.msra.mxu0 0.0
    %4064 = vmatprep.subr.mxu0 0.0
    %4065 = vmatpush1.msra.mxu0 0.0
    %4066 = vmatprep.subr.mxu0 0.0
    %4067 = vmatpush1.msra.mxu0 0.0
    %4068 = vmatprep.subr.mxu0 0.0
    %4069 = vmatpush1.msra.mxu0 0.0
    %4070 = vmatprep.subr.mxu0 0.0
    %4071 = vmatpush1.msra.mxu0 0.0
    %4072 = vmatprep.subr.mxu0 0.0
    %4073 = vmatpush1.msra.mxu0 0.0
    %4074 = vmatprep.subr.mxu0 0.0
    %4075 = vmatpush1.msra.mxu0 0.0
    %4076 = vmatprep.subr.mxu0 0.0
    %4077 = vmatpush1.msra.mxu0 0.0
    %4078 = vmatprep.subr.mxu0 0.0
    %4079 = vmatpush1.msra.mxu0 0.0
    %4080 = vmatprep.subr.mxu0 0.0
    %4081 = vmatpush1.msra.mxu0 0.0
    %4082 = vmatprep.subr.mxu0 0.0
    %4083 = vmatpush1.msra.mxu0 0.0
    %4084 = vmatprep.subr.mxu0 0.0
    %4085 = vmatpush1.msra.mxu0 %v483
    %4086 = vmatprep.subr.mxu0 0.0
    %4087 = vmatpush1.msra.mxu0 %v482
    %4088 = vmatprep.subr.mxu0 0.0
    %4089 = vmatpush1.msra.mxu0 %v481
    %4090 = vmatprep.subr.mxu0 0.0
    %4091 = vmatpush1.msra.mxu0 %v480
    %4092 = vmatprep.subr.mxu0 0.0
    %4093 = vmatpush2.msra.mxu0 0.0
    %4094 = vmatprep.subr.mxu0 0.0
    %4095 = vmatpush2.msra.mxu0 0.0
    %4096 = vmatprep.subr.mxu0 0.0
    %4097 = vmatpush2.msra.mxu0 0.0
    %4098 = vmatprep.subr.mxu0 0.0
    %4099 = vmatpush2.msra.mxu0 0.0
    %4100 = vmatprep.subr.mxu0 0.0
    %4101 = vmatpush2.msra.mxu0 0.0
    %4102 = vmatprep.subr.mxu0 0.0
    %4103 = vmatpush2.msra.mxu0 0.0
    %4104 = vmatprep.subr.mxu0 0.0
    %4105 = vmatpush2.msra.mxu0 0.0
    %4106 = vmatprep.subr.mxu0 0.0
    %4107 = vmatpush2.msra.mxu0 0.0
    %4108 = vmatprep.subr.mxu0 0.0
    %4109 = vmatpush2.msra.mxu0 0.0
    %4110 = vmatprep.subr.mxu0 0.0
    %4111 = vmatpush2.msra.mxu0 0.0
    %4112 = vmatprep.subr.mxu0 0.0
    %4113 = vmatpush2.msra.mxu0 0.0
    %4114 = vmatprep.subr.mxu0 0.0
    %4115 = vmatpush2.msra.mxu0 0.0
    %4116 = vmatprep.subr.mxu0 0.0
    %4117 = vmatpush2.msra.mxu0 0.0
    %4118 = vmatprep.subr.mxu0 0.0
    %4119 = vmatpush2.msra.mxu0 0.0
    %4120 = vmatprep.subr.mxu0 0.0
    %4121 = vmatpush2.msra.mxu0 0.0
    %4122 = vmatprep.subr.mxu0 0.0
    %4123 = vmatpush2.msra.mxu0 0.0
    %4124 = vmatprep.mubr.f32.mxu0 0.0
    %4125 = vmatmul.mubr.f32.gmra.mxu0 %v4058
    %v4126 = vpop.f32.mrf.mxu0
    %v4127 = vadd.f32 0.0, %v4126
    %v4128 = vpop.f32.mrf.mxu0
    %4129 = vdwg.mxu0
    %v4130 = vadd.f32 %v4057, %v4127
    %v4131 = vxor.u32 %v4130, 2147483648
    %v4132 = vmul.f32 %v4131, 1.442695
    %v4133 = vpow.pop %v4132
    %v4134 = vadd.f32 %v4133, 1.0
    %v4135 = vrcp.pop %v4134
    %v4136 = vmul.f32 1.0, %v4135
    %v4137 = vtanh.pop %v4130
    %v4138 = vmul.f32 %v4136, %v4043
    %4140 = vrot.lane.b32.xlu0 %v4137, 32
    %v4141 = vpop.permute.xlu0 %4140
    %v4143 = vmul.f32 %v4136, %v4141
    %4145 = vrot.lane.b32.xlu0 %v4143, 64
    %v4146 = vpop.permute.xlu0 %4145
    %v4148 = vadd.f32 %v4138, %v4146
    %v4149 = vtanh.pop %v4148
    %4151 = vrot.lane.b32.xlu0 %v4149, 96
    %v4152 = vpop.permute.xlu0 %4151
    %v4154 = vmul.f32 %v4136, %v4152
    %4156 = vrot.lane.b32.xlu0 %v4154, 96
    %v4157 = vpop.permute.xlu0 %4156
    %s4159 = scalar_lea.vmem [#allocation3], 280
    %4160 = vst.msk [vmem:[%s4159] sm:$0xff] %vm484, %v4157
    %v4161 = vld [vmem:[%s0] sm:$0xff]
    %v4162 = vld [vmem:[%s0 + $0x8] sm:$0xff]
    %v4163 = vld [vmem:[%s0 + $0x10] sm:$0xff]
    %v4164 = vld [vmem:[%s0 + $0x18] sm:$0xff]
    %v4165 = vld [vmem:[%s0 + $0x20] sm:$0xff]
    %v4166 = vld [vmem:[%s0 + $0x28] sm:$0xff]
    %v4167 = vld [vmem:[%s0 + $0x30] sm:$0xff]
    %v4168 = vld [vmem:[%s0 + $0x38] sm:$0xff]
    %v4169 = vld [vmem:[%s0 + $0x40] sm:$0xff]
    %v4170 = vld [vmem:[%s0 + $0x48] sm:$0xff]
    %v4171 = vld [vmem:[%s0 + $0x50] sm:$0xff]
    %v4172 = vld [vmem:[%s0 + $0x58] sm:$0xff]
    %v4173 = vld [vmem:[%s0 + $0x60] sm:$0xff]
    %v4174 = vld [vmem:[%s0 + $0x68] sm:$0xff]
    %v4175 = vld [vmem:[%s0 + $0x70] sm:$0xff]
    %v4176 = vld [vmem:[%s0 + $0x78] sm:$0xff]
    %v4177 = vld [vmem:[%s0 + $0x80] sm:$0xff]
    %v4178 = vld [vmem:[%s0 + $0x88] sm:$0xff]
    %v4179 = vld [vmem:[%s0 + $0x90] sm:$0xff]
    %v4180 = vld [vmem:[%s0 + $0x98] sm:$0xff]
    %v4181 = vld [vmem:[%s0 + $0xa0] sm:$0xff]
    %v4182 = vld [vmem:[%s0 + $0xa8] sm:$0xff]
    %v4183 = vld [vmem:[%s0 + $0xb0] sm:$0xff]
    %v4184 = vld [vmem:[%s0 + $0xb8] sm:$0xff]
    %v4185 = vld [vmem:[%s0 + $0xc0] sm:$0xff]
    %v4186 = vld [vmem:[%s0 + $0xc8] sm:$0xff]
    %v4187 = vld [vmem:[%s0 + $0xd0] sm:$0xff]
    %v4188 = vld [vmem:[%s0 + $0xd8] sm:$0xff]
    %v4189 = vld [vmem:[%s0 + $0xe0] sm:$0xff]
    %v4190 = vld [vmem:[%s0 + $0xe8] sm:$0xff]
    %v4191 = vld [vmem:[%s0 + $0xf0] sm:$0xff]
    %v4192 = vld [vmem:[%s0 + $0xf8] sm:$0xff]
    %v4193 = vld [vmem:[%s0 + $0x100] sm:$0xff]
    %v4194 = vld [vmem:[%s0 + $0x108] sm:$0xff]
    %v4195 = vld [vmem:[%s0 + $0x110] sm:$0xff]
    %v4196 = vld [vmem:[%s0 + $0x118] sm:$0xff]
    %v4197 = vld [vmem:[%s4] sm:$0xff]
    %v4198 = vld [vmem:[%s4 + $0x8] sm:$0xff]
    %v4199 = vld [vmem:[#allocation3] sm:$0xff]
    %v4200 = vld [vmem:[#allocation3 + $0x8] sm:$0xff]
    %v4201 = vld [vmem:[#allocation3 + $0x10] sm:$0xff]
    %v4202 = vld [vmem:[#allocation3 + $0x18] sm:$0xff]
    %v4203 = vld [vmem:[#allocation3 + $0x20] sm:$0xff]
    %v4204 = vld [vmem:[#allocation3 + $0x28] sm:$0xff]
    %v4205 = vld [vmem:[#allocation3 + $0x30] sm:$0xff]
    %v4206 = vld [vmem:[#allocation3 + $0x38] sm:$0xff]
    %v4207 = vld [vmem:[#allocation3 + $0x40] sm:$0xff]
    %v4208 = vld [vmem:[#allocation3 + $0x48] sm:$0xff]
    %v4209 = vld [vmem:[#allocation3 + $0x50] sm:$0xff]
    %v4210 = vld [vmem:[#allocation3 + $0x58] sm:$0xff]
    %v4211 = vld [vmem:[#allocation3 + $0x60] sm:$0xff]
    %v4212 = vld [vmem:[#allocation3 + $0x68] sm:$0xff]
    %v4213 = vld [vmem:[#allocation3 + $0x70] sm:$0xff]
    %v4214 = vld [vmem:[#allocation3 + $0x78] sm:$0xff]
    %v4215 = vld [vmem:[#allocation3 + $0x80] sm:$0xff]
    %v4216 = vld [vmem:[#allocation3 + $0x88] sm:$0xff]
    %v4217 = vld [vmem:[#allocation3 + $0x90] sm:$0xff]
    %v4218 = vld [vmem:[#allocation3 + $0x98] sm:$0xff]
    %v4219 = vld [vmem:[#allocation3 + $0xa0] sm:$0xff]
    %v4220 = vld [vmem:[#allocation3 + $0xa8] sm:$0xff]
    %v4221 = vld [vmem:[#allocation3 + $0xb0] sm:$0xff]
    %v4222 = vld [vmem:[#allocation3 + $0xb8] sm:$0xff]
    %v4223 = vld [vmem:[#allocation3 + $0xc0] sm:$0xff]
    %v4224 = vld [vmem:[#allocation3 + $0xc8] sm:$0xff]
    %v4225 = vld [vmem:[#allocation3 + $0xd0] sm:$0xff]
    %v4226 = vld [vmem:[#allocation3 + $0xd8] sm:$0xff]
    %v4227 = vld [vmem:[#allocation3 + $0xe0] sm:$0xff]
    %v4228 = vld [vmem:[#allocation3 + $0xe8] sm:$0xff]
    %v4229 = vld [vmem:[#allocation3 + $0xf0] sm:$0xff]
    %v4230 = vld [vmem:[#allocation3 + $0xf8] sm:$0xff]
    %v4231 = vld [vmem:[#allocation3 + $0x100] sm:$0xff]
    %v4232 = vld [vmem:[#allocation3 + $0x108] sm:$0xff]
    %v4233 = vld [vmem:[#allocation3 + $0x110] sm:$0xff]
    %v4234 = vld [vmem:[#allocation3 + $0x118] sm:$0xff]
    %v4235 = vld [vmem:[%s5] sm:$0xff]
    %v4236 = vld [vmem:[%s5 + $0x8] sm:$0xff]
    %v4237 = vld [vmem:[%s5 + $0x10] sm:$0xff]
    %v4238 = vld [vmem:[%s5 + $0x18] sm:$0xff]
    %v4240 = vsel %vm484, %v4199, 0
    %v4243 = vsel %vm484, %v4200, 0
    %v4246 = vsel %vm484, %v4201, 0
    %v4249 = vsel %vm484, %v4202, 0
    %v4252 = vsel %vm484, %v4203, 0
    %v4255 = vsel %vm484, %v4204, 0
    %v4258 = vsel %vm484, %v4205, 0
    %v4261 = vsel %vm484, %v4206, 0
    %v4264 = vsel %vm484, %v4207, 0
    %v4267 = vsel %vm484, %v4208, 0
    %v4270 = vsel %vm484, %v4209, 0
    %v4273 = vsel %vm484, %v4210, 0
    %v4276 = vsel %vm484, %v4211, 0
    %v4279 = vsel %vm484, %v4212, 0
    %v4282 = vsel %vm484, %v4213, 0
    %v4285 = vsel %vm484, %v4214, 0
    %v4288 = vsel %vm484, %v4215, 0
    %v4291 = vsel %vm484, %v4216, 0
    %v4294 = vsel %vm484, %v4217, 0
    %v4297 = vsel %vm484, %v4218, 0
    %v4300 = vsel %vm484, %v4219, 0
    %v4303 = vsel %vm484, %v4220, 0
    %v4306 = vsel %vm484, %v4221, 0
    %v4309 = vsel %vm484, %v4222, 0
    %v4312 = vsel %vm484, %v4223, 0
    %v4315 = vsel %vm484, %v4224, 0
    %v4318 = vsel %vm484, %v4225, 0
    %v4321 = vsel %vm484, %v4226, 0
    %v4324 = vsel %vm484, %v4227, 0
    %v4327 = vsel %vm484, %v4228, 0
    %v4330 = vsel %vm484, %v4229, 0
    %v4333 = vsel %vm484, %v4230, 0
    %v4336 = vsel %vm484, %v4231, 0
    %v4339 = vsel %vm484, %v4232, 0
    %v4342 = vsel %vm484, %v4233, 0
    %v4345 = vsel %vm484, %v4234, 0
    %4347 = vmatprep.subr.mxu0 0.0
    %4348 = vmatpush1.msra.mxu0 0.0
    %4349 = vmatprep.subr.mxu0 0.0
    %4350 = vmatpush1.msra.mxu0 0.0
    %4351 = vmatprep.subr.mxu0 0.0
    %4352 = vmatpush1.msra.mxu0 0.0
    %4353 = vmatprep.subr.mxu0 0.0
    %4354 = vmatpush1.msra.mxu0 0.0
    %4355 = vmatprep.subr.mxu0 0.0
    %4356 = vmatpush1.msra.mxu0 0.0
    %4357 = vmatprep.subr.mxu0 0.0
    %4358 = vmatpush1.msra.mxu0 0.0
    %4359 = vmatprep.subr.mxu0 0.0
    %4360 = vmatpush1.msra.mxu0 0.0
    %4361 = vmatprep.subr.mxu0 0.0
    %4362 = vmatpush1.msra.mxu0 0.0
    %4363 = vmatprep.subr.mxu0 0.0
    %4364 = vmatpush1.msra.mxu0 0.0
    %4365 = vmatprep.subr.mxu0 0.0
    %4366 = vmatpush1.msra.mxu0 0.0
    %4367 = vmatprep.subr.mxu0 0.0
    %4368 = vmatpush1.msra.mxu0 0.0
    %4369 = vmatprep.subr.mxu0 0.0
    %4370 = vmatpush1.msra.mxu0 0.0
    %4371 = vmatprep.subr.mxu0 0.0
    %4372 = vmatpush1.msra.mxu0 %v4238
    %4373 = vmatprep.subr.mxu0 0.0
    %4374 = vmatpush1.msra.mxu0 %v4237
    %4375 = vmatprep.subr.mxu0 0.0
    %4376 = vmatpush1.msra.mxu0 %v4236
    %4377 = vmatprep.subr.mxu0 0.0
    %4378 = vmatpush1.msra.mxu0 %v4235
    %4379 = vmatprep.subr.mxu0 0.0
    %4380 = vmatpush2.msra.mxu0 0.0
    %4381 = vmatprep.subr.mxu0 0.0
    %4382 = vmatpush2.msra.mxu0 0.0
    %4383 = vmatprep.subr.mxu0 0.0
    %4384 = vmatpush2.msra.mxu0 0.0
    %4385 = vmatprep.subr.mxu0 0.0
    %4386 = vmatpush2.msra.mxu0 0.0
    %4387 = vmatprep.subr.mxu0 0.0
    %4388 = vmatpush2.msra.mxu0 0.0
    %4389 = vmatprep.subr.mxu0 0.0
    %4390 = vmatpush2.msra.mxu0 0.0
    %4391 = vmatprep.subr.mxu0 0.0
    %4392 = vmatpush2.msra.mxu0 0.0
    %4393 = vmatprep.subr.mxu0 0.0
    %4394 = vmatpush2.msra.mxu0 0.0
    %4395 = vmatprep.subr.mxu0 0.0
    %4396 = vmatpush2.msra.mxu0 0.0
    %4397 = vmatprep.subr.mxu0 0.0
    %4398 = vmatpush2.msra.mxu0 0.0
    %4399 = vmatprep.subr.mxu0 0.0
    %4400 = vmatpush2.msra.mxu0 0.0
    %4401 = vmatprep.subr.mxu0 0.0
    %4402 = vmatpush2.msra.mxu0 0.0
    %4403 = vmatprep.subr.mxu0 0.0
    %4404 = vmatpush2.msra.mxu0 0.0
    %4405 = vmatprep.subr.mxu0 0.0
    %4406 = vmatpush2.msra.mxu0 0.0
    %4407 = vmatprep.subr.mxu0 0.0
    %4408 = vmatpush2.msra.mxu0 0.0
    %4409 = vmatprep.subr.mxu0 0.0
    %4410 = vmatpush2.msra.mxu0 0.0
    %4411 = vmatprep.mubr.f32.mxu0 0.0
    %4412 = vmatmul.mubr.f32.gmra.mxu0 %v4240
    %v4413 = vpop.f32.mrf.mxu0
    %v4414 = vadd.f32 0.0, %v4413
    %v4415 = vpop.f32.mrf.mxu0
    %4416 = vmatprep.mubr.f32.mxu0 0.0
    %4417 = vmatmul.mubr.f32.gmra.mxu0 %v4243
    %v4418 = vpop.f32.mrf.mxu0
    %v4419 = vadd.f32 0.0, %v4418
    %v4420 = vpop.f32.mrf.mxu0
    %4421 = vmatprep.mubr.f32.mxu0 0.0
    %4422 = vmatmul.mubr.f32.gmra.mxu0 %v4246
    %v4423 = vpop.f32.mrf.mxu0
    %v4424 = vadd.f32 0.0, %v4423
    %v4425 = vpop.f32.mrf.mxu0
    %4426 = vmatprep.mubr.f32.mxu0 0.0
    %4427 = vmatmul.mubr.f32.gmra.mxu0 %v4249
    %v4428 = vpop.f32.mrf.mxu0
    %v4429 = vadd.f32 0.0, %v4428
    %v4430 = vpop.f32.mrf.mxu0
    %4431 = vmatprep.mubr.f32.mxu0 0.0
    %4432 = vmatmul.mubr.f32.gmra.mxu0 %v4252
    %v4433 = vpop.f32.mrf.mxu0
    %v4434 = vadd.f32 0.0, %v4433
    %v4435 = vpop.f32.mrf.mxu0
    %4436 = vmatprep.mubr.f32.mxu0 0.0
    %4437 = vmatmul.mubr.f32.gmra.mxu0 %v4255
    %v4438 = vpop.f32.mrf.mxu0
    %v4439 = vadd.f32 0.0, %v4438
    %v4440 = vpop.f32.mrf.mxu0
    %4441 = vmatprep.mubr.f32.mxu0 0.0
    %4442 = vmatmul.mubr.f32.gmra.mxu0 %v4258
    %v4443 = vpop.f32.mrf.mxu0
    %v4444 = vadd.f32 0.0, %v4443
    %v4445 = vpop.f32.mrf.mxu0
    %4446 = vmatprep.mubr.f32.mxu0 0.0
    %4447 = vmatmul.mubr.f32.gmra.mxu0 %v4261
    %v4448 = vpop.f32.mrf.mxu0
    %v4449 = vadd.f32 0.0, %v4448
    %v4450 = vpop.f32.mrf.mxu0
    %4451 = vmatprep.mubr.f32.mxu0 0.0
    %4452 = vmatmul.mubr.f32.gmra.mxu0 %v4264
    %v4453 = vpop.f32.mrf.mxu0
    %v4454 = vadd.f32 0.0, %v4453
    %v4455 = vpop.f32.mrf.mxu0
    %4456 = vmatprep.mubr.f32.mxu0 0.0
    %4457 = vmatmul.mubr.f32.gmra.mxu0 %v4267
    %v4458 = vpop.f32.mrf.mxu0
    %v4459 = vadd.f32 0.0, %v4458
    %v4460 = vpop.f32.mrf.mxu0
    %4461 = vmatprep.mubr.f32.mxu0 0.0
    %4462 = vmatmul.mubr.f32.gmra.mxu0 %v4270
    %v4463 = vpop.f32.mrf.mxu0
    %v4464 = vadd.f32 0.0, %v4463
    %v4465 = vpop.f32.mrf.mxu0
    %4466 = vmatprep.mubr.f32.mxu0 0.0
    %4467 = vmatmul.mubr.f32.gmra.mxu0 %v4273
    %v4468 = vpop.f32.mrf.mxu0
    %v4469 = vadd.f32 0.0, %v4468
    %v4470 = vpop.f32.mrf.mxu0
    %4471 = vmatprep.mubr.f32.mxu0 0.0
    %4472 = vmatmul.mubr.f32.gmra.mxu0 %v4276
    %v4473 = vpop.f32.mrf.mxu0
    %v4474 = vadd.f32 0.0, %v4473
    %v4475 = vpop.f32.mrf.mxu0
    %4476 = vmatprep.mubr.f32.mxu0 0.0
    %4477 = vmatmul.mubr.f32.gmra.mxu0 %v4279
    %v4478 = vpop.f32.mrf.mxu0
    %v4479 = vadd.f32 0.0, %v4478
    %v4480 = vpop.f32.mrf.mxu0
    %4481 = vmatprep.mubr.f32.mxu0 0.0
    %4482 = vmatmul.mubr.f32.gmra.mxu0 %v4282
    %v4483 = vpop.f32.mrf.mxu0
    %v4484 = vadd.f32 0.0, %v4483
    %v4485 = vpop.f32.mrf.mxu0
    %4486 = vmatprep.mubr.f32.mxu0 0.0
    %4487 = vmatmul.mubr.f32.gmra.mxu0 %v4285
    %v4488 = vpop.f32.mrf.mxu0
    %v4489 = vadd.f32 0.0, %v4488
    %v4490 = vpop.f32.mrf.mxu0
    %4491 = vmatprep.mubr.f32.mxu0 0.0
    %4492 = vmatmul.mubr.f32.gmra.mxu0 %v4288
    %v4493 = vpop.f32.mrf.mxu0
    %v4494 = vadd.f32 0.0, %v4493
    %v4495 = vpop.f32.mrf.mxu0
    %4496 = vmatprep.mubr.f32.mxu0 0.0
    %4497 = vmatmul.mubr.f32.gmra.mxu0 %v4291
    %v4498 = vpop.f32.mrf.mxu0
    %v4499 = vadd.f32 0.0, %v4498
    %v4500 = vpop.f32.mrf.mxu0
    %4501 = vmatprep.mubr.f32.mxu0 0.0
    %4502 = vmatmul.mubr.f32.gmra.mxu0 %v4294
    %v4503 = vpop.f32.mrf.mxu0
    %v4504 = vadd.f32 0.0, %v4503
    %v4505 = vpop.f32.mrf.mxu0
    %4506 = vmatprep.mubr.f32.mxu0 0.0
    %4507 = vmatmul.mubr.f32.gmra.mxu0 %v4297
    %v4508 = vpop.f32.mrf.mxu0
    %v4509 = vadd.f32 0.0, %v4508
    %v4510 = vpop.f32.mrf.mxu0
    %4511 = vmatprep.mubr.f32.mxu0 0.0
    %4512 = vmatmul.mubr.f32.gmra.mxu0 %v4300
    %v4513 = vpop.f32.mrf.mxu0
    %v4514 = vadd.f32 0.0, %v4513
    %v4515 = vpop.f32.mrf.mxu0
    %4516 = vmatprep.mubr.f32.mxu0 0.0
    %4517 = vmatmul.mubr.f32.gmra.mxu0 %v4303
    %v4518 = vpop.f32.mrf.mxu0
    %v4519 = vadd.f32 0.0, %v4518
    %v4520 = vpop.f32.mrf.mxu0
    %4521 = vmatprep.mubr.f32.mxu0 0.0
    %4522 = vmatmul.mubr.f32.gmra.mxu0 %v4306
    %v4523 = vpop.f32.mrf.mxu0
    %v4524 = vadd.f32 0.0, %v4523
    %v4525 = vpop.f32.mrf.mxu0
    %4526 = vmatprep.mubr.f32.mxu0 0.0
    %4527 = vmatmul.mubr.f32.gmra.mxu0 %v4309
    %v4528 = vpop.f32.mrf.mxu0
    %v4529 = vadd.f32 0.0, %v4528
    %v4530 = vpop.f32.mrf.mxu0
    %4531 = vmatprep.mubr.f32.mxu0 0.0
    %4532 = vmatmul.mubr.f32.gmra.mxu0 %v4312
    %v4533 = vpop.f32.mrf.mxu0
    %v4534 = vadd.f32 0.0, %v4533
    %v4535 = vpop.f32.mrf.mxu0
    %4536 = vmatprep.mubr.f32.mxu0 0.0
    %4537 = vmatmul.mubr.f32.gmra.mxu0 %v4315
    %v4538 = vpop.f32.mrf.mxu0
    %v4539 = vadd.f32 0.0, %v4538
    %v4540 = vpop.f32.mrf.mxu0
    %4541 = vmatprep.mubr.f32.mxu0 0.0
    %4542 = vmatmul.mubr.f32.gmra.mxu0 %v4318
    %v4543 = vpop.f32.mrf.mxu0
    %v4544 = vadd.f32 0.0, %v4543
    %v4545 = vpop.f32.mrf.mxu0
    %4546 = vmatprep.mubr.f32.mxu0 0.0
    %4547 = vmatmul.mubr.f32.gmra.mxu0 %v4321
    %v4548 = vpop.f32.mrf.mxu0
    %v4549 = vadd.f32 0.0, %v4548
    %v4550 = vpop.f32.mrf.mxu0
    %4551 = vmatprep.mubr.f32.mxu0 0.0
    %4552 = vmatmul.mubr.f32.gmra.mxu0 %v4324
    %v4553 = vpop.f32.mrf.mxu0
    %v4554 = vadd.f32 0.0, %v4553
    %v4555 = vpop.f32.mrf.mxu0
    %4556 = vmatprep.mubr.f32.mxu0 0.0
    %4557 = vmatmul.mubr.f32.gmra.mxu0 %v4327
    %v4558 = vpop.f32.mrf.mxu0
    %v4559 = vadd.f32 0.0, %v4558
    %v4560 = vpop.f32.mrf.mxu0
    %4561 = vmatprep.mubr.f32.mxu0 0.0
    %4562 = vmatmul.mubr.f32.gmra.mxu0 %v4330
    %v4563 = vpop.f32.mrf.mxu0
    %v4564 = vadd.f32 0.0, %v4563
    %v4565 = vpop.f32.mrf.mxu0
    %4566 = vmatprep.mubr.f32.mxu0 0.0
    %4567 = vmatmul.mubr.f32.gmra.mxu0 %v4333
    %v4568 = vpop.f32.mrf.mxu0
    %v4569 = vadd.f32 0.0, %v4568
    %v4570 = vpop.f32.mrf.mxu0
    %4571 = vmatprep.mubr.f32.mxu0 0.0
    %4572 = vmatmul.mubr.f32.gmra.mxu0 %v4336
    %v4573 = vpop.f32.mrf.mxu0
    %v4574 = vadd.f32 0.0, %v4573
    %v4575 = vpop.f32.mrf.mxu0
    %4576 = vmatprep.mubr.f32.mxu0 0.0
    %4577 = vmatmul.mubr.f32.gmra.mxu0 %v4339
    %v4578 = vpop.f32.mrf.mxu0
    %v4579 = vadd.f32 0.0, %v4578
    %v4580 = vpop.f32.mrf.mxu0
    %4581 = vmatprep.mubr.f32.mxu0 0.0
    %4582 = vmatmul.mubr.f32.gmra.mxu0 %v4342
    %v4583 = vpop.f32.mrf.mxu0
    %v4584 = vadd.f32 0.0, %v4583
    %v4585 = vpop.f32.mrf.mxu0
    %4586 = vmatprep.mubr.f32.mxu0 0.0
    %4587 = vmatmul.mubr.f32.gmra.mxu0 %v4345
    %v4588 = vpop.f32.mrf.mxu0
    %v4589 = vadd.f32 0.0, %v4588
    %v4590 = vpop.f32.mrf.mxu0
    %4591 = vdwg.mxu0
    %v4593 = vsel %vm90, %v4161, 0
    %v4596 = vsel %vm90, %v4162, 0
    %v4599 = vsel %vm90, %v4163, 0
    %v4602 = vsel %vm90, %v4164, 0
    %v4605 = vsel %vm90, %v4165, 0
    %v4608 = vsel %vm90, %v4166, 0
    %v4611 = vsel %vm90, %v4167, 0
    %v4614 = vsel %vm90, %v4168, 0
    %v4617 = vsel %vm90, %v4169, 0
    %v4620 = vsel %vm90, %v4170, 0
    %v4623 = vsel %vm90, %v4171, 0
    %v4626 = vsel %vm90, %v4172, 0
    %v4629 = vsel %vm90, %v4173, 0
    %v4632 = vsel %vm90, %v4174, 0
    %v4635 = vsel %vm90, %v4175, 0
    %v4638 = vsel %vm90, %v4176, 0
    %v4641 = vsel %vm90, %v4177, 0
    %v4644 = vsel %vm90, %v4178, 0
    %v4647 = vsel %vm90, %v4179, 0
    %v4650 = vsel %vm90, %v4180, 0
    %v4653 = vsel %vm90, %v4181, 0
    %v4656 = vsel %vm90, %v4182, 0
    %v4659 = vsel %vm90, %v4183, 0
    %v4662 = vsel %vm90, %v4184, 0
    %v4665 = vsel %vm90, %v4185, 0
    %v4668 = vsel %vm90, %v4186, 0
    %v4671 = vsel %vm90, %v4187, 0
    %v4674 = vsel %vm90, %v4188, 0
    %v4677 = vsel %vm90, %v4189, 0
    %v4680 = vsel %vm90, %v4190, 0
    %v4683 = vsel %vm90, %v4191, 0
    %v4686 = vsel %vm90, %v4192, 0
    %v4689 = vsel %vm90, %v4193, 0
    %v4692 = vsel %vm90, %v4194, 0
    %v4695 = vsel %vm90, %v4195, 0
    %v4698 = vsel %vm90, %v4196, 0
    %4700 = vmatprep.subr.mxu0 0.0
    %4701 = vmatpush1.msra.mxu0 0.0
    %4702 = vmatprep.subr.mxu0 0.0
    %4703 = vmatpush1.msra.mxu0 0.0
    %4704 = vmatprep.subr.mxu0 0.0
    %4705 = vmatpush1.msra.mxu0 0.0
    %4706 = vmatprep.subr.mxu0 0.0
    %4707 = vmatpush1.msra.mxu0 0.0
    %4708 = vmatprep.subr.mxu0 0.0
    %4709 = vmatpush1.msra.mxu0 0.0
    %4710 = vmatprep.subr.mxu0 0.0
    %4711 = vmatpush1.msra.mxu0 0.0
    %4712 = vmatprep.subr.mxu0 0.0
    %4713 = vmatpush1.msra.mxu0 0.0
    %4714 = vmatprep.subr.mxu0 0.0
    %4715 = vmatpush1.msra.mxu0 0.0
    %4716 = vmatprep.subr.mxu0 0.0
    %4717 = vmatpush1.msra.mxu0 0.0
    %4718 = vmatprep.subr.mxu0 0.0
    %4719 = vmatpush1.msra.mxu0 0.0
    %4720 = vmatprep.subr.mxu0 0.0
    %4721 = vmatpush1.msra.mxu0 0.0
    %4722 = vmatprep.subr.mxu0 0.0
    %4723 = vmatpush1.msra.mxu0 0.0
    %4724 = vmatprep.subr.mxu0 0.0
    %4725 = vmatpush1.msra.mxu0 0.0
    %4726 = vmatprep.subr.mxu0 0.0
    %4727 = vmatpush1.msra.mxu0 0.0
    %4728 = vmatprep.subr.mxu0 0.0
    %4729 = vmatpush1.msra.mxu0 %v4198
    %4730 = vmatprep.subr.mxu0 0.0
    %4731 = vmatpush1.msra.mxu0 %v4197
    %4732 = vmatprep.subr.mxu0 0.0
    %4733 = vmatpush2.msra.mxu0 0.0
    %4734 = vmatprep.subr.mxu0 0.0
    %4735 = vmatpush2.msra.mxu0 0.0
    %4736 = vmatprep.subr.mxu0 0.0
    %4737 = vmatpush2.msra.mxu0 0.0
    %4738 = vmatprep.subr.mxu0 0.0
    %4739 = vmatpush2.msra.mxu0 0.0
    %4740 = vmatprep.subr.mxu0 0.0
    %4741 = vmatpush2.msra.mxu0 0.0
    %4742 = vmatprep.subr.mxu0 0.0
    %4743 = vmatpush2.msra.mxu0 0.0
    %4744 = vmatprep.subr.mxu0 0.0
    %4745 = vmatpush2.msra.mxu0 0.0
    %4746 = vmatprep.subr.mxu0 0.0
    %4747 = vmatpush2.msra.mxu0 0.0
    %4748 = vmatprep.subr.mxu0 0.0
    %4749 = vmatpush2.msra.mxu0 0.0
    %4750 = vmatprep.subr.mxu0 0.0
    %4751 = vmatpush2.msra.mxu0 0.0
    %4752 = vmatprep.subr.mxu0 0.0
    %4753 = vmatpush2.msra.mxu0 0.0
    %4754 = vmatprep.subr.mxu0 0.0
    %4755 = vmatpush2.msra.mxu0 0.0
    %4756 = vmatprep.subr.mxu0 0.0
    %4757 = vmatpush2.msra.mxu0 0.0
    %4758 = vmatprep.subr.mxu0 0.0
    %4759 = vmatpush2.msra.mxu0 0.0
    %4760 = vmatprep.subr.mxu0 0.0
    %4761 = vmatpush2.msra.mxu0 0.0
    %4762 = vmatprep.subr.mxu0 0.0
    %4763 = vmatpush2.msra.mxu0 0.0
    %4764 = vmatprep.mubr.f32.mxu0 0.0
    %4765 = vmatmul.mubr.f32.gmra.mxu0 %v4593
    %v4766 = vpop.f32.mrf.mxu0
    %v4767 = vadd.f32 %v4414, %v4766
    %v4768 = vpop.f32.mrf.mxu0
    %4769 = vmatprep.mubr.f32.mxu0 0.0
    %4770 = vmatmul.mubr.f32.gmra.mxu0 %v4596
    %v4771 = vpop.f32.mrf.mxu0
    %v4772 = vadd.f32 %v4419, %v4771
    %v4773 = vpop.f32.mrf.mxu0
    %4774 = vmatprep.mubr.f32.mxu0 0.0
    %4775 = vmatmul.mubr.f32.gmra.mxu0 %v4599
    %v4776 = vpop.f32.mrf.mxu0
    %v4777 = vadd.f32 %v4424, %v4776
    %v4778 = vpop.f32.mrf.mxu0
    %4779 = vmatprep.mubr.f32.mxu0 0.0
    %4780 = vmatmul.mubr.f32.gmra.mxu0 %v4602
    %v4781 = vpop.f32.mrf.mxu0
    %v4782 = vadd.f32 %v4429, %v4781
    %v4783 = vpop.f32.mrf.mxu0
    %4784 = vmatprep.mubr.f32.mxu0 0.0
    %4785 = vmatmul.mubr.f32.gmra.mxu0 %v4605
    %v4786 = vpop.f32.mrf.mxu0
    %v4787 = vadd.f32 %v4434, %v4786
    %v4788 = vpop.f32.mrf.mxu0
    %4789 = vmatprep.mubr.f32.mxu0 0.0
    %4790 = vmatmul.mubr.f32.gmra.mxu0 %v4608
    %v4791 = vpop.f32.mrf.mxu0
    %v4792 = vadd.f32 %v4439, %v4791
    %v4793 = vpop.f32.mrf.mxu0
    %4794 = vmatprep.mubr.f32.mxu0 0.0
    %4795 = vmatmul.mubr.f32.gmra.mxu0 %v4611
    %v4796 = vpop.f32.mrf.mxu0
    %v4797 = vadd.f32 %v4444, %v4796
    %v4798 = vpop.f32.mrf.mxu0
    %4799 = vmatprep.mubr.f32.mxu0 0.0
    %4800 = vmatmul.mubr.f32.gmra.mxu0 %v4614
    %v4801 = vpop.f32.mrf.mxu0
    %v4802 = vadd.f32 %v4449, %v4801
    %v4803 = vpop.f32.mrf.mxu0
    %4804 = vmatprep.mubr.f32.mxu0 0.0
    %4805 = vmatmul.mubr.f32.gmra.mxu0 %v4617
    %v4806 = vpop.f32.mrf.mxu0
    %v4807 = vadd.f32 %v4454, %v4806
    %v4808 = vpop.f32.mrf.mxu0
    %4809 = vmatprep.mubr.f32.mxu0 0.0
    %4810 = vmatmul.mubr.f32.gmra.mxu0 %v4620
    %v4811 = vpop.f32.mrf.mxu0
    %v4812 = vadd.f32 %v4459, %v4811
    %v4813 = vpop.f32.mrf.mxu0
    %4814 = vmatprep.mubr.f32.mxu0 0.0
    %4815 = vmatmul.mubr.f32.gmra.mxu0 %v4623
    %v4816 = vpop.f32.mrf.mxu0
    %v4817 = vadd.f32 %v4464, %v4816
    %v4818 = vpop.f32.mrf.mxu0
    %4819 = vmatprep.mubr.f32.mxu0 0.0
    %4820 = vmatmul.mubr.f32.gmra.mxu0 %v4626
    %v4821 = vpop.f32.mrf.mxu0
    %v4822 = vadd.f32 %v4469, %v4821
    %v4823 = vpop.f32.mrf.mxu0
    %4824 = vmatprep.mubr.f32.mxu0 0.0
    %4825 = vmatmul.mubr.f32.gmra.mxu0 %v4629
    %v4826 = vpop.f32.mrf.mxu0
    %v4827 = vadd.f32 %v4474, %v4826
    %v4828 = vpop.f32.mrf.mxu0
    %4829 = vmatprep.mubr.f32.mxu0 0.0
    %4830 = vmatmul.mubr.f32.gmra.mxu0 %v4632
    %v4831 = vpop.f32.mrf.mxu0
    %v4832 = vadd.f32 %v4479, %v4831
    %v4833 = vpop.f32.mrf.mxu0
    %4834 = vmatprep.mubr.f32.mxu0 0.0
    %4835 = vmatmul.mubr.f32.gmra.mxu0 %v4635
    %v4836 = vpop.f32.mrf.mxu0
    %v4837 = vadd.f32 %v4484, %v4836
    %v4838 = vpop.f32.mrf.mxu0
    %4839 = vmatprep.mubr.f32.mxu0 0.0
    %4840 = vmatmul.mubr.f32.gmra.mxu0 %v4638
    %v4841 = vpop.f32.mrf.mxu0
    %v4842 = vadd.f32 %v4489, %v4841
    %v4843 = vpop.f32.mrf.mxu0
    %4844 = vmatprep.mubr.f32.mxu0 0.0
    %4845 = vmatmul.mubr.f32.gmra.mxu0 %v4641
    %v4846 = vpop.f32.mrf.mxu0
    %v4847 = vadd.f32 %v4494, %v4846
    %v4848 = vpop.f32.mrf.mxu0
    %4849 = vmatprep.mubr.f32.mxu0 0.0
    %4850 = vmatmul.mubr.f32.gmra.mxu0 %v4644
    %v4851 = vpop.f32.mrf.mxu0
    %v4852 = vadd.f32 %v4499, %v4851
    %v4853 = vpop.f32.mrf.mxu0
    %4854 = vmatprep.mubr.f32.mxu0 0.0
    %4855 = vmatmul.mubr.f32.gmra.mxu0 %v4647
    %v4856 = vpop.f32.mrf.mxu0
    %v4857 = vadd.f32 %v4504, %v4856
    %v4858 = vpop.f32.mrf.mxu0
    %4859 = vmatprep.mubr.f32.mxu0 0.0
    %4860 = vmatmul.mubr.f32.gmra.mxu0 %v4650
    %v4861 = vpop.f32.mrf.mxu0
    %v4862 = vadd.f32 %v4509, %v4861
    %v4863 = vpop.f32.mrf.mxu0
    %4864 = vmatprep.mubr.f32.mxu0 0.0
    %4865 = vmatmul.mubr.f32.gmra.mxu0 %v4653
    %v4866 = vpop.f32.mrf.mxu0
    %v4867 = vadd.f32 %v4514, %v4866
    %v4868 = vpop.f32.mrf.mxu0
    %4869 = vmatprep.mubr.f32.mxu0 0.0
    %4870 = vmatmul.mubr.f32.gmra.mxu0 %v4656
    %v4871 = vpop.f32.mrf.mxu0
    %v4872 = vadd.f32 %v4519, %v4871
    %v4873 = vpop.f32.mrf.mxu0
    %4874 = vmatprep.mubr.f32.mxu0 0.0
    %4875 = vmatmul.mubr.f32.gmra.mxu0 %v4659
    %v4876 = vpop.f32.mrf.mxu0
    %v4877 = vadd.f32 %v4524, %v4876
    %v4878 = vpop.f32.mrf.mxu0
    %4879 = vmatprep.mubr.f32.mxu0 0.0
    %4880 = vmatmul.mubr.f32.gmra.mxu0 %v4662
    %v4881 = vpop.f32.mrf.mxu0
    %v4882 = vadd.f32 %v4529, %v4881
    %v4883 = vpop.f32.mrf.mxu0
    %4884 = vmatprep.mubr.f32.mxu0 0.0
    %4885 = vmatmul.mubr.f32.gmra.mxu0 %v4665
    %v4886 = vpop.f32.mrf.mxu0
    %v4887 = vadd.f32 %v4534, %v4886
    %v4888 = vpop.f32.mrf.mxu0
    %4889 = vmatprep.mubr.f32.mxu0 0.0
    %4890 = vmatmul.mubr.f32.gmra.mxu0 %v4668
    %v4891 = vpop.f32.mrf.mxu0
    %v4892 = vadd.f32 %v4539, %v4891
    %v4893 = vpop.f32.mrf.mxu0
    %4894 = vmatprep.mubr.f32.mxu0 0.0
    %4895 = vmatmul.mubr.f32.gmra.mxu0 %v4671
    %v4896 = vpop.f32.mrf.mxu0
    %v4897 = vadd.f32 %v4544, %v4896
    %v4898 = vpop.f32.mrf.mxu0
    %4899 = vmatprep.mubr.f32.mxu0 0.0
    %4900 = vmatmul.mubr.f32.gmra.mxu0 %v4674
    %v4901 = vpop.f32.mrf.mxu0
    %v4902 = vadd.f32 %v4549, %v4901
    %v4903 = vpop.f32.mrf.mxu0
    %4904 = vmatprep.mubr.f32.mxu0 0.0
    %4905 = vmatmul.mubr.f32.gmra.mxu0 %v4677
    %v4906 = vpop.f32.mrf.mxu0
    %v4907 = vadd.f32 %v4554, %v4906
    %v4908 = vpop.f32.mrf.mxu0
    %4909 = vmatprep.mubr.f32.mxu0 0.0
    %4910 = vmatmul.mubr.f32.gmra.mxu0 %v4680
    %v4911 = vpop.f32.mrf.mxu0
    %v4912 = vadd.f32 %v4559, %v4911
    %v4913 = vpop.f32.mrf.mxu0
    %4914 = vmatprep.mubr.f32.mxu0 0.0
    %4915 = vmatmul.mubr.f32.gmra.mxu0 %v4683
    %v4916 = vpop.f32.mrf.mxu0
    %v4917 = vadd.f32 %v4564, %v4916
    %v4918 = vpop.f32.mrf.mxu0
    %4919 = vmatprep.mubr.f32.mxu0 0.0
    %4920 = vmatmul.mubr.f32.gmra.mxu0 %v4686
    %v4921 = vpop.f32.mrf.mxu0
    %v4922 = vadd.f32 %v4569, %v4921
    %v4923 = vpop.f32.mrf.mxu0
    %4924 = vmatprep.mubr.f32.mxu0 0.0
    %4925 = vmatmul.mubr.f32.gmra.mxu0 %v4689
    %v4926 = vpop.f32.mrf.mxu0
    %v4927 = vadd.f32 %v4574, %v4926
    %v4928 = vpop.f32.mrf.mxu0
    %4929 = vmatprep.mubr.f32.mxu0 0.0
    %4930 = vmatmul.mubr.f32.gmra.mxu0 %v4692
    %v4931 = vpop.f32.mrf.mxu0
    %v4932 = vadd.f32 %v4579, %v4931
    %v4933 = vpop.f32.mrf.mxu0
    %4934 = vmatprep.mubr.f32.mxu0 0.0
    %4935 = vmatmul.mubr.f32.gmra.mxu0 %v4695
    %v4936 = vpop.f32.mrf.mxu0
    %v4937 = vadd.f32 %v4584, %v4936
    %v4938 = vpop.f32.mrf.mxu0
    %4939 = vmatprep.mubr.f32.mxu0 0.0
    %4940 = vmatmul.mubr.f32.gmra.mxu0 %v4698
    %v4941 = vpop.f32.mrf.mxu0
    %v4942 = vadd.f32 %v4589, %v4941
    %v4943 = vpop.f32.mrf.mxu0
    %4944 = vdwg.mxu0
    %v4945 = vld [vmem:[%s6] sm:$0x1]
    %v4947 = vlaneseq
    %v4948 = vshrl.u32 %v4947, 7
    %v4949 = vsub.s32 0, %v4948
    %v4950 = vrot.slane %v4945, %v4949
    %v4952 = vadd.f32 %v4767, %v4950
    %v4953 = vadd.f32 %v4772, %v4950
    %v4954 = vadd.f32 %v4777, %v4950
    %v4955 = vadd.f32 %v4782, %v4950
    %v4956 = vadd.f32 %v4787, %v4950
    %v4957 = vadd.f32 %v4792, %v4950
    %v4958 = vadd.f32 %v4797, %v4950
    %v4959 = vadd.f32 %v4802, %v4950
    %v4960 = vadd.f32 %v4807, %v4950
    %v4961 = vadd.f32 %v4812, %v4950
    %v4962 = vadd.f32 %v4817, %v4950
    %v4963 = vadd.f32 %v4822, %v4950
    %v4964 = vadd.f32 %v4827, %v4950
    %v4965 = vadd.f32 %v4832, %v4950
    %v4966 = vadd.f32 %v4837, %v4950
    %v4967 = vadd.f32 %v4842, %v4950
    %v4968 = vadd.f32 %v4847, %v4950
    %v4969 = vadd.f32 %v4852, %v4950
    %v4970 = vadd.f32 %v4857, %v4950
    %v4971 = vadd.f32 %v4862, %v4950
    %v4972 = vadd.f32 %v4867, %v4950
    %v4973 = vadd.f32 %v4872, %v4950
    %v4974 = vadd.f32 %v4877, %v4950
    %v4975 = vadd.f32 %v4882, %v4950
    %v4976 = vadd.f32 %v4887, %v4950
    %v4977 = vadd.f32 %v4892, %v4950
    %v4978 = vadd.f32 %v4897, %v4950
    %v4979 = vadd.f32 %v4902, %v4950
    %v4980 = vadd.f32 %v4907, %v4950
    %v4981 = vadd.f32 %v4912, %v4950
    %v4982 = vadd.f32 %v4917, %v4950
    %v4983 = vadd.f32 %v4922, %v4950
    %v4984 = vadd.f32 %v4927, %v4950
    %v4985 = vadd.f32 %v4932, %v4950
    %v4986 = vadd.f32 %v4937, %v4950
    %v4987 = vadd.f32 %v4942, %v4950
    %v4988 = vmax.f32 %v4952, 0.0
    %v4989 = vmax.f32 %v4953, 0.0
    %v4990 = vmax.f32 %v4954, 0.0
    %v4991 = vmax.f32 %v4955, 0.0
    %v4992 = vmax.f32 %v4956, 0.0
    %v4993 = vmax.f32 %v4957, 0.0
    %v4994 = vmax.f32 %v4958, 0.0
    %v4995 = vmax.f32 %v4959, 0.0
    %v4996 = vmax.f32 %v4960, 0.0
    %v4997 = vmax.f32 %v4961, 0.0
    %v4998 = vmax.f32 %v4962, 0.0
    %v4999 = vmax.f32 %v4963, 0.0
    %v5000 = vmax.f32 %v4964, 0.0
    %v5001 = vmax.f32 %v4965, 0.0
    %v5002 = vmax.f32 %v4966, 0.0
    %v5003 = vmax.f32 %v4967, 0.0
    %v5004 = vmax.f32 %v4968, 0.0
    %v5005 = vmax.f32 %v4969, 0.0
    %v5006 = vmax.f32 %v4970, 0.0
    %v5007 = vmax.f32 %v4971, 0.0
    %v5008 = vmax.f32 %v4972, 0.0
    %v5009 = vmax.f32 %v4973, 0.0
    %v5010 = vmax.f32 %v4974, 0.0
    %v5011 = vmax.f32 %v4975, 0.0
    %v5012 = vmax.f32 %v4976, 0.0
    %v5013 = vmax.f32 %v4977, 0.0
    %v5014 = vmax.f32 %v4978, 0.0
    %v5015 = vmax.f32 %v4979, 0.0
    %v5016 = vmax.f32 %v4980, 0.0
    %v5017 = vmax.f32 %v4981, 0.0
    %v5018 = vmax.f32 %v4982, 0.0
    %v5019 = vmax.f32 %v4983, 0.0
    %v5020 = vmax.f32 %v4984, 0.0
    %v5021 = vmax.f32 %v4985, 0.0
    %v5022 = vmax.f32 %v4986, 0.0
    %v5023 = vmax.f32 %v4987, 0.0
    %v5024 = vld [vmem:[%s7] sm:$0xff]
    %v5025 = vld [vmem:[%s7 + $0x8] sm:$0xff]
    %v5026 = vld [vmem:[%s7 + $0x10] sm:$0xff]
    %v5027 = vld [vmem:[%s7 + $0x18] sm:$0xff]
    %v5028 = vld [vmem:[%s8] sm:$0x1]
    %v5030 = vlaneseq
    %v5031 = vshrl.u32 %v5030, 7
    %v5032 = vsub.s32 0, %v5031
    %v5033 = vrot.slane %v5028, %v5032
    %v5036 = vsel %vm484, %v4988, 0
    %v5039 = vsel %vm484, %v4989, 0
    %v5042 = vsel %vm484, %v4990, 0
    %v5045 = vsel %vm484, %v4991, 0
    %v5048 = vsel %vm484, %v4992, 0
    %v5051 = vsel %vm484, %v4993, 0
    %v5054 = vsel %vm484, %v4994, 0
    %v5057 = vsel %vm484, %v4995, 0
    %v5060 = vsel %vm484, %v4996, 0
    %v5063 = vsel %vm484, %v4997, 0
    %v5066 = vsel %vm484, %v4998, 0
    %v5069 = vsel %vm484, %v4999, 0
    %v5072 = vsel %vm484, %v5000, 0
    %v5075 = vsel %vm484, %v5001, 0
    %v5078 = vsel %vm484, %v5002, 0
    %v5081 = vsel %vm484, %v5003, 0
    %v5084 = vsel %vm484, %v5004, 0
    %v5087 = vsel %vm484, %v5005, 0
    %v5090 = vsel %vm484, %v5006, 0
    %v5093 = vsel %vm484, %v5007, 0
    %v5096 = vsel %vm484, %v5008, 0
    %v5099 = vsel %vm484, %v5009, 0
    %v5102 = vsel %vm484, %v5010, 0
    %v5105 = vsel %vm484, %v5011, 0
    %v5108 = vsel %vm484, %v5012, 0
    %v5111 = vsel %vm484, %v5013, 0
    %v5114 = vsel %vm484, %v5014, 0
    %v5117 = vsel %vm484, %v5015, 0
    %v5120 = vsel %vm484, %v5016, 0
    %v5123 = vsel %vm484, %v5017, 0
    %v5126 = vsel %vm484, %v5018, 0
    %v5129 = vsel %vm484, %v5019, 0
    %v5132 = vsel %vm484, %v5020, 0
    %v5135 = vsel %vm484, %v5021, 0
    %v5138 = vsel %vm484, %v5022, 0
    %v5141 = vsel %vm484, %v5023, 0
    %5143 = vmatprep.subr.mxu0 0.0
    %5144 = vmatpush1.msra.mxu0 0.0
    %5145 = vmatprep.subr.mxu0 0.0
    %5146 = vmatpush1.msra.mxu0 0.0
    %5147 = vmatprep.subr.mxu0 0.0
    %5148 = vmatpush1.msra.mxu0 0.0
    %5149 = vmatprep.subr.mxu0 0.0
    %5150 = vmatpush1.msra.mxu0 0.0
    %5151 = vmatprep.subr.mxu0 0.0
    %5152 = vmatpush1.msra.mxu0 0.0
    %5153 = vmatprep.subr.mxu0 0.0
    %5154 = vmatpush1.msra.mxu0 0.0
    %5155 = vmatprep.subr.mxu0 0.0
    %5156 = vmatpush1.msra.mxu0 0.0
    %5157 = vmatprep.subr.mxu0 0.0
    %5158 = vmatpush1.msra.mxu0 0.0
    %5159 = vmatprep.subr.mxu0 0.0
    %5160 = vmatpush1.msra.mxu0 0.0
    %5161 = vmatprep.subr.mxu0 0.0
    %5162 = vmatpush1.msra.mxu0 0.0
    %5163 = vmatprep.subr.mxu0 0.0
    %5164 = vmatpush1.msra.mxu0 0.0
    %5165 = vmatprep.subr.mxu0 0.0
    %5166 = vmatpush1.msra.mxu0 0.0
    %5167 = vmatprep.subr.mxu0 0.0
    %5168 = vmatpush1.msra.mxu0 %v5027
    %5169 = vmatprep.subr.mxu0 0.0
    %5170 = vmatpush1.msra.mxu0 %v5026
    %5171 = vmatprep.subr.mxu0 0.0
    %5172 = vmatpush1.msra.mxu0 %v5025
    %5173 = vmatprep.subr.mxu0 0.0
    %5174 = vmatpush1.msra.mxu0 %v5024
    %5175 = vmatprep.subr.mxu0 0.0
    %5176 = vmatpush2.msra.mxu0 0.0
    %5177 = vmatprep.subr.mxu0 0.0
    %5178 = vmatpush2.msra.mxu0 0.0
    %5179 = vmatprep.subr.mxu0 0.0
    %5180 = vmatpush2.msra.mxu0 0.0
    %5181 = vmatprep.subr.mxu0 0.0
    %5182 = vmatpush2.msra.mxu0 0.0
    %5183 = vmatprep.subr.mxu0 0.0
    %5184 = vmatpush2.msra.mxu0 0.0
    %5185 = vmatprep.subr.mxu0 0.0
    %5186 = vmatpush2.msra.mxu0 0.0
    %5187 = vmatprep.subr.mxu0 0.0
    %5188 = vmatpush2.msra.mxu0 0.0
    %5189 = vmatprep.subr.mxu0 0.0
    %5190 = vmatpush2.msra.mxu0 0.0
    %5191 = vmatprep.subr.mxu0 0.0
    %5192 = vmatpush2.msra.mxu0 0.0
    %5193 = vmatprep.subr.mxu0 0.0
    %5194 = vmatpush2.msra.mxu0 0.0
    %5195 = vmatprep.subr.mxu0 0.0
    %5196 = vmatpush2.msra.mxu0 0.0
    %5197 = vmatprep.subr.mxu0 0.0
    %5198 = vmatpush2.msra.mxu0 0.0
    %5199 = vmatprep.subr.mxu0 0.0
    %5200 = vmatpush2.msra.mxu0 0.0
    %5201 = vmatprep.subr.mxu0 0.0
    %5202 = vmatpush2.msra.mxu0 0.0
    %5203 = vmatprep.subr.mxu0 0.0
    %5204 = vmatpush2.msra.mxu0 0.0
    %5205 = vmatprep.subr.mxu0 0.0
    %5206 = vmatpush2.msra.mxu0 0.0
    %5207 = vmatprep.mubr.f32.mxu0 0.0
    %5208 = vmatmul.mubr.f32.gmra.mxu0 %v5036
    %v5209 = vpop.f32.mrf.mxu0
    %v5210 = vadd.f32 %v5033, %v5209
    %v5211 = vpop.f32.mrf.mxu0
    %5212 = vmatprep.mubr.f32.mxu0 0.0
    %5213 = vmatmul.mubr.f32.gmra.mxu0 %v5039
    %v5214 = vpop.f32.mrf.mxu0
    %v5215 = vadd.f32 %v5033, %v5214
    %v5216 = vpop.f32.mrf.mxu0
    %5217 = vmatprep.mubr.f32.mxu0 0.0
    %5218 = vmatmul.mubr.f32.gmra.mxu0 %v5042
    %v5219 = vpop.f32.mrf.mxu0
    %v5220 = vadd.f32 %v5033, %v5219
    %v5221 = vpop.f32.mrf.mxu0
    %5222 = vmatprep.mubr.f32.mxu0 0.0
    %5223 = vmatmul.mubr.f32.gmra.mxu0 %v5045
    %v5224 = vpop.f32.mrf.mxu0
    %v5225 = vadd.f32 %v5033, %v5224
    %v5226 = vpop.f32.mrf.mxu0
    %5227 = vmatprep.mubr.f32.mxu0 0.0
    %5228 = vmatmul.mubr.f32.gmra.mxu0 %v5048
    %v5229 = vpop.f32.mrf.mxu0
    %v5230 = vadd.f32 %v5033, %v5229
    %v5231 = vpop.f32.mrf.mxu0
    %5232 = vmatprep.mubr.f32.mxu0 0.0
    %5233 = vmatmul.mubr.f32.gmra.mxu0 %v5051
    %v5234 = vpop.f32.mrf.mxu0
    %v5235 = vadd.f32 %v5033, %v5234
    %v5236 = vpop.f32.mrf.mxu0
    %5237 = vmatprep.mubr.f32.mxu0 0.0
    %5238 = vmatmul.mubr.f32.gmra.mxu0 %v5054
    %v5239 = vpop.f32.mrf.mxu0
    %v5240 = vadd.f32 %v5033, %v5239
    %v5241 = vpop.f32.mrf.mxu0
    %5242 = vmatprep.mubr.f32.mxu0 0.0
    %5243 = vmatmul.mubr.f32.gmra.mxu0 %v5057
    %v5244 = vpop.f32.mrf.mxu0
    %v5245 = vadd.f32 %v5033, %v5244
    %v5246 = vpop.f32.mrf.mxu0
    %5247 = vmatprep.mubr.f32.mxu0 0.0
    %5248 = vmatmul.mubr.f32.gmra.mxu0 %v5060
    %v5249 = vpop.f32.mrf.mxu0
    %v5250 = vadd.f32 %v5033, %v5249
    %v5251 = vpop.f32.mrf.mxu0
    %5252 = vmatprep.mubr.f32.mxu0 0.0
    %5253 = vmatmul.mubr.f32.gmra.mxu0 %v5063
    %v5254 = vpop.f32.mrf.mxu0
    %v5255 = vadd.f32 %v5033, %v5254
    %v5256 = vpop.f32.mrf.mxu0
    %5257 = vmatprep.mubr.f32.mxu0 0.0
    %5258 = vmatmul.mubr.f32.gmra.mxu0 %v5066
    %v5259 = vpop.f32.mrf.mxu0
    %v5260 = vadd.f32 %v5033, %v5259
    %v5261 = vpop.f32.mrf.mxu0
    %5262 = vmatprep.mubr.f32.mxu0 0.0
    %5263 = vmatmul.mubr.f32.gmra.mxu0 %v5069
    %v5264 = vpop.f32.mrf.mxu0
    %v5265 = vadd.f32 %v5033, %v5264
    %v5266 = vpop.f32.mrf.mxu0
    %5267 = vmatprep.mubr.f32.mxu0 0.0
    %5268 = vmatmul.mubr.f32.gmra.mxu0 %v5072
    %v5269 = vpop.f32.mrf.mxu0
    %v5270 = vadd.f32 %v5033, %v5269
    %v5271 = vpop.f32.mrf.mxu0
    %5272 = vmatprep.mubr.f32.mxu0 0.0
    %5273 = vmatmul.mubr.f32.gmra.mxu0 %v5075
    %v5274 = vpop.f32.mrf.mxu0
    %v5275 = vadd.f32 %v5033, %v5274
    %v5276 = vpop.f32.mrf.mxu0
    %5277 = vmatprep.mubr.f32.mxu0 0.0
    %5278 = vmatmul.mubr.f32.gmra.mxu0 %v5078
    %v5279 = vpop.f32.mrf.mxu0
    %v5280 = vadd.f32 %v5033, %v5279
    %v5281 = vpop.f32.mrf.mxu0
    %5282 = vmatprep.mubr.f32.mxu0 0.0
    %5283 = vmatmul.mubr.f32.gmra.mxu0 %v5081
    %v5284 = vpop.f32.mrf.mxu0
    %v5285 = vadd.f32 %v5033, %v5284
    %v5286 = vpop.f32.mrf.mxu0
    %5287 = vmatprep.mubr.f32.mxu0 0.0
    %5288 = vmatmul.mubr.f32.gmra.mxu0 %v5084
    %v5289 = vpop.f32.mrf.mxu0
    %v5290 = vadd.f32 %v5033, %v5289
    %v5291 = vpop.f32.mrf.mxu0
    %5292 = vmatprep.mubr.f32.mxu0 0.0
    %5293 = vmatmul.mubr.f32.gmra.mxu0 %v5087
    %v5294 = vpop.f32.mrf.mxu0
    %v5295 = vadd.f32 %v5033, %v5294
    %v5296 = vpop.f32.mrf.mxu0
    %5297 = vmatprep.mubr.f32.mxu0 0.0
    %5298 = vmatmul.mubr.f32.gmra.mxu0 %v5090
    %v5299 = vpop.f32.mrf.mxu0
    %v5300 = vadd.f32 %v5033, %v5299
    %v5301 = vpop.f32.mrf.mxu0
    %5302 = vmatprep.mubr.f32.mxu0 0.0
    %5303 = vmatmul.mubr.f32.gmra.mxu0 %v5093
    %v5304 = vpop.f32.mrf.mxu0
    %v5305 = vadd.f32 %v5033, %v5304
    %v5306 = vpop.f32.mrf.mxu0
    %5307 = vmatprep.mubr.f32.mxu0 0.0
    %5308 = vmatmul.mubr.f32.gmra.mxu0 %v5096
    %v5309 = vpop.f32.mrf.mxu0
    %v5310 = vadd.f32 %v5033, %v5309
    %v5311 = vpop.f32.mrf.mxu0
    %5312 = vmatprep.mubr.f32.mxu0 0.0
    %5313 = vmatmul.mubr.f32.gmra.mxu0 %v5099
    %v5314 = vpop.f32.mrf.mxu0
    %v5315 = vadd.f32 %v5033, %v5314
    %v5316 = vpop.f32.mrf.mxu0
    %5317 = vmatprep.mubr.f32.mxu0 0.0
    %5318 = vmatmul.mubr.f32.gmra.mxu0 %v5102
    %v5319 = vpop.f32.mrf.mxu0
    %v5320 = vadd.f32 %v5033, %v5319
    %v5321 = vpop.f32.mrf.mxu0
    %5322 = vmatprep.mubr.f32.mxu0 0.0
    %5323 = vmatmul.mubr.f32.gmra.mxu0 %v5105
    %v5324 = vpop.f32.mrf.mxu0
    %v5325 = vadd.f32 %v5033, %v5324
    %v5326 = vpop.f32.mrf.mxu0
    %5327 = vmatprep.mubr.f32.mxu0 0.0
    %5328 = vmatmul.mubr.f32.gmra.mxu0 %v5108
    %v5329 = vpop.f32.mrf.mxu0
    %v5330 = vadd.f32 %v5033, %v5329
    %v5331 = vpop.f32.mrf.mxu0
    %5332 = vmatprep.mubr.f32.mxu0 0.0
    %5333 = vmatmul.mubr.f32.gmra.mxu0 %v5111
    %v5334 = vpop.f32.mrf.mxu0
    %v5335 = vadd.f32 %v5033, %v5334
    %v5336 = vpop.f32.mrf.mxu0
    %5337 = vmatprep.mubr.f32.mxu0 0.0
    %5338 = vmatmul.mubr.f32.gmra.mxu0 %v5114
    %v5339 = vpop.f32.mrf.mxu0
    %v5340 = vadd.f32 %v5033, %v5339
    %v5341 = vpop.f32.mrf.mxu0
    %5342 = vmatprep.mubr.f32.mxu0 0.0
    %5343 = vmatmul.mubr.f32.gmra.mxu0 %v5117
    %v5344 = vpop.f32.mrf.mxu0
    %v5345 = vadd.f32 %v5033, %v5344
    %v5346 = vpop.f32.mrf.mxu0
    %5347 = vmatprep.mubr.f32.mxu0 0.0
    %5348 = vmatmul.mubr.f32.gmra.mxu0 %v5120
    %v5349 = vpop.f32.mrf.mxu0
    %v5350 = vadd.f32 %v5033, %v5349
    %v5351 = vpop.f32.mrf.mxu0
    %5352 = vmatprep.mubr.f32.mxu0 0.0
    %5353 = vmatmul.mubr.f32.gmra.mxu0 %v5123
    %v5354 = vpop.f32.mrf.mxu0
    %v5355 = vadd.f32 %v5033, %v5354
    %v5356 = vpop.f32.mrf.mxu0
    %5357 = vmatprep.mubr.f32.mxu0 0.0
    %5358 = vmatmul.mubr.f32.gmra.mxu0 %v5126
    %v5359 = vpop.f32.mrf.mxu0
    %v5360 = vadd.f32 %v5033, %v5359
    %v5361 = vpop.f32.mrf.mxu0
    %5362 = vmatprep.mubr.f32.mxu0 0.0
    %5363 = vmatmul.mubr.f32.gmra.mxu0 %v5129
    %v5364 = vpop.f32.mrf.mxu0
    %v5365 = vadd.f32 %v5033, %v5364
    %v5366 = vpop.f32.mrf.mxu0
    %5367 = vmatprep.mubr.f32.mxu0 0.0
    %5368 = vmatmul.mubr.f32.gmra.mxu0 %v5132
    %v5369 = vpop.f32.mrf.mxu0
    %v5370 = vadd.f32 %v5033, %v5369
    %v5371 = vpop.f32.mrf.mxu0
    %5372 = vmatprep.mubr.f32.mxu0 0.0
    %5373 = vmatmul.mubr.f32.gmra.mxu0 %v5135
    %v5374 = vpop.f32.mrf.mxu0
    %v5375 = vadd.f32 %v5033, %v5374
    %v5376 = vpop.f32.mrf.mxu0
    %5377 = vmatprep.mubr.f32.mxu0 0.0
    %5378 = vmatmul.mubr.f32.gmra.mxu0 %v5138
    %v5379 = vpop.f32.mrf.mxu0
    %v5380 = vadd.f32 %v5033, %v5379
    %v5381 = vpop.f32.mrf.mxu0
    %5382 = vmatprep.mubr.f32.mxu0 0.0
    %5383 = vmatmul.mubr.f32.gmra.mxu0 %v5141
    %v5384 = vpop.f32.mrf.mxu0
    %v5385 = vadd.f32 %v5033, %v5384
    %v5386 = vpop.f32.mrf.mxu0
    %5387 = vdwg.mxu0
    %v5388 = vld [vmem:[%s11] sm:$0xff]
    %v5389 = vld [vmem:[%s11 + $0x8] sm:$0xff]
    %v5390 = vld [vmem:[%s11 + $0x10] sm:$0xff]
    %v5391 = vld [vmem:[%s11 + $0x18] sm:$0xff]
    %v5392 = vld [vmem:[%s11 + $0x20] sm:$0xff]
    %v5393 = vld [vmem:[%s11 + $0x28] sm:$0xff]
    %v5394 = vld [vmem:[%s11 + $0x30] sm:$0xff]
    %v5395 = vld [vmem:[%s11 + $0x38] sm:$0xff]
    %v5396 = vld [vmem:[%s11 + $0x40] sm:$0xff]
    %v5397 = vld [vmem:[%s11 + $0x48] sm:$0xff]
    %v5398 = vld [vmem:[%s11 + $0x50] sm:$0xff]
    %v5399 = vld [vmem:[%s11 + $0x58] sm:$0xff]
    %v5400 = vld [vmem:[%s11 + $0x60] sm:$0xff]
    %v5401 = vld [vmem:[%s11 + $0x68] sm:$0xff]
    %v5402 = vld [vmem:[%s11 + $0x70] sm:$0xff]
    %v5403 = vld [vmem:[%s11 + $0x78] sm:$0xff]
    %v5404 = vld [vmem:[%s11 + $0x80] sm:$0xff]
    %v5405 = vld [vmem:[%s11 + $0x88] sm:$0xff]
    %v5406 = vld [vmem:[%s11 + $0x90] sm:$0xff]
    %v5407 = vld [vmem:[%s11 + $0x98] sm:$0xff]
    %v5408 = vld [vmem:[%s11 + $0xa0] sm:$0xff]
    %v5409 = vld [vmem:[%s11 + $0xa8] sm:$0xff]
    %v5410 = vld [vmem:[%s11 + $0xb0] sm:$0xff]
    %v5411 = vld [vmem:[%s11 + $0xb8] sm:$0xff]
    %v5412 = vld [vmem:[%s11 + $0xc0] sm:$0xff]
    %v5413 = vld [vmem:[%s11 + $0xc8] sm:$0xff]
    %v5414 = vld [vmem:[%s11 + $0xd0] sm:$0xff]
    %v5415 = vld [vmem:[%s11 + $0xd8] sm:$0xff]
    %v5416 = vld [vmem:[%s11 + $0xe0] sm:$0xff]
    %v5417 = vld [vmem:[%s11 + $0xe8] sm:$0xff]
    %v5418 = vld [vmem:[%s11 + $0xf0] sm:$0xff]
    %v5419 = vld [vmem:[%s11 + $0xf8] sm:$0xff]
    %v5420 = vld [vmem:[%s11 + $0x100] sm:$0xff]
    %v5421 = vld [vmem:[%s11 + $0x108] sm:$0xff]
    %v5422 = vld [vmem:[%s11 + $0x110] sm:$0xff]
    %v5423 = vld [vmem:[%s11 + $0x118] sm:$0xff]
    %vm5424 = vcmask 171008
    %v5425 = vsel %vm5424, %v5210, -inf
    %5426 = vmax.xlane.f32.xlu0 %v5425
    %v5427 = vpop.xlane.xlu0 %5426
    %v5428 = vsel %vm5424, %v5215, -inf
    %5429 = vmax.xlane.f32.xlu0 %v5428
    %v5430 = vpop.xlane.xlu0 %5429
    %v5431 = vsel %vm5424, %v5220, -inf
    %5432 = vmax.xlane.f32.xlu0 %v5431
    %v5433 = vpop.xlane.xlu0 %5432
    %v5434 = vsel %vm5424, %v5225, -inf
    %5435 = vmax.xlane.f32.xlu0 %v5434
    %v5436 = vpop.xlane.xlu0 %5435
    %v5437 = vsel %vm5424, %v5230, -inf
    %5438 = vmax.xlane.f32.xlu0 %v5437
    %v5439 = vpop.xlane.xlu0 %5438
    %v5440 = vsel %vm5424, %v5235, -inf
    %5441 = vmax.xlane.f32.xlu0 %v5440
    %v5442 = vpop.xlane.xlu0 %5441
    %v5443 = vsel %vm5424, %v5240, -inf
    %5444 = vmax.xlane.f32.xlu0 %v5443
    %v5445 = vpop.xlane.xlu0 %5444
    %v5446 = vsel %vm5424, %v5245, -inf
    %5447 = vmax.xlane.f32.xlu0 %v5446
    %v5448 = vpop.xlane.xlu0 %5447
    %v5449 = vsel %vm5424, %v5250, -inf
    %5450 = vmax.xlane.f32.xlu0 %v5449
    %v5451 = vpop.xlane.xlu0 %5450
    %v5452 = vsel %vm5424, %v5255, -inf
    %5453 = vmax.xlane.f32.xlu0 %v5452
    %v5454 = vpop.xlane.xlu0 %5453
    %v5455 = vsel %vm5424, %v5260, -inf
    %5456 = vmax.xlane.f32.xlu0 %v5455
    %v5457 = vpop.xlane.xlu0 %5456
    %v5458 = vsel %vm5424, %v5265, -inf
    %5459 = vmax.xlane.f32.xlu0 %v5458
    %v5460 = vpop.xlane.xlu0 %5459
    %v5461 = vsel %vm5424, %v5270, -inf
    %5462 = vmax.xlane.f32.xlu0 %v5461
    %v5463 = vpop.xlane.xlu0 %5462
    %v5464 = vsel %vm5424, %v5275, -inf
    %5465 = vmax.xlane.f32.xlu0 %v5464
    %v5466 = vpop.xlane.xlu0 %5465
    %v5467 = vsel %vm5424, %v5280, -inf
    %5468 = vmax.xlane.f32.xlu0 %v5467
    %v5469 = vpop.xlane.xlu0 %5468
    %v5470 = vsel %vm5424, %v5285, -inf
    %5471 = vmax.xlane.f32.xlu0 %v5470
    %v5472 = vpop.xlane.xlu0 %5471
    %v5473 = vsel %vm5424, %v5290, -inf
    %5474 = vmax.xlane.f32.xlu0 %v5473
    %v5475 = vpop.xlane.xlu0 %5474
    %v5476 = vsel %vm5424, %v5295, -inf
    %5477 = vmax.xlane.f32.xlu0 %v5476
    %v5478 = vpop.xlane.xlu0 %5477
    %v5479 = vsel %vm5424, %v5300, -inf
    %5480 = vmax.xlane.f32.xlu0 %v5479
    %v5481 = vpop.xlane.xlu0 %5480
    %v5482 = vsel %vm5424, %v5305, -inf
    %5483 = vmax.xlane.f32.xlu0 %v5482
    %v5484 = vpop.xlane.xlu0 %5483
    %v5485 = vsel %vm5424, %v5310, -inf
    %5486 = vmax.xlane.f32.xlu0 %v5485
    %v5487 = vpop.xlane.xlu0 %5486
    %v5488 = vsel %vm5424, %v5315, -inf
    %5489 = vmax.xlane.f32.xlu0 %v5488
    %v5490 = vpop.xlane.xlu0 %5489
    %v5491 = vsel %vm5424, %v5320, -inf
    %5492 = vmax.xlane.f32.xlu0 %v5491
    %v5493 = vpop.xlane.xlu0 %5492
    %v5494 = vsel %vm5424, %v5325, -inf
    %5495 = vmax.xlane.f32.xlu0 %v5494
    %v5496 = vpop.xlane.xlu0 %5495
    %v5497 = vsel %vm5424, %v5330, -inf
    %5498 = vmax.xlane.f32.xlu0 %v5497
    %v5499 = vpop.xlane.xlu0 %5498
    %v5500 = vsel %vm5424, %v5335, -inf
    %5501 = vmax.xlane.f32.xlu0 %v5500
    %v5502 = vpop.xlane.xlu0 %5501
    %v5503 = vsel %vm5424, %v5340, -inf
    %5504 = vmax.xlane.f32.xlu0 %v5503
    %v5505 = vpop.xlane.xlu0 %5504
    %v5506 = vsel %vm5424, %v5345, -inf
    %5507 = vmax.xlane.f32.xlu0 %v5506
    %v5508 = vpop.xlane.xlu0 %5507
    %v5509 = vsel %vm5424, %v5350, -inf
    %5510 = vmax.xlane.f32.xlu0 %v5509
    %v5511 = vpop.xlane.xlu0 %5510
    %v5512 = vsel %vm5424, %v5355, -inf
    %5513 = vmax.xlane.f32.xlu0 %v5512
    %v5514 = vpop.xlane.xlu0 %5513
    %v5515 = vsel %vm5424, %v5360, -inf
    %5516 = vmax.xlane.f32.xlu0 %v5515
    %v5517 = vpop.xlane.xlu0 %5516
    %v5518 = vsel %vm5424, %v5365, -inf
    %5519 = vmax.xlane.f32.xlu0 %v5518
    %v5520 = vpop.xlane.xlu0 %5519
    %v5521 = vsel %vm5424, %v5370, -inf
    %5522 = vmax.xlane.f32.xlu0 %v5521
    %v5523 = vpop.xlane.xlu0 %5522
    %v5524 = vsel %vm5424, %v5375, -inf
    %5525 = vmax.xlane.f32.xlu0 %v5524
    %v5526 = vpop.xlane.xlu0 %5525
    %v5527 = vsel %vm5424, %v5380, -inf
    %5528 = vmax.xlane.f32.xlu0 %v5527
    %v5529 = vpop.xlane.xlu0 %5528
    %v5530 = vsel %vm5424, %v5385, -inf
    %5531 = vmax.xlane.f32.xlu0 %v5530
    %v5532 = vpop.xlane.xlu0 %5531
    %v5533 = vsub.f32 %v5210, %v5427
    %v5534 = vsub.f32 %v5215, %v5430
    %v5535 = vsub.f32 %v5220, %v5433
    %v5536 = vsub.f32 %v5225, %v5436
    %v5537 = vsub.f32 %v5230, %v5439
    %v5538 = vsub.f32 %v5235, %v5442
    %v5539 = vsub.f32 %v5240, %v5445
    %v5540 = vsub.f32 %v5245, %v5448
    %v5541 = vsub.f32 %v5250, %v5451
    %v5542 = vsub.f32 %v5255, %v5454
    %v5543 = vsub.f32 %v5260, %v5457
    %v5544 = vsub.f32 %v5265, %v5460
    %v5545 = vsub.f32 %v5270, %v5463
    %v5546 = vsub.f32 %v5275, %v5466
    %v5547 = vsub.f32 %v5280, %v5469
    %v5548 = vsub.f32 %v5285, %v5472
    %v5549 = vsub.f32 %v5290, %v5475
    %v5550 = vsub.f32 %v5295, %v5478
    %v5551 = vsub.f32 %v5300, %v5481
    %v5552 = vsub.f32 %v5305, %v5484
    %v5553 = vsub.f32 %v5310, %v5487
    %v5554 = vsub.f32 %v5315, %v5490
    %v5555 = vsub.f32 %v5320, %v5493
    %v5556 = vsub.f32 %v5325, %v5496
    %v5557 = vsub.f32 %v5330, %v5499
    %v5558 = vsub.f32 %v5335, %v5502
    %v5559 = vsub.f32 %v5340, %v5505
    %v5560 = vsub.f32 %v5345, %v5508
    %v5561 = vsub.f32 %v5350, %v5511
    %v5562 = vsub.f32 %v5355, %v5514
    %v5563 = vsub.f32 %v5360, %v5517
    %v5564 = vsub.f32 %v5365, %v5520
    %v5565 = vsub.f32 %v5370, %v5523
    %v5566 = vsub.f32 %v5375, %v5526
    %v5567 = vsub.f32 %v5380, %v5529
    %v5568 = vsub.f32 %v5385, %v5532
    %v5569 = vmul.f32 %v5533, 1.442695
    %v5570 = vpow.pop %v5569
    %v5571 = vmul.f32 %v5534, 1.442695
    %v5572 = vpow.pop %v5571
    %v5573 = vmul.f32 %v5535, 1.442695
    %v5574 = vpow.pop %v5573
    %v5575 = vmul.f32 %v5536, 1.442695
    %v5576 = vpow.pop %v5575
    %v5577 = vmul.f32 %v5537, 1.442695
    %v5578 = vpow.pop %v5577
    %v5579 = vmul.f32 %v5538, 1.442695
    %v5580 = vpow.pop %v5579
    %v5581 = vmul.f32 %v5539, 1.442695
    %v5582 = vpow.pop %v5581
    %v5583 = vmul.f32 %v5540, 1.442695
    %v5584 = vpow.pop %v5583
    %v5585 = vmul.f32 %v5541, 1.442695
    %v5586 = vpow.pop %v5585
    %v5587 = vmul.f32 %v5542, 1.442695
    %v5588 = vpow.pop %v5587
    %v5589 = vmul.f32 %v5543, 1.442695
    %v5590 = vpow.pop %v5589
    %v5591 = vmul.f32 %v5544, 1.442695
    %v5592 = vpow.pop %v5591
    %v5593 = vmul.f32 %v5545, 1.442695
    %v5594 = vpow.pop %v5593
    %v5595 = vmul.f32 %v5546, 1.442695
    %v5596 = vpow.pop %v5595
    %v5597 = vmul.f32 %v5547, 1.442695
    %v5598 = vpow.pop %v5597
    %v5599 = vmul.f32 %v5548, 1.442695
    %v5600 = vpow.pop %v5599
    %v5601 = vmul.f32 %v5549, 1.442695
    %v5602 = vpow.pop %v5601
    %v5603 = vmul.f32 %v5550, 1.442695
    %v5604 = vpow.pop %v5603
    %v5605 = vmul.f32 %v5551, 1.442695
    %v5606 = vpow.pop %v5605
    %v5607 = vmul.f32 %v5552, 1.442695
    %v5608 = vpow.pop %v5607
    %v5609 = vmul.f32 %v5553, 1.442695
    %v5610 = vpow.pop %v5609
    %v5611 = vmul.f32 %v5554, 1.442695
    %v5612 = vpow.pop %v5611
    %v5613 = vmul.f32 %v5555, 1.442695
    %v5614 = vpow.pop %v5613
    %v5615 = vmul.f32 %v5556, 1.442695
    %v5616 = vpow.pop %v5615
    %v5617 = vmul.f32 %v5557, 1.442695
    %v5618 = vpow.pop %v5617
    %v5619 = vmul.f32 %v5558, 1.442695
    %v5620 = vpow.pop %v5619
    %v5621 = vmul.f32 %v5559, 1.442695
    %v5622 = vpow.pop %v5621
    %v5623 = vmul.f32 %v5560, 1.442695
    %v5624 = vpow.pop %v5623
    %v5625 = vmul.f32 %v5561, 1.442695
    %v5626 = vpow.pop %v5625
    %v5627 = vmul.f32 %v5562, 1.442695
    %v5628 = vpow.pop %v5627
    %v5629 = vmul.f32 %v5563, 1.442695
    %v5630 = vpow.pop %v5629
    %v5631 = vmul.f32 %v5564, 1.442695
    %v5632 = vpow.pop %v5631
    %v5633 = vmul.f32 %v5565, 1.442695
    %v5634 = vpow.pop %v5633
    %v5635 = vmul.f32 %v5566, 1.442695
    %v5636 = vpow.pop %v5635
    %v5637 = vmul.f32 %v5567, 1.442695
    %v5638 = vpow.pop %v5637
    %v5639 = vmul.f32 %v5568, 1.442695
    %v5640 = vpow.pop %v5639
    %v5641 = vsel %vm5424, %v5570, 0.0
    %5642 = vadd.xlane.f32.xlu0 %v5641
    %v5643 = vpop.xlane.xlu0 %5642
    %v5644 = vsel %vm5424, %v5572, 0.0
    %5645 = vadd.xlane.f32.xlu0 %v5644
    %v5646 = vpop.xlane.xlu0 %5645
    %v5647 = vsel %vm5424, %v5574, 0.0
    %5648 = vadd.xlane.f32.xlu0 %v5647
    %v5649 = vpop.xlane.xlu0 %5648
    %v5650 = vsel %vm5424, %v5576, 0.0
    %5651 = vadd.xlane.f32.xlu0 %v5650
    %v5652 = vpop.xlane.xlu0 %5651
    %v5653 = vsel %vm5424, %v5578, 0.0
    %5654 = vadd.xlane.f32.xlu0 %v5653
    %v5655 = vpop.xlane.xlu0 %5654
    %v5656 = vsel %vm5424, %v5580, 0.0
    %5657 = vadd.xlane.f32.xlu0 %v5656
    %v5658 = vpop.xlane.xlu0 %5657
    %v5659 = vsel %vm5424, %v5582, 0.0
    %5660 = vadd.xlane.f32.xlu0 %v5659
    %v5661 = vpop.xlane.xlu0 %5660
    %v5662 = vsel %vm5424, %v5584, 0.0
    %5663 = vadd.xlane.f32.xlu0 %v5662
    %v5664 = vpop.xlane.xlu0 %5663
    %v5665 = vsel %vm5424, %v5586, 0.0
    %5666 = vadd.xlane.f32.xlu0 %v5665
    %v5667 = vpop.xlane.xlu0 %5666
    %v5668 = vsel %vm5424, %v5588, 0.0
    %5669 = vadd.xlane.f32.xlu0 %v5668
    %v5670 = vpop.xlane.xlu0 %5669
    %v5671 = vsel %vm5424, %v5590, 0.0
    %5672 = vadd.xlane.f32.xlu0 %v5671
    %v5673 = vpop.xlane.xlu0 %5672
    %v5674 = vsel %vm5424, %v5592, 0.0
    %5675 = vadd.xlane.f32.xlu0 %v5674
    %v5676 = vpop.xlane.xlu0 %5675
    %v5677 = vsel %vm5424, %v5594, 0.0
    %5678 = vadd.xlane.f32.xlu0 %v5677
    %v5679 = vpop.xlane.xlu0 %5678
    %v5680 = vsel %vm5424, %v5596, 0.0
    %5681 = vadd.xlane.f32.xlu0 %v5680
    %v5682 = vpop.xlane.xlu0 %5681
    %v5683 = vsel %vm5424, %v5598, 0.0
    %5684 = vadd.xlane.f32.xlu0 %v5683
    %v5685 = vpop.xlane.xlu0 %5684
    %v5686 = vsel %vm5424, %v5600, 0.0
    %5687 = vadd.xlane.f32.xlu0 %v5686
    %v5688 = vpop.xlane.xlu0 %5687
    %v5689 = vsel %vm5424, %v5602, 0.0
    %5690 = vadd.xlane.f32.xlu0 %v5689
    %v5691 = vpop.xlane.xlu0 %5690
    %v5692 = vsel %vm5424, %v5604, 0.0
    %5693 = vadd.xlane.f32.xlu0 %v5692
    %v5694 = vpop.xlane.xlu0 %5693
    %v5695 = vsel %vm5424, %v5606, 0.0
    %5696 = vadd.xlane.f32.xlu0 %v5695
    %v5697 = vpop.xlane.xlu0 %5696
    %v5698 = vsel %vm5424, %v5608, 0.0
    %5699 = vadd.xlane.f32.xlu0 %v5698
    %v5700 = vpop.xlane.xlu0 %5699
    %v5701 = vsel %vm5424, %v5610, 0.0
    %5702 = vadd.xlane.f32.xlu0 %v5701
    %v5703 = vpop.xlane.xlu0 %5702
    %v5704 = vsel %vm5424, %v5612, 0.0
    %5705 = vadd.xlane.f32.xlu0 %v5704
    %v5706 = vpop.xlane.xlu0 %5705
    %v5707 = vsel %vm5424, %v5614, 0.0
    %5708 = vadd.xlane.f32.xlu0 %v5707
    %v5709 = vpop.xlane.xlu0 %5708
    %v5710 = vsel %vm5424, %v5616, 0.0
    %5711 = vadd.xlane.f32.xlu0 %v5710
    %v5712 = vpop.xlane.xlu0 %5711
    %v5713 = vsel %vm5424, %v5618, 0.0
    %5714 = vadd.xlane.f32.xlu0 %v5713
    %v5715 = vpop.xlane.xlu0 %5714
    %v5716 = vsel %vm5424, %v5620, 0.0
    %5717 = vadd.xlane.f32.xlu0 %v5716
    %v5718 = vpop.xlane.xlu0 %5717
    %v5719 = vsel %vm5424, %v5622, 0.0
    %5720 = vadd.xlane.f32.xlu0 %v5719
    %v5721 = vpop.xlane.xlu0 %5720
    %v5722 = vsel %vm5424, %v5624, 0.0
    %5723 = vadd.xlane.f32.xlu0 %v5722
    %v5724 = vpop.xlane.xlu0 %5723
    %v5725 = vsel %vm5424, %v5626, 0.0
    %5726 = vadd.xlane.f32.xlu0 %v5725
    %v5727 = vpop.xlane.xlu0 %5726
    %v5728 = vsel %vm5424, %v5628, 0.0
    %5729 = vadd.xlane.f32.xlu0 %v5728
    %v5730 = vpop.xlane.xlu0 %5729
    %v5731 = vsel %vm5424, %v5630, 0.0
    %5732 = vadd.xlane.f32.xlu0 %v5731
    %v5733 = vpop.xlane.xlu0 %5732
    %v5734 = vsel %vm5424, %v5632, 0.0
    %5735 = vadd.xlane.f32.xlu0 %v5734
    %v5736 = vpop.xlane.xlu0 %5735
    %v5737 = vsel %vm5424, %v5634, 0.0
    %5738 = vadd.xlane.f32.xlu0 %v5737
    %v5739 = vpop.xlane.xlu0 %5738
    %v5740 = vsel %vm5424, %v5636, 0.0
    %5741 = vadd.xlane.f32.xlu0 %v5740
    %v5742 = vpop.xlane.xlu0 %5741
    %v5743 = vsel %vm5424, %v5638, 0.0
    %5744 = vadd.xlane.f32.xlu0 %v5743
    %v5745 = vpop.xlane.xlu0 %5744
    %v5746 = vsel %vm5424, %v5640, 0.0
    %5747 = vadd.xlane.f32.xlu0 %v5746
    %v5748 = vpop.xlane.xlu0 %5747
    %v5749 = vlog2.pop %v5643
    %v5750 = vmul.f32 %v5749, 0.6931472
    %v5751 = vlog2.pop %v5646
    %v5752 = vmul.f32 %v5751, 0.6931472
    %v5753 = vlog2.pop %v5649
    %v5754 = vmul.f32 %v5753, 0.6931472
    %v5755 = vlog2.pop %v5652
    %v5756 = vmul.f32 %v5755, 0.6931472
    %v5757 = vlog2.pop %v5655
    %v5758 = vmul.f32 %v5757, 0.6931472
    %v5759 = vlog2.pop %v5658
    %v5760 = vmul.f32 %v5759, 0.6931472
    %v5761 = vlog2.pop %v5661
    %v5762 = vmul.f32 %v5761, 0.6931472
    %v5763 = vlog2.pop %v5664
    %v5764 = vmul.f32 %v5763, 0.6931472
    %v5765 = vlog2.pop %v5667
    %v5766 = vmul.f32 %v5765, 0.6931472
    %v5767 = vlog2.pop %v5670
    %v5768 = vmul.f32 %v5767, 0.6931472
    %v5769 = vlog2.pop %v5673
    %v5770 = vmul.f32 %v5769, 0.6931472
    %v5771 = vlog2.pop %v5676
    %v5772 = vmul.f32 %v5771, 0.6931472
    %v5773 = vlog2.pop %v5679
    %v5774 = vmul.f32 %v5773, 0.6931472
    %v5775 = vlog2.pop %v5682
    %v5776 = vmul.f32 %v5775, 0.6931472
    %v5777 = vlog2.pop %v5685
    %v5778 = vmul.f32 %v5777, 0.6931472
    %v5779 = vlog2.pop %v5688
    %v5780 = vmul.f32 %v5779, 0.6931472
    %v5781 = vlog2.pop %v5691
    %v5782 = vmul.f32 %v5781, 0.6931472
    %v5783 = vlog2.pop %v5694
    %v5784 = vmul.f32 %v5783, 0.6931472
    %v5785 = vlog2.pop %v5697
    %v5786 = vmul.f32 %v5785, 0.6931472
    %v5787 = vlog2.pop %v5700
    %v5788 = vmul.f32 %v5787, 0.6931472
    %v5789 = vlog2.pop %v5703
    %v5790 = vmul.f32 %v5789, 0.6931472
    %v5791 = vlog2.pop %v5706
    %v5792 = vmul.f32 %v5791, 0.6931472
    %v5793 = vlog2.pop %v5709
    %v5794 = vmul.f32 %v5793, 0.6931472
    %v5795 = vlog2.pop %v5712
    %v5796 = vmul.f32 %v5795, 0.6931472
    %v5797 = vlog2.pop %v5715
    %v5798 = vmul.f32 %v5797, 0.6931472
    %v5799 = vlog2.pop %v5718
    %v5800 = vmul.f32 %v5799, 0.6931472
    %v5801 = vlog2.pop %v5721
    %v5802 = vmul.f32 %v5801, 0.6931472
    %v5803 = vlog2.pop %v5724
    %v5804 = vmul.f32 %v5803, 0.6931472
    %v5805 = vlog2.pop %v5727
    %v5806 = vmul.f32 %v5805, 0.6931472
    %v5807 = vlog2.pop %v5730
    %v5808 = vmul.f32 %v5807, 0.6931472
    %v5809 = vlog2.pop %v5733
    %v5810 = vmul.f32 %v5809, 0.6931472
    %v5811 = vlog2.pop %v5736
    %v5812 = vmul.f32 %v5811, 0.6931472
    %v5813 = vlog2.pop %v5739
    %v5814 = vmul.f32 %v5813, 0.6931472
    %v5815 = vlog2.pop %v5742
    %v5816 = vmul.f32 %v5815, 0.6931472
    %v5817 = vlog2.pop %v5745
    %v5818 = vmul.f32 %v5817, 0.6931472
    %v5819 = vlog2.pop %v5748
    %v5820 = vmul.f32 %v5819, 0.6931472
    %v5821 = vadd.f32 %v5750, %v5427
    %v5822 = vadd.f32 %v5752, %v5430
    %v5823 = vadd.f32 %v5754, %v5433
    %v5824 = vadd.f32 %v5756, %v5436
    %v5825 = vadd.f32 %v5758, %v5439
    %v5826 = vadd.f32 %v5760, %v5442
    %v5827 = vadd.f32 %v5762, %v5445
    %v5828 = vadd.f32 %v5764, %v5448
    %v5829 = vadd.f32 %v5766, %v5451
    %v5830 = vadd.f32 %v5768, %v5454
    %v5831 = vadd.f32 %v5770, %v5457
    %v5832 = vadd.f32 %v5772, %v5460
    %v5833 = vadd.f32 %v5774, %v5463
    %v5834 = vadd.f32 %v5776, %v5466
    %v5835 = vadd.f32 %v5778, %v5469
    %v5836 = vadd.f32 %v5780, %v5472
    %v5837 = vadd.f32 %v5782, %v5475
    %v5838 = vadd.f32 %v5784, %v5478
    %v5839 = vadd.f32 %v5786, %v5481
    %v5840 = vadd.f32 %v5788, %v5484
    %v5841 = vadd.f32 %v5790, %v5487
    %v5842 = vadd.f32 %v5792, %v5490
    %v5843 = vadd.f32 %v5794, %v5493
    %v5844 = vadd.f32 %v5796, %v5496
    %v5845 = vadd.f32 %v5798, %v5499
    %v5846 = vadd.f32 %v5800, %v5502
    %v5847 = vadd.f32 %v5802, %v5505
    %v5848 = vadd.f32 %v5804, %v5508
    %v5849 = vadd.f32 %v5806, %v5511
    %v5850 = vadd.f32 %v5808, %v5514
    %v5851 = vadd.f32 %v5810, %v5517
    %v5852 = vadd.f32 %v5812, %v5520
    %v5853 = vadd.f32 %v5814, %v5523
    %v5854 = vadd.f32 %v5816, %v5526
    %v5855 = vadd.f32 %v5818, %v5529
    %v5856 = vadd.f32 %v5820, %v5532
    %v5857 = vld [vmem:[%s9] sm:$0xff]
    %v5858 = vld [vmem:[%s9 + $0x8] sm:$0xff]
    %v5859 = vld [vmem:[%s9 + $0x10] sm:$0xff]
    %v5860 = vld [vmem:[%s9 + $0x18] sm:$0xff]
    %v5861 = vld [vmem:[%s9 + $0x20] sm:$0xff]
    %v5862 = vld [vmem:[%s9 + $0x28] sm:$0xff]
    %v5863 = vld [vmem:[%s9 + $0x30] sm:$0xff]
    %v5864 = vld [vmem:[%s9 + $0x38] sm:$0xff]
    %v5865 = vld [vmem:[%s9 + $0x40] sm:$0xff]
    %v5866 = vld [vmem:[%s9 + $0x48] sm:$0xff]
    %v5867 = vld [vmem:[%s9 + $0x50] sm:$0xff]
    %v5868 = vld [vmem:[%s9 + $0x58] sm:$0xff]
    %v5869 = vld [vmem:[%s9 + $0x60] sm:$0xff]
    %v5870 = vld [vmem:[%s9 + $0x68] sm:$0xff]
    %v5871 = vld [vmem:[%s9 + $0x70] sm:$0xff]
    %v5872 = vld [vmem:[%s9 + $0x78] sm:$0xff]
    %v5873 = vld [vmem:[%s9 + $0x80] sm:$0xff]
    %v5874 = vld [vmem:[%s9 + $0x88] sm:$0xff]
    %v5875 = vld [vmem:[%s9 + $0x90] sm:$0xff]
    %v5876 = vld [vmem:[%s9 + $0x98] sm:$0xff]
    %v5877 = vld [vmem:[%s9 + $0xa0] sm:$0xff]
    %v5878 = vld [vmem:[%s9 + $0xa8] sm:$0xff]
    %v5879 = vld [vmem:[%s9 + $0xb0] sm:$0xff]
    %v5880 = vld [vmem:[%s9 + $0xb8] sm:$0xff]
    %v5881 = vld [vmem:[%s9 + $0xc0] sm:$0xff]
    %v5882 = vld [vmem:[%s9 + $0xc8] sm:$0xff]
    %v5883 = vld [vmem:[%s9 + $0xd0] sm:$0xff]
    %v5884 = vld [vmem:[%s9 + $0xd8] sm:$0xff]
    %v5885 = vld [vmem:[%s9 + $0xe0] sm:$0xff]
    %v5886 = vld [vmem:[%s9 + $0xe8] sm:$0xff]
    %v5887 = vld [vmem:[%s9 + $0xf0] sm:$0xff]
    %v5888 = vld [vmem:[%s9 + $0xf8] sm:$0xff]
    %v5889 = vld [vmem:[%s9 + $0x100] sm:$0xff]
    %v5890 = vld [vmem:[%s9 + $0x108] sm:$0xff]
    %v5891 = vld [vmem:[%s9 + $0x110] sm:$0xff]
    %v5892 = vld [vmem:[%s9 + $0x118] sm:$0xff]
    %v5893 = vmul.f32 %v5210, %v5857
    %v5894 = vmul.f32 %v5215, %v5858
    %v5895 = vmul.f32 %v5220, %v5859
    %v5896 = vmul.f32 %v5225, %v5860
    %v5897 = vmul.f32 %v5230, %v5861
    %v5898 = vmul.f32 %v5235, %v5862
    %v5899 = vmul.f32 %v5240, %v5863
    %v5900 = vmul.f32 %v5245, %v5864
    %v5901 = vmul.f32 %v5250, %v5865
    %v5902 = vmul.f32 %v5255, %v5866
    %v5903 = vmul.f32 %v5260, %v5867
    %v5904 = vmul.f32 %v5265, %v5868
    %v5905 = vmul.f32 %v5270, %v5869
    %v5906 = vmul.f32 %v5275, %v5870
    %v5907 = vmul.f32 %v5280, %v5871
    %v5908 = vmul.f32 %v5285, %v5872
    %v5909 = vmul.f32 %v5290, %v5873
    %v5910 = vmul.f32 %v5295, %v5874
    %v5911 = vmul.f32 %v5300, %v5875
    %v5912 = vmul.f32 %v5305, %v5876
    %v5913 = vmul.f32 %v5310, %v5877
    %v5914 = vmul.f32 %v5315, %v5878
    %v5915 = vmul.f32 %v5320, %v5879
    %v5916 = vmul.f32 %v5325, %v5880
    %v5917 = vmul.f32 %v5330, %v5881
    %v5918 = vmul.f32 %v5335, %v5882
    %v5919 = vmul.f32 %v5340, %v5883
    %v5920 = vmul.f32 %v5345, %v5884
    %v5921 = vmul.f32 %v5350, %v5885
    %v5922 = vmul.f32 %v5355, %v5886
    %v5923 = vmul.f32 %v5360, %v5887
    %v5924 = vmul.f32 %v5365, %v5888
    %v5925 = vmul.f32 %v5370, %v5889
    %v5926 = vmul.f32 %v5375, %v5890
    %v5927 = vmul.f32 %v5380, %v5891
    %v5928 = vmul.f32 %v5385, %v5892
    %v5929 = vsel %vm5424, %v5893, 0.0
    %5930 = vadd.xlane.f32.xlu0 %v5929
    %v5931 = vpop.xlane.xlu0 %5930
    %v5932 = vsel %vm5424, %v5894, 0.0
    %5933 = vadd.xlane.f32.xlu0 %v5932
    %v5934 = vpop.xlane.xlu0 %5933
    %v5935 = vsel %vm5424, %v5895, 0.0
    %5936 = vadd.xlane.f32.xlu0 %v5935
    %v5937 = vpop.xlane.xlu0 %5936
    %v5938 = vsel %vm5424, %v5896, 0.0
    %5939 = vadd.xlane.f32.xlu0 %v5938
    %v5940 = vpop.xlane.xlu0 %5939
    %v5941 = vsel %vm5424, %v5897, 0.0
    %5942 = vadd.xlane.f32.xlu0 %v5941
    %v5943 = vpop.xlane.xlu0 %5942
    %v5944 = vsel %vm5424, %v5898, 0.0
    %5945 = vadd.xlane.f32.xlu0 %v5944
    %v5946 = vpop.xlane.xlu0 %5945
    %v5947 = vsel %vm5424, %v5899, 0.0
    %5948 = vadd.xlane.f32.xlu0 %v5947
    %v5949 = vpop.xlane.xlu0 %5948
    %v5950 = vsel %vm5424, %v5900, 0.0
    %5951 = vadd.xlane.f32.xlu0 %v5950
    %v5952 = vpop.xlane.xlu0 %5951
    %v5953 = vsel %vm5424, %v5901, 0.0
    %5954 = vadd.xlane.f32.xlu0 %v5953
    %v5955 = vpop.xlane.xlu0 %5954
    %v5956 = vsel %vm5424, %v5902, 0.0
    %5957 = vadd.xlane.f32.xlu0 %v5956
    %v5958 = vpop.xlane.xlu0 %5957
    %v5959 = vsel %vm5424, %v5903, 0.0
    %5960 = vadd.xlane.f32.xlu0 %v5959
    %v5961 = vpop.xlane.xlu0 %5960
    %v5962 = vsel %vm5424, %v5904, 0.0
    %5963 = vadd.xlane.f32.xlu0 %v5962
    %v5964 = vpop.xlane.xlu0 %5963
    %v5965 = vsel %vm5424, %v5905, 0.0
    %5966 = vadd.xlane.f32.xlu0 %v5965
    %v5967 = vpop.xlane.xlu0 %5966
    %v5968 = vsel %vm5424, %v5906, 0.0
    %5969 = vadd.xlane.f32.xlu0 %v5968
    %v5970 = vpop.xlane.xlu0 %5969
    %v5971 = vsel %vm5424, %v5907, 0.0
    %5972 = vadd.xlane.f32.xlu0 %v5971
    %v5973 = vpop.xlane.xlu0 %5972
    %v5974 = vsel %vm5424, %v5908, 0.0
    %5975 = vadd.xlane.f32.xlu0 %v5974
    %v5976 = vpop.xlane.xlu0 %5975
    %v5977 = vsel %vm5424, %v5909, 0.0
    %5978 = vadd.xlane.f32.xlu0 %v5977
    %v5979 = vpop.xlane.xlu0 %5978
    %v5980 = vsel %vm5424, %v5910, 0.0
    %5981 = vadd.xlane.f32.xlu0 %v5980
    %v5982 = vpop.xlane.xlu0 %5981
    %v5983 = vsel %vm5424, %v5911, 0.0
    %5984 = vadd.xlane.f32.xlu0 %v5983
    %v5985 = vpop.xlane.xlu0 %5984
    %v5986 = vsel %vm5424, %v5912, 0.0
    %5987 = vadd.xlane.f32.xlu0 %v5986
    %v5988 = vpop.xlane.xlu0 %5987
    %v5989 = vsel %vm5424, %v5913, 0.0
    %5990 = vadd.xlane.f32.xlu0 %v5989
    %v5991 = vpop.xlane.xlu0 %5990
    %v5992 = vsel %vm5424, %v5914, 0.0
    %5993 = vadd.xlane.f32.xlu0 %v5992
    %v5994 = vpop.xlane.xlu0 %5993
    %v5995 = vsel %vm5424, %v5915, 0.0
    %5996 = vadd.xlane.f32.xlu0 %v5995
    %v5997 = vpop.xlane.xlu0 %5996
    %v5998 = vsel %vm5424, %v5916, 0.0
    %5999 = vadd.xlane.f32.xlu0 %v5998
    %v6000 = vpop.xlane.xlu0 %5999
    %v6001 = vsel %vm5424, %v5917, 0.0
    %6002 = vadd.xlane.f32.xlu0 %v6001
    %v6003 = vpop.xlane.xlu0 %6002
    %v6004 = vsel %vm5424, %v5918, 0.0
    %6005 = vadd.xlane.f32.xlu0 %v6004
    %v6006 = vpop.xlane.xlu0 %6005
    %v6007 = vsel %vm5424, %v5919, 0.0
    %6008 = vadd.xlane.f32.xlu0 %v6007
    %v6009 = vpop.xlane.xlu0 %6008
    %v6010 = vsel %vm5424, %v5920, 0.0
    %6011 = vadd.xlane.f32.xlu0 %v6010
    %v6012 = vpop.xlane.xlu0 %6011
    %v6013 = vsel %vm5424, %v5921, 0.0
    %6014 = vadd.xlane.f32.xlu0 %v6013
    %v6015 = vpop.xlane.xlu0 %6014
    %v6016 = vsel %vm5424, %v5922, 0.0
    %6017 = vadd.xlane.f32.xlu0 %v6016
    %v6018 = vpop.xlane.xlu0 %6017
    %v6019 = vsel %vm5424, %v5923, 0.0
    %6020 = vadd.xlane.f32.xlu0 %v6019
    %v6021 = vpop.xlane.xlu0 %6020
    %v6022 = vsel %vm5424, %v5924, 0.0
    %6023 = vadd.xlane.f32.xlu0 %v6022
    %v6024 = vpop.xlane.xlu0 %6023
    %v6025 = vsel %vm5424, %v5925, 0.0
    %6026 = vadd.xlane.f32.xlu0 %v6025
    %v6027 = vpop.xlane.xlu0 %6026
    %v6028 = vsel %vm5424, %v5926, 0.0
    %6029 = vadd.xlane.f32.xlu0 %v6028
    %v6030 = vpop.xlane.xlu0 %6029
    %v6031 = vsel %vm5424, %v5927, 0.0
    %6032 = vadd.xlane.f32.xlu0 %v6031
    %v6033 = vpop.xlane.xlu0 %6032
    %v6034 = vsel %vm5424, %v5928, 0.0
    %6035 = vadd.xlane.f32.xlu0 %v6034
    %v6036 = vpop.xlane.xlu0 %6035
    %v6037 = vsub.f32 %v5821, %v5931
    %v6038 = vsub.f32 %v5822, %v5934
    %v6039 = vsub.f32 %v5823, %v5937
    %v6040 = vsub.f32 %v5824, %v5940
    %v6041 = vsub.f32 %v5825, %v5943
    %v6042 = vsub.f32 %v5826, %v5946
    %v6043 = vsub.f32 %v5827, %v5949
    %v6044 = vsub.f32 %v5828, %v5952
    %v6045 = vsub.f32 %v5829, %v5955
    %v6046 = vsub.f32 %v5830, %v5958
    %v6047 = vsub.f32 %v5831, %v5961
    %v6048 = vsub.f32 %v5832, %v5964
    %v6049 = vsub.f32 %v5833, %v5967
    %v6050 = vsub.f32 %v5834, %v5970
    %v6051 = vsub.f32 %v5835, %v5973
    %v6052 = vsub.f32 %v5836, %v5976
    %v6053 = vsub.f32 %v5837, %v5979
    %v6054 = vsub.f32 %v5838, %v5982
    %v6055 = vsub.f32 %v5839, %v5985
    %v6056 = vsub.f32 %v5840, %v5988
    %v6057 = vsub.f32 %v5841, %v5991
    %v6058 = vsub.f32 %v5842, %v5994
    %v6059 = vsub.f32 %v5843, %v5997
    %v6060 = vsub.f32 %v5844, %v6000
    %v6061 = vsub.f32 %v5845, %v6003
    %v6062 = vsub.f32 %v5846, %v6006
    %v6063 = vsub.f32 %v5847, %v6009
    %v6064 = vsub.f32 %v5848, %v6012
    %v6065 = vsub.f32 %v5849, %v6015
    %v6066 = vsub.f32 %v5850, %v6018
    %v6067 = vsub.f32 %v5851, %v6021
    %v6068 = vsub.f32 %v5852, %v6024
    %v6069 = vsub.f32 %v5853, %v6027
    %v6070 = vsub.f32 %v5854, %v6030
    %v6071 = vsub.f32 %v5855, %v6033
    %v6072 = vsub.f32 %v5856, %v6036
    %v6073 = vmul.f32 %v5388, %v6037
    %v6074 = vmul.f32 %v5389, %v6038
    %v6075 = vmul.f32 %v5390, %v6039
    %v6076 = vmul.f32 %v5391, %v6040
    %v6077 = vmul.f32 %v5392, %v6041
    %v6078 = vmul.f32 %v5393, %v6042
    %v6079 = vmul.f32 %v5394, %v6043
    %v6080 = vmul.f32 %v5395, %v6044
    %v6081 = vmul.f32 %v5396, %v6045
    %v6082 = vmul.f32 %v5397, %v6046
    %v6083 = vmul.f32 %v5398, %v6047
    %v6084 = vmul.f32 %v5399, %v6048
    %v6085 = vmul.f32 %v5400, %v6049
    %v6086 = vmul.f32 %v5401, %v6050
    %v6087 = vmul.f32 %v5402, %v6051
    %v6088 = vmul.f32 %v5403, %v6052
    %v6089 = vmul.f32 %v5404, %v6053
    %v6090 = vmul.f32 %v5405, %v6054
    %v6091 = vmul.f32 %v5406, %v6055
    %v6092 = vmul.f32 %v5407, %v6056
    %v6093 = vmul.f32 %v5408, %v6057
    %v6094 = vmul.f32 %v5409, %v6058
    %v6095 = vmul.f32 %v5410, %v6059
    %v6096 = vmul.f32 %v5411, %v6060
    %v6097 = vmul.f32 %v5412, %v6061
    %v6098 = vmul.f32 %v5413, %v6062
    %v6099 = vmul.f32 %v5414, %v6063
    %v6100 = vmul.f32 %v5415, %v6064
    %v6101 = vmul.f32 %v5416, %v6065
    %v6102 = vmul.f32 %v5417, %v6066
    %v6103 = vmul.f32 %v5418, %v6067
    %v6104 = vmul.f32 %v5419, %v6068
    %v6105 = vmul.f32 %v5420, %v6069
    %v6106 = vmul.f32 %v5421, %v6070
    %v6107 = vmul.f32 %v5422, %v6071
    %v6108 = vmul.f32 %v5423, %v6072
    %vm6109 = vcmask 7168
    %v6110 = vsel %vm6109, %v6073, 0.0
    %v6111 = vsel %vm6109, %v6074, 0.0
    %v6112 = vadd.f32 %v6110, %v6111
    %v6113 = vsel %vm6109, %v6075, 0.0
    %v6114 = vadd.f32 %v6112, %v6113
    %v6115 = vsel %vm6109, %v6076, 0.0
    %v6116 = vadd.f32 %v6114, %v6115
    %v6117 = vsel %vm6109, %v6077, 0.0
    %v6118 = vadd.f32 %v6116, %v6117
    %v6119 = vsel %vm6109, %v6078, 0.0
    %v6120 = vadd.f32 %v6118, %v6119
    %v6121 = vsel %vm6109, %v6079, 0.0
    %v6122 = vadd.f32 %v6120, %v6121
    %v6123 = vsel %vm6109, %v6080, 0.0
    %v6124 = vadd.f32 %v6122, %v6123
    %v6125 = vsel %vm6109, %v6081, 0.0
    %v6126 = vadd.f32 %v6124, %v6125
    %v6127 = vsel %vm6109, %v6082, 0.0
    %v6128 = vadd.f32 %v6126, %v6127
    %v6129 = vsel %vm6109, %v6083, 0.0
    %v6130 = vadd.f32 %v6128, %v6129
    %v6131 = vsel %vm6109, %v6084, 0.0
    %v6132 = vadd.f32 %v6130, %v6131
    %v6133 = vsel %vm6109, %v6085, 0.0
    %v6134 = vadd.f32 %v6132, %v6133
    %v6135 = vsel %vm6109, %v6086, 0.0
    %v6136 = vadd.f32 %v6134, %v6135
    %v6137 = vsel %vm6109, %v6087, 0.0
    %v6138 = vadd.f32 %v6136, %v6137
    %v6139 = vsel %vm6109, %v6088, 0.0
    %v6140 = vadd.f32 %v6138, %v6139
    %v6141 = vsel %vm6109, %v6089, 0.0
    %v6142 = vadd.f32 %v6140, %v6141
    %v6143 = vsel %vm6109, %v6090, 0.0
    %v6144 = vadd.f32 %v6142, %v6143
    %v6145 = vsel %vm6109, %v6091, 0.0
    %v6146 = vadd.f32 %v6144, %v6145
    %v6147 = vsel %vm6109, %v6092, 0.0
    %v6148 = vadd.f32 %v6146, %v6147
    %v6149 = vsel %vm6109, %v6093, 0.0
    %v6150 = vadd.f32 %v6148, %v6149
    %v6151 = vsel %vm6109, %v6094, 0.0
    %v6152 = vadd.f32 %v6150, %v6151
    %v6153 = vsel %vm6109, %v6095, 0.0
    %v6154 = vadd.f32 %v6152, %v6153
    %v6155 = vsel %vm6109, %v6096, 0.0
    %v6156 = vadd.f32 %v6154, %v6155
    %v6157 = vsel %vm6109, %v6097, 0.0
    %v6158 = vadd.f32 %v6156, %v6157
    %v6159 = vsel %vm6109, %v6098, 0.0
    %v6160 = vadd.f32 %v6158, %v6159
    %v6161 = vsel %vm6109, %v6099, 0.0
    %v6162 = vadd.f32 %v6160, %v6161
    %v6163 = vsel %vm6109, %v6100, 0.0
    %v6164 = vadd.f32 %v6162, %v6163
    %v6165 = vsel %vm6109, %v6101, 0.0
    %v6166 = vadd.f32 %v6164, %v6165
    %v6167 = vsel %vm6109, %v6102, 0.0
    %v6168 = vadd.f32 %v6166, %v6167
    %v6169 = vsel %vm6109, %v6103, 0.0
    %v6170 = vadd.f32 %v6168, %v6169
    %v6171 = vsel %vm6109, %v6104, 0.0
    %v6172 = vadd.f32 %v6170, %v6171
    %v6173 = vsel %vm6109, %v6105, 0.0
    %v6174 = vadd.f32 %v6172, %v6173
    %v6175 = vsel %vm6109, %v6106, 0.0
    %v6176 = vadd.f32 %v6174, %v6175
    %v6177 = vsel %vm6109, %v6107, 0.0
    %v6178 = vadd.f32 %v6176, %v6177
    %v6179 = vsel %vm6109, %v6108, 0.0
    %v6180 = vadd.f32 %v6178, %v6179
    %6181 = vadd.xlane.f32.xlu0 %v6180
    %v6182 = vpop.xlane.xlu0 %6181
    %v6183 = vrot.slane %v6182, 4
    %v6184 = vadd.f32 %v6182, %v6183
    %v6185 = vrot.slane %v6184, 2
    %v6186 = vadd.f32 %v6184, %v6185
    %v6187 = vrot.slane %v6186, 1
    %v6188 = vadd.f32 %v6186, %v6187
    %s6189 = vtos %v6188
    %s6190 = scalar_lea.smem [#allocation4], 0
    %6191 = sst [smem:[%s6190]] %s6189
    %v6192 = vlaneseq
    %v6193 = vand.u32 %v6192, 127
    %vm6194 = vcmp.eq.f32.partialorder %v5210, %v5427
    %vm6195 = vcmp.eq.f32.partialorder %v5215, %v5430
    %vm6196 = vcmp.eq.f32.partialorder %v5220, %v5433
    %vm6197 = vcmp.eq.f32.partialorder %v5225, %v5436
    %vm6198 = vcmp.eq.f32.partialorder %v5230, %v5439
    %vm6199 = vcmp.eq.f32.partialorder %v5235, %v5442
    %vm6200 = vcmp.eq.f32.partialorder %v5240, %v5445
    %vm6201 = vcmp.eq.f32.partialorder %v5245, %v5448
    %vm6202 = vcmp.eq.f32.partialorder %v5250, %v5451
    %vm6203 = vcmp.eq.f32.partialorder %v5255, %v5454
    %vm6204 = vcmp.eq.f32.partialorder %v5260, %v5457
    %vm6205 = vcmp.eq.f32.partialorder %v5265, %v5460
    %vm6206 = vcmp.eq.f32.partialorder %v5270, %v5463
    %vm6207 = vcmp.eq.f32.partialorder %v5275, %v5466
    %vm6208 = vcmp.eq.f32.partialorder %v5280, %v5469
    %vm6209 = vcmp.eq.f32.partialorder %v5285, %v5472
    %vm6210 = vcmp.eq.f32.partialorder %v5290, %v5475
    %vm6211 = vcmp.eq.f32.partialorder %v5295, %v5478
    %vm6212 = vcmp.eq.f32.partialorder %v5300, %v5481
    %vm6213 = vcmp.eq.f32.partialorder %v5305, %v5484
    %vm6214 = vcmp.eq.f32.partialorder %v5310, %v5487
    %vm6215 = vcmp.eq.f32.partialorder %v5315, %v5490
    %vm6216 = vcmp.eq.f32.partialorder %v5320, %v5493
    %vm6217 = vcmp.eq.f32.partialorder %v5325, %v5496
    %vm6218 = vcmp.eq.f32.partialorder %v5330, %v5499
    %vm6219 = vcmp.eq.f32.partialorder %v5335, %v5502
    %vm6220 = vcmp.eq.f32.partialorder %v5340, %v5505
    %vm6221 = vcmp.eq.f32.partialorder %v5345, %v5508
    %vm6222 = vcmp.eq.f32.partialorder %v5350, %v5511
    %vm6223 = vcmp.eq.f32.partialorder %v5355, %v5514
    %vm6224 = vcmp.eq.f32.partialorder %v5360, %v5517
    %vm6225 = vcmp.eq.f32.partialorder %v5365, %v5520
    %vm6226 = vcmp.eq.f32.partialorder %v5370, %v5523
    %vm6227 = vcmp.eq.f32.partialorder %v5375, %v5526
    %vm6228 = vcmp.eq.f32.partialorder %v5380, %v5529
    %vm6229 = vcmp.eq.f32.partialorder %v5385, %v5532
    %v6230 = vsel %vm6194, %v6193, 1073741824
    %v6231 = vsel %vm6195, %v6193, 1073741824
    %v6232 = vsel %vm6196, %v6193, 1073741824
    %v6233 = vsel %vm6197, %v6193, 1073741824
    %v6234 = vsel %vm6198, %v6193, 1073741824
    %v6235 = vsel %vm6199, %v6193, 1073741824
    %v6236 = vsel %vm6200, %v6193, 1073741824
    %v6237 = vsel %vm6201, %v6193, 1073741824
    %v6238 = vsel %vm6202, %v6193, 1073741824
    %v6239 = vsel %vm6203, %v6193, 1073741824
    %v6240 = vsel %vm6204, %v6193, 1073741824
    %v6241 = vsel %vm6205, %v6193, 1073741824
    %v6242 = vsel %vm6206, %v6193, 1073741824
    %v6243 = vsel %vm6207, %v6193, 1073741824
    %v6244 = vsel %vm6208, %v6193, 1073741824
    %v6245 = vsel %vm6209, %v6193, 1073741824
    %v6246 = vsel %vm6210, %v6193, 1073741824
    %v6247 = vsel %vm6211, %v6193, 1073741824
    %v6248 = vsel %vm6212, %v6193, 1073741824
    %v6249 = vsel %vm6213, %v6193, 1073741824
    %v6250 = vsel %vm6214, %v6193, 1073741824
    %v6251 = vsel %vm6215, %v6193, 1073741824
    %v6252 = vsel %vm6216, %v6193, 1073741824
    %v6253 = vsel %vm6217, %v6193, 1073741824
    %v6254 = vsel %vm6218, %v6193, 1073741824
    %v6255 = vsel %vm6219, %v6193, 1073741824
    %v6256 = vsel %vm6220, %v6193, 1073741824
    %v6257 = vsel %vm6221, %v6193, 1073741824
    %v6258 = vsel %vm6222, %v6193, 1073741824
    %v6259 = vsel %vm6223, %v6193, 1073741824
    %v6260 = vsel %vm6224, %v6193, 1073741824
    %v6261 = vsel %vm6225, %v6193, 1073741824
    %v6262 = vsel %vm6226, %v6193, 1073741824
    %v6263 = vsel %vm6227, %v6193, 1073741824
    %v6264 = vsel %vm6228, %v6193, 1073741824
    %v6265 = vsel %vm6229, %v6193, 1073741824
    %v6266 = vsel %vm5424, %v6230, 2147483647
    %v6267 = vand.u32 %v6266, 65535
    %v6268 = vshra.s32 %v6266, 16
    %v6269 = vcvt.s32.f32 %v6267
    %v6270 = vcvt.s32.f32 %v6268
    %6271 = vmin.xlane.f32.xlu0 %v6270
    %v6272 = vpop.xlane.xlu0 %6271
    %vm6273 = vcmp.eq.f32.partialorder %v6270, %v6272
    %v6274 = vsel %vm6273, %v6269, inf
    %6275 = vmin.xlane.f32.xlu0 %v6274
    %v6276 = vpop.xlane.xlu0 %6275
    %v6277 = vcvt.f32.s32 %v6276
    %v6278 = vcvt.f32.s32 %v6272
    %v6279 = vshll.u32 %v6278, 16
    %v6280 = vadd.s32 %v6279, %v6277
    %v6281 = vsel %vm5424, %v6231, 2147483647
    %v6282 = vand.u32 %v6281, 65535
    %v6283 = vshra.s32 %v6281, 16
    %v6284 = vcvt.s32.f32 %v6282
    %v6285 = vcvt.s32.f32 %v6283
    %6286 = vmin.xlane.f32.xlu0 %v6285
    %v6287 = vpop.xlane.xlu0 %6286
    %vm6288 = vcmp.eq.f32.partialorder %v6285, %v6287
    %v6289 = vsel %vm6288, %v6284, inf
    %6290 = vmin.xlane.f32.xlu0 %v6289
    %v6291 = vpop.xlane.xlu0 %6290
    %v6292 = vcvt.f32.s32 %v6291
    %v6293 = vcvt.f32.s32 %v6287
    %v6294 = vshll.u32 %v6293, 16
    %v6295 = vadd.s32 %v6294, %v6292
    %v6296 = vsel %vm5424, %v6232, 2147483647
    %v6297 = vand.u32 %v6296, 65535
    %v6298 = vshra.s32 %v6296, 16
    %v6299 = vcvt.s32.f32 %v6297
    %v6300 = vcvt.s32.f32 %v6298
    %6301 = vmin.xlane.f32.xlu0 %v6300
    %v6302 = vpop.xlane.xlu0 %6301
    %vm6303 = vcmp.eq.f32.partialorder %v6300, %v6302
    %v6304 = vsel %vm6303, %v6299, inf
    %6305 = vmin.xlane.f32.xlu0 %v6304
    %v6306 = vpop.xlane.xlu0 %6305
    %v6307 = vcvt.f32.s32 %v6306
    %v6308 = vcvt.f32.s32 %v6302
    %v6309 = vshll.u32 %v6308, 16
    %v6310 = vadd.s32 %v6309, %v6307
    %v6311 = vsel %vm5424, %v6233, 2147483647
    %v6312 = vand.u32 %v6311, 65535
    %v6313 = vshra.s32 %v6311, 16
    %v6314 = vcvt.s32.f32 %v6312
    %v6315 = vcvt.s32.f32 %v6313
    %6316 = vmin.xlane.f32.xlu0 %v6315
    %v6317 = vpop.xlane.xlu0 %6316
    %vm6318 = vcmp.eq.f32.partialorder %v6315, %v6317
    %v6319 = vsel %vm6318, %v6314, inf
    %6320 = vmin.xlane.f32.xlu0 %v6319
    %v6321 = vpop.xlane.xlu0 %6320
    %v6322 = vcvt.f32.s32 %v6321
    %v6323 = vcvt.f32.s32 %v6317
    %v6324 = vshll.u32 %v6323, 16
    %v6325 = vadd.s32 %v6324, %v6322
    %v6326 = vsel %vm5424, %v6234, 2147483647
    %v6327 = vand.u32 %v6326, 65535
    %v6328 = vshra.s32 %v6326, 16
    %v6329 = vcvt.s32.f32 %v6327
    %v6330 = vcvt.s32.f32 %v6328
    %6331 = vmin.xlane.f32.xlu0 %v6330
    %v6332 = vpop.xlane.xlu0 %6331
    %vm6333 = vcmp.eq.f32.partialorder %v6330, %v6332
    %v6334 = vsel %vm6333, %v6329, inf
    %6335 = vmin.xlane.f32.xlu0 %v6334
    %v6336 = vpop.xlane.xlu0 %6335
    %v6337 = vcvt.f32.s32 %v6336
    %v6338 = vcvt.f32.s32 %v6332
    %v6339 = vshll.u32 %v6338, 16
    %v6340 = vadd.s32 %v6339, %v6337
    %v6341 = vsel %vm5424, %v6235, 2147483647
    %v6342 = vand.u32 %v6341, 65535
    %v6343 = vshra.s32 %v6341, 16
    %v6344 = vcvt.s32.f32 %v6342
    %v6345 = vcvt.s32.f32 %v6343
    %6346 = vmin.xlane.f32.xlu0 %v6345
    %v6347 = vpop.xlane.xlu0 %6346
    %vm6348 = vcmp.eq.f32.partialorder %v6345, %v6347
    %v6349 = vsel %vm6348, %v6344, inf
    %6350 = vmin.xlane.f32.xlu0 %v6349
    %v6351 = vpop.xlane.xlu0 %6350
    %v6352 = vcvt.f32.s32 %v6351
    %v6353 = vcvt.f32.s32 %v6347
    %v6354 = vshll.u32 %v6353, 16
    %v6355 = vadd.s32 %v6354, %v6352
    %v6356 = vsel %vm5424, %v6236, 2147483647
    %v6357 = vand.u32 %v6356, 65535
    %v6358 = vshra.s32 %v6356, 16
    %v6359 = vcvt.s32.f32 %v6357
    %v6360 = vcvt.s32.f32 %v6358
    %6361 = vmin.xlane.f32.xlu0 %v6360
    %v6362 = vpop.xlane.xlu0 %6361
    %vm6363 = vcmp.eq.f32.partialorder %v6360, %v6362
    %v6364 = vsel %vm6363, %v6359, inf
    %6365 = vmin.xlane.f32.xlu0 %v6364
    %v6366 = vpop.xlane.xlu0 %6365
    %v6367 = vcvt.f32.s32 %v6366
    %v6368 = vcvt.f32.s32 %v6362
    %v6369 = vshll.u32 %v6368, 16
    %v6370 = vadd.s32 %v6369, %v6367
    %v6371 = vsel %vm5424, %v6237, 2147483647
    %v6372 = vand.u32 %v6371, 65535
    %v6373 = vshra.s32 %v6371, 16
    %v6374 = vcvt.s32.f32 %v6372
    %v6375 = vcvt.s32.f32 %v6373
    %6376 = vmin.xlane.f32.xlu0 %v6375
    %v6377 = vpop.xlane.xlu0 %6376
    %vm6378 = vcmp.eq.f32.partialorder %v6375, %v6377
    %v6379 = vsel %vm6378, %v6374, inf
    %6380 = vmin.xlane.f32.xlu0 %v6379
    %v6381 = vpop.xlane.xlu0 %6380
    %v6382 = vcvt.f32.s32 %v6381
    %v6383 = vcvt.f32.s32 %v6377
    %v6384 = vshll.u32 %v6383, 16
    %v6385 = vadd.s32 %v6384, %v6382
    %v6386 = vsel %vm5424, %v6238, 2147483647
    %v6387 = vand.u32 %v6386, 65535
    %v6388 = vshra.s32 %v6386, 16
    %v6389 = vcvt.s32.f32 %v6387
    %v6390 = vcvt.s32.f32 %v6388
    %6391 = vmin.xlane.f32.xlu0 %v6390
    %v6392 = vpop.xlane.xlu0 %6391
    %vm6393 = vcmp.eq.f32.partialorder %v6390, %v6392
    %v6394 = vsel %vm6393, %v6389, inf
    %6395 = vmin.xlane.f32.xlu0 %v6394
    %v6396 = vpop.xlane.xlu0 %6395
    %v6397 = vcvt.f32.s32 %v6396
    %v6398 = vcvt.f32.s32 %v6392
    %v6399 = vshll.u32 %v6398, 16
    %v6400 = vadd.s32 %v6399, %v6397
    %v6401 = vsel %vm5424, %v6239, 2147483647
    %v6402 = vand.u32 %v6401, 65535
    %v6403 = vshra.s32 %v6401, 16
    %v6404 = vcvt.s32.f32 %v6402
    %v6405 = vcvt.s32.f32 %v6403
    %6406 = vmin.xlane.f32.xlu0 %v6405
    %v6407 = vpop.xlane.xlu0 %6406
    %vm6408 = vcmp.eq.f32.partialorder %v6405, %v6407
    %v6409 = vsel %vm6408, %v6404, inf
    %6410 = vmin.xlane.f32.xlu0 %v6409
    %v6411 = vpop.xlane.xlu0 %6410
    %v6412 = vcvt.f32.s32 %v6411
    %v6413 = vcvt.f32.s32 %v6407
    %v6414 = vshll.u32 %v6413, 16
    %v6415 = vadd.s32 %v6414, %v6412
    %v6416 = vsel %vm5424, %v6240, 2147483647
    %v6417 = vand.u32 %v6416, 65535
    %v6418 = vshra.s32 %v6416, 16
    %v6419 = vcvt.s32.f32 %v6417
    %v6420 = vcvt.s32.f32 %v6418
    %6421 = vmin.xlane.f32.xlu0 %v6420
    %v6422 = vpop.xlane.xlu0 %6421
    %vm6423 = vcmp.eq.f32.partialorder %v6420, %v6422
    %v6424 = vsel %vm6423, %v6419, inf
    %6425 = vmin.xlane.f32.xlu0 %v6424
    %v6426 = vpop.xlane.xlu0 %6425
    %v6427 = vcvt.f32.s32 %v6426
    %v6428 = vcvt.f32.s32 %v6422
    %v6429 = vshll.u32 %v6428, 16
    %v6430 = vadd.s32 %v6429, %v6427
    %v6431 = vsel %vm5424, %v6241, 2147483647
    %v6432 = vand.u32 %v6431, 65535
    %v6433 = vshra.s32 %v6431, 16
    %v6434 = vcvt.s32.f32 %v6432
    %v6435 = vcvt.s32.f32 %v6433
    %6436 = vmin.xlane.f32.xlu0 %v6435
    %v6437 = vpop.xlane.xlu0 %6436
    %vm6438 = vcmp.eq.f32.partialorder %v6435, %v6437
    %v6439 = vsel %vm6438, %v6434, inf
    %6440 = vmin.xlane.f32.xlu0 %v6439
    %v6441 = vpop.xlane.xlu0 %6440
    %v6442 = vcvt.f32.s32 %v6441
    %v6443 = vcvt.f32.s32 %v6437
    %v6444 = vshll.u32 %v6443, 16
    %v6445 = vadd.s32 %v6444, %v6442
    %v6446 = vsel %vm5424, %v6242, 2147483647
    %v6447 = vand.u32 %v6446, 65535
    %v6448 = vshra.s32 %v6446, 16
    %v6449 = vcvt.s32.f32 %v6447
    %v6450 = vcvt.s32.f32 %v6448
    %6451 = vmin.xlane.f32.xlu0 %v6450
    %v6452 = vpop.xlane.xlu0 %6451
    %vm6453 = vcmp.eq.f32.partialorder %v6450, %v6452
    %v6454 = vsel %vm6453, %v6449, inf
    %6455 = vmin.xlane.f32.xlu0 %v6454
    %v6456 = vpop.xlane.xlu0 %6455
    %v6457 = vcvt.f32.s32 %v6456
    %v6458 = vcvt.f32.s32 %v6452
    %v6459 = vshll.u32 %v6458, 16
    %v6460 = vadd.s32 %v6459, %v6457
    %v6461 = vsel %vm5424, %v6243, 2147483647
    %v6462 = vand.u32 %v6461, 65535
    %v6463 = vshra.s32 %v6461, 16
    %v6464 = vcvt.s32.f32 %v6462
    %v6465 = vcvt.s32.f32 %v6463
    %6466 = vmin.xlane.f32.xlu0 %v6465
    %v6467 = vpop.xlane.xlu0 %6466
    %vm6468 = vcmp.eq.f32.partialorder %v6465, %v6467
    %v6469 = vsel %vm6468, %v6464, inf
    %6470 = vmin.xlane.f32.xlu0 %v6469
    %v6471 = vpop.xlane.xlu0 %6470
    %v6472 = vcvt.f32.s32 %v6471
    %v6473 = vcvt.f32.s32 %v6467
    %v6474 = vshll.u32 %v6473, 16
    %v6475 = vadd.s32 %v6474, %v6472
    %v6476 = vsel %vm5424, %v6244, 2147483647
    %v6477 = vand.u32 %v6476, 65535
    %v6478 = vshra.s32 %v6476, 16
    %v6479 = vcvt.s32.f32 %v6477
    %v6480 = vcvt.s32.f32 %v6478
    %6481 = vmin.xlane.f32.xlu0 %v6480
    %v6482 = vpop.xlane.xlu0 %6481
    %vm6483 = vcmp.eq.f32.partialorder %v6480, %v6482
    %v6484 = vsel %vm6483, %v6479, inf
    %6485 = vmin.xlane.f32.xlu0 %v6484
    %v6486 = vpop.xlane.xlu0 %6485
    %v6487 = vcvt.f32.s32 %v6486
    %v6488 = vcvt.f32.s32 %v6482
    %v6489 = vshll.u32 %v6488, 16
    %v6490 = vadd.s32 %v6489, %v6487
    %v6491 = vsel %vm5424, %v6245, 2147483647
    %v6492 = vand.u32 %v6491, 65535
    %v6493 = vshra.s32 %v6491, 16
    %v6494 = vcvt.s32.f32 %v6492
    %v6495 = vcvt.s32.f32 %v6493
    %6496 = vmin.xlane.f32.xlu0 %v6495
    %v6497 = vpop.xlane.xlu0 %6496
    %vm6498 = vcmp.eq.f32.partialorder %v6495, %v6497
    %v6499 = vsel %vm6498, %v6494, inf
    %6500 = vmin.xlane.f32.xlu0 %v6499
    %v6501 = vpop.xlane.xlu0 %6500
    %v6502 = vcvt.f32.s32 %v6501
    %v6503 = vcvt.f32.s32 %v6497
    %v6504 = vshll.u32 %v6503, 16
    %v6505 = vadd.s32 %v6504, %v6502
    %v6506 = vsel %vm5424, %v6246, 2147483647
    %v6507 = vand.u32 %v6506, 65535
    %v6508 = vshra.s32 %v6506, 16
    %v6509 = vcvt.s32.f32 %v6507
    %v6510 = vcvt.s32.f32 %v6508
    %6511 = vmin.xlane.f32.xlu0 %v6510
    %v6512 = vpop.xlane.xlu0 %6511
    %vm6513 = vcmp.eq.f32.partialorder %v6510, %v6512
    %v6514 = vsel %vm6513, %v6509, inf
    %6515 = vmin.xlane.f32.xlu0 %v6514
    %v6516 = vpop.xlane.xlu0 %6515
    %v6517 = vcvt.f32.s32 %v6516
    %v6518 = vcvt.f32.s32 %v6512
    %v6519 = vshll.u32 %v6518, 16
    %v6520 = vadd.s32 %v6519, %v6517
    %v6521 = vsel %vm5424, %v6247, 2147483647
    %v6522 = vand.u32 %v6521, 65535
    %v6523 = vshra.s32 %v6521, 16
    %v6524 = vcvt.s32.f32 %v6522
    %v6525 = vcvt.s32.f32 %v6523
    %6526 = vmin.xlane.f32.xlu0 %v6525
    %v6527 = vpop.xlane.xlu0 %6526
    %vm6528 = vcmp.eq.f32.partialorder %v6525, %v6527
    %v6529 = vsel %vm6528, %v6524, inf
    %6530 = vmin.xlane.f32.xlu0 %v6529
    %v6531 = vpop.xlane.xlu0 %6530
    %v6532 = vcvt.f32.s32 %v6531
    %v6533 = vcvt.f32.s32 %v6527
    %v6534 = vshll.u32 %v6533, 16
    %v6535 = vadd.s32 %v6534, %v6532
    %v6536 = vsel %vm5424, %v6248, 2147483647
    %v6537 = vand.u32 %v6536, 65535
    %v6538 = vshra.s32 %v6536, 16
    %v6539 = vcvt.s32.f32 %v6537
    %v6540 = vcvt.s32.f32 %v6538
    %6541 = vmin.xlane.f32.xlu0 %v6540
    %v6542 = vpop.xlane.xlu0 %6541
    %vm6543 = vcmp.eq.f32.partialorder %v6540, %v6542
    %v6544 = vsel %vm6543, %v6539, inf
    %6545 = vmin.xlane.f32.xlu0 %v6544
    %v6546 = vpop.xlane.xlu0 %6545
    %v6547 = vcvt.f32.s32 %v6546
    %v6548 = vcvt.f32.s32 %v6542
    %v6549 = vshll.u32 %v6548, 16
    %v6550 = vadd.s32 %v6549, %v6547
    %v6551 = vsel %vm5424, %v6249, 2147483647
    %v6552 = vand.u32 %v6551, 65535
    %v6553 = vshra.s32 %v6551, 16
    %v6554 = vcvt.s32.f32 %v6552
    %v6555 = vcvt.s32.f32 %v6553
    %6556 = vmin.xlane.f32.xlu0 %v6555
    %v6557 = vpop.xlane.xlu0 %6556
    %vm6558 = vcmp.eq.f32.partialorder %v6555, %v6557
    %v6559 = vsel %vm6558, %v6554, inf
    %6560 = vmin.xlane.f32.xlu0 %v6559
    %v6561 = vpop.xlane.xlu0 %6560
    %v6562 = vcvt.f32.s32 %v6561
    %v6563 = vcvt.f32.s32 %v6557
    %v6564 = vshll.u32 %v6563, 16
    %v6565 = vadd.s32 %v6564, %v6562
    %v6566 = vsel %vm5424, %v6250, 2147483647
    %v6567 = vand.u32 %v6566, 65535
    %v6568 = vshra.s32 %v6566, 16
    %v6569 = vcvt.s32.f32 %v6567
    %v6570 = vcvt.s32.f32 %v6568
    %6571 = vmin.xlane.f32.xlu0 %v6570
    %v6572 = vpop.xlane.xlu0 %6571
    %vm6573 = vcmp.eq.f32.partialorder %v6570, %v6572
    %v6574 = vsel %vm6573, %v6569, inf
    %6575 = vmin.xlane.f32.xlu0 %v6574
    %v6576 = vpop.xlane.xlu0 %6575
    %v6577 = vcvt.f32.s32 %v6576
    %v6578 = vcvt.f32.s32 %v6572
    %v6579 = vshll.u32 %v6578, 16
    %v6580 = vadd.s32 %v6579, %v6577
    %v6581 = vsel %vm5424, %v6251, 2147483647
    %v6582 = vand.u32 %v6581, 65535
    %v6583 = vshra.s32 %v6581, 16
    %v6584 = vcvt.s32.f32 %v6582
    %v6585 = vcvt.s32.f32 %v6583
    %6586 = vmin.xlane.f32.xlu0 %v6585
    %v6587 = vpop.xlane.xlu0 %6586
    %vm6588 = vcmp.eq.f32.partialorder %v6585, %v6587
    %v6589 = vsel %vm6588, %v6584, inf
    %6590 = vmin.xlane.f32.xlu0 %v6589
    %v6591 = vpop.xlane.xlu0 %6590
    %v6592 = vcvt.f32.s32 %v6591
    %v6593 = vcvt.f32.s32 %v6587
    %v6594 = vshll.u32 %v6593, 16
    %v6595 = vadd.s32 %v6594, %v6592
    %v6596 = vsel %vm5424, %v6252, 2147483647
    %v6597 = vand.u32 %v6596, 65535
    %v6598 = vshra.s32 %v6596, 16
    %v6599 = vcvt.s32.f32 %v6597
    %v6600 = vcvt.s32.f32 %v6598
    %6601 = vmin.xlane.f32.xlu0 %v6600
    %v6602 = vpop.xlane.xlu0 %6601
    %vm6603 = vcmp.eq.f32.partialorder %v6600, %v6602
    %v6604 = vsel %vm6603, %v6599, inf
    %6605 = vmin.xlane.f32.xlu0 %v6604
    %v6606 = vpop.xlane.xlu0 %6605
    %v6607 = vcvt.f32.s32 %v6606
    %v6608 = vcvt.f32.s32 %v6602
    %v6609 = vshll.u32 %v6608, 16
    %v6610 = vadd.s32 %v6609, %v6607
    %v6611 = vsel %vm5424, %v6253, 2147483647
    %v6612 = vand.u32 %v6611, 65535
    %v6613 = vshra.s32 %v6611, 16
    %v6614 = vcvt.s32.f32 %v6612
    %v6615 = vcvt.s32.f32 %v6613
    %6616 = vmin.xlane.f32.xlu0 %v6615
    %v6617 = vpop.xlane.xlu0 %6616
    %vm6618 = vcmp.eq.f32.partialorder %v6615, %v6617
    %v6619 = vsel %vm6618, %v6614, inf
    %6620 = vmin.xlane.f32.xlu0 %v6619
    %v6621 = vpop.xlane.xlu0 %6620
    %v6622 = vcvt.f32.s32 %v6621
    %v6623 = vcvt.f32.s32 %v6617
    %v6624 = vshll.u32 %v6623, 16
    %v6625 = vadd.s32 %v6624, %v6622
    %v6626 = vsel %vm5424, %v6254, 2147483647
    %v6627 = vand.u32 %v6626, 65535
    %v6628 = vshra.s32 %v6626, 16
    %v6629 = vcvt.s32.f32 %v6627
    %v6630 = vcvt.s32.f32 %v6628
    %6631 = vmin.xlane.f32.xlu0 %v6630
    %v6632 = vpop.xlane.xlu0 %6631
    %vm6633 = vcmp.eq.f32.partialorder %v6630, %v6632
    %v6634 = vsel %vm6633, %v6629, inf
    %6635 = vmin.xlane.f32.xlu0 %v6634
    %v6636 = vpop.xlane.xlu0 %6635
    %v6637 = vcvt.f32.s32 %v6636
    %v6638 = vcvt.f32.s32 %v6632
    %v6639 = vshll.u32 %v6638, 16
    %v6640 = vadd.s32 %v6639, %v6637
    %v6641 = vsel %vm5424, %v6255, 2147483647
    %v6642 = vand.u32 %v6641, 65535
    %v6643 = vshra.s32 %v6641, 16
    %v6644 = vcvt.s32.f32 %v6642
    %v6645 = vcvt.s32.f32 %v6643
    %6646 = vmin.xlane.f32.xlu0 %v6645
    %v6647 = vpop.xlane.xlu0 %6646
    %vm6648 = vcmp.eq.f32.partialorder %v6645, %v6647
    %v6649 = vsel %vm6648, %v6644, inf
    %6650 = vmin.xlane.f32.xlu0 %v6649
    %v6651 = vpop.xlane.xlu0 %6650
    %v6652 = vcvt.f32.s32 %v6651
    %v6653 = vcvt.f32.s32 %v6647
    %v6654 = vshll.u32 %v6653, 16
    %v6655 = vadd.s32 %v6654, %v6652
    %v6656 = vsel %vm5424, %v6256, 2147483647
    %v6657 = vand.u32 %v6656, 65535
    %v6658 = vshra.s32 %v6656, 16
    %v6659 = vcvt.s32.f32 %v6657
    %v6660 = vcvt.s32.f32 %v6658
    %6661 = vmin.xlane.f32.xlu0 %v6660
    %v6662 = vpop.xlane.xlu0 %6661
    %vm6663 = vcmp.eq.f32.partialorder %v6660, %v6662
    %v6664 = vsel %vm6663, %v6659, inf
    %6665 = vmin.xlane.f32.xlu0 %v6664
    %v6666 = vpop.xlane.xlu0 %6665
    %v6667 = vcvt.f32.s32 %v6666
    %v6668 = vcvt.f32.s32 %v6662
    %v6669 = vshll.u32 %v6668, 16
    %v6670 = vadd.s32 %v6669, %v6667
    %v6671 = vsel %vm5424, %v6257, 2147483647
    %v6672 = vand.u32 %v6671, 65535
    %v6673 = vshra.s32 %v6671, 16
    %v6674 = vcvt.s32.f32 %v6672
    %v6675 = vcvt.s32.f32 %v6673
    %6676 = vmin.xlane.f32.xlu0 %v6675
    %v6677 = vpop.xlane.xlu0 %6676
    %vm6678 = vcmp.eq.f32.partialorder %v6675, %v6677
    %v6679 = vsel %vm6678, %v6674, inf
    %6680 = vmin.xlane.f32.xlu0 %v6679
    %v6681 = vpop.xlane.xlu0 %6680
    %v6682 = vcvt.f32.s32 %v6681
    %v6683 = vcvt.f32.s32 %v6677
    %v6684 = vshll.u32 %v6683, 16
    %v6685 = vadd.s32 %v6684, %v6682
    %v6686 = vsel %vm5424, %v6258, 2147483647
    %v6687 = vand.u32 %v6686, 65535
    %v6688 = vshra.s32 %v6686, 16
    %v6689 = vcvt.s32.f32 %v6687
    %v6690 = vcvt.s32.f32 %v6688
    %6691 = vmin.xlane.f32.xlu0 %v6690
    %v6692 = vpop.xlane.xlu0 %6691
    %vm6693 = vcmp.eq.f32.partialorder %v6690, %v6692
    %v6694 = vsel %vm6693, %v6689, inf
    %6695 = vmin.xlane.f32.xlu0 %v6694
    %v6696 = vpop.xlane.xlu0 %6695
    %v6697 = vcvt.f32.s32 %v6696
    %v6698 = vcvt.f32.s32 %v6692
    %v6699 = vshll.u32 %v6698, 16
    %v6700 = vadd.s32 %v6699, %v6697
    %v6701 = vsel %vm5424, %v6259, 2147483647
    %v6702 = vand.u32 %v6701, 65535
    %v6703 = vshra.s32 %v6701, 16
    %v6704 = vcvt.s32.f32 %v6702
    %v6705 = vcvt.s32.f32 %v6703
    %6706 = vmin.xlane.f32.xlu0 %v6705
    %v6707 = vpop.xlane.xlu0 %6706
    %vm6708 = vcmp.eq.f32.partialorder %v6705, %v6707
    %v6709 = vsel %vm6708, %v6704, inf
    %6710 = vmin.xlane.f32.xlu0 %v6709
    %v6711 = vpop.xlane.xlu0 %6710
    %v6712 = vcvt.f32.s32 %v6711
    %v6713 = vcvt.f32.s32 %v6707
    %v6714 = vshll.u32 %v6713, 16
    %v6715 = vadd.s32 %v6714, %v6712
    %v6716 = vsel %vm5424, %v6260, 2147483647
    %v6717 = vand.u32 %v6716, 65535
    %v6718 = vshra.s32 %v6716, 16
    %v6719 = vcvt.s32.f32 %v6717
    %v6720 = vcvt.s32.f32 %v6718
    %6721 = vmin.xlane.f32.xlu0 %v6720
    %v6722 = vpop.xlane.xlu0 %6721
    %vm6723 = vcmp.eq.f32.partialorder %v6720, %v6722
    %v6724 = vsel %vm6723, %v6719, inf
    %6725 = vmin.xlane.f32.xlu0 %v6724
    %v6726 = vpop.xlane.xlu0 %6725
    %v6727 = vcvt.f32.s32 %v6726
    %v6728 = vcvt.f32.s32 %v6722
    %v6729 = vshll.u32 %v6728, 16
    %v6730 = vadd.s32 %v6729, %v6727
    %v6731 = vsel %vm5424, %v6261, 2147483647
    %v6732 = vand.u32 %v6731, 65535
    %v6733 = vshra.s32 %v6731, 16
    %v6734 = vcvt.s32.f32 %v6732
    %v6735 = vcvt.s32.f32 %v6733
    %6736 = vmin.xlane.f32.xlu0 %v6735
    %v6737 = vpop.xlane.xlu0 %6736
    %vm6738 = vcmp.eq.f32.partialorder %v6735, %v6737
    %v6739 = vsel %vm6738, %v6734, inf
    %6740 = vmin.xlane.f32.xlu0 %v6739
    %v6741 = vpop.xlane.xlu0 %6740
    %v6742 = vcvt.f32.s32 %v6741
    %v6743 = vcvt.f32.s32 %v6737
    %v6744 = vshll.u32 %v6743, 16
    %v6745 = vadd.s32 %v6744, %v6742
    %v6746 = vsel %vm5424, %v6262, 2147483647
    %v6747 = vand.u32 %v6746, 65535
    %v6748 = vshra.s32 %v6746, 16
    %v6749 = vcvt.s32.f32 %v6747
    %v6750 = vcvt.s32.f32 %v6748
    %6751 = vmin.xlane.f32.xlu0 %v6750
    %v6752 = vpop.xlane.xlu0 %6751
    %vm6753 = vcmp.eq.f32.partialorder %v6750, %v6752
    %v6754 = vsel %vm6753, %v6749, inf
    %6755 = vmin.xlane.f32.xlu0 %v6754
    %v6756 = vpop.xlane.xlu0 %6755
    %v6757 = vcvt.f32.s32 %v6756
    %v6758 = vcvt.f32.s32 %v6752
    %v6759 = vshll.u32 %v6758, 16
    %v6760 = vadd.s32 %v6759, %v6757
    %v6761 = vsel %vm5424, %v6263, 2147483647
    %v6762 = vand.u32 %v6761, 65535
    %v6763 = vshra.s32 %v6761, 16
    %v6764 = vcvt.s32.f32 %v6762
    %v6765 = vcvt.s32.f32 %v6763
    %6766 = vmin.xlane.f32.xlu0 %v6765
    %v6767 = vpop.xlane.xlu0 %6766
    %vm6768 = vcmp.eq.f32.partialorder %v6765, %v6767
    %v6769 = vsel %vm6768, %v6764, inf
    %6770 = vmin.xlane.f32.xlu0 %v6769
    %v6771 = vpop.xlane.xlu0 %6770
    %v6772 = vcvt.f32.s32 %v6771
    %v6773 = vcvt.f32.s32 %v6767
    %v6774 = vshll.u32 %v6773, 16
    %v6775 = vadd.s32 %v6774, %v6772
    %v6776 = vsel %vm5424, %v6264, 2147483647
    %v6777 = vand.u32 %v6776, 65535
    %v6778 = vshra.s32 %v6776, 16
    %v6779 = vcvt.s32.f32 %v6777
    %v6780 = vcvt.s32.f32 %v6778
    %6781 = vmin.xlane.f32.xlu0 %v6780
    %v6782 = vpop.xlane.xlu0 %6781
    %vm6783 = vcmp.eq.f32.partialorder %v6780, %v6782
    %v6784 = vsel %vm6783, %v6779, inf
    %6785 = vmin.xlane.f32.xlu0 %v6784
    %v6786 = vpop.xlane.xlu0 %6785
    %v6787 = vcvt.f32.s32 %v6786
    %v6788 = vcvt.f32.s32 %v6782
    %v6789 = vshll.u32 %v6788, 16
    %v6790 = vadd.s32 %v6789, %v6787
    %v6791 = vsel %vm5424, %v6265, 2147483647
    %v6792 = vand.u32 %v6791, 65535
    %v6793 = vshra.s32 %v6791, 16
    %v6794 = vcvt.s32.f32 %v6792
    %v6795 = vcvt.s32.f32 %v6793
    %6796 = vmin.xlane.f32.xlu0 %v6795
    %v6797 = vpop.xlane.xlu0 %6796
    %vm6798 = vcmp.eq.f32.partialorder %v6795, %v6797
    %v6799 = vsel %vm6798, %v6794, inf
    %6800 = vmin.xlane.f32.xlu0 %v6799
    %v6801 = vpop.xlane.xlu0 %6800
    %v6802 = vcvt.f32.s32 %v6801
    %v6803 = vcvt.f32.s32 %v6797
    %v6804 = vshll.u32 %v6803, 16
    %v6805 = vadd.s32 %v6804, %v6802
    %v6806 = vld [vmem:[%s10] sm:$0xff]
    %v6807 = vld [vmem:[%s10 + $0x8] sm:$0xff]
    %v6808 = vld [vmem:[%s10 + $0x10] sm:$0xff]
    %v6809 = vld [vmem:[%s10 + $0x18] sm:$0xff]
    %v6810 = vld [vmem:[%s10 + $0x20] sm:$0xff]
    %v6811 = vld [vmem:[%s10 + $0x28] sm:$0xff]
    %v6812 = vld [vmem:[%s10 + $0x30] sm:$0xff]
    %v6813 = vld [vmem:[%s10 + $0x38] sm:$0xff]
    %v6814 = vld [vmem:[%s10 + $0x40] sm:$0xff]
    %v6815 = vld [vmem:[%s10 + $0x48] sm:$0xff]
    %v6816 = vld [vmem:[%s10 + $0x50] sm:$0xff]
    %v6817 = vld [vmem:[%s10 + $0x58] sm:$0xff]
    %v6818 = vld [vmem:[%s10 + $0x60] sm:$0xff]
    %v6819 = vld [vmem:[%s10 + $0x68] sm:$0xff]
    %v6820 = vld [vmem:[%s10 + $0x70] sm:$0xff]
    %v6821 = vld [vmem:[%s10 + $0x78] sm:$0xff]
    %v6822 = vld [vmem:[%s10 + $0x80] sm:$0xff]
    %v6823 = vld [vmem:[%s10 + $0x88] sm:$0xff]
    %v6824 = vld [vmem:[%s10 + $0x90] sm:$0xff]
    %v6825 = vld [vmem:[%s10 + $0x98] sm:$0xff]
    %v6826 = vld [vmem:[%s10 + $0xa0] sm:$0xff]
    %v6827 = vld [vmem:[%s10 + $0xa8] sm:$0xff]
    %v6828 = vld [vmem:[%s10 + $0xb0] sm:$0xff]
    %v6829 = vld [vmem:[%s10 + $0xb8] sm:$0xff]
    %v6830 = vld [vmem:[%s10 + $0xc0] sm:$0xff]
    %v6831 = vld [vmem:[%s10 + $0xc8] sm:$0xff]
    %v6832 = vld [vmem:[%s10 + $0xd0] sm:$0xff]
    %v6833 = vld [vmem:[%s10 + $0xd8] sm:$0xff]
    %v6834 = vld [vmem:[%s10 + $0xe0] sm:$0xff]
    %v6835 = vld [vmem:[%s10 + $0xe8] sm:$0xff]
    %v6836 = vld [vmem:[%s10 + $0xf0] sm:$0xff]
    %v6837 = vld [vmem:[%s10 + $0xf8] sm:$0xff]
    %v6838 = vld [vmem:[%s10 + $0x100] sm:$0xff]
    %v6839 = vld [vmem:[%s10 + $0x108] sm:$0xff]
    %v6840 = vld [vmem:[%s10 + $0x110] sm:$0xff]
    %v6841 = vld [vmem:[%s10 + $0x118] sm:$0xff]
    %vm6842 = vcmp.eq.s32.totalorder %v6280, %v6806
    %vm6843 = vcmp.eq.s32.totalorder %v6295, %v6807
    %vm6844 = vcmp.eq.s32.totalorder %v6310, %v6808
    %vm6845 = vcmp.eq.s32.totalorder %v6325, %v6809
    %vm6846 = vcmp.eq.s32.totalorder %v6340, %v6810
    %vm6847 = vcmp.eq.s32.totalorder %v6355, %v6811
    %vm6848 = vcmp.eq.s32.totalorder %v6370, %v6812
    %vm6849 = vcmp.eq.s32.totalorder %v6385, %v6813
    %vm6850 = vcmp.eq.s32.totalorder %v6400, %v6814
    %vm6851 = vcmp.eq.s32.totalorder %v6415, %v6815
    %vm6852 = vcmp.eq.s32.totalorder %v6430, %v6816
    %vm6853 = vcmp.eq.s32.totalorder %v6445, %v6817
    %vm6854 = vcmp.eq.s32.totalorder %v6460, %v6818
    %vm6855 = vcmp.eq.s32.totalorder %v6475, %v6819
    %vm6856 = vcmp.eq.s32.totalorder %v6490, %v6820
    %vm6857 = vcmp.eq.s32.totalorder %v6505, %v6821
    %vm6858 = vcmp.eq.s32.totalorder %v6520, %v6822
    %vm6859 = vcmp.eq.s32.totalorder %v6535, %v6823
    %vm6860 = vcmp.eq.s32.totalorder %v6550, %v6824
    %vm6861 = vcmp.eq.s32.totalorder %v6565, %v6825
    %vm6862 = vcmp.eq.s32.totalorder %v6580, %v6826
    %vm6863 = vcmp.eq.s32.totalorder %v6595, %v6827
    %vm6864 = vcmp.eq.s32.totalorder %v6610, %v6828
    %vm6865 = vcmp.eq.s32.totalorder %v6625, %v6829
    %vm6866 = vcmp.eq.s32.totalorder %v6640, %v6830
    %vm6867 = vcmp.eq.s32.totalorder %v6655, %v6831
    %vm6868 = vcmp.eq.s32.totalorder %v6670, %v6832
    %vm6869 = vcmp.eq.s32.totalorder %v6685, %v6833
    %vm6870 = vcmp.eq.s32.totalorder %v6700, %v6834
    %vm6871 = vcmp.eq.s32.totalorder %v6715, %v6835
    %vm6872 = vcmp.eq.s32.totalorder %v6730, %v6836
    %vm6873 = vcmp.eq.s32.totalorder %v6745, %v6837
    %vm6874 = vcmp.eq.s32.totalorder %v6760, %v6838
    %vm6875 = vcmp.eq.s32.totalorder %v6775, %v6839
    %vm6876 = vcmp.eq.s32.totalorder %v6790, %v6840
    %vm6877 = vcmp.eq.s32.totalorder %v6805, %v6841
    %v6878 = vsel %vm6842, 1, 0
    %v6879 = vsel %vm6843, 1, 0
    %v6880 = vsel %vm6844, 1, 0
    %v6881 = vsel %vm6845, 1, 0
    %v6882 = vsel %vm6846, 1, 0
    %v6883 = vsel %vm6847, 1, 0
    %v6884 = vsel %vm6848, 1, 0
    %v6885 = vsel %vm6849, 1, 0
    %v6886 = vsel %vm6850, 1, 0
    %v6887 = vsel %vm6851, 1, 0
    %v6888 = vsel %vm6852, 1, 0
    %v6889 = vsel %vm6853, 1, 0
    %v6890 = vsel %vm6854, 1, 0
    %v6891 = vsel %vm6855, 1, 0
    %v6892 = vsel %vm6856, 1, 0
    %v6893 = vsel %vm6857, 1, 0
    %v6894 = vsel %vm6858, 1, 0
    %v6895 = vsel %vm6859, 1, 0
    %v6896 = vsel %vm6860, 1, 0
    %v6897 = vsel %vm6861, 1, 0
    %v6898 = vsel %vm6862, 1, 0
    %v6899 = vsel %vm6863, 1, 0
    %v6900 = vsel %vm6864, 1, 0
    %v6901 = vsel %vm6865, 1, 0
    %v6902 = vsel %vm6866, 1, 0
    %v6903 = vsel %vm6867, 1, 0
    %v6904 = vsel %vm6868, 1, 0
    %v6905 = vsel %vm6869, 1, 0
    %v6906 = vsel %vm6870, 1, 0
    %v6907 = vsel %vm6871, 1, 0
    %v6908 = vsel %vm6872, 1, 0
    %v6909 = vsel %vm6873, 1, 0
    %v6910 = vsel %vm6874, 1, 0
    %v6911 = vsel %vm6875, 1, 0
    %v6912 = vsel %vm6876, 1, 0
    %v6913 = vsel %vm6877, 1, 0
    %v6914 = vcvt.s32.f32 %v6878
    %v6915 = vcvt.s32.f32 %v6879
    %v6916 = vcvt.s32.f32 %v6880
    %v6917 = vcvt.s32.f32 %v6881
    %v6918 = vcvt.s32.f32 %v6882
    %v6919 = vcvt.s32.f32 %v6883
    %v6920 = vcvt.s32.f32 %v6884
    %v6921 = vcvt.s32.f32 %v6885
    %v6922 = vcvt.s32.f32 %v6886
    %v6923 = vcvt.s32.f32 %v6887
    %v6924 = vcvt.s32.f32 %v6888
    %v6925 = vcvt.s32.f32 %v6889
    %v6926 = vcvt.s32.f32 %v6890
    %v6927 = vcvt.s32.f32 %v6891
    %v6928 = vcvt.s32.f32 %v6892
    %v6929 = vcvt.s32.f32 %v6893
    %v6930 = vcvt.s32.f32 %v6894
    %v6931 = vcvt.s32.f32 %v6895
    %v6932 = vcvt.s32.f32 %v6896
    %v6933 = vcvt.s32.f32 %v6897
    %v6934 = vcvt.s32.f32 %v6898
    %v6935 = vcvt.s32.f32 %v6899
    %v6936 = vcvt.s32.f32 %v6900
    %v6937 = vcvt.s32.f32 %v6901
    %v6938 = vcvt.s32.f32 %v6902
    %v6939 = vcvt.s32.f32 %v6903
    %v6940 = vcvt.s32.f32 %v6904
    %v6941 = vcvt.s32.f32 %v6905
    %v6942 = vcvt.s32.f32 %v6906
    %v6943 = vcvt.s32.f32 %v6907
    %v6944 = vcvt.s32.f32 %v6908
    %v6945 = vcvt.s32.f32 %v6909
    %v6946 = vcvt.s32.f32 %v6910
    %v6947 = vcvt.s32.f32 %v6911
    %v6948 = vcvt.s32.f32 %v6912
    %v6949 = vcvt.s32.f32 %v6913
    %v6950 = vmul.f32 %v5388, %v6914
    %v6951 = vmul.f32 %v5389, %v6915
    %v6952 = vmul.f32 %v5390, %v6916
    %v6953 = vmul.f32 %v5391, %v6917
    %v6954 = vmul.f32 %v5392, %v6918
    %v6955 = vmul.f32 %v5393, %v6919
    %v6956 = vmul.f32 %v5394, %v6920
    %v6957 = vmul.f32 %v5395, %v6921
    %v6958 = vmul.f32 %v5396, %v6922
    %v6959 = vmul.f32 %v5397, %v6923
    %v6960 = vmul.f32 %v5398, %v6924
    %v6961 = vmul.f32 %v5399, %v6925
    %v6962 = vmul.f32 %v5400, %v6926
    %v6963 = vmul.f32 %v5401, %v6927
    %v6964 = vmul.f32 %v5402, %v6928
    %v6965 = vmul.f32 %v5403, %v6929
    %v6966 = vmul.f32 %v5404, %v6930
    %v6967 = vmul.f32 %v5405, %v6931
    %v6968 = vmul.f32 %v5406, %v6932
    %v6969 = vmul.f32 %v5407, %v6933
    %v6970 = vmul.f32 %v5408, %v6934
    %v6971 = vmul.f32 %v5409, %v6935
    %v6972 = vmul.f32 %v5410, %v6936
    %v6973 = vmul.f32 %v5411, %v6937
    %v6974 = vmul.f32 %v5412, %v6938
    %v6975 = vmul.f32 %v5413, %v6939
    %v6976 = vmul.f32 %v5414, %v6940
    %v6977 = vmul.f32 %v5415, %v6941
    %v6978 = vmul.f32 %v5416, %v6942
    %v6979 = vmul.f32 %v5417, %v6943
    %v6980 = vmul.f32 %v5418, %v6944
    %v6981 = vmul.f32 %v5419, %v6945
    %v6982 = vmul.f32 %v5420, %v6946
    %v6983 = vmul.f32 %v5421, %v6947
    %v6984 = vmul.f32 %v5422, %v6948
    %v6985 = vmul.f32 %v5423, %v6949
    %v6986 = vsel %vm6109, %v6950, 0.0
    %v6987 = vsel %vm6109, %v6951, 0.0
    %v6988 = vadd.f32 %v6986, %v6987
    %v6989 = vsel %vm6109, %v6952, 0.0
    %v6990 = vadd.f32 %v6988, %v6989
    %v6991 = vsel %vm6109, %v6953, 0.0
    %v6992 = vadd.f32 %v6990, %v6991
    %v6993 = vsel %vm6109, %v6954, 0.0
    %v6994 = vadd.f32 %v6992, %v6993
    %v6995 = vsel %vm6109, %v6955, 0.0
    %v6996 = vadd.f32 %v6994, %v6995
    %v6997 = vsel %vm6109, %v6956, 0.0
    %v6998 = vadd.f32 %v6996, %v6997
    %v6999 = vsel %vm6109, %v6957, 0.0
    %v7000 = vadd.f32 %v6998, %v6999
    %v7001 = vsel %vm6109, %v6958, 0.0
    %v7002 = vadd.f32 %v7000, %v7001
    %v7003 = vsel %vm6109, %v6959, 0.0
    %v7004 = vadd.f32 %v7002, %v7003
    %v7005 = vsel %vm6109, %v6960, 0.0
    %v7006 = vadd.f32 %v7004, %v7005
    %v7007 = vsel %vm6109, %v6961, 0.0
    %v7008 = vadd.f32 %v7006, %v7007
    %v7009 = vsel %vm6109, %v6962, 0.0
    %v7010 = vadd.f32 %v7008, %v7009
    %v7011 = vsel %vm6109, %v6963, 0.0
    %v7012 = vadd.f32 %v7010, %v7011
    %v7013 = vsel %vm6109, %v6964, 0.0
    %v7014 = vadd.f32 %v7012, %v7013
    %v7015 = vsel %vm6109, %v6965, 0.0
    %v7016 = vadd.f32 %v7014, %v7015
    %v7017 = vsel %vm6109, %v6966, 0.0
    %v7018 = vadd.f32 %v7016, %v7017
    %v7019 = vsel %vm6109, %v6967, 0.0
    %v7020 = vadd.f32 %v7018, %v7019
    %v7021 = vsel %vm6109, %v6968, 0.0
    %v7022 = vadd.f32 %v7020, %v7021
    %v7023 = vsel %vm6109, %v6969, 0.0
    %v7024 = vadd.f32 %v7022, %v7023
    %v7025 = vsel %vm6109, %v6970, 0.0
    %v7026 = vadd.f32 %v7024, %v7025
    %v7027 = vsel %vm6109, %v6971, 0.0
    %v7028 = vadd.f32 %v7026, %v7027
    %v7029 = vsel %vm6109, %v6972, 0.0
    %v7030 = vadd.f32 %v7028, %v7029
    %v7031 = vsel %vm6109, %v6973, 0.0
    %v7032 = vadd.f32 %v7030, %v7031
    %v7033 = vsel %vm6109, %v6974, 0.0
    %v7034 = vadd.f32 %v7032, %v7033
    %v7035 = vsel %vm6109, %v6975, 0.0
    %v7036 = vadd.f32 %v7034, %v7035
    %v7037 = vsel %vm6109, %v6976, 0.0
    %v7038 = vadd.f32 %v7036, %v7037
    %v7039 = vsel %vm6109, %v6977, 0.0
    %v7040 = vadd.f32 %v7038, %v7039
    %v7041 = vsel %vm6109, %v6978, 0.0
    %v7042 = vadd.f32 %v7040, %v7041
    %v7043 = vsel %vm6109, %v6979, 0.0
    %v7044 = vadd.f32 %v7042, %v7043
    %v7045 = vsel %vm6109, %v6980, 0.0
    %v7046 = vadd.f32 %v7044, %v7045
    %v7047 = vsel %vm6109, %v6981, 0.0
    %v7048 = vadd.f32 %v7046, %v7047
    %v7049 = vsel %vm6109, %v6982, 0.0
    %v7050 = vadd.f32 %v7048, %v7049
    %v7051 = vsel %vm6109, %v6983, 0.0
    %v7052 = vadd.f32 %v7050, %v7051
    %v7053 = vsel %vm6109, %v6984, 0.0
    %v7054 = vadd.f32 %v7052, %v7053
    %v7055 = vsel %vm6109, %v6985, 0.0
    %v7056 = vadd.f32 %v7054, %v7055
    %7057 = vadd.xlane.f32.xlu0 %v7056
    %v7058 = vpop.xlane.xlu0 %7057
    %v7059 = vrot.slane %v7058, 4
    %v7060 = vadd.f32 %v7058, %v7059
    %v7061 = vrot.slane %v7060, 2
    %v7062 = vadd.f32 %v7060, %v7061
    %v7063 = vrot.slane %v7062, 1
    %v7064 = vadd.f32 %v7062, %v7063
    %s7065 = vtos %v7064
    %s7066 = scalar_lea.smem [#allocation6], 0
    %7067 = sst [smem:[%s7066]] %s7065
    // Predicated region
    $region50: #{tcr_lstm_forward.1} parent=1 // pred_check
      _
    $region51: #{tcr_lstm_forward.1} parent=1 // pred_check_branch
      %7069 = sbr.rel (0) target = $region53
    $region52: #{tcr_lstm_forward.1} parent=1 // pred_region
      %s7071 = ssub.s32 16, 16
      %7072 = vsyncadd [#allocation5], %s7071
      %7075 = dma.smem_to_hbm [#allocation4], 16, %s12, [#allocation5]
    $region53: #{tcr_lstm_forward.1} parent=1 // pred_fallthru
      _
    // Predicated region
    $region54: #{tcr_lstm_forward.1} parent=1 // pred_check
      _
    $region55: #{tcr_lstm_forward.1} parent=1 // pred_check_branch
      %7077 = sbr.rel (0) target = $region57
    $region56: #{tcr_lstm_forward.1} parent=1 // pred_region
      %s7079 = ssub.s32 16, 16
      %7080 = vsyncadd [#allocation7], %s7079
      %7083 = dma.smem_to_hbm [#allocation6], 16, %s13, [#allocation7]
    $region57: #{tcr_lstm_forward.1} parent=1 // pred_fallthru
      _
    // Predicated region
    $region58: #{tcr_lstm_forward.1} parent=1 // pred_check
      _
    $region59: #{tcr_lstm_forward.1} parent=1 // pred_check_branch
      %7085 = sbr.rel (0) target = $region61
    $region60: #{tcr_lstm_forward.1} parent=1 // pred_region
      %7086 = dma.done [#allocation5], 16
    $region61: #{tcr_lstm_forward.1} parent=1 // pred_fallthru
      _
    // Predicated region
    $region62: #{tcr_lstm_forward.1} parent=1 // pred_check
      _
    $region63: #{tcr_lstm_forward.1} parent=1 // pred_check_branch
      %7088 = sbr.rel (0) target = $region65
    $region64: #{tcr_lstm_forward.1} parent=1 // pred_region
      %7089 = dma.done [#allocation7], 16
    $region65: #{tcr_lstm_forward.1} parent=1 // pred_fallthru
      _
    %7090 = sfence
    %7091 = vsyncpa [#allocation5], 1
    %7092 = vsyncpa [#allocation7], 1

</llo_original>
